<compile_context>
chip_gen: v7x
topology: tpu7x:2x2x1
jax: 0.10.0
libtpu: 0.0.40
codegen_flags: <defaults>
</compile_context>

<pallas_src>
import jax
import jax.numpy as jnp
from jax.experimental import pallas as pl
from jax.experimental.pallas import tpu as pltpu

_LN_EPS = 1e-5            # torch.nn.LayerNorm default eps
_INV_SQRT2 = 0.7071067811865476
_VMEM_LIMIT = 32 * 1024 * 1024   # explicit scoped-VMEM limit (safe on v5e/v6e/v7x)


def _round_up(v, m):
    return -(-v // m) * m


def _layernorm(x, gamma, beta):
    # x: (TB, D) f32; gamma/beta: (1, D) f32.  Matches torch.nn.LayerNorm(dim).
    mu = jnp.mean(x, axis=-1, keepdims=True)
    var = jnp.mean((x - mu) ** 2, axis=-1, keepdims=True)
    return (x - mu) * jax.lax.rsqrt(var + _LN_EPS) * gamma + beta


def _gelu_exact(h):
    # exact (erf-based) GELU == torch.nn.GELU() default
    return 0.5 * h * (1.0 + jax.lax.erf(h * _INV_SQRT2))


def _make_fused_kernel(depths, num_patches):
    """One kernel for every branch: pos add + cls concat + depth x (PreNorm
    ExternalAttention, PreNorm FeedForward) per branch + cls + fc(flattened
    patch tokens) for the last branch."""
    k = num_patches
    n_tok = k + 1
    n_out = len(depths)
    _PER_BRANCH = 11   # cls, ln1_g, ln1_b, wk, wv, ln2_g, ln2_b, w1, b1, w2, b2

    def kernel(*refs):
        idx = 0
        x_ref = refs[idx]; idx += 1          # (k, TB, D)
        pos_ref = refs[idx]; idx += 1        # (k, 1, D)
        branch_refs = []
        for _ in range(n_out):
            branch_refs.append(refs[idx:idx + _PER_BRANCH])
            idx += _PER_BRANCH
        fcw_ref = refs[idx]; idx += 1        # (k, D, D)  (blocks of fc.weight.T)
        fcb_ref = refs[idx]; idx += 1        # (1, D)
        out_refs = refs[idx:idx + n_out]     # n_out x (TB, D)

        tb, d = out_refs[0].shape

        # pos embedding rows, loaded once per grid step and shared by every branch
        pos_f = [pos_ref[j].astype(jnp.float32) for j in range(k)]

        for i in range(n_out):
            (cls_ref, ln1g_ref, ln1b_ref, wk_ref, wv_ref,
             ln2g_ref, ln2b_ref, w1_ref, b1_ref, w2_ref, b2_ref) = branch_refs[i]

            # token blocks, each (TB, D) f32: block 0 = cls token, blocks 1..k = patches
            blk = [jnp.broadcast_to(cls_ref[...].astype(jnp.float32), (tb, d))]
            for j in range(k):
                blk.append(x_ref[j].astype(jnp.float32) + pos_f[j])

            for l in range(depths[i]):        # static unroll over the (small) depth
                g1 = ln1g_ref[l].astype(jnp.float32)     # (1, D)
                be1 = ln1b_ref[l].astype(jnp.float32)
                wk = wk_ref[l]                           # (D, S) bf16
                wv = wv_ref[l]                           # (S, D) bf16
                g2 = ln2g_ref[l].astype(jnp.float32)
                be2 = ln2b_ref[l].astype(jnp.float32)
                w1 = w1_ref[l]                           # (D, H) bf16
                bb1 = b1_ref[l].astype(jnp.float32)      # (1, H)
                w2 = w2_ref[l]                           # (H, D) bf16
                bb2 = b2_ref[l].astype(jnp.float32)      # (1, D)

                # ---- PreNorm + ExternalAttention ----
                logits = [jnp.dot(_layernorm(x, g1, be1).astype(wk.dtype), wk,
                                  preferred_element_type=jnp.float32)
                          for x in blk]                  # N x (TB, S)
                # torch Softmax(dim=1): over the token axis, per (sample, s)
                m = logits[0]
                for n in range(1, n_tok):
                    m = jnp.maximum(m, logits[n])
                e = [jnp.exp(a - m) for a in logits]
                denom = e[0]
                for n in range(1, n_tok):
                    denom = denom + e[n]
                inv_tok = pl.reciprocal(denom, approx=True)
                for n in range(n_tok):
                    p = e[n] * inv_tok                   # softmax over tokens
                    # attn = attn / attn.sum(dim=2, keepdim=True): renormalize over S
                    p = p * pl.reciprocal(jnp.sum(p, axis=-1, keepdims=True),
                                          approx=True)
                    blk[n] = blk[n] + jnp.dot(p.astype(wv.dtype), wv,
                                              preferred_element_type=jnp.float32)

                # ---- PreNorm + FeedForward (Dropout is identity in eval mode) ----
                for n in range(n_tok):
                    xn = _layernorm(blk[n], g2, be2)
                    h = jnp.dot(xn.astype(w1.dtype), w1,
                                preferred_element_type=jnp.float32) + bb1
                    h = _gelu_exact(h)
                    blk[n] = blk[n] + jnp.dot(h.astype(w2.dtype), w2,
                                              preferred_element_type=jnp.float32) + bb2

            if i == n_out - 1:
                # out = cls + Linear(dim*num_patches -> dim)(patch tokens flattened)
                out = blk[0] + fcb_ref[...].astype(jnp.float32)
                for j in range(k):
                    wj = fcw_ref[j]                      # (D, D) bf16 (W.T block token j)
                    out = out + jnp.dot(blk[j + 1].astype(wj.dtype), wj,
                                        preferred_element_type=jnp.float32)
                out_refs[i][...] = out.astype(out_refs[i].dtype)
            else:
                out_refs[i][...] = blk[0].astype(out_refs[i].dtype)

    return kernel


def _pick_tb(batch, k, d, s_max, h_mlp):
    """Samples per grid step.  Targets 256-row matmuls (a multiple of 128 too, so it
    matches both the v6e/v7x 256-wide and v5e 128-wide MXU), keeps the rough per-step
    VMEM footprint bounded, and prefers >=2 grid steps (v7x megacore) for big batches."""
    n_tok = k + 1
    b8 = _round_up(batch, 8)
    tb = min(256, b8)

    def footprint(t):
        io = 2 * (k * t * d + t * d) * 4                     # double-buffered in/out blocks
        act = 6 * n_tok * t * max(d, s_max, h_mlp) * 4       # rough live f32 temporaries
        return io + act

    while tb > 16 and footprint(tb) > 16 * 1024 * 1024:
        tb = _round_up(tb // 2, 8)
    if tb >= b8 and b8 >= 64:
        tb = _round_up(b8 // 2, 8)    # give both v7x TensorCores a grid step
    return max(8, tb)


def msfa_forward(feat_x, params):
    b, c, k, h, w = feat_x.shape
    batch = b * h * w
    branches = params['branches']
    n_out = len(branches)

    # (b, c, k, h, w) -> (k, b, h, w, c) -> (k, B, c): token-major layout so every
    # kernel block (k, TB, c) holds token-contiguous (TB, c) 2-D slabs.
    x_t = jnp.transpose(feat_x, (2, 0, 3, 4, 1)).reshape(k, batch, c)
    pos = params['pos_embedding'][0, :k][:, None, :]          # (k, 1, c), added in-kernel
    # TODO(synk): emb/attention/MLP Dropout layers are identity (inference mode only).

    s_max = max(br['wk'].shape[2] for br in branches)
    h_mlp = max(br['w1'].shape[2] for br in branches)
    tb = _pick_tb(batch, k, c, s_max, h_mlp)
    bp = _round_up(batch, tb)
    if bp != batch:
        # zero-padded samples are self-contained (per-sample softmax/LN), dropped below
        x_t = jnp.pad(x_t, ((0, 0), (0, bp - batch), (0, 0)))

    depths = tuple(br['wk'].shape[0] for br in branches)
    kernel = _make_fused_kernel(depths, k)

    inputs = [x_t, pos]
    in_specs = [pl.BlockSpec((k, tb, c), lambda g: (0, g, 0)),
                pl.BlockSpec(pos.shape, lambda g: (0, 0, 0))]
    names = ['ln1_g', 'ln1_b', 'wk', 'wv', 'ln2_g', 'ln2_b', 'w1', 'b1', 'w2', 'b2']
    for i in range(n_out):
        weight_list = [params['cls_tokens'][i]] + [branches[i][nm] for nm in names]
        for wgt in weight_list:
            inputs.append(wgt)
            # constant index map -> weights stay resident in VMEM across grid steps
            in_specs.append(pl.BlockSpec(wgt.shape, lambda g, nd=wgt.ndim: (0,) * nd))
    for wgt in (params['fc_w'], params['fc_b']):
        inputs.append(wgt)
        in_specs.append(pl.BlockSpec(wgt.shape, lambda g, nd=wgt.ndim: (0,) * nd))

    out_shapes = tuple(jax.ShapeDtypeStruct((bp, c), jnp.float32) for _ in range(n_out))
    out_specs = tuple(pl.BlockSpec((tb, c), lambda g: (g, 0)) for _ in range(n_out))

    outs = pl.pallas_call(
        kernel,
        out_shape=out_shapes,
        grid=(bp // tb,),
        in_specs=in_specs,
        out_specs=out_specs,
        compiler_params=pltpu.CompilerParams(
            dimension_semantics=("parallel",),
            vmem_limit_bytes=_VMEM_LIMIT),
    )(*inputs)

    # (B, c) -> (b, h, w, c) -> NCHW (b, c, h, w)
    return [jnp.transpose(o[:batch].reshape(b, h, w, c), (0, 3, 1, 2)) for o in outs]


def init_msfa_params(key, num_patches, dim, depthL, sL, mlp_dim):
    """Deterministic synthetic parameters matching the module's shapes.  Matmul
    weights are stored bf16 (MXU operands); LN params / biases stay f32."""
    n_out = len(depthL)
    cnt = [0]

    def nk():
        cnt[0] += 1
        return jax.random.fold_in(key, cnt[0])

    def randn(shape, std=1.0, dtype=jnp.float32):
        return (std * jax.random.normal(nk(), shape, jnp.float32)).astype(dtype)

    params = {
        'pos_embedding': randn((1, num_patches, dim)),
        'cls_tokens': [randn((1, dim)) for _ in range(n_out)],
        'branches': [],
    }
    for i in range(n_out):
        L, S = depthL[i], sL[i]
        params['branches'].append({
            'ln1_g': jnp.ones((L, 1, dim), jnp.float32),
            'ln1_b': jnp.zeros((L, 1, dim), jnp.float32),
            # ExternalAttention linears: normal(std=0.001), no bias (stored transposed)
            'wk': randn((L, dim, S), std=0.001, dtype=jnp.bfloat16),
            'wv': randn((L, S, dim), std=0.001, dtype=jnp.bfloat16),
            'ln2_g': jnp.ones((L, 1, dim), jnp.float32),
            'ln2_b': jnp.zeros((L, 1, dim), jnp.float32),
            'w1': randn((L, dim, mlp_dim), std=0.05, dtype=jnp.bfloat16),
            'b1': jnp.zeros((L, 1, mlp_dim), jnp.float32),
            'w2': randn((L, mlp_dim, dim), std=0.05, dtype=jnp.bfloat16),
            'b2': jnp.zeros((L, 1, dim), jnp.float32),
        })
    # fc.weight.T (dim*num_patches, dim) stored as per-token (num_patches, dim, dim) blocks
    params['fc_w'] = randn((num_patches, dim, dim), std=0.05, dtype=jnp.bfloat16)
    params['fc_b'] = jnp.zeros((1, dim), jnp.float32)
    return params


if __name__ == "__main__":
    # Small shapes consistent with the forward: feat_x (b, c=dim, k=num_patches, h, w)
    b, dim, k, hgt, wid = 2, 16, 4, 4, 4
    depthL, sL, mlp_dim = [1, 2], [8, 16], 32

    key = jax.random.PRNGKey(0)
    kx, kp = jax.random.split(key)
    feat_x = jax.random.normal(kx, (b, dim, k, hgt, wid), jnp.float32)
    params = init_msfa_params(kp, k, dim, depthL, sL, mlp_dim)

    fwd = jax.jit(msfa_forward)
    outs = jax.block_until_ready(fwd(feat_x, params))
    assert len(outs) == len(depthL)
    for o in outs:
        assert o.shape == (b, dim, hgt, wid), o.shape
        assert bool(jnp.all(jnp.isfinite(o)))
    print("KERNEL_OK")
</pallas_src>

<mosaic_0001>
module attributes {stable_mosaic.version = 11 : i64} {
  func.func @kernel(%arg0: i32, %arg1: memref<4x32x16xf32, #tpu.memory_space<vmem>>, %arg2: memref<4x1x16xf32, #tpu.memory_space<vmem>>, %arg3: memref<1x16xf32, #tpu.memory_space<vmem>>, %arg4: memref<1x1x16xf32, #tpu.memory_space<vmem>>, %arg5: memref<1x1x16xf32, #tpu.memory_space<vmem>>, %arg6: memref<1x16x8xbf16, #tpu.memory_space<vmem>>, %arg7: memref<1x8x16xbf16, #tpu.memory_space<vmem>>, %arg8: memref<1x1x16xf32, #tpu.memory_space<vmem>>, %arg9: memref<1x1x16xf32, #tpu.memory_space<vmem>>, %arg10: memref<1x16x32xbf16, #tpu.memory_space<vmem>>, %arg11: memref<1x1x32xf32, #tpu.memory_space<vmem>>, %arg12: memref<1x32x16xbf16, #tpu.memory_space<vmem>>, %arg13: memref<1x1x16xf32, #tpu.memory_space<vmem>>, %arg14: memref<1x16xf32, #tpu.memory_space<vmem>>, %arg15: memref<2x1x16xf32, #tpu.memory_space<vmem>>, %arg16: memref<2x1x16xf32, #tpu.memory_space<vmem>>, %arg17: memref<2x16x16xbf16, #tpu.memory_space<vmem>>, %arg18: memref<2x16x16xbf16, #tpu.memory_space<vmem>>, %arg19: memref<2x1x16xf32, #tpu.memory_space<vmem>>, %arg20: memref<2x1x16xf32, #tpu.memory_space<vmem>>, %arg21: memref<2x16x32xbf16, #tpu.memory_space<vmem>>, %arg22: memref<2x1x32xf32, #tpu.memory_space<vmem>>, %arg23: memref<2x32x16xbf16, #tpu.memory_space<vmem>>, %arg24: memref<2x1x16xf32, #tpu.memory_space<vmem>>, %arg25: memref<4x16x16xbf16, #tpu.memory_space<vmem>>, %arg26: memref<1x16xf32, #tpu.memory_space<vmem>>, %arg27: memref<32x16xf32, #tpu.memory_space<vmem>>, %arg28: memref<32x16xf32, #tpu.memory_space<vmem>>) attributes {dimension_semantics = [#tpu.dimension_semantics<parallel>], iteration_bounds = array<i64: 1>, scalar_prefetch = 0 : i64, scratch_operands = 0 : i64, tpu.core_type = #tpu.core_type<tc>, window_params = [{transform_indices = @transform_0, window_bounds = array<i64: 4, 32, 16>}, {pipeline_mode = #tpu.pipeline_mode<synchronous>, transform_indices = @transform_1, window_bounds = array<i64: 4, 1, 16>}, {pipeline_mode = #tpu.pipeline_mode<synchronous>, transform_indices = @transform_2, window_bounds = array<i64: 1, 16>}, {pipeline_mode = #tpu.pipeline_mode<synchronous>, transform_indices = @transform_3, window_bounds = array<i64: 1, 1, 16>}, {pipeline_mode = #tpu.pipeline_mode<synchronous>, transform_indices = @transform_4, window_bounds = array<i64: 1, 1, 16>}, {pipeline_mode = #tpu.pipeline_mode<synchronous>, transform_indices = @transform_5, window_bounds = array<i64: 1, 16, 8>}, {pipeline_mode = #tpu.pipeline_mode<synchronous>, transform_indices = @transform_6, window_bounds = array<i64: 1, 8, 16>}, {pipeline_mode = #tpu.pipeline_mode<synchronous>, transform_indices = @transform_7, window_bounds = array<i64: 1, 1, 16>}, {pipeline_mode = #tpu.pipeline_mode<synchronous>, transform_indices = @transform_8, window_bounds = array<i64: 1, 1, 16>}, {pipeline_mode = #tpu.pipeline_mode<synchronous>, transform_indices = @transform_9, window_bounds = array<i64: 1, 16, 32>}, {pipeline_mode = #tpu.pipeline_mode<synchronous>, transform_indices = @transform_10, window_bounds = array<i64: 1, 1, 32>}, {pipeline_mode = #tpu.pipeline_mode<synchronous>, transform_indices = @transform_11, window_bounds = array<i64: 1, 32, 16>}, {pipeline_mode = #tpu.pipeline_mode<synchronous>, transform_indices = @transform_12, window_bounds = array<i64: 1, 1, 16>}, {pipeline_mode = #tpu.pipeline_mode<synchronous>, transform_indices = @transform_13, window_bounds = array<i64: 1, 16>}, {pipeline_mode = #tpu.pipeline_mode<synchronous>, transform_indices = @transform_14, window_bounds = array<i64: 2, 1, 16>}, {pipeline_mode = #tpu.pipeline_mode<synchronous>, transform_indices = @transform_15, window_bounds = array<i64: 2, 1, 16>}, {pipeline_mode = #tpu.pipeline_mode<synchronous>, transform_indices = @transform_16, window_bounds = array<i64: 2, 16, 16>}, {pipeline_mode = #tpu.pipeline_mode<synchronous>, transform_indices = @transform_17, window_bounds = array<i64: 2, 16, 16>}, {pipeline_mode = #tpu.pipeline_mode<synchronous>, transform_indices = @transform_18, window_bounds = array<i64: 2, 1, 16>}, {pipeline_mode = #tpu.pipeline_mode<synchronous>, transform_indices = @transform_19, window_bounds = array<i64: 2, 1, 16>}, {pipeline_mode = #tpu.pipeline_mode<synchronous>, transform_indices = @transform_20, window_bounds = array<i64: 2, 16, 32>}, {pipeline_mode = #tpu.pipeline_mode<synchronous>, transform_indices = @transform_21, window_bounds = array<i64: 2, 1, 32>}, {pipeline_mode = #tpu.pipeline_mode<synchronous>, transform_indices = @transform_22, window_bounds = array<i64: 2, 32, 16>}, {pipeline_mode = #tpu.pipeline_mode<synchronous>, transform_indices = @transform_23, window_bounds = array<i64: 2, 1, 16>}, {pipeline_mode = #tpu.pipeline_mode<synchronous>, transform_indices = @transform_24, window_bounds = array<i64: 4, 16, 16>}, {pipeline_mode = #tpu.pipeline_mode<synchronous>, transform_indices = @transform_25, window_bounds = array<i64: 1, 16>}, {transform_indices = @transform_26, window_bounds = array<i64: 32, 16>}, {transform_indices = @transform_27, window_bounds = array<i64: 32, 16>}]} {
    %c0 = arith.constant 0 : index
    %c0_0 = arith.constant 0 : index
    %c0_1 = arith.constant 0 : index
    %0 = vector.load %arg2[%c0, %c0_0, %c0_1] : memref<4x1x16xf32, #tpu.memory_space<vmem>>, vector<1x1x16xf32>
    %1 = vector.shape_cast %0 : vector<1x1x16xf32> to vector<1x16xf32>
    %c1 = arith.constant 1 : index
    %c0_2 = arith.constant 0 : index
    %c0_3 = arith.constant 0 : index
    %2 = vector.load %arg2[%c1, %c0_2, %c0_3] : memref<4x1x16xf32, #tpu.memory_space<vmem>>, vector<1x1x16xf32>
    %3 = vector.shape_cast %2 : vector<1x1x16xf32> to vector<1x16xf32>
    %c2 = arith.constant 2 : index
    %c0_4 = arith.constant 0 : index
    %c0_5 = arith.constant 0 : index
    %4 = vector.load %arg2[%c2, %c0_4, %c0_5] : memref<4x1x16xf32, #tpu.memory_space<vmem>>, vector<1x1x16xf32>
    %5 = vector.shape_cast %4 : vector<1x1x16xf32> to vector<1x16xf32>
    %c3 = arith.constant 3 : index
    %c0_6 = arith.constant 0 : index
    %c0_7 = arith.constant 0 : index
    %6 = vector.load %arg2[%c3, %c0_6, %c0_7] : memref<4x1x16xf32, #tpu.memory_space<vmem>>, vector<1x1x16xf32>
    %7 = vector.shape_cast %6 : vector<1x1x16xf32> to vector<1x16xf32>
    %c0_8 = arith.constant 0 : index
    %c0_9 = arith.constant 0 : index
    %8 = vector.load %arg3[%c0_8, %c0_9] : memref<1x16xf32, #tpu.memory_space<vmem>>, vector<1x16xf32>
    %9 = vector.shape_cast %8 : vector<1x16xf32> to vector<1x16xf32>
    %10 = vector.broadcast %9 : vector<1x16xf32> to vector<32x16xf32>
    %c0_10 = arith.constant 0 : index
    %c0_11 = arith.constant 0 : index
    %c0_12 = arith.constant 0 : index
    %11 = vector.load %arg1[%c0_10, %c0_11, %c0_12] : memref<4x32x16xf32, #tpu.memory_space<vmem>>, vector<1x32x16xf32>
    %12 = vector.shape_cast %11 : vector<1x32x16xf32> to vector<32x16xf32>
    %13 = vector.broadcast %1 : vector<1x16xf32> to vector<32x16xf32>
    %14 = arith.addf %12, %13 : vector<32x16xf32>
    %c1_13 = arith.constant 1 : index
    %c0_14 = arith.constant 0 : index
    %c0_15 = arith.constant 0 : index
    %15 = vector.load %arg1[%c1_13, %c0_14, %c0_15] : memref<4x32x16xf32, #tpu.memory_space<vmem>>, vector<1x32x16xf32>
    %16 = vector.shape_cast %15 : vector<1x32x16xf32> to vector<32x16xf32>
    %17 = vector.broadcast %3 : vector<1x16xf32> to vector<32x16xf32>
    %18 = arith.addf %16, %17 : vector<32x16xf32>
    %c2_16 = arith.constant 2 : index
    %c0_17 = arith.constant 0 : index
    %c0_18 = arith.constant 0 : index
    %19 = vector.load %arg1[%c2_16, %c0_17, %c0_18] : memref<4x32x16xf32, #tpu.memory_space<vmem>>, vector<1x32x16xf32>
    %20 = vector.shape_cast %19 : vector<1x32x16xf32> to vector<32x16xf32>
    %21 = vector.broadcast %5 : vector<1x16xf32> to vector<32x16xf32>
    %22 = arith.addf %20, %21 : vector<32x16xf32>
    %c3_19 = arith.constant 3 : index
    %c0_20 = arith.constant 0 : index
    %c0_21 = arith.constant 0 : index
    %23 = vector.load %arg1[%c3_19, %c0_20, %c0_21] : memref<4x32x16xf32, #tpu.memory_space<vmem>>, vector<1x32x16xf32>
    %24 = vector.shape_cast %23 : vector<1x32x16xf32> to vector<32x16xf32>
    %25 = vector.broadcast %7 : vector<1x16xf32> to vector<32x16xf32>
    %26 = arith.addf %24, %25 : vector<32x16xf32>
    %c0_22 = arith.constant 0 : index
    %c0_23 = arith.constant 0 : index
    %c0_24 = arith.constant 0 : index
    %27 = vector.load %arg4[%c0_22, %c0_23, %c0_24] : memref<1x1x16xf32, #tpu.memory_space<vmem>>, vector<1x1x16xf32>
    %28 = vector.shape_cast %27 : vector<1x1x16xf32> to vector<1x16xf32>
    %c0_25 = arith.constant 0 : index
    %c0_26 = arith.constant 0 : index
    %c0_27 = arith.constant 0 : index
    %29 = vector.load %arg5[%c0_25, %c0_26, %c0_27] : memref<1x1x16xf32, #tpu.memory_space<vmem>>, vector<1x1x16xf32>
    %30 = vector.shape_cast %29 : vector<1x1x16xf32> to vector<1x16xf32>
    %c0_28 = arith.constant 0 : index
    %c0_29 = arith.constant 0 : index
    %c0_30 = arith.constant 0 : index
    %31 = vector.load %arg6[%c0_28, %c0_29, %c0_30] : memref<1x16x8xbf16, #tpu.memory_space<vmem>>, vector<1x16x8xbf16>
    %32 = vector.shape_cast %31 : vector<1x16x8xbf16> to vector<16x8xbf16>
    %c0_31 = arith.constant 0 : index
    %c0_32 = arith.constant 0 : index
    %c0_33 = arith.constant 0 : index
    %33 = vector.load %arg7[%c0_31, %c0_32, %c0_33] : memref<1x8x16xbf16, #tpu.memory_space<vmem>>, vector<1x8x16xbf16>
    %34 = vector.shape_cast %33 : vector<1x8x16xbf16> to vector<8x16xbf16>
    %c0_34 = arith.constant 0 : index
    %c0_35 = arith.constant 0 : index
    %c0_36 = arith.constant 0 : index
    %35 = vector.load %arg8[%c0_34, %c0_35, %c0_36] : memref<1x1x16xf32, #tpu.memory_space<vmem>>, vector<1x1x16xf32>
    %36 = vector.shape_cast %35 : vector<1x1x16xf32> to vector<1x16xf32>
    %c0_37 = arith.constant 0 : index
    %c0_38 = arith.constant 0 : index
    %c0_39 = arith.constant 0 : index
    %37 = vector.load %arg9[%c0_37, %c0_38, %c0_39] : memref<1x1x16xf32, #tpu.memory_space<vmem>>, vector<1x1x16xf32>
    %38 = vector.shape_cast %37 : vector<1x1x16xf32> to vector<1x16xf32>
    %c0_40 = arith.constant 0 : index
    %c0_41 = arith.constant 0 : index
    %c0_42 = arith.constant 0 : index
    %39 = vector.load %arg10[%c0_40, %c0_41, %c0_42] : memref<1x16x32xbf16, #tpu.memory_space<vmem>>, vector<1x16x32xbf16>
    %40 = vector.shape_cast %39 : vector<1x16x32xbf16> to vector<16x32xbf16>
    %c0_43 = arith.constant 0 : index
    %c0_44 = arith.constant 0 : index
    %c0_45 = arith.constant 0 : index
    %41 = vector.load %arg11[%c0_43, %c0_44, %c0_45] : memref<1x1x32xf32, #tpu.memory_space<vmem>>, vector<1x1x32xf32>
    %42 = vector.shape_cast %41 : vector<1x1x32xf32> to vector<1x32xf32>
    %c0_46 = arith.constant 0 : index
    %c0_47 = arith.constant 0 : index
    %c0_48 = arith.constant 0 : index
    %43 = vector.load %arg12[%c0_46, %c0_47, %c0_48] : memref<1x32x16xbf16, #tpu.memory_space<vmem>>, vector<1x32x16xbf16>
    %44 = vector.shape_cast %43 : vector<1x32x16xbf16> to vector<32x16xbf16>
    %c0_49 = arith.constant 0 : index
    %c0_50 = arith.constant 0 : index
    %c0_51 = arith.constant 0 : index
    %45 = vector.load %arg13[%c0_49, %c0_50, %c0_51] : memref<1x1x16xf32, #tpu.memory_space<vmem>>, vector<1x1x16xf32>
    %46 = vector.shape_cast %45 : vector<1x1x16xf32> to vector<1x16xf32>
    %cst = arith.constant dense<0.000000e+00> : vector<32xf32>
    %47 = vector.multi_reduction <add>, %10, %cst [1] : vector<32x16xf32> to vector<32xf32>
    %48 = vector.shape_cast %47 : vector<32xf32> to vector<32x1xf32>
    %cst_52 = arith.constant 1.600000e+01 : f32
    %49 = vector.broadcast %cst_52 : f32 to vector<32x1xf32>
    %50 = arith.divf %48, %49 : vector<32x1xf32>
    %51 = vector.broadcast %50 : vector<32x1xf32> to vector<32x16xf32>
    %52 = arith.subf %10, %51 : vector<32x16xf32>
    %53 = arith.mulf %52, %52 : vector<32x16xf32>
    %cst_53 = arith.constant dense<0.000000e+00> : vector<32xf32>
    %54 = vector.multi_reduction <add>, %53, %cst_53 [1] : vector<32x16xf32> to vector<32xf32>
    %55 = vector.shape_cast %54 : vector<32xf32> to vector<32x1xf32>
    %cst_54 = arith.constant 1.600000e+01 : f32
    %56 = vector.broadcast %cst_54 : f32 to vector<32x1xf32>
    %57 = arith.divf %55, %56 : vector<32x1xf32>
    %58 = vector.broadcast %50 : vector<32x1xf32> to vector<32x16xf32>
    %59 = arith.subf %10, %58 : vector<32x16xf32>
    %cst_55 = arith.constant 9.99999974E-6 : f32
    %60 = vector.broadcast %cst_55 : f32 to vector<32x1xf32>
    %61 = arith.addf %57, %60 : vector<32x1xf32>
    %62 = math.rsqrt %61 : vector<32x1xf32>
    %63 = vector.broadcast %62 : vector<32x1xf32> to vector<32x16xf32>
    %64 = arith.mulf %59, %63 : vector<32x16xf32>
    %65 = vector.broadcast %28 : vector<1x16xf32> to vector<32x16xf32>
    %66 = arith.mulf %64, %65 : vector<32x16xf32>
    %67 = vector.broadcast %30 : vector<1x16xf32> to vector<32x16xf32>
    %68 = arith.addf %66, %67 : vector<32x16xf32>
    %69 = arith.truncf %68 : vector<32x16xf32> to vector<32x16xbf16>
    %cst_56 = arith.constant dense<0.000000e+00> : vector<32x8xf32>
    %70 = tpu.matmul %69, %32, %cst_56 {dimension_numbers = #tpu.dot_dimension_numbers<[1], [0], [0], [1], [0, 0, 1, 1], [], []>} : vector<32x16xbf16>, vector<16x8xbf16>, vector<32x8xf32> -> vector<32x8xf32>
    %cst_57 = arith.constant dense<0.000000e+00> : vector<32xf32>
    %71 = vector.multi_reduction <add>, %14, %cst_57 [1] : vector<32x16xf32> to vector<32xf32>
    %72 = vector.shape_cast %71 : vector<32xf32> to vector<32x1xf32>
    %cst_58 = arith.constant 1.600000e+01 : f32
    %73 = vector.broadcast %cst_58 : f32 to vector<32x1xf32>
    %74 = arith.divf %72, %73 : vector<32x1xf32>
    %75 = vector.broadcast %74 : vector<32x1xf32> to vector<32x16xf32>
    %76 = arith.subf %14, %75 : vector<32x16xf32>
    %77 = arith.mulf %76, %76 : vector<32x16xf32>
    %cst_59 = arith.constant dense<0.000000e+00> : vector<32xf32>
    %78 = vector.multi_reduction <add>, %77, %cst_59 [1] : vector<32x16xf32> to vector<32xf32>
    %79 = vector.shape_cast %78 : vector<32xf32> to vector<32x1xf32>
    %cst_60 = arith.constant 1.600000e+01 : f32
    %80 = vector.broadcast %cst_60 : f32 to vector<32x1xf32>
    %81 = arith.divf %79, %80 : vector<32x1xf32>
    %82 = vector.broadcast %74 : vector<32x1xf32> to vector<32x16xf32>
    %83 = arith.subf %14, %82 : vector<32x16xf32>
    %cst_61 = arith.constant 9.99999974E-6 : f32
    %84 = vector.broadcast %cst_61 : f32 to vector<32x1xf32>
    %85 = arith.addf %81, %84 : vector<32x1xf32>
    %86 = math.rsqrt %85 : vector<32x1xf32>
    %87 = vector.broadcast %86 : vector<32x1xf32> to vector<32x16xf32>
    %88 = arith.mulf %83, %87 : vector<32x16xf32>
    %89 = vector.broadcast %28 : vector<1x16xf32> to vector<32x16xf32>
    %90 = arith.mulf %88, %89 : vector<32x16xf32>
    %91 = vector.broadcast %30 : vector<1x16xf32> to vector<32x16xf32>
    %92 = arith.addf %90, %91 : vector<32x16xf32>
    %93 = arith.truncf %92 : vector<32x16xf32> to vector<32x16xbf16>
    %cst_62 = arith.constant dense<0.000000e+00> : vector<32x8xf32>
    %94 = tpu.matmul %93, %32, %cst_62 {dimension_numbers = #tpu.dot_dimension_numbers<[1], [0], [0], [1], [0, 0, 1, 1], [], []>} : vector<32x16xbf16>, vector<16x8xbf16>, vector<32x8xf32> -> vector<32x8xf32>
    %cst_63 = arith.constant dense<0.000000e+00> : vector<32xf32>
    %95 = vector.multi_reduction <add>, %18, %cst_63 [1] : vector<32x16xf32> to vector<32xf32>
    %96 = vector.shape_cast %95 : vector<32xf32> to vector<32x1xf32>
    %cst_64 = arith.constant 1.600000e+01 : f32
    %97 = vector.broadcast %cst_64 : f32 to vector<32x1xf32>
    %98 = arith.divf %96, %97 : vector<32x1xf32>
    %99 = vector.broadcast %98 : vector<32x1xf32> to vector<32x16xf32>
    %100 = arith.subf %18, %99 : vector<32x16xf32>
    %101 = arith.mulf %100, %100 : vector<32x16xf32>
    %cst_65 = arith.constant dense<0.000000e+00> : vector<32xf32>
    %102 = vector.multi_reduction <add>, %101, %cst_65 [1] : vector<32x16xf32> to vector<32xf32>
    %103 = vector.shape_cast %102 : vector<32xf32> to vector<32x1xf32>
    %cst_66 = arith.constant 1.600000e+01 : f32
    %104 = vector.broadcast %cst_66 : f32 to vector<32x1xf32>
    %105 = arith.divf %103, %104 : vector<32x1xf32>
    %106 = vector.broadcast %98 : vector<32x1xf32> to vector<32x16xf32>
    %107 = arith.subf %18, %106 : vector<32x16xf32>
    %cst_67 = arith.constant 9.99999974E-6 : f32
    %108 = vector.broadcast %cst_67 : f32 to vector<32x1xf32>
    %109 = arith.addf %105, %108 : vector<32x1xf32>
    %110 = math.rsqrt %109 : vector<32x1xf32>
    %111 = vector.broadcast %110 : vector<32x1xf32> to vector<32x16xf32>
    %112 = arith.mulf %107, %111 : vector<32x16xf32>
    %113 = vector.broadcast %28 : vector<1x16xf32> to vector<32x16xf32>
    %114 = arith.mulf %112, %113 : vector<32x16xf32>
    %115 = vector.broadcast %30 : vector<1x16xf32> to vector<32x16xf32>
    %116 = arith.addf %114, %115 : vector<32x16xf32>
    %117 = arith.truncf %116 : vector<32x16xf32> to vector<32x16xbf16>
    %cst_68 = arith.constant dense<0.000000e+00> : vector<32x8xf32>
    %118 = tpu.matmul %117, %32, %cst_68 {dimension_numbers = #tpu.dot_dimension_numbers<[1], [0], [0], [1], [0, 0, 1, 1], [], []>} : vector<32x16xbf16>, vector<16x8xbf16>, vector<32x8xf32> -> vector<32x8xf32>
    %cst_69 = arith.constant dense<0.000000e+00> : vector<32xf32>
    %119 = vector.multi_reduction <add>, %22, %cst_69 [1] : vector<32x16xf32> to vector<32xf32>
    %120 = vector.shape_cast %119 : vector<32xf32> to vector<32x1xf32>
    %cst_70 = arith.constant 1.600000e+01 : f32
    %121 = vector.broadcast %cst_70 : f32 to vector<32x1xf32>
    %122 = arith.divf %120, %121 : vector<32x1xf32>
    %123 = vector.broadcast %122 : vector<32x1xf32> to vector<32x16xf32>
    %124 = arith.subf %22, %123 : vector<32x16xf32>
    %125 = arith.mulf %124, %124 : vector<32x16xf32>
    %cst_71 = arith.constant dense<0.000000e+00> : vector<32xf32>
    %126 = vector.multi_reduction <add>, %125, %cst_71 [1] : vector<32x16xf32> to vector<32xf32>
    %127 = vector.shape_cast %126 : vector<32xf32> to vector<32x1xf32>
    %cst_72 = arith.constant 1.600000e+01 : f32
    %128 = vector.broadcast %cst_72 : f32 to vector<32x1xf32>
    %129 = arith.divf %127, %128 : vector<32x1xf32>
    %130 = vector.broadcast %122 : vector<32x1xf32> to vector<32x16xf32>
    %131 = arith.subf %22, %130 : vector<32x16xf32>
    %cst_73 = arith.constant 9.99999974E-6 : f32
    %132 = vector.broadcast %cst_73 : f32 to vector<32x1xf32>
    %133 = arith.addf %129, %132 : vector<32x1xf32>
    %134 = math.rsqrt %133 : vector<32x1xf32>
    %135 = vector.broadcast %134 : vector<32x1xf32> to vector<32x16xf32>
    %136 = arith.mulf %131, %135 : vector<32x16xf32>
    %137 = vector.broadcast %28 : vector<1x16xf32> to vector<32x16xf32>
    %138 = arith.mulf %136, %137 : vector<32x16xf32>
    %139 = vector.broadcast %30 : vector<1x16xf32> to vector<32x16xf32>
    %140 = arith.addf %138, %139 : vector<32x16xf32>
    %141 = arith.truncf %140 : vector<32x16xf32> to vector<32x16xbf16>
    %cst_74 = arith.constant dense<0.000000e+00> : vector<32x8xf32>
    %142 = tpu.matmul %141, %32, %cst_74 {dimension_numbers = #tpu.dot_dimension_numbers<[1], [0], [0], [1], [0, 0, 1, 1], [], []>} : vector<32x16xbf16>, vector<16x8xbf16>, vector<32x8xf32> -> vector<32x8xf32>
    %cst_75 = arith.constant dense<0.000000e+00> : vector<32xf32>
    %143 = vector.multi_reduction <add>, %26, %cst_75 [1] : vector<32x16xf32> to vector<32xf32>
    %144 = vector.shape_cast %143 : vector<32xf32> to vector<32x1xf32>
    %cst_76 = arith.constant 1.600000e+01 : f32
    %145 = vector.broadcast %cst_76 : f32 to vector<32x1xf32>
    %146 = arith.divf %144, %145 : vector<32x1xf32>
    %147 = vector.broadcast %146 : vector<32x1xf32> to vector<32x16xf32>
    %148 = arith.subf %26, %147 : vector<32x16xf32>
    %149 = arith.mulf %148, %148 : vector<32x16xf32>
    %cst_77 = arith.constant dense<0.000000e+00> : vector<32xf32>
    %150 = vector.multi_reduction <add>, %149, %cst_77 [1] : vector<32x16xf32> to vector<32xf32>
    %151 = vector.shape_cast %150 : vector<32xf32> to vector<32x1xf32>
    %cst_78 = arith.constant 1.600000e+01 : f32
    %152 = vector.broadcast %cst_78 : f32 to vector<32x1xf32>
    %153 = arith.divf %151, %152 : vector<32x1xf32>
    %154 = vector.broadcast %146 : vector<32x1xf32> to vector<32x16xf32>
    %155 = arith.subf %26, %154 : vector<32x16xf32>
    %cst_79 = arith.constant 9.99999974E-6 : f32
    %156 = vector.broadcast %cst_79 : f32 to vector<32x1xf32>
    %157 = arith.addf %153, %156 : vector<32x1xf32>
    %158 = math.rsqrt %157 : vector<32x1xf32>
    %159 = vector.broadcast %158 : vector<32x1xf32> to vector<32x16xf32>
    %160 = arith.mulf %155, %159 : vector<32x16xf32>
    %161 = vector.broadcast %28 : vector<1x16xf32> to vector<32x16xf32>
    %162 = arith.mulf %160, %161 : vector<32x16xf32>
    %163 = vector.broadcast %30 : vector<1x16xf32> to vector<32x16xf32>
    %164 = arith.addf %162, %163 : vector<32x16xf32>
    %165 = arith.truncf %164 : vector<32x16xf32> to vector<32x16xbf16>
    %cst_80 = arith.constant dense<0.000000e+00> : vector<32x8xf32>
    %166 = tpu.matmul %165, %32, %cst_80 {dimension_numbers = #tpu.dot_dimension_numbers<[1], [0], [0], [1], [0, 0, 1, 1], [], []>} : vector<32x16xbf16>, vector<16x8xbf16>, vector<32x8xf32> -> vector<32x8xf32>
    %167 = arith.maximumf %70, %94 : vector<32x8xf32>
    %168 = arith.maximumf %167, %118 : vector<32x8xf32>
    %169 = arith.maximumf %168, %142 : vector<32x8xf32>
    %170 = arith.maximumf %169, %166 : vector<32x8xf32>
    %171 = arith.subf %70, %170 : vector<32x8xf32>
    %172 = math.exp %171 : vector<32x8xf32>
    %173 = arith.subf %94, %170 : vector<32x8xf32>
    %174 = math.exp %173 : vector<32x8xf32>
    %175 = arith.subf %118, %170 : vector<32x8xf32>
    %176 = math.exp %175 : vector<32x8xf32>
    %177 = arith.subf %142, %170 : vector<32x8xf32>
    %178 = math.exp %177 : vector<32x8xf32>
    %179 = arith.subf %166, %170 : vector<32x8xf32>
    %180 = math.exp %179 : vector<32x8xf32>
    %181 = arith.addf %172, %174 : vector<32x8xf32>
    %182 = arith.addf %181, %176 : vector<32x8xf32>
    %183 = arith.addf %182, %178 : vector<32x8xf32>
    %184 = arith.addf %183, %180 : vector<32x8xf32>
    %185 = tpu.reciprocal %184 {approx = true} : vector<32x8xf32> -> vector<32x8xf32>
    %186 = arith.mulf %172, %185 : vector<32x8xf32>
    %cst_81 = arith.constant dense<0.000000e+00> : vector<32xf32>
    %187 = vector.multi_reduction <add>, %186, %cst_81 [1] : vector<32x8xf32> to vector<32xf32>
    %188 = vector.shape_cast %187 : vector<32xf32> to vector<32x1xf32>
    %189 = tpu.reciprocal %188 {approx = true} : vector<32x1xf32> -> vector<32x1xf32>
    %190 = vector.broadcast %189 : vector<32x1xf32> to vector<32x8xf32>
    %191 = arith.mulf %186, %190 : vector<32x8xf32>
    %192 = arith.truncf %191 : vector<32x8xf32> to vector<32x8xbf16>
    %cst_82 = arith.constant dense<0.000000e+00> : vector<32x16xf32>
    %193 = tpu.matmul %192, %34, %cst_82 {dimension_numbers = #tpu.dot_dimension_numbers<[1], [0], [0], [1], [0, 0, 1, 1], [], []>} : vector<32x8xbf16>, vector<8x16xbf16>, vector<32x16xf32> -> vector<32x16xf32>
    %194 = arith.addf %10, %193 : vector<32x16xf32>
    %cst_83 = arith.constant dense<0.000000e+00> : vector<32xf32>
    %195 = vector.multi_reduction <add>, %194, %cst_83 [1] : vector<32x16xf32> to vector<32xf32>
    %196 = vector.shape_cast %195 : vector<32xf32> to vector<32x1xf32>
    %cst_84 = arith.constant 1.600000e+01 : f32
    %197 = vector.broadcast %cst_84 : f32 to vector<32x1xf32>
    %198 = arith.divf %196, %197 : vector<32x1xf32>
    %199 = vector.broadcast %198 : vector<32x1xf32> to vector<32x16xf32>
    %200 = arith.subf %194, %199 : vector<32x16xf32>
    %201 = arith.mulf %200, %200 : vector<32x16xf32>
    %cst_85 = arith.constant dense<0.000000e+00> : vector<32xf32>
    %202 = vector.multi_reduction <add>, %201, %cst_85 [1] : vector<32x16xf32> to vector<32xf32>
    %203 = vector.shape_cast %202 : vector<32xf32> to vector<32x1xf32>
    %cst_86 = arith.constant 1.600000e+01 : f32
    %204 = vector.broadcast %cst_86 : f32 to vector<32x1xf32>
    %205 = arith.divf %203, %204 : vector<32x1xf32>
    %206 = vector.broadcast %198 : vector<32x1xf32> to vector<32x16xf32>
    %207 = arith.subf %194, %206 : vector<32x16xf32>
    %cst_87 = arith.constant 9.99999974E-6 : f32
    %208 = vector.broadcast %cst_87 : f32 to vector<32x1xf32>
    %209 = arith.addf %205, %208 : vector<32x1xf32>
    %210 = math.rsqrt %209 : vector<32x1xf32>
    %211 = vector.broadcast %210 : vector<32x1xf32> to vector<32x16xf32>
    %212 = arith.mulf %207, %211 : vector<32x16xf32>
    %213 = vector.broadcast %36 : vector<1x16xf32> to vector<32x16xf32>
    %214 = arith.mulf %212, %213 : vector<32x16xf32>
    %215 = vector.broadcast %38 : vector<1x16xf32> to vector<32x16xf32>
    %216 = arith.addf %214, %215 : vector<32x16xf32>
    %217 = arith.truncf %216 : vector<32x16xf32> to vector<32x16xbf16>
    %cst_88 = arith.constant dense<0.000000e+00> : vector<32x32xf32>
    %218 = tpu.matmul %217, %40, %cst_88 {dimension_numbers = #tpu.dot_dimension_numbers<[1], [0], [0], [1], [0, 0, 1, 1], [], []>} : vector<32x16xbf16>, vector<16x32xbf16>, vector<32x32xf32> -> vector<32x32xf32>
    %219 = vector.broadcast %42 : vector<1x32xf32> to vector<32x32xf32>
    %220 = arith.addf %218, %219 : vector<32x32xf32>
    %cst_89 = arith.constant 5.000000e-01 : f32
    %221 = vector.broadcast %cst_89 : f32 to vector<32x32xf32>
    %222 = arith.mulf %221, %220 : vector<32x32xf32>
    %cst_90 = arith.constant 0.707106769 : f32
    %223 = vector.broadcast %cst_90 : f32 to vector<32x32xf32>
    %224 = arith.mulf %220, %223 : vector<32x32xf32>
    %225 = math.erf %224 : vector<32x32xf32>
    %cst_91 = arith.constant 1.000000e+00 : f32
    %226 = vector.broadcast %cst_91 : f32 to vector<32x32xf32>
    %227 = arith.addf %226, %225 : vector<32x32xf32>
    %228 = arith.mulf %222, %227 : vector<32x32xf32>
    %229 = arith.truncf %228 : vector<32x32xf32> to vector<32x32xbf16>
    %cst_92 = arith.constant dense<0.000000e+00> : vector<32x16xf32>
    %230 = tpu.matmul %229, %44, %cst_92 {dimension_numbers = #tpu.dot_dimension_numbers<[1], [0], [0], [1], [0, 0, 1, 1], [], []>} : vector<32x32xbf16>, vector<32x16xbf16>, vector<32x16xf32> -> vector<32x16xf32>
    %231 = arith.addf %194, %230 : vector<32x16xf32>
    %232 = vector.broadcast %46 : vector<1x16xf32> to vector<32x16xf32>
    %233 = arith.addf %231, %232 : vector<32x16xf32>
    %c0_93 = arith.constant 0 : index
    %c0_94 = arith.constant 0 : index
    %234 = vector.load %arg27[%c0_93, %c0_94] : memref<32x16xf32, #tpu.memory_space<vmem>>, vector<32x16xf32>
    tpu.vector_store %arg27[%c0_93, %c0_94], %233 {strides = array<i32>} : memref<32x16xf32, #tpu.memory_space<vmem>>, vector<32x16xf32>,
    %c0_95 = arith.constant 0 : index
    %c0_96 = arith.constant 0 : index
    %235 = vector.load %arg14[%c0_95, %c0_96] : memref<1x16xf32, #tpu.memory_space<vmem>>, vector<1x16xf32>
    %236 = vector.shape_cast %235 : vector<1x16xf32> to vector<1x16xf32>
    %237 = vector.broadcast %236 : vector<1x16xf32> to vector<32x16xf32>
    %c0_97 = arith.constant 0 : index
    %c0_98 = arith.constant 0 : index
    %c0_99 = arith.constant 0 : index
    %238 = vector.load %arg1[%c0_97, %c0_98, %c0_99] : memref<4x32x16xf32, #tpu.memory_space<vmem>>, vector<1x32x16xf32>
    %239 = vector.shape_cast %238 : vector<1x32x16xf32> to vector<32x16xf32>
    %240 = vector.broadcast %1 : vector<1x16xf32> to vector<32x16xf32>
    %241 = arith.addf %239, %240 : vector<32x16xf32>
    %c1_100 = arith.constant 1 : index
    %c0_101 = arith.constant 0 : index
    %c0_102 = arith.constant 0 : index
    %242 = vector.load %arg1[%c1_100, %c0_101, %c0_102] : memref<4x32x16xf32, #tpu.memory_space<vmem>>, vector<1x32x16xf32>
    %243 = vector.shape_cast %242 : vector<1x32x16xf32> to vector<32x16xf32>
    %244 = vector.broadcast %3 : vector<1x16xf32> to vector<32x16xf32>
    %245 = arith.addf %243, %244 : vector<32x16xf32>
    %c2_103 = arith.constant 2 : index
    %c0_104 = arith.constant 0 : index
    %c0_105 = arith.constant 0 : index
    %246 = vector.load %arg1[%c2_103, %c0_104, %c0_105] : memref<4x32x16xf32, #tpu.memory_space<vmem>>, vector<1x32x16xf32>
    %247 = vector.shape_cast %246 : vector<1x32x16xf32> to vector<32x16xf32>
    %248 = vector.broadcast %5 : vector<1x16xf32> to vector<32x16xf32>
    %249 = arith.addf %247, %248 : vector<32x16xf32>
    %c3_106 = arith.constant 3 : index
    %c0_107 = arith.constant 0 : index
    %c0_108 = arith.constant 0 : index
    %250 = vector.load %arg1[%c3_106, %c0_107, %c0_108] : memref<4x32x16xf32, #tpu.memory_space<vmem>>, vector<1x32x16xf32>
    %251 = vector.shape_cast %250 : vector<1x32x16xf32> to vector<32x16xf32>
    %252 = vector.broadcast %7 : vector<1x16xf32> to vector<32x16xf32>
    %253 = arith.addf %251, %252 : vector<32x16xf32>
    %c0_109 = arith.constant 0 : index
    %c0_110 = arith.constant 0 : index
    %c0_111 = arith.constant 0 : index
    %254 = vector.load %arg15[%c0_109, %c0_110, %c0_111] : memref<2x1x16xf32, #tpu.memory_space<vmem>>, vector<1x1x16xf32>
    %255 = vector.shape_cast %254 : vector<1x1x16xf32> to vector<1x16xf32>
    %c0_112 = arith.constant 0 : index
    %c0_113 = arith.constant 0 : index
    %c0_114 = arith.constant 0 : index
    %256 = vector.load %arg16[%c0_112, %c0_113, %c0_114] : memref<2x1x16xf32, #tpu.memory_space<vmem>>, vector<1x1x16xf32>
    %257 = vector.shape_cast %256 : vector<1x1x16xf32> to vector<1x16xf32>
    %c0_115 = arith.constant 0 : index
    %c0_116 = arith.constant 0 : index
    %c0_117 = arith.constant 0 : index
    %258 = vector.load %arg17[%c0_115, %c0_116, %c0_117] : memref<2x16x16xbf16, #tpu.memory_space<vmem>>, vector<1x16x16xbf16>
    %259 = vector.shape_cast %258 : vector<1x16x16xbf16> to vector<16x16xbf16>
    %c0_118 = arith.constant 0 : index
    %c0_119 = arith.constant 0 : index
    %c0_120 = arith.constant 0 : index
    %260 = vector.load %arg18[%c0_118, %c0_119, %c0_120] : memref<2x16x16xbf16, #tpu.memory_space<vmem>>, vector<1x16x16xbf16>
    %261 = vector.shape_cast %260 : vector<1x16x16xbf16> to vector<16x16xbf16>
    %c0_121 = arith.constant 0 : index
    %c0_122 = arith.constant 0 : index
    %c0_123 = arith.constant 0 : index
    %262 = vector.load %arg19[%c0_121, %c0_122, %c0_123] : memref<2x1x16xf32, #tpu.memory_space<vmem>>, vector<1x1x16xf32>
    %263 = vector.shape_cast %262 : vector<1x1x16xf32> to vector<1x16xf32>
    %c0_124 = arith.constant 0 : index
    %c0_125 = arith.constant 0 : index
    %c0_126 = arith.constant 0 : index
    %264 = vector.load %arg20[%c0_124, %c0_125, %c0_126] : memref<2x1x16xf32, #tpu.memory_space<vmem>>, vector<1x1x16xf32>
    %265 = vector.shape_cast %264 : vector<1x1x16xf32> to vector<1x16xf32>
    %c0_127 = arith.constant 0 : index
    %c0_128 = arith.constant 0 : index
    %c0_129 = arith.constant 0 : index
    %266 = vector.load %arg21[%c0_127, %c0_128, %c0_129] : memref<2x16x32xbf16, #tpu.memory_space<vmem>>, vector<1x16x32xbf16>
    %267 = vector.shape_cast %266 : vector<1x16x32xbf16> to vector<16x32xbf16>
    %c0_130 = arith.constant 0 : index
    %c0_131 = arith.constant 0 : index
    %c0_132 = arith.constant 0 : index
    %268 = vector.load %arg22[%c0_130, %c0_131, %c0_132] : memref<2x1x32xf32, #tpu.memory_space<vmem>>, vector<1x1x32xf32>
    %269 = vector.shape_cast %268 : vector<1x1x32xf32> to vector<1x32xf32>
    %c0_133 = arith.constant 0 : index
    %c0_134 = arith.constant 0 : index
    %c0_135 = arith.constant 0 : index
    %270 = vector.load %arg23[%c0_133, %c0_134, %c0_135] : memref<2x32x16xbf16, #tpu.memory_space<vmem>>, vector<1x32x16xbf16>
    %271 = vector.shape_cast %270 : vector<1x32x16xbf16> to vector<32x16xbf16>
    %c0_136 = arith.constant 0 : index
    %c0_137 = arith.constant 0 : index
    %c0_138 = arith.constant 0 : index
    %272 = vector.load %arg24[%c0_136, %c0_137, %c0_138] : memref<2x1x16xf32, #tpu.memory_space<vmem>>, vector<1x1x16xf32>
    %273 = vector.shape_cast %272 : vector<1x1x16xf32> to vector<1x16xf32>
    %cst_139 = arith.constant dense<0.000000e+00> : vector<32xf32>
    %274 = vector.multi_reduction <add>, %237, %cst_139 [1] : vector<32x16xf32> to vector<32xf32>
    %275 = vector.shape_cast %274 : vector<32xf32> to vector<32x1xf32>
    %cst_140 = arith.constant 1.600000e+01 : f32
    %276 = vector.broadcast %cst_140 : f32 to vector<32x1xf32>
    %277 = arith.divf %275, %276 : vector<32x1xf32>
    %278 = vector.broadcast %277 : vector<32x1xf32> to vector<32x16xf32>
    %279 = arith.subf %237, %278 : vector<32x16xf32>
    %280 = arith.mulf %279, %279 : vector<32x16xf32>
    %cst_141 = arith.constant dense<0.000000e+00> : vector<32xf32>
    %281 = vector.multi_reduction <add>, %280, %cst_141 [1] : vector<32x16xf32> to vector<32xf32>
    %282 = vector.shape_cast %281 : vector<32xf32> to vector<32x1xf32>
    %cst_142 = arith.constant 1.600000e+01 : f32
    %283 = vector.broadcast %cst_142 : f32 to vector<32x1xf32>
    %284 = arith.divf %282, %283 : vector<32x1xf32>
    %285 = vector.broadcast %277 : vector<32x1xf32> to vector<32x16xf32>
    %286 = arith.subf %237, %285 : vector<32x16xf32>
    %cst_143 = arith.constant 9.99999974E-6 : f32
    %287 = vector.broadcast %cst_143 : f32 to vector<32x1xf32>
    %288 = arith.addf %284, %287 : vector<32x1xf32>
    %289 = math.rsqrt %288 : vector<32x1xf32>
    %290 = vector.broadcast %289 : vector<32x1xf32> to vector<32x16xf32>
    %291 = arith.mulf %286, %290 : vector<32x16xf32>
    %292 = vector.broadcast %255 : vector<1x16xf32> to vector<32x16xf32>
    %293 = arith.mulf %291, %292 : vector<32x16xf32>
    %294 = vector.broadcast %257 : vector<1x16xf32> to vector<32x16xf32>
    %295 = arith.addf %293, %294 : vector<32x16xf32>
    %296 = arith.truncf %295 : vector<32x16xf32> to vector<32x16xbf16>
    %cst_144 = arith.constant dense<0.000000e+00> : vector<32x16xf32>
    %297 = tpu.matmul %296, %259, %cst_144 {dimension_numbers = #tpu.dot_dimension_numbers<[1], [0], [0], [1], [0, 0, 1, 1], [], []>} : vector<32x16xbf16>, vector<16x16xbf16>, vector<32x16xf32> -> vector<32x16xf32>
    %cst_145 = arith.constant dense<0.000000e+00> : vector<32xf32>
    %298 = vector.multi_reduction <add>, %241, %cst_145 [1] : vector<32x16xf32> to vector<32xf32>
    %299 = vector.shape_cast %298 : vector<32xf32> to vector<32x1xf32>
    %cst_146 = arith.constant 1.600000e+01 : f32
    %300 = vector.broadcast %cst_146 : f32 to vector<32x1xf32>
    %301 = arith.divf %299, %300 : vector<32x1xf32>
    %302 = vector.broadcast %301 : vector<32x1xf32> to vector<32x16xf32>
    %303 = arith.subf %241, %302 : vector<32x16xf32>
    %304 = arith.mulf %303, %303 : vector<32x16xf32>
    %cst_147 = arith.constant dense<0.000000e+00> : vector<32xf32>
    %305 = vector.multi_reduction <add>, %304, %cst_147 [1] : vector<32x16xf32> to vector<32xf32>
    %306 = vector.shape_cast %305 : vector<32xf32> to vector<32x1xf32>
    %cst_148 = arith.constant 1.600000e+01 : f32
    %307 = vector.broadcast %cst_148 : f32 to vector<32x1xf32>
    %308 = arith.divf %306, %307 : vector<32x1xf32>
    %309 = vector.broadcast %301 : vector<32x1xf32> to vector<32x16xf32>
    %310 = arith.subf %241, %309 : vector<32x16xf32>
    %cst_149 = arith.constant 9.99999974E-6 : f32
    %311 = vector.broadcast %cst_149 : f32 to vector<32x1xf32>
    %312 = arith.addf %308, %311 : vector<32x1xf32>
    %313 = math.rsqrt %312 : vector<32x1xf32>
    %314 = vector.broadcast %313 : vector<32x1xf32> to vector<32x16xf32>
    %315 = arith.mulf %310, %314 : vector<32x16xf32>
    %316 = vector.broadcast %255 : vector<1x16xf32> to vector<32x16xf32>
    %317 = arith.mulf %315, %316 : vector<32x16xf32>
    %318 = vector.broadcast %257 : vector<1x16xf32> to vector<32x16xf32>
    %319 = arith.addf %317, %318 : vector<32x16xf32>
    %320 = arith.truncf %319 : vector<32x16xf32> to vector<32x16xbf16>
    %cst_150 = arith.constant dense<0.000000e+00> : vector<32x16xf32>
    %321 = tpu.matmul %320, %259, %cst_150 {dimension_numbers = #tpu.dot_dimension_numbers<[1], [0], [0], [1], [0, 0, 1, 1], [], []>} : vector<32x16xbf16>, vector<16x16xbf16>, vector<32x16xf32> -> vector<32x16xf32>
    %cst_151 = arith.constant dense<0.000000e+00> : vector<32xf32>
    %322 = vector.multi_reduction <add>, %245, %cst_151 [1] : vector<32x16xf32> to vector<32xf32>
    %323 = vector.shape_cast %322 : vector<32xf32> to vector<32x1xf32>
    %cst_152 = arith.constant 1.600000e+01 : f32
    %324 = vector.broadcast %cst_152 : f32 to vector<32x1xf32>
    %325 = arith.divf %323, %324 : vector<32x1xf32>
    %326 = vector.broadcast %325 : vector<32x1xf32> to vector<32x16xf32>
    %327 = arith.subf %245, %326 : vector<32x16xf32>
    %328 = arith.mulf %327, %327 : vector<32x16xf32>
    %cst_153 = arith.constant dense<0.000000e+00> : vector<32xf32>
    %329 = vector.multi_reduction <add>, %328, %cst_153 [1] : vector<32x16xf32> to vector<32xf32>
    %330 = vector.shape_cast %329 : vector<32xf32> to vector<32x1xf32>
    %cst_154 = arith.constant 1.600000e+01 : f32
    %331 = vector.broadcast %cst_154 : f32 to vector<32x1xf32>
    %332 = arith.divf %330, %331 : vector<32x1xf32>
    %333 = vector.broadcast %325 : vector<32x1xf32> to vector<32x16xf32>
    %334 = arith.subf %245, %333 : vector<32x16xf32>
    %cst_155 = arith.constant 9.99999974E-6 : f32
    %335 = vector.broadcast %cst_155 : f32 to vector<32x1xf32>
    %336 = arith.addf %332, %335 : vector<32x1xf32>
    %337 = math.rsqrt %336 : vector<32x1xf32>
    %338 = vector.broadcast %337 : vector<32x1xf32> to vector<32x16xf32>
    %339 = arith.mulf %334, %338 : vector<32x16xf32>
    %340 = vector.broadcast %255 : vector<1x16xf32> to vector<32x16xf32>
    %341 = arith.mulf %339, %340 : vector<32x16xf32>
    %342 = vector.broadcast %257 : vector<1x16xf32> to vector<32x16xf32>
    %343 = arith.addf %341, %342 : vector<32x16xf32>
    %344 = arith.truncf %343 : vector<32x16xf32> to vector<32x16xbf16>
    %cst_156 = arith.constant dense<0.000000e+00> : vector<32x16xf32>
    %345 = tpu.matmul %344, %259, %cst_156 {dimension_numbers = #tpu.dot_dimension_numbers<[1], [0], [0], [1], [0, 0, 1, 1], [], []>} : vector<32x16xbf16>, vector<16x16xbf16>, vector<32x16xf32> -> vector<32x16xf32>
    %cst_157 = arith.constant dense<0.000000e+00> : vector<32xf32>
    %346 = vector.multi_reduction <add>, %249, %cst_157 [1] : vector<32x16xf32> to vector<32xf32>
    %347 = vector.shape_cast %346 : vector<32xf32> to vector<32x1xf32>
    %cst_158 = arith.constant 1.600000e+01 : f32
    %348 = vector.broadcast %cst_158 : f32 to vector<32x1xf32>
    %349 = arith.divf %347, %348 : vector<32x1xf32>
    %350 = vector.broadcast %349 : vector<32x1xf32> to vector<32x16xf32>
    %351 = arith.subf %249, %350 : vector<32x16xf32>
    %352 = arith.mulf %351, %351 : vector<32x16xf32>
    %cst_159 = arith.constant dense<0.000000e+00> : vector<32xf32>
    %353 = vector.multi_reduction <add>, %352, %cst_159 [1] : vector<32x16xf32> to vector<32xf32>
    %354 = vector.shape_cast %353 : vector<32xf32> to vector<32x1xf32>
    %cst_160 = arith.constant 1.600000e+01 : f32
    %355 = vector.broadcast %cst_160 : f32 to vector<32x1xf32>
    %356 = arith.divf %354, %355 : vector<32x1xf32>
    %357 = vector.broadcast %349 : vector<32x1xf32> to vector<32x16xf32>
    %358 = arith.subf %249, %357 : vector<32x16xf32>
    %cst_161 = arith.constant 9.99999974E-6 : f32
    %359 = vector.broadcast %cst_161 : f32 to vector<32x1xf32>
    %360 = arith.addf %356, %359 : vector<32x1xf32>
    %361 = math.rsqrt %360 : vector<32x1xf32>
    %362 = vector.broadcast %361 : vector<32x1xf32> to vector<32x16xf32>
    %363 = arith.mulf %358, %362 : vector<32x16xf32>
    %364 = vector.broadcast %255 : vector<1x16xf32> to vector<32x16xf32>
    %365 = arith.mulf %363, %364 : vector<32x16xf32>
    %366 = vector.broadcast %257 : vector<1x16xf32> to vector<32x16xf32>
    %367 = arith.addf %365, %366 : vector<32x16xf32>
    %368 = arith.truncf %367 : vector<32x16xf32> to vector<32x16xbf16>
    %cst_162 = arith.constant dense<0.000000e+00> : vector<32x16xf32>
    %369 = tpu.matmul %368, %259, %cst_162 {dimension_numbers = #tpu.dot_dimension_numbers<[1], [0], [0], [1], [0, 0, 1, 1], [], []>} : vector<32x16xbf16>, vector<16x16xbf16>, vector<32x16xf32> -> vector<32x16xf32>
    %cst_163 = arith.constant dense<0.000000e+00> : vector<32xf32>
    %370 = vector.multi_reduction <add>, %253, %cst_163 [1] : vector<32x16xf32> to vector<32xf32>
    %371 = vector.shape_cast %370 : vector<32xf32> to vector<32x1xf32>
    %cst_164 = arith.constant 1.600000e+01 : f32
    %372 = vector.broadcast %cst_164 : f32 to vector<32x1xf32>
    %373 = arith.divf %371, %372 : vector<32x1xf32>
    %374 = vector.broadcast %373 : vector<32x1xf32> to vector<32x16xf32>
    %375 = arith.subf %253, %374 : vector<32x16xf32>
    %376 = arith.mulf %375, %375 : vector<32x16xf32>
    %cst_165 = arith.constant dense<0.000000e+00> : vector<32xf32>
    %377 = vector.multi_reduction <add>, %376, %cst_165 [1] : vector<32x16xf32> to vector<32xf32>
    %378 = vector.shape_cast %377 : vector<32xf32> to vector<32x1xf32>
    %cst_166 = arith.constant 1.600000e+01 : f32
    %379 = vector.broadcast %cst_166 : f32 to vector<32x1xf32>
    %380 = arith.divf %378, %379 : vector<32x1xf32>
    %381 = vector.broadcast %373 : vector<32x1xf32> to vector<32x16xf32>
    %382 = arith.subf %253, %381 : vector<32x16xf32>
    %cst_167 = arith.constant 9.99999974E-6 : f32
    %383 = vector.broadcast %cst_167 : f32 to vector<32x1xf32>
    %384 = arith.addf %380, %383 : vector<32x1xf32>
    %385 = math.rsqrt %384 : vector<32x1xf32>
    %386 = vector.broadcast %385 : vector<32x1xf32> to vector<32x16xf32>
    %387 = arith.mulf %382, %386 : vector<32x16xf32>
    %388 = vector.broadcast %255 : vector<1x16xf32> to vector<32x16xf32>
    %389 = arith.mulf %387, %388 : vector<32x16xf32>
    %390 = vector.broadcast %257 : vector<1x16xf32> to vector<32x16xf32>
    %391 = arith.addf %389, %390 : vector<32x16xf32>
    %392 = arith.truncf %391 : vector<32x16xf32> to vector<32x16xbf16>
    %cst_168 = arith.constant dense<0.000000e+00> : vector<32x16xf32>
    %393 = tpu.matmul %392, %259, %cst_168 {dimension_numbers = #tpu.dot_dimension_numbers<[1], [0], [0], [1], [0, 0, 1, 1], [], []>} : vector<32x16xbf16>, vector<16x16xbf16>, vector<32x16xf32> -> vector<32x16xf32>
    %394 = arith.maximumf %297, %321 : vector<32x16xf32>
    %395 = arith.maximumf %394, %345 : vector<32x16xf32>
    %396 = arith.maximumf %395, %369 : vector<32x16xf32>
    %397 = arith.maximumf %396, %393 : vector<32x16xf32>
    %398 = arith.subf %297, %397 : vector<32x16xf32>
    %399 = math.exp %398 : vector<32x16xf32>
    %400 = arith.subf %321, %397 : vector<32x16xf32>
    %401 = math.exp %400 : vector<32x16xf32>
    %402 = arith.subf %345, %397 : vector<32x16xf32>
    %403 = math.exp %402 : vector<32x16xf32>
    %404 = arith.subf %369, %397 : vector<32x16xf32>
    %405 = math.exp %404 : vector<32x16xf32>
    %406 = arith.subf %393, %397 : vector<32x16xf32>
    %407 = math.exp %406 : vector<32x16xf32>
    %408 = arith.addf %399, %401 : vector<32x16xf32>
    %409 = arith.addf %408, %403 : vector<32x16xf32>
    %410 = arith.addf %409, %405 : vector<32x16xf32>
    %411 = arith.addf %410, %407 : vector<32x16xf32>
    %412 = tpu.reciprocal %411 {approx = true} : vector<32x16xf32> -> vector<32x16xf32>
    %413 = arith.mulf %399, %412 : vector<32x16xf32>
    %cst_169 = arith.constant dense<0.000000e+00> : vector<32xf32>
    %414 = vector.multi_reduction <add>, %413, %cst_169 [1] : vector<32x16xf32> to vector<32xf32>
    %415 = vector.shape_cast %414 : vector<32xf32> to vector<32x1xf32>
    %416 = tpu.reciprocal %415 {approx = true} : vector<32x1xf32> -> vector<32x1xf32>
    %417 = vector.broadcast %416 : vector<32x1xf32> to vector<32x16xf32>
    %418 = arith.mulf %413, %417 : vector<32x16xf32>
    %419 = arith.truncf %418 : vector<32x16xf32> to vector<32x16xbf16>
    %cst_170 = arith.constant dense<0.000000e+00> : vector<32x16xf32>
    %420 = tpu.matmul %419, %261, %cst_170 {dimension_numbers = #tpu.dot_dimension_numbers<[1], [0], [0], [1], [0, 0, 1, 1], [], []>} : vector<32x16xbf16>, vector<16x16xbf16>, vector<32x16xf32> -> vector<32x16xf32>
    %421 = arith.addf %237, %420 : vector<32x16xf32>
    %422 = arith.mulf %401, %412 : vector<32x16xf32>
    %cst_171 = arith.constant dense<0.000000e+00> : vector<32xf32>
    %423 = vector.multi_reduction <add>, %422, %cst_171 [1] : vector<32x16xf32> to vector<32xf32>
    %424 = vector.shape_cast %423 : vector<32xf32> to vector<32x1xf32>
    %425 = tpu.reciprocal %424 {approx = true} : vector<32x1xf32> -> vector<32x1xf32>
    %426 = vector.broadcast %425 : vector<32x1xf32> to vector<32x16xf32>
    %427 = arith.mulf %422, %426 : vector<32x16xf32>
    %428 = arith.truncf %427 : vector<32x16xf32> to vector<32x16xbf16>
    %cst_172 = arith.constant dense<0.000000e+00> : vector<32x16xf32>
    %429 = tpu.matmul %428, %261, %cst_172 {dimension_numbers = #tpu.dot_dimension_numbers<[1], [0], [0], [1], [0, 0, 1, 1], [], []>} : vector<32x16xbf16>, vector<16x16xbf16>, vector<32x16xf32> -> vector<32x16xf32>
    %430 = arith.addf %241, %429 : vector<32x16xf32>
    %431 = arith.mulf %403, %412 : vector<32x16xf32>
    %cst_173 = arith.constant dense<0.000000e+00> : vector<32xf32>
    %432 = vector.multi_reduction <add>, %431, %cst_173 [1] : vector<32x16xf32> to vector<32xf32>
    %433 = vector.shape_cast %432 : vector<32xf32> to vector<32x1xf32>
    %434 = tpu.reciprocal %433 {approx = true} : vector<32x1xf32> -> vector<32x1xf32>
    %435 = vector.broadcast %434 : vector<32x1xf32> to vector<32x16xf32>
    %436 = arith.mulf %431, %435 : vector<32x16xf32>
    %437 = arith.truncf %436 : vector<32x16xf32> to vector<32x16xbf16>
    %cst_174 = arith.constant dense<0.000000e+00> : vector<32x16xf32>
    %438 = tpu.matmul %437, %261, %cst_174 {dimension_numbers = #tpu.dot_dimension_numbers<[1], [0], [0], [1], [0, 0, 1, 1], [], []>} : vector<32x16xbf16>, vector<16x16xbf16>, vector<32x16xf32> -> vector<32x16xf32>
    %439 = arith.addf %245, %438 : vector<32x16xf32>
    %440 = arith.mulf %405, %412 : vector<32x16xf32>
    %cst_175 = arith.constant dense<0.000000e+00> : vector<32xf32>
    %441 = vector.multi_reduction <add>, %440, %cst_175 [1] : vector<32x16xf32> to vector<32xf32>
    %442 = vector.shape_cast %441 : vector<32xf32> to vector<32x1xf32>
    %443 = tpu.reciprocal %442 {approx = true} : vector<32x1xf32> -> vector<32x1xf32>
    %444 = vector.broadcast %443 : vector<32x1xf32> to vector<32x16xf32>
    %445 = arith.mulf %440, %444 : vector<32x16xf32>
    %446 = arith.truncf %445 : vector<32x16xf32> to vector<32x16xbf16>
    %cst_176 = arith.constant dense<0.000000e+00> : vector<32x16xf32>
    %447 = tpu.matmul %446, %261, %cst_176 {dimension_numbers = #tpu.dot_dimension_numbers<[1], [0], [0], [1], [0, 0, 1, 1], [], []>} : vector<32x16xbf16>, vector<16x16xbf16>, vector<32x16xf32> -> vector<32x16xf32>
    %448 = arith.addf %249, %447 : vector<32x16xf32>
    %449 = arith.mulf %407, %412 : vector<32x16xf32>
    %cst_177 = arith.constant dense<0.000000e+00> : vector<32xf32>
    %450 = vector.multi_reduction <add>, %449, %cst_177 [1] : vector<32x16xf32> to vector<32xf32>
    %451 = vector.shape_cast %450 : vector<32xf32> to vector<32x1xf32>
    %452 = tpu.reciprocal %451 {approx = true} : vector<32x1xf32> -> vector<32x1xf32>
    %453 = vector.broadcast %452 : vector<32x1xf32> to vector<32x16xf32>
    %454 = arith.mulf %449, %453 : vector<32x16xf32>
    %455 = arith.truncf %454 : vector<32x16xf32> to vector<32x16xbf16>
    %cst_178 = arith.constant dense<0.000000e+00> : vector<32x16xf32>
    %456 = tpu.matmul %455, %261, %cst_178 {dimension_numbers = #tpu.dot_dimension_numbers<[1], [0], [0], [1], [0, 0, 1, 1], [], []>} : vector<32x16xbf16>, vector<16x16xbf16>, vector<32x16xf32> -> vector<32x16xf32>
    %457 = arith.addf %253, %456 : vector<32x16xf32>
    %cst_179 = arith.constant dense<0.000000e+00> : vector<32xf32>
    %458 = vector.multi_reduction <add>, %421, %cst_179 [1] : vector<32x16xf32> to vector<32xf32>
    %459 = vector.shape_cast %458 : vector<32xf32> to vector<32x1xf32>
    %cst_180 = arith.constant 1.600000e+01 : f32
    %460 = vector.broadcast %cst_180 : f32 to vector<32x1xf32>
    %461 = arith.divf %459, %460 : vector<32x1xf32>
    %462 = vector.broadcast %461 : vector<32x1xf32> to vector<32x16xf32>
    %463 = arith.subf %421, %462 : vector<32x16xf32>
    %464 = arith.mulf %463, %463 : vector<32x16xf32>
    %cst_181 = arith.constant dense<0.000000e+00> : vector<32xf32>
    %465 = vector.multi_reduction <add>, %464, %cst_181 [1] : vector<32x16xf32> to vector<32xf32>
    %466 = vector.shape_cast %465 : vector<32xf32> to vector<32x1xf32>
    %cst_182 = arith.constant 1.600000e+01 : f32
    %467 = vector.broadcast %cst_182 : f32 to vector<32x1xf32>
    %468 = arith.divf %466, %467 : vector<32x1xf32>
    %469 = vector.broadcast %461 : vector<32x1xf32> to vector<32x16xf32>
    %470 = arith.subf %421, %469 : vector<32x16xf32>
    %cst_183 = arith.constant 9.99999974E-6 : f32
    %471 = vector.broadcast %cst_183 : f32 to vector<32x1xf32>
    %472 = arith.addf %468, %471 : vector<32x1xf32>
    %473 = math.rsqrt %472 : vector<32x1xf32>
    %474 = vector.broadcast %473 : vector<32x1xf32> to vector<32x16xf32>
    %475 = arith.mulf %470, %474 : vector<32x16xf32>
    %476 = vector.broadcast %263 : vector<1x16xf32> to vector<32x16xf32>
    %477 = arith.mulf %475, %476 : vector<32x16xf32>
    %478 = vector.broadcast %265 : vector<1x16xf32> to vector<32x16xf32>
    %479 = arith.addf %477, %478 : vector<32x16xf32>
    %480 = arith.truncf %479 : vector<32x16xf32> to vector<32x16xbf16>
    %cst_184 = arith.constant dense<0.000000e+00> : vector<32x32xf32>
    %481 = tpu.matmul %480, %267, %cst_184 {dimension_numbers = #tpu.dot_dimension_numbers<[1], [0], [0], [1], [0, 0, 1, 1], [], []>} : vector<32x16xbf16>, vector<16x32xbf16>, vector<32x32xf32> -> vector<32x32xf32>
    %482 = vector.broadcast %269 : vector<1x32xf32> to vector<32x32xf32>
    %483 = arith.addf %481, %482 : vector<32x32xf32>
    %cst_185 = arith.constant 5.000000e-01 : f32
    %484 = vector.broadcast %cst_185 : f32 to vector<32x32xf32>
    %485 = arith.mulf %484, %483 : vector<32x32xf32>
    %cst_186 = arith.constant 0.707106769 : f32
    %486 = vector.broadcast %cst_186 : f32 to vector<32x32xf32>
    %487 = arith.mulf %483, %486 : vector<32x32xf32>
    %488 = math.erf %487 : vector<32x32xf32>
    %cst_187 = arith.constant 1.000000e+00 : f32
    %489 = vector.broadcast %cst_187 : f32 to vector<32x32xf32>
    %490 = arith.addf %489, %488 : vector<32x32xf32>
    %491 = arith.mulf %485, %490 : vector<32x32xf32>
    %492 = arith.truncf %491 : vector<32x32xf32> to vector<32x32xbf16>
    %cst_188 = arith.constant dense<0.000000e+00> : vector<32x16xf32>
    %493 = tpu.matmul %492, %271, %cst_188 {dimension_numbers = #tpu.dot_dimension_numbers<[1], [0], [0], [1], [0, 0, 1, 1], [], []>} : vector<32x32xbf16>, vector<32x16xbf16>, vector<32x16xf32> -> vector<32x16xf32>
    %494 = arith.addf %421, %493 : vector<32x16xf32>
    %495 = vector.broadcast %273 : vector<1x16xf32> to vector<32x16xf32>
    %496 = arith.addf %494, %495 : vector<32x16xf32>
    %cst_189 = arith.constant dense<0.000000e+00> : vector<32xf32>
    %497 = vector.multi_reduction <add>, %430, %cst_189 [1] : vector<32x16xf32> to vector<32xf32>
    %498 = vector.shape_cast %497 : vector<32xf32> to vector<32x1xf32>
    %cst_190 = arith.constant 1.600000e+01 : f32
    %499 = vector.broadcast %cst_190 : f32 to vector<32x1xf32>
    %500 = arith.divf %498, %499 : vector<32x1xf32>
    %501 = vector.broadcast %500 : vector<32x1xf32> to vector<32x16xf32>
    %502 = arith.subf %430, %501 : vector<32x16xf32>
    %503 = arith.mulf %502, %502 : vector<32x16xf32>
    %cst_191 = arith.constant dense<0.000000e+00> : vector<32xf32>
    %504 = vector.multi_reduction <add>, %503, %cst_191 [1] : vector<32x16xf32> to vector<32xf32>
    %505 = vector.shape_cast %504 : vector<32xf32> to vector<32x1xf32>
    %cst_192 = arith.constant 1.600000e+01 : f32
    %506 = vector.broadcast %cst_192 : f32 to vector<32x1xf32>
    %507 = arith.divf %505, %506 : vector<32x1xf32>
    %508 = vector.broadcast %500 : vector<32x1xf32> to vector<32x16xf32>
    %509 = arith.subf %430, %508 : vector<32x16xf32>
    %cst_193 = arith.constant 9.99999974E-6 : f32
    %510 = vector.broadcast %cst_193 : f32 to vector<32x1xf32>
    %511 = arith.addf %507, %510 : vector<32x1xf32>
    %512 = math.rsqrt %511 : vector<32x1xf32>
    %513 = vector.broadcast %512 : vector<32x1xf32> to vector<32x16xf32>
    %514 = arith.mulf %509, %513 : vector<32x16xf32>
    %515 = vector.broadcast %263 : vector<1x16xf32> to vector<32x16xf32>
    %516 = arith.mulf %514, %515 : vector<32x16xf32>
    %517 = vector.broadcast %265 : vector<1x16xf32> to vector<32x16xf32>
    %518 = arith.addf %516, %517 : vector<32x16xf32>
    %519 = arith.truncf %518 : vector<32x16xf32> to vector<32x16xbf16>
    %cst_194 = arith.constant dense<0.000000e+00> : vector<32x32xf32>
    %520 = tpu.matmul %519, %267, %cst_194 {dimension_numbers = #tpu.dot_dimension_numbers<[1], [0], [0], [1], [0, 0, 1, 1], [], []>} : vector<32x16xbf16>, vector<16x32xbf16>, vector<32x32xf32> -> vector<32x32xf32>
    %521 = vector.broadcast %269 : vector<1x32xf32> to vector<32x32xf32>
    %522 = arith.addf %520, %521 : vector<32x32xf32>
    %cst_195 = arith.constant 5.000000e-01 : f32
    %523 = vector.broadcast %cst_195 : f32 to vector<32x32xf32>
    %524 = arith.mulf %523, %522 : vector<32x32xf32>
    %cst_196 = arith.constant 0.707106769 : f32
    %525 = vector.broadcast %cst_196 : f32 to vector<32x32xf32>
    %526 = arith.mulf %522, %525 : vector<32x32xf32>
    %527 = math.erf %526 : vector<32x32xf32>
    %cst_197 = arith.constant 1.000000e+00 : f32
    %528 = vector.broadcast %cst_197 : f32 to vector<32x32xf32>
    %529 = arith.addf %528, %527 : vector<32x32xf32>
    %530 = arith.mulf %524, %529 : vector<32x32xf32>
    %531 = arith.truncf %530 : vector<32x32xf32> to vector<32x32xbf16>
    %cst_198 = arith.constant dense<0.000000e+00> : vector<32x16xf32>
    %532 = tpu.matmul %531, %271, %cst_198 {dimension_numbers = #tpu.dot_dimension_numbers<[1], [0], [0], [1], [0, 0, 1, 1], [], []>} : vector<32x32xbf16>, vector<32x16xbf16>, vector<32x16xf32> -> vector<32x16xf32>
    %533 = arith.addf %430, %532 : vector<32x16xf32>
    %534 = vector.broadcast %273 : vector<1x16xf32> to vector<32x16xf32>
    %535 = arith.addf %533, %534 : vector<32x16xf32>
    %cst_199 = arith.constant dense<0.000000e+00> : vector<32xf32>
    %536 = vector.multi_reduction <add>, %439, %cst_199 [1] : vector<32x16xf32> to vector<32xf32>
    %537 = vector.shape_cast %536 : vector<32xf32> to vector<32x1xf32>
    %cst_200 = arith.constant 1.600000e+01 : f32
    %538 = vector.broadcast %cst_200 : f32 to vector<32x1xf32>
    %539 = arith.divf %537, %538 : vector<32x1xf32>
    %540 = vector.broadcast %539 : vector<32x1xf32> to vector<32x16xf32>
    %541 = arith.subf %439, %540 : vector<32x16xf32>
    %542 = arith.mulf %541, %541 : vector<32x16xf32>
    %cst_201 = arith.constant dense<0.000000e+00> : vector<32xf32>
    %543 = vector.multi_reduction <add>, %542, %cst_201 [1] : vector<32x16xf32> to vector<32xf32>
    %544 = vector.shape_cast %543 : vector<32xf32> to vector<32x1xf32>
    %cst_202 = arith.constant 1.600000e+01 : f32
    %545 = vector.broadcast %cst_202 : f32 to vector<32x1xf32>
    %546 = arith.divf %544, %545 : vector<32x1xf32>
    %547 = vector.broadcast %539 : vector<32x1xf32> to vector<32x16xf32>
    %548 = arith.subf %439, %547 : vector<32x16xf32>
    %cst_203 = arith.constant 9.99999974E-6 : f32
    %549 = vector.broadcast %cst_203 : f32 to vector<32x1xf32>
    %550 = arith.addf %546, %549 : vector<32x1xf32>
    %551 = math.rsqrt %550 : vector<32x1xf32>
    %552 = vector.broadcast %551 : vector<32x1xf32> to vector<32x16xf32>
    %553 = arith.mulf %548, %552 : vector<32x16xf32>
    %554 = vector.broadcast %263 : vector<1x16xf32> to vector<32x16xf32>
    %555 = arith.mulf %553, %554 : vector<32x16xf32>
    %556 = vector.broadcast %265 : vector<1x16xf32> to vector<32x16xf32>
    %557 = arith.addf %555, %556 : vector<32x16xf32>
    %558 = arith.truncf %557 : vector<32x16xf32> to vector<32x16xbf16>
    %cst_204 = arith.constant dense<0.000000e+00> : vector<32x32xf32>
    %559 = tpu.matmul %558, %267, %cst_204 {dimension_numbers = #tpu.dot_dimension_numbers<[1], [0], [0], [1], [0, 0, 1, 1], [], []>} : vector<32x16xbf16>, vector<16x32xbf16>, vector<32x32xf32> -> vector<32x32xf32>
    %560 = vector.broadcast %269 : vector<1x32xf32> to vector<32x32xf32>
    %561 = arith.addf %559, %560 : vector<32x32xf32>
    %cst_205 = arith.constant 5.000000e-01 : f32
    %562 = vector.broadcast %cst_205 : f32 to vector<32x32xf32>
    %563 = arith.mulf %562, %561 : vector<32x32xf32>
    %cst_206 = arith.constant 0.707106769 : f32
    %564 = vector.broadcast %cst_206 : f32 to vector<32x32xf32>
    %565 = arith.mulf %561, %564 : vector<32x32xf32>
    %566 = math.erf %565 : vector<32x32xf32>
    %cst_207 = arith.constant 1.000000e+00 : f32
    %567 = vector.broadcast %cst_207 : f32 to vector<32x32xf32>
    %568 = arith.addf %567, %566 : vector<32x32xf32>
    %569 = arith.mulf %563, %568 : vector<32x32xf32>
    %570 = arith.truncf %569 : vector<32x32xf32> to vector<32x32xbf16>
    %cst_208 = arith.constant dense<0.000000e+00> : vector<32x16xf32>
    %571 = tpu.matmul %570, %271, %cst_208 {dimension_numbers = #tpu.dot_dimension_numbers<[1], [0], [0], [1], [0, 0, 1, 1], [], []>} : vector<32x32xbf16>, vector<32x16xbf16>, vector<32x16xf32> -> vector<32x16xf32>
    %572 = arith.addf %439, %571 : vector<32x16xf32>
    %573 = vector.broadcast %273 : vector<1x16xf32> to vector<32x16xf32>
    %574 = arith.addf %572, %573 : vector<32x16xf32>
    %cst_209 = arith.constant dense<0.000000e+00> : vector<32xf32>
    %575 = vector.multi_reduction <add>, %448, %cst_209 [1] : vector<32x16xf32> to vector<32xf32>
    %576 = vector.shape_cast %575 : vector<32xf32> to vector<32x1xf32>
    %cst_210 = arith.constant 1.600000e+01 : f32
    %577 = vector.broadcast %cst_210 : f32 to vector<32x1xf32>
    %578 = arith.divf %576, %577 : vector<32x1xf32>
    %579 = vector.broadcast %578 : vector<32x1xf32> to vector<32x16xf32>
    %580 = arith.subf %448, %579 : vector<32x16xf32>
    %581 = arith.mulf %580, %580 : vector<32x16xf32>
    %cst_211 = arith.constant dense<0.000000e+00> : vector<32xf32>
    %582 = vector.multi_reduction <add>, %581, %cst_211 [1] : vector<32x16xf32> to vector<32xf32>
    %583 = vector.shape_cast %582 : vector<32xf32> to vector<32x1xf32>
    %cst_212 = arith.constant 1.600000e+01 : f32
    %584 = vector.broadcast %cst_212 : f32 to vector<32x1xf32>
    %585 = arith.divf %583, %584 : vector<32x1xf32>
    %586 = vector.broadcast %578 : vector<32x1xf32> to vector<32x16xf32>
    %587 = arith.subf %448, %586 : vector<32x16xf32>
    %cst_213 = arith.constant 9.99999974E-6 : f32
    %588 = vector.broadcast %cst_213 : f32 to vector<32x1xf32>
    %589 = arith.addf %585, %588 : vector<32x1xf32>
    %590 = math.rsqrt %589 : vector<32x1xf32>
    %591 = vector.broadcast %590 : vector<32x1xf32> to vector<32x16xf32>
    %592 = arith.mulf %587, %591 : vector<32x16xf32>
    %593 = vector.broadcast %263 : vector<1x16xf32> to vector<32x16xf32>
    %594 = arith.mulf %592, %593 : vector<32x16xf32>
    %595 = vector.broadcast %265 : vector<1x16xf32> to vector<32x16xf32>
    %596 = arith.addf %594, %595 : vector<32x16xf32>
    %597 = arith.truncf %596 : vector<32x16xf32> to vector<32x16xbf16>
    %cst_214 = arith.constant dense<0.000000e+00> : vector<32x32xf32>
    %598 = tpu.matmul %597, %267, %cst_214 {dimension_numbers = #tpu.dot_dimension_numbers<[1], [0], [0], [1], [0, 0, 1, 1], [], []>} : vector<32x16xbf16>, vector<16x32xbf16>, vector<32x32xf32> -> vector<32x32xf32>
    %599 = vector.broadcast %269 : vector<1x32xf32> to vector<32x32xf32>
    %600 = arith.addf %598, %599 : vector<32x32xf32>
    %cst_215 = arith.constant 5.000000e-01 : f32
    %601 = vector.broadcast %cst_215 : f32 to vector<32x32xf32>
    %602 = arith.mulf %601, %600 : vector<32x32xf32>
    %cst_216 = arith.constant 0.707106769 : f32
    %603 = vector.broadcast %cst_216 : f32 to vector<32x32xf32>
    %604 = arith.mulf %600, %603 : vector<32x32xf32>
    %605 = math.erf %604 : vector<32x32xf32>
    %cst_217 = arith.constant 1.000000e+00 : f32
    %606 = vector.broadcast %cst_217 : f32 to vector<32x32xf32>
    %607 = arith.addf %606, %605 : vector<32x32xf32>
    %608 = arith.mulf %602, %607 : vector<32x32xf32>
    %609 = arith.truncf %608 : vector<32x32xf32> to vector<32x32xbf16>
    %cst_218 = arith.constant dense<0.000000e+00> : vector<32x16xf32>
    %610 = tpu.matmul %609, %271, %cst_218 {dimension_numbers = #tpu.dot_dimension_numbers<[1], [0], [0], [1], [0, 0, 1, 1], [], []>} : vector<32x32xbf16>, vector<32x16xbf16>, vector<32x16xf32> -> vector<32x16xf32>
    %611 = arith.addf %448, %610 : vector<32x16xf32>
    %612 = vector.broadcast %273 : vector<1x16xf32> to vector<32x16xf32>
    %613 = arith.addf %611, %612 : vector<32x16xf32>
    %cst_219 = arith.constant dense<0.000000e+00> : vector<32xf32>
    %614 = vector.multi_reduction <add>, %457, %cst_219 [1] : vector<32x16xf32> to vector<32xf32>
    %615 = vector.shape_cast %614 : vector<32xf32> to vector<32x1xf32>
    %cst_220 = arith.constant 1.600000e+01 : f32
    %616 = vector.broadcast %cst_220 : f32 to vector<32x1xf32>
    %617 = arith.divf %615, %616 : vector<32x1xf32>
    %618 = vector.broadcast %617 : vector<32x1xf32> to vector<32x16xf32>
    %619 = arith.subf %457, %618 : vector<32x16xf32>
    %620 = arith.mulf %619, %619 : vector<32x16xf32>
    %cst_221 = arith.constant dense<0.000000e+00> : vector<32xf32>
    %621 = vector.multi_reduction <add>, %620, %cst_221 [1] : vector<32x16xf32> to vector<32xf32>
    %622 = vector.shape_cast %621 : vector<32xf32> to vector<32x1xf32>
    %cst_222 = arith.constant 1.600000e+01 : f32
    %623 = vector.broadcast %cst_222 : f32 to vector<32x1xf32>
    %624 = arith.divf %622, %623 : vector<32x1xf32>
    %625 = vector.broadcast %617 : vector<32x1xf32> to vector<32x16xf32>
    %626 = arith.subf %457, %625 : vector<32x16xf32>
    %cst_223 = arith.constant 9.99999974E-6 : f32
    %627 = vector.broadcast %cst_223 : f32 to vector<32x1xf32>
    %628 = arith.addf %624, %627 : vector<32x1xf32>
    %629 = math.rsqrt %628 : vector<32x1xf32>
    %630 = vector.broadcast %629 : vector<32x1xf32> to vector<32x16xf32>
    %631 = arith.mulf %626, %630 : vector<32x16xf32>
    %632 = vector.broadcast %263 : vector<1x16xf32> to vector<32x16xf32>
    %633 = arith.mulf %631, %632 : vector<32x16xf32>
    %634 = vector.broadcast %265 : vector<1x16xf32> to vector<32x16xf32>
    %635 = arith.addf %633, %634 : vector<32x16xf32>
    %636 = arith.truncf %635 : vector<32x16xf32> to vector<32x16xbf16>
    %cst_224 = arith.constant dense<0.000000e+00> : vector<32x32xf32>
    %637 = tpu.matmul %636, %267, %cst_224 {dimension_numbers = #tpu.dot_dimension_numbers<[1], [0], [0], [1], [0, 0, 1, 1], [], []>} : vector<32x16xbf16>, vector<16x32xbf16>, vector<32x32xf32> -> vector<32x32xf32>
    %638 = vector.broadcast %269 : vector<1x32xf32> to vector<32x32xf32>
    %639 = arith.addf %637, %638 : vector<32x32xf32>
    %cst_225 = arith.constant 5.000000e-01 : f32
    %640 = vector.broadcast %cst_225 : f32 to vector<32x32xf32>
    %641 = arith.mulf %640, %639 : vector<32x32xf32>
    %cst_226 = arith.constant 0.707106769 : f32
    %642 = vector.broadcast %cst_226 : f32 to vector<32x32xf32>
    %643 = arith.mulf %639, %642 : vector<32x32xf32>
    %644 = math.erf %643 : vector<32x32xf32>
    %cst_227 = arith.constant 1.000000e+00 : f32
    %645 = vector.broadcast %cst_227 : f32 to vector<32x32xf32>
    %646 = arith.addf %645, %644 : vector<32x32xf32>
    %647 = arith.mulf %641, %646 : vector<32x32xf32>
    %648 = arith.truncf %647 : vector<32x32xf32> to vector<32x32xbf16>
    %cst_228 = arith.constant dense<0.000000e+00> : vector<32x16xf32>
    %649 = tpu.matmul %648, %271, %cst_228 {dimension_numbers = #tpu.dot_dimension_numbers<[1], [0], [0], [1], [0, 0, 1, 1], [], []>} : vector<32x32xbf16>, vector<32x16xbf16>, vector<32x16xf32> -> vector<32x16xf32>
    %650 = arith.addf %457, %649 : vector<32x16xf32>
    %651 = vector.broadcast %273 : vector<1x16xf32> to vector<32x16xf32>
    %652 = arith.addf %650, %651 : vector<32x16xf32>
    %c1_229 = arith.constant 1 : index
    %c0_230 = arith.constant 0 : index
    %c0_231 = arith.constant 0 : index
    %653 = vector.load %arg15[%c1_229, %c0_230, %c0_231] : memref<2x1x16xf32, #tpu.memory_space<vmem>>, vector<1x1x16xf32>
    %654 = vector.shape_cast %653 : vector<1x1x16xf32> to vector<1x16xf32>
    %c1_232 = arith.constant 1 : index
    %c0_233 = arith.constant 0 : index
    %c0_234 = arith.constant 0 : index
    %655 = vector.load %arg16[%c1_232, %c0_233, %c0_234] : memref<2x1x16xf32, #tpu.memory_space<vmem>>, vector<1x1x16xf32>
    %656 = vector.shape_cast %655 : vector<1x1x16xf32> to vector<1x16xf32>
    %c1_235 = arith.constant 1 : index
    %c0_236 = arith.constant 0 : index
    %c0_237 = arith.constant 0 : index
    %657 = vector.load %arg17[%c1_235, %c0_236, %c0_237] : memref<2x16x16xbf16, #tpu.memory_space<vmem>>, vector<1x16x16xbf16>
    %658 = vector.shape_cast %657 : vector<1x16x16xbf16> to vector<16x16xbf16>
    %c1_238 = arith.constant 1 : index
    %c0_239 = arith.constant 0 : index
    %c0_240 = arith.constant 0 : index
    %659 = vector.load %arg18[%c1_238, %c0_239, %c0_240] : memref<2x16x16xbf16, #tpu.memory_space<vmem>>, vector<1x16x16xbf16>
    %660 = vector.shape_cast %659 : vector<1x16x16xbf16> to vector<16x16xbf16>
    %c1_241 = arith.constant 1 : index
    %c0_242 = arith.constant 0 : index
    %c0_243 = arith.constant 0 : index
    %661 = vector.load %arg19[%c1_241, %c0_242, %c0_243] : memref<2x1x16xf32, #tpu.memory_space<vmem>>, vector<1x1x16xf32>
    %662 = vector.shape_cast %661 : vector<1x1x16xf32> to vector<1x16xf32>
    %c1_244 = arith.constant 1 : index
    %c0_245 = arith.constant 0 : index
    %c0_246 = arith.constant 0 : index
    %663 = vector.load %arg20[%c1_244, %c0_245, %c0_246] : memref<2x1x16xf32, #tpu.memory_space<vmem>>, vector<1x1x16xf32>
    %664 = vector.shape_cast %663 : vector<1x1x16xf32> to vector<1x16xf32>
    %c1_247 = arith.constant 1 : index
    %c0_248 = arith.constant 0 : index
    %c0_249 = arith.constant 0 : index
    %665 = vector.load %arg21[%c1_247, %c0_248, %c0_249] : memref<2x16x32xbf16, #tpu.memory_space<vmem>>, vector<1x16x32xbf16>
    %666 = vector.shape_cast %665 : vector<1x16x32xbf16> to vector<16x32xbf16>
    %c1_250 = arith.constant 1 : index
    %c0_251 = arith.constant 0 : index
    %c0_252 = arith.constant 0 : index
    %667 = vector.load %arg22[%c1_250, %c0_251, %c0_252] : memref<2x1x32xf32, #tpu.memory_space<vmem>>, vector<1x1x32xf32>
    %668 = vector.shape_cast %667 : vector<1x1x32xf32> to vector<1x32xf32>
    %c1_253 = arith.constant 1 : index
    %c0_254 = arith.constant 0 : index
    %c0_255 = arith.constant 0 : index
    %669 = vector.load %arg23[%c1_253, %c0_254, %c0_255] : memref<2x32x16xbf16, #tpu.memory_space<vmem>>, vector<1x32x16xbf16>
    %670 = vector.shape_cast %669 : vector<1x32x16xbf16> to vector<32x16xbf16>
    %c1_256 = arith.constant 1 : index
    %c0_257 = arith.constant 0 : index
    %c0_258 = arith.constant 0 : index
    %671 = vector.load %arg24[%c1_256, %c0_257, %c0_258] : memref<2x1x16xf32, #tpu.memory_space<vmem>>, vector<1x1x16xf32>
    %672 = vector.shape_cast %671 : vector<1x1x16xf32> to vector<1x16xf32>
    %cst_259 = arith.constant dense<0.000000e+00> : vector<32xf32>
    %673 = vector.multi_reduction <add>, %496, %cst_259 [1] : vector<32x16xf32> to vector<32xf32>
    %674 = vector.shape_cast %673 : vector<32xf32> to vector<32x1xf32>
    %cst_260 = arith.constant 1.600000e+01 : f32
    %675 = vector.broadcast %cst_260 : f32 to vector<32x1xf32>
    %676 = arith.divf %674, %675 : vector<32x1xf32>
    %677 = vector.broadcast %676 : vector<32x1xf32> to vector<32x16xf32>
    %678 = arith.subf %496, %677 : vector<32x16xf32>
    %679 = arith.mulf %678, %678 : vector<32x16xf32>
    %cst_261 = arith.constant dense<0.000000e+00> : vector<32xf32>
    %680 = vector.multi_reduction <add>, %679, %cst_261 [1] : vector<32x16xf32> to vector<32xf32>
    %681 = vector.shape_cast %680 : vector<32xf32> to vector<32x1xf32>
    %cst_262 = arith.constant 1.600000e+01 : f32
    %682 = vector.broadcast %cst_262 : f32 to vector<32x1xf32>
    %683 = arith.divf %681, %682 : vector<32x1xf32>
    %684 = vector.broadcast %676 : vector<32x1xf32> to vector<32x16xf32>
    %685 = arith.subf %496, %684 : vector<32x16xf32>
    %cst_263 = arith.constant 9.99999974E-6 : f32
    %686 = vector.broadcast %cst_263 : f32 to vector<32x1xf32>
    %687 = arith.addf %683, %686 : vector<32x1xf32>
    %688 = math.rsqrt %687 : vector<32x1xf32>
    %689 = vector.broadcast %688 : vector<32x1xf32> to vector<32x16xf32>
    %690 = arith.mulf %685, %689 : vector<32x16xf32>
    %691 = vector.broadcast %654 : vector<1x16xf32> to vector<32x16xf32>
    %692 = arith.mulf %690, %691 : vector<32x16xf32>
    %693 = vector.broadcast %656 : vector<1x16xf32> to vector<32x16xf32>
    %694 = arith.addf %692, %693 : vector<32x16xf32>
    %695 = arith.truncf %694 : vector<32x16xf32> to vector<32x16xbf16>
    %cst_264 = arith.constant dense<0.000000e+00> : vector<32x16xf32>
    %696 = tpu.matmul %695, %658, %cst_264 {dimension_numbers = #tpu.dot_dimension_numbers<[1], [0], [0], [1], [0, 0, 1, 1], [], []>} : vector<32x16xbf16>, vector<16x16xbf16>, vector<32x16xf32> -> vector<32x16xf32>
    %cst_265 = arith.constant dense<0.000000e+00> : vector<32xf32>
    %697 = vector.multi_reduction <add>, %535, %cst_265 [1] : vector<32x16xf32> to vector<32xf32>
    %698 = vector.shape_cast %697 : vector<32xf32> to vector<32x1xf32>
    %cst_266 = arith.constant 1.600000e+01 : f32
    %699 = vector.broadcast %cst_266 : f32 to vector<32x1xf32>
    %700 = arith.divf %698, %699 : vector<32x1xf32>
    %701 = vector.broadcast %700 : vector<32x1xf32> to vector<32x16xf32>
    %702 = arith.subf %535, %701 : vector<32x16xf32>
    %703 = arith.mulf %702, %702 : vector<32x16xf32>
    %cst_267 = arith.constant dense<0.000000e+00> : vector<32xf32>
    %704 = vector.multi_reduction <add>, %703, %cst_267 [1] : vector<32x16xf32> to vector<32xf32>
    %705 = vector.shape_cast %704 : vector<32xf32> to vector<32x1xf32>
    %cst_268 = arith.constant 1.600000e+01 : f32
    %706 = vector.broadcast %cst_268 : f32 to vector<32x1xf32>
    %707 = arith.divf %705, %706 : vector<32x1xf32>
    %708 = vector.broadcast %700 : vector<32x1xf32> to vector<32x16xf32>
    %709 = arith.subf %535, %708 : vector<32x16xf32>
    %cst_269 = arith.constant 9.99999974E-6 : f32
    %710 = vector.broadcast %cst_269 : f32 to vector<32x1xf32>
    %711 = arith.addf %707, %710 : vector<32x1xf32>
    %712 = math.rsqrt %711 : vector<32x1xf32>
    %713 = vector.broadcast %712 : vector<32x1xf32> to vector<32x16xf32>
    %714 = arith.mulf %709, %713 : vector<32x16xf32>
    %715 = vector.broadcast %654 : vector<1x16xf32> to vector<32x16xf32>
    %716 = arith.mulf %714, %715 : vector<32x16xf32>
    %717 = vector.broadcast %656 : vector<1x16xf32> to vector<32x16xf32>
    %718 = arith.addf %716, %717 : vector<32x16xf32>
    %719 = arith.truncf %718 : vector<32x16xf32> to vector<32x16xbf16>
    %cst_270 = arith.constant dense<0.000000e+00> : vector<32x16xf32>
    %720 = tpu.matmul %719, %658, %cst_270 {dimension_numbers = #tpu.dot_dimension_numbers<[1], [0], [0], [1], [0, 0, 1, 1], [], []>} : vector<32x16xbf16>, vector<16x16xbf16>, vector<32x16xf32> -> vector<32x16xf32>
    %cst_271 = arith.constant dense<0.000000e+00> : vector<32xf32>
    %721 = vector.multi_reduction <add>, %574, %cst_271 [1] : vector<32x16xf32> to vector<32xf32>
    %722 = vector.shape_cast %721 : vector<32xf32> to vector<32x1xf32>
    %cst_272 = arith.constant 1.600000e+01 : f32
    %723 = vector.broadcast %cst_272 : f32 to vector<32x1xf32>
    %724 = arith.divf %722, %723 : vector<32x1xf32>
    %725 = vector.broadcast %724 : vector<32x1xf32> to vector<32x16xf32>
    %726 = arith.subf %574, %725 : vector<32x16xf32>
    %727 = arith.mulf %726, %726 : vector<32x16xf32>
    %cst_273 = arith.constant dense<0.000000e+00> : vector<32xf32>
    %728 = vector.multi_reduction <add>, %727, %cst_273 [1] : vector<32x16xf32> to vector<32xf32>
    %729 = vector.shape_cast %728 : vector<32xf32> to vector<32x1xf32>
    %cst_274 = arith.constant 1.600000e+01 : f32
    %730 = vector.broadcast %cst_274 : f32 to vector<32x1xf32>
    %731 = arith.divf %729, %730 : vector<32x1xf32>
    %732 = vector.broadcast %724 : vector<32x1xf32> to vector<32x16xf32>
    %733 = arith.subf %574, %732 : vector<32x16xf32>
    %cst_275 = arith.constant 9.99999974E-6 : f32
    %734 = vector.broadcast %cst_275 : f32 to vector<32x1xf32>
    %735 = arith.addf %731, %734 : vector<32x1xf32>
    %736 = math.rsqrt %735 : vector<32x1xf32>
    %737 = vector.broadcast %736 : vector<32x1xf32> to vector<32x16xf32>
    %738 = arith.mulf %733, %737 : vector<32x16xf32>
    %739 = vector.broadcast %654 : vector<1x16xf32> to vector<32x16xf32>
    %740 = arith.mulf %738, %739 : vector<32x16xf32>
    %741 = vector.broadcast %656 : vector<1x16xf32> to vector<32x16xf32>
    %742 = arith.addf %740, %741 : vector<32x16xf32>
    %743 = arith.truncf %742 : vector<32x16xf32> to vector<32x16xbf16>
    %cst_276 = arith.constant dense<0.000000e+00> : vector<32x16xf32>
    %744 = tpu.matmul %743, %658, %cst_276 {dimension_numbers = #tpu.dot_dimension_numbers<[1], [0], [0], [1], [0, 0, 1, 1], [], []>} : vector<32x16xbf16>, vector<16x16xbf16>, vector<32x16xf32> -> vector<32x16xf32>
    %cst_277 = arith.constant dense<0.000000e+00> : vector<32xf32>
    %745 = vector.multi_reduction <add>, %613, %cst_277 [1] : vector<32x16xf32> to vector<32xf32>
    %746 = vector.shape_cast %745 : vector<32xf32> to vector<32x1xf32>
    %cst_278 = arith.constant 1.600000e+01 : f32
    %747 = vector.broadcast %cst_278 : f32 to vector<32x1xf32>
    %748 = arith.divf %746, %747 : vector<32x1xf32>
    %749 = vector.broadcast %748 : vector<32x1xf32> to vector<32x16xf32>
    %750 = arith.subf %613, %749 : vector<32x16xf32>
    %751 = arith.mulf %750, %750 : vector<32x16xf32>
    %cst_279 = arith.constant dense<0.000000e+00> : vector<32xf32>
    %752 = vector.multi_reduction <add>, %751, %cst_279 [1] : vector<32x16xf32> to vector<32xf32>
    %753 = vector.shape_cast %752 : vector<32xf32> to vector<32x1xf32>
    %cst_280 = arith.constant 1.600000e+01 : f32
    %754 = vector.broadcast %cst_280 : f32 to vector<32x1xf32>
    %755 = arith.divf %753, %754 : vector<32x1xf32>
    %756 = vector.broadcast %748 : vector<32x1xf32> to vector<32x16xf32>
    %757 = arith.subf %613, %756 : vector<32x16xf32>
    %cst_281 = arith.constant 9.99999974E-6 : f32
    %758 = vector.broadcast %cst_281 : f32 to vector<32x1xf32>
    %759 = arith.addf %755, %758 : vector<32x1xf32>
    %760 = math.rsqrt %759 : vector<32x1xf32>
    %761 = vector.broadcast %760 : vector<32x1xf32> to vector<32x16xf32>
    %762 = arith.mulf %757, %761 : vector<32x16xf32>
    %763 = vector.broadcast %654 : vector<1x16xf32> to vector<32x16xf32>
    %764 = arith.mulf %762, %763 : vector<32x16xf32>
    %765 = vector.broadcast %656 : vector<1x16xf32> to vector<32x16xf32>
    %766 = arith.addf %764, %765 : vector<32x16xf32>
    %767 = arith.truncf %766 : vector<32x16xf32> to vector<32x16xbf16>
    %cst_282 = arith.constant dense<0.000000e+00> : vector<32x16xf32>
    %768 = tpu.matmul %767, %658, %cst_282 {dimension_numbers = #tpu.dot_dimension_numbers<[1], [0], [0], [1], [0, 0, 1, 1], [], []>} : vector<32x16xbf16>, vector<16x16xbf16>, vector<32x16xf32> -> vector<32x16xf32>
    %cst_283 = arith.constant dense<0.000000e+00> : vector<32xf32>
    %769 = vector.multi_reduction <add>, %652, %cst_283 [1] : vector<32x16xf32> to vector<32xf32>
    %770 = vector.shape_cast %769 : vector<32xf32> to vector<32x1xf32>
    %cst_284 = arith.constant 1.600000e+01 : f32
    %771 = vector.broadcast %cst_284 : f32 to vector<32x1xf32>
    %772 = arith.divf %770, %771 : vector<32x1xf32>
    %773 = vector.broadcast %772 : vector<32x1xf32> to vector<32x16xf32>
    %774 = arith.subf %652, %773 : vector<32x16xf32>
    %775 = arith.mulf %774, %774 : vector<32x16xf32>
    %cst_285 = arith.constant dense<0.000000e+00> : vector<32xf32>
    %776 = vector.multi_reduction <add>, %775, %cst_285 [1] : vector<32x16xf32> to vector<32xf32>
    %777 = vector.shape_cast %776 : vector<32xf32> to vector<32x1xf32>
    %cst_286 = arith.constant 1.600000e+01 : f32
    %778 = vector.broadcast %cst_286 : f32 to vector<32x1xf32>
    %779 = arith.divf %777, %778 : vector<32x1xf32>
    %780 = vector.broadcast %772 : vector<32x1xf32> to vector<32x16xf32>
    %781 = arith.subf %652, %780 : vector<32x16xf32>
    %cst_287 = arith.constant 9.99999974E-6 : f32
    %782 = vector.broadcast %cst_287 : f32 to vector<32x1xf32>
    %783 = arith.addf %779, %782 : vector<32x1xf32>
    %784 = math.rsqrt %783 : vector<32x1xf32>
    %785 = vector.broadcast %784 : vector<32x1xf32> to vector<32x16xf32>
    %786 = arith.mulf %781, %785 : vector<32x16xf32>
    %787 = vector.broadcast %654 : vector<1x16xf32> to vector<32x16xf32>
    %788 = arith.mulf %786, %787 : vector<32x16xf32>
    %789 = vector.broadcast %656 : vector<1x16xf32> to vector<32x16xf32>
    %790 = arith.addf %788, %789 : vector<32x16xf32>
    %791 = arith.truncf %790 : vector<32x16xf32> to vector<32x16xbf16>
    %cst_288 = arith.constant dense<0.000000e+00> : vector<32x16xf32>
    %792 = tpu.matmul %791, %658, %cst_288 {dimension_numbers = #tpu.dot_dimension_numbers<[1], [0], [0], [1], [0, 0, 1, 1], [], []>} : vector<32x16xbf16>, vector<16x16xbf16>, vector<32x16xf32> -> vector<32x16xf32>
    %793 = arith.maximumf %696, %720 : vector<32x16xf32>
    %794 = arith.maximumf %793, %744 : vector<32x16xf32>
    %795 = arith.maximumf %794, %768 : vector<32x16xf32>
    %796 = arith.maximumf %795, %792 : vector<32x16xf32>
    %797 = arith.subf %696, %796 : vector<32x16xf32>
    %798 = math.exp %797 : vector<32x16xf32>
    %799 = arith.subf %720, %796 : vector<32x16xf32>
    %800 = math.exp %799 : vector<32x16xf32>
    %801 = arith.subf %744, %796 : vector<32x16xf32>
    %802 = math.exp %801 : vector<32x16xf32>
    %803 = arith.subf %768, %796 : vector<32x16xf32>
    %804 = math.exp %803 : vector<32x16xf32>
    %805 = arith.subf %792, %796 : vector<32x16xf32>
    %806 = math.exp %805 : vector<32x16xf32>
    %807 = arith.addf %798, %800 : vector<32x16xf32>
    %808 = arith.addf %807, %802 : vector<32x16xf32>
    %809 = arith.addf %808, %804 : vector<32x16xf32>
    %810 = arith.addf %809, %806 : vector<32x16xf32>
    %811 = tpu.reciprocal %810 {approx = true} : vector<32x16xf32> -> vector<32x16xf32>
    %812 = arith.mulf %798, %811 : vector<32x16xf32>
    %cst_289 = arith.constant dense<0.000000e+00> : vector<32xf32>
    %813 = vector.multi_reduction <add>, %812, %cst_289 [1] : vector<32x16xf32> to vector<32xf32>
    %814 = vector.shape_cast %813 : vector<32xf32> to vector<32x1xf32>
    %815 = tpu.reciprocal %814 {approx = true} : vector<32x1xf32> -> vector<32x1xf32>
    %816 = vector.broadcast %815 : vector<32x1xf32> to vector<32x16xf32>
    %817 = arith.mulf %812, %816 : vector<32x16xf32>
    %818 = arith.truncf %817 : vector<32x16xf32> to vector<32x16xbf16>
    %cst_290 = arith.constant dense<0.000000e+00> : vector<32x16xf32>
    %819 = tpu.matmul %818, %660, %cst_290 {dimension_numbers = #tpu.dot_dimension_numbers<[1], [0], [0], [1], [0, 0, 1, 1], [], []>} : vector<32x16xbf16>, vector<16x16xbf16>, vector<32x16xf32> -> vector<32x16xf32>
    %820 = arith.addf %496, %819 : vector<32x16xf32>
    %821 = arith.mulf %800, %811 : vector<32x16xf32>
    %cst_291 = arith.constant dense<0.000000e+00> : vector<32xf32>
    %822 = vector.multi_reduction <add>, %821, %cst_291 [1] : vector<32x16xf32> to vector<32xf32>
    %823 = vector.shape_cast %822 : vector<32xf32> to vector<32x1xf32>
    %824 = tpu.reciprocal %823 {approx = true} : vector<32x1xf32> -> vector<32x1xf32>
    %825 = vector.broadcast %824 : vector<32x1xf32> to vector<32x16xf32>
    %826 = arith.mulf %821, %825 : vector<32x16xf32>
    %827 = arith.truncf %826 : vector<32x16xf32> to vector<32x16xbf16>
    %cst_292 = arith.constant dense<0.000000e+00> : vector<32x16xf32>
    %828 = tpu.matmul %827, %660, %cst_292 {dimension_numbers = #tpu.dot_dimension_numbers<[1], [0], [0], [1], [0, 0, 1, 1], [], []>} : vector<32x16xbf16>, vector<16x16xbf16>, vector<32x16xf32> -> vector<32x16xf32>
    %829 = arith.addf %535, %828 : vector<32x16xf32>
    %830 = arith.mulf %802, %811 : vector<32x16xf32>
    %cst_293 = arith.constant dense<0.000000e+00> : vector<32xf32>
    %831 = vector.multi_reduction <add>, %830, %cst_293 [1] : vector<32x16xf32> to vector<32xf32>
    %832 = vector.shape_cast %831 : vector<32xf32> to vector<32x1xf32>
    %833 = tpu.reciprocal %832 {approx = true} : vector<32x1xf32> -> vector<32x1xf32>
    %834 = vector.broadcast %833 : vector<32x1xf32> to vector<32x16xf32>
    %835 = arith.mulf %830, %834 : vector<32x16xf32>
    %836 = arith.truncf %835 : vector<32x16xf32> to vector<32x16xbf16>
    %cst_294 = arith.constant dense<0.000000e+00> : vector<32x16xf32>
    %837 = tpu.matmul %836, %660, %cst_294 {dimension_numbers = #tpu.dot_dimension_numbers<[1], [0], [0], [1], [0, 0, 1, 1], [], []>} : vector<32x16xbf16>, vector<16x16xbf16>, vector<32x16xf32> -> vector<32x16xf32>
    %838 = arith.addf %574, %837 : vector<32x16xf32>
    %839 = arith.mulf %804, %811 : vector<32x16xf32>
    %cst_295 = arith.constant dense<0.000000e+00> : vector<32xf32>
    %840 = vector.multi_reduction <add>, %839, %cst_295 [1] : vector<32x16xf32> to vector<32xf32>
    %841 = vector.shape_cast %840 : vector<32xf32> to vector<32x1xf32>
    %842 = tpu.reciprocal %841 {approx = true} : vector<32x1xf32> -> vector<32x1xf32>
    %843 = vector.broadcast %842 : vector<32x1xf32> to vector<32x16xf32>
    %844 = arith.mulf %839, %843 : vector<32x16xf32>
    %845 = arith.truncf %844 : vector<32x16xf32> to vector<32x16xbf16>
    %cst_296 = arith.constant dense<0.000000e+00> : vector<32x16xf32>
    %846 = tpu.matmul %845, %660, %cst_296 {dimension_numbers = #tpu.dot_dimension_numbers<[1], [0], [0], [1], [0, 0, 1, 1], [], []>} : vector<32x16xbf16>, vector<16x16xbf16>, vector<32x16xf32> -> vector<32x16xf32>
    %847 = arith.addf %613, %846 : vector<32x16xf32>
    %848 = arith.mulf %806, %811 : vector<32x16xf32>
    %cst_297 = arith.constant dense<0.000000e+00> : vector<32xf32>
    %849 = vector.multi_reduction <add>, %848, %cst_297 [1] : vector<32x16xf32> to vector<32xf32>
    %850 = vector.shape_cast %849 : vector<32xf32> to vector<32x1xf32>
    %851 = tpu.reciprocal %850 {approx = true} : vector<32x1xf32> -> vector<32x1xf32>
    %852 = vector.broadcast %851 : vector<32x1xf32> to vector<32x16xf32>
    %853 = arith.mulf %848, %852 : vector<32x16xf32>
    %854 = arith.truncf %853 : vector<32x16xf32> to vector<32x16xbf16>
    %cst_298 = arith.constant dense<0.000000e+00> : vector<32x16xf32>
    %855 = tpu.matmul %854, %660, %cst_298 {dimension_numbers = #tpu.dot_dimension_numbers<[1], [0], [0], [1], [0, 0, 1, 1], [], []>} : vector<32x16xbf16>, vector<16x16xbf16>, vector<32x16xf32> -> vector<32x16xf32>
    %856 = arith.addf %652, %855 : vector<32x16xf32>
    %cst_299 = arith.constant dense<0.000000e+00> : vector<32xf32>
    %857 = vector.multi_reduction <add>, %820, %cst_299 [1] : vector<32x16xf32> to vector<32xf32>
    %858 = vector.shape_cast %857 : vector<32xf32> to vector<32x1xf32>
    %cst_300 = arith.constant 1.600000e+01 : f32
    %859 = vector.broadcast %cst_300 : f32 to vector<32x1xf32>
    %860 = arith.divf %858, %859 : vector<32x1xf32>
    %861 = vector.broadcast %860 : vector<32x1xf32> to vector<32x16xf32>
    %862 = arith.subf %820, %861 : vector<32x16xf32>
    %863 = arith.mulf %862, %862 : vector<32x16xf32>
    %cst_301 = arith.constant dense<0.000000e+00> : vector<32xf32>
    %864 = vector.multi_reduction <add>, %863, %cst_301 [1] : vector<32x16xf32> to vector<32xf32>
    %865 = vector.shape_cast %864 : vector<32xf32> to vector<32x1xf32>
    %cst_302 = arith.constant 1.600000e+01 : f32
    %866 = vector.broadcast %cst_302 : f32 to vector<32x1xf32>
    %867 = arith.divf %865, %866 : vector<32x1xf32>
    %868 = vector.broadcast %860 : vector<32x1xf32> to vector<32x16xf32>
    %869 = arith.subf %820, %868 : vector<32x16xf32>
    %cst_303 = arith.constant 9.99999974E-6 : f32
    %870 = vector.broadcast %cst_303 : f32 to vector<32x1xf32>
    %871 = arith.addf %867, %870 : vector<32x1xf32>
    %872 = math.rsqrt %871 : vector<32x1xf32>
    %873 = vector.broadcast %872 : vector<32x1xf32> to vector<32x16xf32>
    %874 = arith.mulf %869, %873 : vector<32x16xf32>
    %875 = vector.broadcast %662 : vector<1x16xf32> to vector<32x16xf32>
    %876 = arith.mulf %874, %875 : vector<32x16xf32>
    %877 = vector.broadcast %664 : vector<1x16xf32> to vector<32x16xf32>
    %878 = arith.addf %876, %877 : vector<32x16xf32>
    %879 = arith.truncf %878 : vector<32x16xf32> to vector<32x16xbf16>
    %cst_304 = arith.constant dense<0.000000e+00> : vector<32x32xf32>
    %880 = tpu.matmul %879, %666, %cst_304 {dimension_numbers = #tpu.dot_dimension_numbers<[1], [0], [0], [1], [0, 0, 1, 1], [], []>} : vector<32x16xbf16>, vector<16x32xbf16>, vector<32x32xf32> -> vector<32x32xf32>
    %881 = vector.broadcast %668 : vector<1x32xf32> to vector<32x32xf32>
    %882 = arith.addf %880, %881 : vector<32x32xf32>
    %cst_305 = arith.constant 5.000000e-01 : f32
    %883 = vector.broadcast %cst_305 : f32 to vector<32x32xf32>
    %884 = arith.mulf %883, %882 : vector<32x32xf32>
    %cst_306 = arith.constant 0.707106769 : f32
    %885 = vector.broadcast %cst_306 : f32 to vector<32x32xf32>
    %886 = arith.mulf %882, %885 : vector<32x32xf32>
    %887 = math.erf %886 : vector<32x32xf32>
    %cst_307 = arith.constant 1.000000e+00 : f32
    %888 = vector.broadcast %cst_307 : f32 to vector<32x32xf32>
    %889 = arith.addf %888, %887 : vector<32x32xf32>
    %890 = arith.mulf %884, %889 : vector<32x32xf32>
    %891 = arith.truncf %890 : vector<32x32xf32> to vector<32x32xbf16>
    %cst_308 = arith.constant dense<0.000000e+00> : vector<32x16xf32>
    %892 = tpu.matmul %891, %670, %cst_308 {dimension_numbers = #tpu.dot_dimension_numbers<[1], [0], [0], [1], [0, 0, 1, 1], [], []>} : vector<32x32xbf16>, vector<32x16xbf16>, vector<32x16xf32> -> vector<32x16xf32>
    %893 = arith.addf %820, %892 : vector<32x16xf32>
    %894 = vector.broadcast %672 : vector<1x16xf32> to vector<32x16xf32>
    %895 = arith.addf %893, %894 : vector<32x16xf32>
    %cst_309 = arith.constant dense<0.000000e+00> : vector<32xf32>
    %896 = vector.multi_reduction <add>, %829, %cst_309 [1] : vector<32x16xf32> to vector<32xf32>
    %897 = vector.shape_cast %896 : vector<32xf32> to vector<32x1xf32>
    %cst_310 = arith.constant 1.600000e+01 : f32
    %898 = vector.broadcast %cst_310 : f32 to vector<32x1xf32>
    %899 = arith.divf %897, %898 : vector<32x1xf32>
    %900 = vector.broadcast %899 : vector<32x1xf32> to vector<32x16xf32>
    %901 = arith.subf %829, %900 : vector<32x16xf32>
    %902 = arith.mulf %901, %901 : vector<32x16xf32>
    %cst_311 = arith.constant dense<0.000000e+00> : vector<32xf32>
    %903 = vector.multi_reduction <add>, %902, %cst_311 [1] : vector<32x16xf32> to vector<32xf32>
    %904 = vector.shape_cast %903 : vector<32xf32> to vector<32x1xf32>
    %cst_312 = arith.constant 1.600000e+01 : f32
    %905 = vector.broadcast %cst_312 : f32 to vector<32x1xf32>
    %906 = arith.divf %904, %905 : vector<32x1xf32>
    %907 = vector.broadcast %899 : vector<32x1xf32> to vector<32x16xf32>
    %908 = arith.subf %829, %907 : vector<32x16xf32>
    %cst_313 = arith.constant 9.99999974E-6 : f32
    %909 = vector.broadcast %cst_313 : f32 to vector<32x1xf32>
    %910 = arith.addf %906, %909 : vector<32x1xf32>
    %911 = math.rsqrt %910 : vector<32x1xf32>
    %912 = vector.broadcast %911 : vector<32x1xf32> to vector<32x16xf32>
    %913 = arith.mulf %908, %912 : vector<32x16xf32>
    %914 = vector.broadcast %662 : vector<1x16xf32> to vector<32x16xf32>
    %915 = arith.mulf %913, %914 : vector<32x16xf32>
    %916 = vector.broadcast %664 : vector<1x16xf32> to vector<32x16xf32>
    %917 = arith.addf %915, %916 : vector<32x16xf32>
    %918 = arith.truncf %917 : vector<32x16xf32> to vector<32x16xbf16>
    %cst_314 = arith.constant dense<0.000000e+00> : vector<32x32xf32>
    %919 = tpu.matmul %918, %666, %cst_314 {dimension_numbers = #tpu.dot_dimension_numbers<[1], [0], [0], [1], [0, 0, 1, 1], [], []>} : vector<32x16xbf16>, vector<16x32xbf16>, vector<32x32xf32> -> vector<32x32xf32>
    %920 = vector.broadcast %668 : vector<1x32xf32> to vector<32x32xf32>
    %921 = arith.addf %919, %920 : vector<32x32xf32>
    %cst_315 = arith.constant 5.000000e-01 : f32
    %922 = vector.broadcast %cst_315 : f32 to vector<32x32xf32>
    %923 = arith.mulf %922, %921 : vector<32x32xf32>
    %cst_316 = arith.constant 0.707106769 : f32
    %924 = vector.broadcast %cst_316 : f32 to vector<32x32xf32>
    %925 = arith.mulf %921, %924 : vector<32x32xf32>
    %926 = math.erf %925 : vector<32x32xf32>
    %cst_317 = arith.constant 1.000000e+00 : f32
    %927 = vector.broadcast %cst_317 : f32 to vector<32x32xf32>
    %928 = arith.addf %927, %926 : vector<32x32xf32>
    %929 = arith.mulf %923, %928 : vector<32x32xf32>
    %930 = arith.truncf %929 : vector<32x32xf32> to vector<32x32xbf16>
    %cst_318 = arith.constant dense<0.000000e+00> : vector<32x16xf32>
    %931 = tpu.matmul %930, %670, %cst_318 {dimension_numbers = #tpu.dot_dimension_numbers<[1], [0], [0], [1], [0, 0, 1, 1], [], []>} : vector<32x32xbf16>, vector<32x16xbf16>, vector<32x16xf32> -> vector<32x16xf32>
    %932 = arith.addf %829, %931 : vector<32x16xf32>
    %933 = vector.broadcast %672 : vector<1x16xf32> to vector<32x16xf32>
    %934 = arith.addf %932, %933 : vector<32x16xf32>
    %cst_319 = arith.constant dense<0.000000e+00> : vector<32xf32>
    %935 = vector.multi_reduction <add>, %838, %cst_319 [1] : vector<32x16xf32> to vector<32xf32>
    %936 = vector.shape_cast %935 : vector<32xf32> to vector<32x1xf32>
    %cst_320 = arith.constant 1.600000e+01 : f32
    %937 = vector.broadcast %cst_320 : f32 to vector<32x1xf32>
    %938 = arith.divf %936, %937 : vector<32x1xf32>
    %939 = vector.broadcast %938 : vector<32x1xf32> to vector<32x16xf32>
    %940 = arith.subf %838, %939 : vector<32x16xf32>
    %941 = arith.mulf %940, %940 : vector<32x16xf32>
    %cst_321 = arith.constant dense<0.000000e+00> : vector<32xf32>
    %942 = vector.multi_reduction <add>, %941, %cst_321 [1] : vector<32x16xf32> to vector<32xf32>
    %943 = vector.shape_cast %942 : vector<32xf32> to vector<32x1xf32>
    %cst_322 = arith.constant 1.600000e+01 : f32
    %944 = vector.broadcast %cst_322 : f32 to vector<32x1xf32>
    %945 = arith.divf %943, %944 : vector<32x1xf32>
    %946 = vector.broadcast %938 : vector<32x1xf32> to vector<32x16xf32>
    %947 = arith.subf %838, %946 : vector<32x16xf32>
    %cst_323 = arith.constant 9.99999974E-6 : f32
    %948 = vector.broadcast %cst_323 : f32 to vector<32x1xf32>
    %949 = arith.addf %945, %948 : vector<32x1xf32>
    %950 = math.rsqrt %949 : vector<32x1xf32>
    %951 = vector.broadcast %950 : vector<32x1xf32> to vector<32x16xf32>
    %952 = arith.mulf %947, %951 : vector<32x16xf32>
    %953 = vector.broadcast %662 : vector<1x16xf32> to vector<32x16xf32>
    %954 = arith.mulf %952, %953 : vector<32x16xf32>
    %955 = vector.broadcast %664 : vector<1x16xf32> to vector<32x16xf32>
    %956 = arith.addf %954, %955 : vector<32x16xf32>
    %957 = arith.truncf %956 : vector<32x16xf32> to vector<32x16xbf16>
    %cst_324 = arith.constant dense<0.000000e+00> : vector<32x32xf32>
    %958 = tpu.matmul %957, %666, %cst_324 {dimension_numbers = #tpu.dot_dimension_numbers<[1], [0], [0], [1], [0, 0, 1, 1], [], []>} : vector<32x16xbf16>, vector<16x32xbf16>, vector<32x32xf32> -> vector<32x32xf32>
    %959 = vector.broadcast %668 : vector<1x32xf32> to vector<32x32xf32>
    %960 = arith.addf %958, %959 : vector<32x32xf32>
    %cst_325 = arith.constant 5.000000e-01 : f32
    %961 = vector.broadcast %cst_325 : f32 to vector<32x32xf32>
    %962 = arith.mulf %961, %960 : vector<32x32xf32>
    %cst_326 = arith.constant 0.707106769 : f32
    %963 = vector.broadcast %cst_326 : f32 to vector<32x32xf32>
    %964 = arith.mulf %960, %963 : vector<32x32xf32>
    %965 = math.erf %964 : vector<32x32xf32>
    %cst_327 = arith.constant 1.000000e+00 : f32
    %966 = vector.broadcast %cst_327 : f32 to vector<32x32xf32>
    %967 = arith.addf %966, %965 : vector<32x32xf32>
    %968 = arith.mulf %962, %967 : vector<32x32xf32>
    %969 = arith.truncf %968 : vector<32x32xf32> to vector<32x32xbf16>
    %cst_328 = arith.constant dense<0.000000e+00> : vector<32x16xf32>
    %970 = tpu.matmul %969, %670, %cst_328 {dimension_numbers = #tpu.dot_dimension_numbers<[1], [0], [0], [1], [0, 0, 1, 1], [], []>} : vector<32x32xbf16>, vector<32x16xbf16>, vector<32x16xf32> -> vector<32x16xf32>
    %971 = arith.addf %838, %970 : vector<32x16xf32>
    %972 = vector.broadcast %672 : vector<1x16xf32> to vector<32x16xf32>
    %973 = arith.addf %971, %972 : vector<32x16xf32>
    %cst_329 = arith.constant dense<0.000000e+00> : vector<32xf32>
    %974 = vector.multi_reduction <add>, %847, %cst_329 [1] : vector<32x16xf32> to vector<32xf32>
    %975 = vector.shape_cast %974 : vector<32xf32> to vector<32x1xf32>
    %cst_330 = arith.constant 1.600000e+01 : f32
    %976 = vector.broadcast %cst_330 : f32 to vector<32x1xf32>
    %977 = arith.divf %975, %976 : vector<32x1xf32>
    %978 = vector.broadcast %977 : vector<32x1xf32> to vector<32x16xf32>
    %979 = arith.subf %847, %978 : vector<32x16xf32>
    %980 = arith.mulf %979, %979 : vector<32x16xf32>
    %cst_331 = arith.constant dense<0.000000e+00> : vector<32xf32>
    %981 = vector.multi_reduction <add>, %980, %cst_331 [1] : vector<32x16xf32> to vector<32xf32>
    %982 = vector.shape_cast %981 : vector<32xf32> to vector<32x1xf32>
    %cst_332 = arith.constant 1.600000e+01 : f32
    %983 = vector.broadcast %cst_332 : f32 to vector<32x1xf32>
    %984 = arith.divf %982, %983 : vector<32x1xf32>
    %985 = vector.broadcast %977 : vector<32x1xf32> to vector<32x16xf32>
    %986 = arith.subf %847, %985 : vector<32x16xf32>
    %cst_333 = arith.constant 9.99999974E-6 : f32
    %987 = vector.broadcast %cst_333 : f32 to vector<32x1xf32>
    %988 = arith.addf %984, %987 : vector<32x1xf32>
    %989 = math.rsqrt %988 : vector<32x1xf32>
    %990 = vector.broadcast %989 : vector<32x1xf32> to vector<32x16xf32>
    %991 = arith.mulf %986, %990 : vector<32x16xf32>
    %992 = vector.broadcast %662 : vector<1x16xf32> to vector<32x16xf32>
    %993 = arith.mulf %991, %992 : vector<32x16xf32>
    %994 = vector.broadcast %664 : vector<1x16xf32> to vector<32x16xf32>
    %995 = arith.addf %993, %994 : vector<32x16xf32>
    %996 = arith.truncf %995 : vector<32x16xf32> to vector<32x16xbf16>
    %cst_334 = arith.constant dense<0.000000e+00> : vector<32x32xf32>
    %997 = tpu.matmul %996, %666, %cst_334 {dimension_numbers = #tpu.dot_dimension_numbers<[1], [0], [0], [1], [0, 0, 1, 1], [], []>} : vector<32x16xbf16>, vector<16x32xbf16>, vector<32x32xf32> -> vector<32x32xf32>
    %998 = vector.broadcast %668 : vector<1x32xf32> to vector<32x32xf32>
    %999 = arith.addf %997, %998 : vector<32x32xf32>
    %cst_335 = arith.constant 5.000000e-01 : f32
    %1000 = vector.broadcast %cst_335 : f32 to vector<32x32xf32>
    %1001 = arith.mulf %1000, %999 : vector<32x32xf32>
    %cst_336 = arith.constant 0.707106769 : f32
    %1002 = vector.broadcast %cst_336 : f32 to vector<32x32xf32>
    %1003 = arith.mulf %999, %1002 : vector<32x32xf32>
    %1004 = math.erf %1003 : vector<32x32xf32>
    %cst_337 = arith.constant 1.000000e+00 : f32
    %1005 = vector.broadcast %cst_337 : f32 to vector<32x32xf32>
    %1006 = arith.addf %1005, %1004 : vector<32x32xf32>
    %1007 = arith.mulf %1001, %1006 : vector<32x32xf32>
    %1008 = arith.truncf %1007 : vector<32x32xf32> to vector<32x32xbf16>
    %cst_338 = arith.constant dense<0.000000e+00> : vector<32x16xf32>
    %1009 = tpu.matmul %1008, %670, %cst_338 {dimension_numbers = #tpu.dot_dimension_numbers<[1], [0], [0], [1], [0, 0, 1, 1], [], []>} : vector<32x32xbf16>, vector<32x16xbf16>, vector<32x16xf32> -> vector<32x16xf32>
    %1010 = arith.addf %847, %1009 : vector<32x16xf32>
    %1011 = vector.broadcast %672 : vector<1x16xf32> to vector<32x16xf32>
    %1012 = arith.addf %1010, %1011 : vector<32x16xf32>
    %cst_339 = arith.constant dense<0.000000e+00> : vector<32xf32>
    %1013 = vector.multi_reduction <add>, %856, %cst_339 [1] : vector<32x16xf32> to vector<32xf32>
    %1014 = vector.shape_cast %1013 : vector<32xf32> to vector<32x1xf32>
    %cst_340 = arith.constant 1.600000e+01 : f32
    %1015 = vector.broadcast %cst_340 : f32 to vector<32x1xf32>
    %1016 = arith.divf %1014, %1015 : vector<32x1xf32>
    %1017 = vector.broadcast %1016 : vector<32x1xf32> to vector<32x16xf32>
    %1018 = arith.subf %856, %1017 : vector<32x16xf32>
    %1019 = arith.mulf %1018, %1018 : vector<32x16xf32>
    %cst_341 = arith.constant dense<0.000000e+00> : vector<32xf32>
    %1020 = vector.multi_reduction <add>, %1019, %cst_341 [1] : vector<32x16xf32> to vector<32xf32>
    %1021 = vector.shape_cast %1020 : vector<32xf32> to vector<32x1xf32>
    %cst_342 = arith.constant 1.600000e+01 : f32
    %1022 = vector.broadcast %cst_342 : f32 to vector<32x1xf32>
    %1023 = arith.divf %1021, %1022 : vector<32x1xf32>
    %1024 = vector.broadcast %1016 : vector<32x1xf32> to vector<32x16xf32>
    %1025 = arith.subf %856, %1024 : vector<32x16xf32>
    %cst_343 = arith.constant 9.99999974E-6 : f32
    %1026 = vector.broadcast %cst_343 : f32 to vector<32x1xf32>
    %1027 = arith.addf %1023, %1026 : vector<32x1xf32>
    %1028 = math.rsqrt %1027 : vector<32x1xf32>
    %1029 = vector.broadcast %1028 : vector<32x1xf32> to vector<32x16xf32>
    %1030 = arith.mulf %1025, %1029 : vector<32x16xf32>
    %1031 = vector.broadcast %662 : vector<1x16xf32> to vector<32x16xf32>
    %1032 = arith.mulf %1030, %1031 : vector<32x16xf32>
    %1033 = vector.broadcast %664 : vector<1x16xf32> to vector<32x16xf32>
    %1034 = arith.addf %1032, %1033 : vector<32x16xf32>
    %1035 = arith.truncf %1034 : vector<32x16xf32> to vector<32x16xbf16>
    %cst_344 = arith.constant dense<0.000000e+00> : vector<32x32xf32>
    %1036 = tpu.matmul %1035, %666, %cst_344 {dimension_numbers = #tpu.dot_dimension_numbers<[1], [0], [0], [1], [0, 0, 1, 1], [], []>} : vector<32x16xbf16>, vector<16x32xbf16>, vector<32x32xf32> -> vector<32x32xf32>
    %1037 = vector.broadcast %668 : vector<1x32xf32> to vector<32x32xf32>
    %1038 = arith.addf %1036, %1037 : vector<32x32xf32>
    %cst_345 = arith.constant 5.000000e-01 : f32
    %1039 = vector.broadcast %cst_345 : f32 to vector<32x32xf32>
    %1040 = arith.mulf %1039, %1038 : vector<32x32xf32>
    %cst_346 = arith.constant 0.707106769 : f32
    %1041 = vector.broadcast %cst_346 : f32 to vector<32x32xf32>
    %1042 = arith.mulf %1038, %1041 : vector<32x32xf32>
    %1043 = math.erf %1042 : vector<32x32xf32>
    %cst_347 = arith.constant 1.000000e+00 : f32
    %1044 = vector.broadcast %cst_347 : f32 to vector<32x32xf32>
    %1045 = arith.addf %1044, %1043 : vector<32x32xf32>
    %1046 = arith.mulf %1040, %1045 : vector<32x32xf32>
    %1047 = arith.truncf %1046 : vector<32x32xf32> to vector<32x32xbf16>
    %cst_348 = arith.constant dense<0.000000e+00> : vector<32x16xf32>
    %1048 = tpu.matmul %1047, %670, %cst_348 {dimension_numbers = #tpu.dot_dimension_numbers<[1], [0], [0], [1], [0, 0, 1, 1], [], []>} : vector<32x32xbf16>, vector<32x16xbf16>, vector<32x16xf32> -> vector<32x16xf32>
    %1049 = arith.addf %856, %1048 : vector<32x16xf32>
    %1050 = vector.broadcast %672 : vector<1x16xf32> to vector<32x16xf32>
    %1051 = arith.addf %1049, %1050 : vector<32x16xf32>
    %c0_349 = arith.constant 0 : index
    %c0_350 = arith.constant 0 : index
    %1052 = vector.load %arg26[%c0_349, %c0_350] : memref<1x16xf32, #tpu.memory_space<vmem>>, vector<1x16xf32>
    %1053 = vector.broadcast %1052 : vector<1x16xf32> to vector<32x16xf32>
    %1054 = arith.addf %895, %1053 : vector<32x16xf32>
    %c0_351 = arith.constant 0 : index
    %c0_352 = arith.constant 0 : index
    %c0_353 = arith.constant 0 : index
    %1055 = vector.load %arg25[%c0_351, %c0_352, %c0_353] : memref<4x16x16xbf16, #tpu.memory_space<vmem>>, vector<1x16x16xbf16>
    %1056 = vector.shape_cast %1055 : vector<1x16x16xbf16> to vector<16x16xbf16>
    %1057 = arith.truncf %934 : vector<32x16xf32> to vector<32x16xbf16>
    %cst_354 = arith.constant dense<0.000000e+00> : vector<32x16xf32>
    %1058 = tpu.matmul %1057, %1056, %cst_354 {dimension_numbers = #tpu.dot_dimension_numbers<[1], [0], [0], [1], [0, 0, 1, 1], [], []>} : vector<32x16xbf16>, vector<16x16xbf16>, vector<32x16xf32> -> vector<32x16xf32>
    %1059 = arith.addf %1054, %1058 : vector<32x16xf32>
    %c1_355 = arith.constant 1 : index
    %c0_356 = arith.constant 0 : index
    %c0_357 = arith.constant 0 : index
    %1060 = vector.load %arg25[%c1_355, %c0_356, %c0_357] : memref<4x16x16xbf16, #tpu.memory_space<vmem>>, vector<1x16x16xbf16>
    %1061 = vector.shape_cast %1060 : vector<1x16x16xbf16> to vector<16x16xbf16>
    %1062 = arith.truncf %973 : vector<32x16xf32> to vector<32x16xbf16>
    %cst_358 = arith.constant dense<0.000000e+00> : vector<32x16xf32>
    %1063 = tpu.matmul %1062, %1061, %cst_358 {dimension_numbers = #tpu.dot_dimension_numbers<[1], [0], [0], [1], [0, 0, 1, 1], [], []>} : vector<32x16xbf16>, vector<16x16xbf16>, vector<32x16xf32> -> vector<32x16xf32>
    %1064 = arith.addf %1059, %1063 : vector<32x16xf32>
    %c2_359 = arith.constant 2 : index
    %c0_360 = arith.constant 0 : index
    %c0_361 = arith.constant 0 : index
    %1065 = vector.load %arg25[%c2_359, %c0_360, %c0_361] : memref<4x16x16xbf16, #tpu.memory_space<vmem>>, vector<1x16x16xbf16>
    %1066 = vector.shape_cast %1065 : vector<1x16x16xbf16> to vector<16x16xbf16>
    %1067 = arith.truncf %1012 : vector<32x16xf32> to vector<32x16xbf16>
    %cst_362 = arith.constant dense<0.000000e+00> : vector<32x16xf32>
    %1068 = tpu.matmul %1067, %1066, %cst_362 {dimension_numbers = #tpu.dot_dimension_numbers<[1], [0], [0], [1], [0, 0, 1, 1], [], []>} : vector<32x16xbf16>, vector<16x16xbf16>, vector<32x16xf32> -> vector<32x16xf32>
    %1069 = arith.addf %1064, %1068 : vector<32x16xf32>
    %c3_363 = arith.constant 3 : index
    %c0_364 = arith.constant 0 : index
    %c0_365 = arith.constant 0 : index
    %1070 = vector.load %arg25[%c3_363, %c0_364, %c0_365] : memref<4x16x16xbf16, #tpu.memory_space<vmem>>, vector<1x16x16xbf16>
    %1071 = vector.shape_cast %1070 : vector<1x16x16xbf16> to vector<16x16xbf16>
    %1072 = arith.truncf %1051 : vector<32x16xf32> to vector<32x16xbf16>
    %cst_366 = arith.constant dense<0.000000e+00> : vector<32x16xf32>
    %1073 = tpu.matmul %1072, %1071, %cst_366 {dimension_numbers = #tpu.dot_dimension_numbers<[1], [0], [0], [1], [0, 0, 1, 1], [], []>} : vector<32x16xbf16>, vector<16x16xbf16>, vector<32x16xf32> -> vector<32x16xf32>
    %1074 = arith.addf %1069, %1073 : vector<32x16xf32>
    %c0_367 = arith.constant 0 : index
    %c0_368 = arith.constant 0 : index
    %1075 = vector.load %arg28[%c0_367, %c0_368] : memref<32x16xf32, #tpu.memory_space<vmem>>, vector<32x16xf32>
    tpu.vector_store %arg28[%c0_367, %c0_368], %1074 {strides = array<i32>} : memref<32x16xf32, #tpu.memory_space<vmem>>, vector<32x16xf32>,
    return
  }
  func.func @transform_0(%arg0: i32) -> (i32, i32, i32) {
    %c0_i32 = arith.constant 0 : i32
    %c0_i32_0 = arith.constant 0 : i32
    %c0_i32_1 = arith.constant 0 : i32
    return %c0_i32, %arg0, %c0_i32_0 : i32, i32, i32
  }
  func.func @transform_1(%arg0: i32) -> (i32, i32, i32) {
    %c0_i32 = arith.constant 0 : i32
    %c0_i32_0 = arith.constant 0 : i32
    %c0_i32_1 = arith.constant 0 : i32
    %c0_i32_2 = arith.constant 0 : i32
    return %c0_i32, %c0_i32_0, %c0_i32_1 : i32, i32, i32
  }
  func.func @transform_2(%arg0: i32) -> (i32, i32) {
    %c0_i32 = arith.constant 0 : i32
    %c0_i32_0 = arith.constant 0 : i32
    %c0_i32_1 = arith.constant 0 : i32
    return %c0_i32, %c0_i32_0 : i32, i32
  }
  func.func @transform_3(%arg0: i32) -> (i32, i32, i32) {
    %c0_i32 = arith.constant 0 : i32
    %c0_i32_0 = arith.constant 0 : i32
    %c0_i32_1 = arith.constant 0 : i32
    %c0_i32_2 = arith.constant 0 : i32
    return %c0_i32, %c0_i32_0, %c0_i32_1 : i32, i32, i32
  }
  func.func @transform_4(%arg0: i32) -> (i32, i32, i32) {
    %c0_i32 = arith.constant 0 : i32
    %c0_i32_0 = arith.constant 0 : i32
    %c0_i32_1 = arith.constant 0 : i32
    %c0_i32_2 = arith.constant 0 : i32
    return %c0_i32, %c0_i32_0, %c0_i32_1 : i32, i32, i32
  }
  func.func @transform_5(%arg0: i32) -> (i32, i32, i32) {
    %c0_i32 = arith.constant 0 : i32
    %c0_i32_0 = arith.constant 0 : i32
    %c0_i32_1 = arith.constant 0 : i32
    %c0_i32_2 = arith.constant 0 : i32
    return %c0_i32, %c0_i32_0, %c0_i32_1 : i32, i32, i32
  }
  func.func @transform_6(%arg0: i32) -> (i32, i32, i32) {
    %c0_i32 = arith.constant 0 : i32
    %c0_i32_0 = arith.constant 0 : i32
    %c0_i32_1 = arith.constant 0 : i32
    %c0_i32_2 = arith.constant 0 : i32
    return %c0_i32, %c0_i32_0, %c0_i32_1 : i32, i32, i32
  }
  func.func @transform_7(%arg0: i32) -> (i32, i32, i32) {
    %c0_i32 = arith.constant 0 : i32
    %c0_i32_0 = arith.constant 0 : i32
    %c0_i32_1 = arith.constant 0 : i32
    %c0_i32_2 = arith.constant 0 : i32
    return %c0_i32, %c0_i32_0, %c0_i32_1 : i32, i32, i32
  }
  func.func @transform_8(%arg0: i32) -> (i32, i32, i32) {
    %c0_i32 = arith.constant 0 : i32
    %c0_i32_0 = arith.constant 0 : i32
    %c0_i32_1 = arith.constant 0 : i32
    %c0_i32_2 = arith.constant 0 : i32
    return %c0_i32, %c0_i32_0, %c0_i32_1 : i32, i32, i32
  }
  func.func @transform_9(%arg0: i32) -> (i32, i32, i32) {
    %c0_i32 = arith.constant 0 : i32
    %c0_i32_0 = arith.constant 0 : i32
    %c0_i32_1 = arith.constant 0 : i32
    %c0_i32_2 = arith.constant 0 : i32
    return %c0_i32, %c0_i32_0, %c0_i32_1 : i32, i32, i32
  }
  func.func @transform_10(%arg0: i32) -> (i32, i32, i32) {
    %c0_i32 = arith.constant 0 : i32
    %c0_i32_0 = arith.constant 0 : i32
    %c0_i32_1 = arith.constant 0 : i32
    %c0_i32_2 = arith.constant 0 : i32
    return %c0_i32, %c0_i32_0, %c0_i32_1 : i32, i32, i32
  }
  func.func @transform_11(%arg0: i32) -> (i32, i32, i32) {
    %c0_i32 = arith.constant 0 : i32
    %c0_i32_0 = arith.constant 0 : i32
    %c0_i32_1 = arith.constant 0 : i32
    %c0_i32_2 = arith.constant 0 : i32
    return %c0_i32, %c0_i32_0, %c0_i32_1 : i32, i32, i32
  }
  func.func @transform_12(%arg0: i32) -> (i32, i32, i32) {
    %c0_i32 = arith.constant 0 : i32
    %c0_i32_0 = arith.constant 0 : i32
    %c0_i32_1 = arith.constant 0 : i32
    %c0_i32_2 = arith.constant 0 : i32
    return %c0_i32, %c0_i32_0, %c0_i32_1 : i32, i32, i32
  }
  func.func @transform_13(%arg0: i32) -> (i32, i32) {
    %c0_i32 = arith.constant 0 : i32
    %c0_i32_0 = arith.constant 0 : i32
    %c0_i32_1 = arith.constant 0 : i32
    return %c0_i32, %c0_i32_0 : i32, i32
  }
  func.func @transform_14(%arg0: i32) -> (i32, i32, i32) {
    %c0_i32 = arith.constant 0 : i32
    %c0_i32_0 = arith.constant 0 : i32
    %c0_i32_1 = arith.constant 0 : i32
    %c0_i32_2 = arith.constant 0 : i32
    return %c0_i32, %c0_i32_0, %c0_i32_1 : i32, i32, i32
  }
  func.func @transform_15(%arg0: i32) -> (i32, i32, i32) {
    %c0_i32 = arith.constant 0 : i32
    %c0_i32_0 = arith.constant 0 : i32
    %c0_i32_1 = arith.constant 0 : i32
    %c0_i32_2 = arith.constant 0 : i32
    return %c0_i32, %c0_i32_0, %c0_i32_1 : i32, i32, i32
  }
  func.func @transform_16(%arg0: i32) -> (i32, i32, i32) {
    %c0_i32 = arith.constant 0 : i32
    %c0_i32_0 = arith.constant 0 : i32
    %c0_i32_1 = arith.constant 0 : i32
    %c0_i32_2 = arith.constant 0 : i32
    return %c0_i32, %c0_i32_0, %c0_i32_1 : i32, i32, i32
  }
  func.func @transform_17(%arg0: i32) -> (i32, i32, i32) {
    %c0_i32 = arith.constant 0 : i32
    %c0_i32_0 = arith.constant 0 : i32
    %c0_i32_1 = arith.constant 0 : i32
    %c0_i32_2 = arith.constant 0 : i32
    return %c0_i32, %c0_i32_0, %c0_i32_1 : i32, i32, i32
  }
  func.func @transform_18(%arg0: i32) -> (i32, i32, i32) {
    %c0_i32 = arith.constant 0 : i32
    %c0_i32_0 = arith.constant 0 : i32
    %c0_i32_1 = arith.constant 0 : i32
    %c0_i32_2 = arith.constant 0 : i32
    return %c0_i32, %c0_i32_0, %c0_i32_1 : i32, i32, i32
  }
  func.func @transform_19(%arg0: i32) -> (i32, i32, i32) {
    %c0_i32 = arith.constant 0 : i32
    %c0_i32_0 = arith.constant 0 : i32
    %c0_i32_1 = arith.constant 0 : i32
    %c0_i32_2 = arith.constant 0 : i32
    return %c0_i32, %c0_i32_0, %c0_i32_1 : i32, i32, i32
  }
  func.func @transform_20(%arg0: i32) -> (i32, i32, i32) {
    %c0_i32 = arith.constant 0 : i32
    %c0_i32_0 = arith.constant 0 : i32
    %c0_i32_1 = arith.constant 0 : i32
    %c0_i32_2 = arith.constant 0 : i32
    return %c0_i32, %c0_i32_0, %c0_i32_1 : i32, i32, i32
  }
  func.func @transform_21(%arg0: i32) -> (i32, i32, i32) {
    %c0_i32 = arith.constant 0 : i32
    %c0_i32_0 = arith.constant 0 : i32
    %c0_i32_1 = arith.constant 0 : i32
    %c0_i32_2 = arith.constant 0 : i32
    return %c0_i32, %c0_i32_0, %c0_i32_1 : i32, i32, i32
  }
  func.func @transform_22(%arg0: i32) -> (i32, i32, i32) {
    %c0_i32 = arith.constant 0 : i32
    %c0_i32_0 = arith.constant 0 : i32
    %c0_i32_1 = arith.constant 0 : i32
    %c0_i32_2 = arith.constant 0 : i32
    return %c0_i32, %c0_i32_0, %c0_i32_1 : i32, i32, i32
  }
  func.func @transform_23(%arg0: i32) -> (i32, i32, i32) {
    %c0_i32 = arith.constant 0 : i32
    %c0_i32_0 = arith.constant 0 : i32
    %c0_i32_1 = arith.constant 0 : i32
    %c0_i32_2 = arith.constant 0 : i32
    return %c0_i32, %c0_i32_0, %c0_i32_1 : i32, i32, i32
  }
  func.func @transform_24(%arg0: i32) -> (i32, i32, i32) {
    %c0_i32 = arith.constant 0 : i32
    %c0_i32_0 = arith.constant 0 : i32
    %c0_i32_1 = arith.constant 0 : i32
    %c0_i32_2 = arith.constant 0 : i32
    return %c0_i32, %c0_i32_0, %c0_i32_1 : i32, i32, i32
  }
  func.func @transform_25(%arg0: i32) -> (i32, i32) {
    %c0_i32 = arith.constant 0 : i32
    %c0_i32_0 = arith.constant 0 : i32
    %c0_i32_1 = arith.constant 0 : i32
    return %c0_i32, %c0_i32_0 : i32, i32
  }
  func.func @transform_26(%arg0: i32) -> (i32, i32) {
    %c0_i32 = arith.constant 0 : i32
    %c0_i32_0 = arith.constant 0 : i32
    return %arg0, %c0_i32 : i32, i32
  }
  func.func @transform_27(%arg0: i32) -> (i32, i32) {
    %c0_i32 = arith.constant 0 : i32
    %c0_i32_0 = arith.constant 0 : i32
    return %arg0, %c0_i32 : i32, i32
  }
}

</mosaic_0001>

<llo_original>
// kernel: msfa_forward.1
$region0: #{msfa_forward.1}
  #allocation0 [shape = 'u32[]', space=smem, size = 0x4, offset = 0x4, fixed_abs, tag = 'smem constant byte address 0x4 - core index']
  #allocation1 [shape = 'u32[144,128]{1,0:T(1,128)}', space=vmem, size = 0x12000, scoped, tag = 'internal scratch']
  %s0 = inlined_call_operand.vmem [shape: f32[4,32,16], index: 0, kind: input, shape index: {}]
  %s1 = inlined_call_operand.vmem [shape: f32[4,1,16], index: 1, kind: input, shape index: {}]
  %s2 = inlined_call_operand.vmem [shape: f32[1,16], index: 2, kind: input, shape index: {}]
  %s3 = inlined_call_operand.vmem [shape: f32[1,1,16], index: 3, kind: input, shape index: {}]
  %s4 = inlined_call_operand.vmem [shape: f32[1,1,16], index: 4, kind: input, shape index: {}]
  %s5 = inlined_call_operand.vmem [shape: bf16[1,16,8], index: 5, kind: input, shape index: {}]
  %s6 = inlined_call_operand.vmem [shape: bf16[1,8,16], index: 6, kind: input, shape index: {}]
  %s7 = inlined_call_operand.vmem [shape: f32[1,1,16], index: 7, kind: input, shape index: {}]
  %s8 = inlined_call_operand.vmem [shape: f32[1,1,16], index: 8, kind: input, shape index: {}]
  %s9 = inlined_call_operand.vmem [shape: bf16[1,16,32], index: 9, kind: input, shape index: {}]
  %s10 = inlined_call_operand.vmem [shape: f32[1,1,32], index: 10, kind: input, shape index: {}]
  %s11 = inlined_call_operand.vmem [shape: bf16[1,32,16], index: 11, kind: input, shape index: {}]
  %s12 = inlined_call_operand.vmem [shape: f32[1,1,16], index: 12, kind: input, shape index: {}]
  %s13 = inlined_call_operand.vmem [shape: f32[1,16], index: 13, kind: input, shape index: {}]
  %s14 = inlined_call_operand.vmem [shape: f32[2,1,16], index: 14, kind: input, shape index: {}]
  %s15 = inlined_call_operand.vmem [shape: f32[2,1,16], index: 15, kind: input, shape index: {}]
  %s16 = inlined_call_operand.vmem [shape: bf16[2,16,16], index: 16, kind: input, shape index: {}]
  %s17 = inlined_call_operand.vmem [shape: bf16[2,16,16], index: 17, kind: input, shape index: {}]
  %s18 = inlined_call_operand.vmem [shape: f32[2,1,16], index: 18, kind: input, shape index: {}]
  %s19 = inlined_call_operand.vmem [shape: f32[2,1,16], index: 19, kind: input, shape index: {}]
  %s20 = inlined_call_operand.vmem [shape: bf16[2,16,32], index: 20, kind: input, shape index: {}]
  %s21 = inlined_call_operand.vmem [shape: f32[2,1,32], index: 21, kind: input, shape index: {}]
  %s22 = inlined_call_operand.vmem [shape: bf16[2,32,16], index: 22, kind: input, shape index: {}]
  %s23 = inlined_call_operand.vmem [shape: f32[2,1,16], index: 23, kind: input, shape index: {}]
  %s24 = inlined_call_operand.vmem [shape: bf16[4,16,16], index: 24, kind: input, shape index: {}]
  %s25 = inlined_call_operand.vmem [shape: f32[1,16], index: 25, kind: input, shape index: {}]
  %s26 = inlined_call_operand.hbm [shape: f32[32,16], index: 26, kind: output, shape index: {0}]
  %s27 = inlined_call_operand.hbm [shape: f32[32,16], index: 27, kind: output, shape index: {1}]
  %28 = xla_tuple %s26, %s27
  %s29 = sld [smem:[#allocation0]]
  $region122: #{msfa_forward.1} parent=0
    _
  %s31 = ssub.s32 1, %s29
  %s32 = scalar_select 0, %s31, %s29
  $region1: #{msfa_forward.1} parent=0
    #allocation2 [shape = 'u8[16384]{0}', space=vmem, size = 0x4000, scoped, tag = 'output window, operand 0, single buffered']
    #allocation3 [shape = 's32[1]{0}', space=sflag, size = 0x4, scoped, tag = 'scoped memory for msfa_forward.1']
    #allocation4 [shape = 'u8[16384]{0}', space=vmem, size = 0x4000, scoped, tag = 'output window, operand 1, single buffered']
    #allocation5 [shape = 's32[1]{0}', space=sflag, size = 0x4, scoped, tag = 'scoped memory for msfa_forward.1']
    %33 = vsyncpa [#allocation3], 0
    %34 = vsyncpa [#allocation5], 0
    // Predicated region
    $region2: #{msfa_forward.1} parent=1 // pred_check
      _
    $region3: #{msfa_forward.1} parent=1 // pred_check_branch
      %36 = sbr.rel (0) target = $region5
    $region4: #{msfa_forward.1} parent=1 // pred_region
      _
    $region5: #{msfa_forward.1} parent=1 // pred_fallthru
      _
    // Predicated region
    $region6: #{msfa_forward.1} parent=1 // pred_check
      _
    $region7: #{msfa_forward.1} parent=1 // pred_check_branch
      %38 = sbr.rel (0) target = $region9
    $region8: #{msfa_forward.1} parent=1 // pred_region
      _
    $region9: #{msfa_forward.1} parent=1 // pred_fallthru
      _
    // Predicated region
    $region10: #{msfa_forward.1} parent=1 // pred_check
      _
    $region11: #{msfa_forward.1} parent=1 // pred_check_branch
      %40 = sbr.rel (0) target = $region13
    $region12: #{msfa_forward.1} parent=1 // pred_region
      _
    $region13: #{msfa_forward.1} parent=1 // pred_fallthru
      _
    // Predicated region
    $region14: #{msfa_forward.1} parent=1 // pred_check
      _
    $region15: #{msfa_forward.1} parent=1 // pred_check_branch
      %42 = sbr.rel (0) target = $region17
    $region16: #{msfa_forward.1} parent=1 // pred_region
      _
    $region17: #{msfa_forward.1} parent=1 // pred_fallthru
      _
    // Predicated region
    $region18: #{msfa_forward.1} parent=1 // pred_check
      _
    $region19: #{msfa_forward.1} parent=1 // pred_check_branch
      %44 = sbr.rel (0) target = $region21
    $region20: #{msfa_forward.1} parent=1 // pred_region
      _
    $region21: #{msfa_forward.1} parent=1 // pred_fallthru
      _
    // Predicated region
    $region22: #{msfa_forward.1} parent=1 // pred_check
      _
    $region23: #{msfa_forward.1} parent=1 // pred_check_branch
      %46 = sbr.rel (0) target = $region25
    $region24: #{msfa_forward.1} parent=1 // pred_region
      _
    $region25: #{msfa_forward.1} parent=1 // pred_fallthru
      _
    // Predicated region
    $region26: #{msfa_forward.1} parent=1 // pred_check
      _
    $region27: #{msfa_forward.1} parent=1 // pred_check_branch
      %48 = sbr.rel (0) target = $region29
    $region28: #{msfa_forward.1} parent=1 // pred_region
      _
    $region29: #{msfa_forward.1} parent=1 // pred_fallthru
      _
    // Predicated region
    $region30: #{msfa_forward.1} parent=1 // pred_check
      _
    $region31: #{msfa_forward.1} parent=1 // pred_check_branch
      %50 = sbr.rel (0) target = $region33
    $region32: #{msfa_forward.1} parent=1 // pred_region
      _
    $region33: #{msfa_forward.1} parent=1 // pred_fallthru
      _
    // Predicated region
    $region34: #{msfa_forward.1} parent=1 // pred_check
      _
    $region35: #{msfa_forward.1} parent=1 // pred_check_branch
      %52 = sbr.rel (0) target = $region37
    $region36: #{msfa_forward.1} parent=1 // pred_region
      _
    $region37: #{msfa_forward.1} parent=1 // pred_fallthru
      _
    // Predicated region
    $region38: #{msfa_forward.1} parent=1 // pred_check
      _
    $region39: #{msfa_forward.1} parent=1 // pred_check_branch
      %54 = sbr.rel (0) target = $region41
    $region40: #{msfa_forward.1} parent=1 // pred_region
      _
    $region41: #{msfa_forward.1} parent=1 // pred_fallthru
      _
    // Predicated region
    $region42: #{msfa_forward.1} parent=1 // pred_check
      _
    $region43: #{msfa_forward.1} parent=1 // pred_check_branch
      %56 = sbr.rel (0) target = $region45
    $region44: #{msfa_forward.1} parent=1 // pred_region
      _
    $region45: #{msfa_forward.1} parent=1 // pred_fallthru
      _
    // Predicated region
    $region46: #{msfa_forward.1} parent=1 // pred_check
      _
    $region47: #{msfa_forward.1} parent=1 // pred_check_branch
      %58 = sbr.rel (0) target = $region49
    $region48: #{msfa_forward.1} parent=1 // pred_region
      _
    $region49: #{msfa_forward.1} parent=1 // pred_fallthru
      _
    // Predicated region
    $region50: #{msfa_forward.1} parent=1 // pred_check
      _
    $region51: #{msfa_forward.1} parent=1 // pred_check_branch
      %60 = sbr.rel (0) target = $region53
    $region52: #{msfa_forward.1} parent=1 // pred_region
      _
    $region53: #{msfa_forward.1} parent=1 // pred_fallthru
      _
    // Predicated region
    $region54: #{msfa_forward.1} parent=1 // pred_check
      _
    $region55: #{msfa_forward.1} parent=1 // pred_check_branch
      %62 = sbr.rel (0) target = $region57
    $region56: #{msfa_forward.1} parent=1 // pred_region
      _
    $region57: #{msfa_forward.1} parent=1 // pred_fallthru
      _
    // Predicated region
    $region58: #{msfa_forward.1} parent=1 // pred_check
      _
    $region59: #{msfa_forward.1} parent=1 // pred_check_branch
      %64 = sbr.rel (0) target = $region61
    $region60: #{msfa_forward.1} parent=1 // pred_region
      _
    $region61: #{msfa_forward.1} parent=1 // pred_fallthru
      _
    // Predicated region
    $region62: #{msfa_forward.1} parent=1 // pred_check
      _
    $region63: #{msfa_forward.1} parent=1 // pred_check_branch
      %66 = sbr.rel (0) target = $region65
    $region64: #{msfa_forward.1} parent=1 // pred_region
      _
    $region65: #{msfa_forward.1} parent=1 // pred_fallthru
      _
    // Predicated region
    $region66: #{msfa_forward.1} parent=1 // pred_check
      _
    $region67: #{msfa_forward.1} parent=1 // pred_check_branch
      %68 = sbr.rel (0) target = $region69
    $region68: #{msfa_forward.1} parent=1 // pred_region
      _
    $region69: #{msfa_forward.1} parent=1 // pred_fallthru
      _
    // Predicated region
    $region70: #{msfa_forward.1} parent=1 // pred_check
      _
    $region71: #{msfa_forward.1} parent=1 // pred_check_branch
      %70 = sbr.rel (0) target = $region73
    $region72: #{msfa_forward.1} parent=1 // pred_region
      _
    $region73: #{msfa_forward.1} parent=1 // pred_fallthru
      _
    // Predicated region
    $region74: #{msfa_forward.1} parent=1 // pred_check
      _
    $region75: #{msfa_forward.1} parent=1 // pred_check_branch
      %72 = sbr.rel (0) target = $region77
    $region76: #{msfa_forward.1} parent=1 // pred_region
      _
    $region77: #{msfa_forward.1} parent=1 // pred_fallthru
      _
    // Predicated region
    $region78: #{msfa_forward.1} parent=1 // pred_check
      _
    $region79: #{msfa_forward.1} parent=1 // pred_check_branch
      %74 = sbr.rel (0) target = $region81
    $region80: #{msfa_forward.1} parent=1 // pred_region
      _
    $region81: #{msfa_forward.1} parent=1 // pred_fallthru
      _
    // Predicated region
    $region82: #{msfa_forward.1} parent=1 // pred_check
      _
    $region83: #{msfa_forward.1} parent=1 // pred_check_branch
      %76 = sbr.rel (0) target = $region85
    $region84: #{msfa_forward.1} parent=1 // pred_region
      _
    $region85: #{msfa_forward.1} parent=1 // pred_fallthru
      _
    // Predicated region
    $region86: #{msfa_forward.1} parent=1 // pred_check
      _
    $region87: #{msfa_forward.1} parent=1 // pred_check_branch
      %78 = sbr.rel (0) target = $region89
    $region88: #{msfa_forward.1} parent=1 // pred_region
      _
    $region89: #{msfa_forward.1} parent=1 // pred_fallthru
      _
    // Predicated region
    $region90: #{msfa_forward.1} parent=1 // pred_check
      _
    $region91: #{msfa_forward.1} parent=1 // pred_check_branch
      %80 = sbr.rel (0) target = $region93
    $region92: #{msfa_forward.1} parent=1 // pred_region
      _
    $region93: #{msfa_forward.1} parent=1 // pred_fallthru
      _
    // Predicated region
    $region94: #{msfa_forward.1} parent=1 // pred_check
      _
    $region95: #{msfa_forward.1} parent=1 // pred_check_branch
      %82 = sbr.rel (0) target = $region97
    $region96: #{msfa_forward.1} parent=1 // pred_region
      _
    $region97: #{msfa_forward.1} parent=1 // pred_fallthru
      _
    // Predicated region
    $region98: #{msfa_forward.1} parent=1 // pred_check
      _
    $region99: #{msfa_forward.1} parent=1 // pred_check_branch
      %84 = sbr.rel (0) target = $region101
    $region100: #{msfa_forward.1} parent=1 // pred_region
      _
    $region101: #{msfa_forward.1} parent=1 // pred_fallthru
      _
    // Predicated region
    $region102: #{msfa_forward.1} parent=1 // pred_check
      _
    $region103: #{msfa_forward.1} parent=1 // pred_check_branch
      %86 = sbr.rel (0) target = $region105
    $region104: #{msfa_forward.1} parent=1 // pred_region
      _
    $region105: #{msfa_forward.1} parent=1 // pred_fallthru
      _
    %v88 = vld [vmem:[%s1] sm:$0x1]
    %s89 = scalar_lea.vmem %s1, 1
    %v90 = vld [vmem:[%s89] sm:$0x1]
    %s91 = scalar_lea.vmem %s1, 2
    %v92 = vld [vmem:[%s91] sm:$0x1]
    %s93 = scalar_lea.vmem %s1, 3
    %v94 = vld [vmem:[%s93] sm:$0x1]
    %v95 = vld [vmem:[%s2] sm:$0x1]
    %v97 = vlaneseq
    %v98 = vshrl.u32 %v97, 7
    %v99 = vsub.s32 0, %v98
    %v100 = vrot.slane %v95, %v99
    %v102 = vld [vmem:[%s0] sm:$0xff]
    %v103 = vld [vmem:[%s0 + $0x8] sm:$0xff]
    %v104 = vld [vmem:[%s0 + $0x10] sm:$0xff]
    %v105 = vld [vmem:[%s0 + $0x18] sm:$0xff]
    %v107 = vlaneseq
    %v108 = vshrl.u32 %v107, 7
    %v109 = vsub.s32 0, %v108
    %v110 = vrot.slane %v88, %v109
    %v112 = vadd.f32 %v102, %v110
    %v113 = vadd.f32 %v103, %v110
    %v114 = vadd.f32 %v104, %v110
    %v115 = vadd.f32 %v105, %v110
    %s116 = scalar_lea.vmem %s0, 32
    %v117 = vld [vmem:[%s116] sm:$0xff]
    %v118 = vld [vmem:[%s116 + $0x8] sm:$0xff]
    %v119 = vld [vmem:[%s116 + $0x10] sm:$0xff]
    %v120 = vld [vmem:[%s116 + $0x18] sm:$0xff]
    %v122 = vlaneseq
    %v123 = vshrl.u32 %v122, 7
    %v124 = vsub.s32 0, %v123
    %v125 = vrot.slane %v90, %v124
    %v127 = vadd.f32 %v117, %v125
    %v128 = vadd.f32 %v118, %v125
    %v129 = vadd.f32 %v119, %v125
    %v130 = vadd.f32 %v120, %v125
    %s131 = scalar_lea.vmem %s0, 64
    %v132 = vld [vmem:[%s131] sm:$0xff]
    %v133 = vld [vmem:[%s131 + $0x8] sm:$0xff]
    %v134 = vld [vmem:[%s131 + $0x10] sm:$0xff]
    %v135 = vld [vmem:[%s131 + $0x18] sm:$0xff]
    %v137 = vlaneseq
    %v138 = vshrl.u32 %v137, 7
    %v139 = vsub.s32 0, %v138
    %v140 = vrot.slane %v92, %v139
    %v142 = vadd.f32 %v132, %v140
    %v143 = vadd.f32 %v133, %v140
    %v144 = vadd.f32 %v134, %v140
    %v145 = vadd.f32 %v135, %v140
    %s146 = scalar_lea.vmem %s0, 96
    %v147 = vld [vmem:[%s146] sm:$0xff]
    %v148 = vld [vmem:[%s146 + $0x8] sm:$0xff]
    %v149 = vld [vmem:[%s146 + $0x10] sm:$0xff]
    %v150 = vld [vmem:[%s146 + $0x18] sm:$0xff]
    %v152 = vlaneseq
    %v153 = vshrl.u32 %v152, 7
    %v154 = vsub.s32 0, %v153
    %v155 = vrot.slane %v94, %v154
    %v157 = vadd.f32 %v147, %v155
    %v158 = vadd.f32 %v148, %v155
    %v159 = vadd.f32 %v149, %v155
    %v160 = vadd.f32 %v150, %v155
    %v161 = vld [vmem:[%s3] sm:$0x1]
    %v162 = vld [vmem:[%s4] sm:$0x1]
    %v163 = vld [vmem:[%s5] sm:$0xf]
    %v164 = vld [vmem:[%s5 + $0x4] sm:$0xf]
    %v165 = vld [vmem:[%s6] sm:$0xf]
    %v166 = vld [vmem:[%s7] sm:$0x1]
    %v167 = vld [vmem:[%s8] sm:$0x1]
    %v168 = vld [vmem:[%s9] sm:$0xf]
    %v169 = vld [vmem:[%s9 + $0x4] sm:$0xf]
    %v170 = vld [vmem:[%s10] sm:$0x1]
    %v171 = vld [vmem:[%s11] sm:$0xf]
    %v172 = vld [vmem:[%s11 + $0x4] sm:$0xf]
    %v173 = vld [vmem:[%s11 + $0x8] sm:$0xf]
    %v174 = vld [vmem:[%s11 + $0xc] sm:$0xf]
    %v175 = vld [vmem:[%s12] sm:$0x1]
    %vm176 = vcmask 130048
    %v177 = vsel %vm176, %v100, 0.0
    %178 = vadd.xlane.f32.xlu0 %v177
    %v179 = vpop.xlane.xlu0 %178
    %v180 = vrcp.pop 16.0
    %v181 = vmul.f32 %v179, %v180
    %v182 = vsub.f32 %v100, %v181
    %v183 = vmul.f32 %v182, %v182
    %v184 = vsel %vm176, %v183, 0.0
    %185 = vadd.xlane.f32.xlu0 %v184
    %v186 = vpop.xlane.xlu0 %185
    %v187 = vmul.f32 %v186, %v180
    %v188 = vadd.f32 %v187, 1e-05
    %v189 = vrsqrt.pop %v188
    %v190 = vmul.f32 %v182, %v189
    %v192 = vlaneseq
    %v193 = vshrl.u32 %v192, 7
    %v194 = vsub.s32 0, %v193
    %v195 = vrot.slane %v161, %v194
    %v197 = vmul.f32 %v190, %v195
    %v199 = vlaneseq
    %v200 = vshrl.u32 %v199, 7
    %v201 = vsub.s32 0, %v200
    %v202 = vrot.slane %v162, %v201
    %v204 = vadd.f32 %v197, %v202
    %v205 = vpack.c.bf16 %v204, %v204
    %v208 = vunpack.c.l.b16 %v163
    %v209 = vunpack.c.l.b16 %v164
    %v210 = vpack.c.b16 %v209, %v208
    %v213 = vsel %vm176, %v205, 0
    %215 = vmatprep.subr.bf16.mxu0 0
    %216 = vmatpush1.bf16.msra.mxu0 %v210
    %217 = vmatprep.subr.bf16.mxu0 0
    %218 = vmatpush1.bf16.msra.mxu0 0
    %219 = vmatprep.subr.bf16.mxu0 0
    %220 = vmatpush1.bf16.msra.mxu0 0
    %221 = vmatprep.subr.bf16.mxu0 0
    %222 = vmatpush1.bf16.msra.mxu0 0
    %223 = vmatprep.subr.bf16.mxu0 0
    %224 = vmatpush1.bf16.msra.mxu0 0
    %225 = vmatprep.subr.bf16.mxu0 0
    %226 = vmatpush1.bf16.msra.mxu0 0
    %227 = vmatprep.subr.bf16.mxu0 0
    %228 = vmatpush1.bf16.msra.mxu0 0
    %229 = vmatprep.subr.bf16.mxu0 0
    %230 = vmatpush1.bf16.msra.mxu0 0
    %231 = vmatprep.subr.bf16.mxu0 0
    %232 = vmatpush1.bf16.msra.mxu0 0
    %233 = vmatprep.subr.bf16.mxu0 0
    %234 = vmatpush1.bf16.msra.mxu0 0
    %235 = vmatprep.subr.bf16.mxu0 0
    %236 = vmatpush1.bf16.msra.mxu0 0
    %237 = vmatprep.subr.bf16.mxu0 0
    %238 = vmatpush1.bf16.msra.mxu0 0
    %239 = vmatprep.subr.bf16.mxu0 0
    %240 = vmatpush1.bf16.msra.mxu0 0
    %241 = vmatprep.subr.bf16.mxu0 0
    %242 = vmatpush1.bf16.msra.mxu0 0
    %243 = vmatprep.subr.bf16.mxu0 0
    %244 = vmatpush1.bf16.msra.mxu0 0
    %245 = vmatprep.subr.bf16.mxu0 0
    %246 = vmatpush1.bf16.msra.mxu0 0
    %247 = vmatprep.mubr.bf16.mxu0 0
    %248 = vmatmul.mubr.bf16.gmra.mrb[0].mxu0 %v213
    %v249 = vpop.f32.mrb[0].mxu0
    %v250 = vadd.f32 0.0, %v249
    %v251 = vpop.f32.mrb[0].mxu0
    %v252 = vpop.f32.mrb[0].mxu0
    %v253 = vadd.f32 0.0, %v252
    %v254 = vpop.f32.mrb[0].mxu0
    %255 = vmatprep.mubr.bf16.mxu0 0
    %256 = vmatmul.mubr.bf16.gmra.mrb[0].mxu0 %v213
    %v257 = vpop.f32.mrb[0].mxu0
    %v258 = vadd.f32 0.0, %v257
    %v259 = vpop.f32.mrb[0].mxu0
    %v260 = vpop.f32.mrb[0].mxu0
    %v261 = vadd.f32 0.0, %v260
    %v262 = vpop.f32.mrb[0].mxu0
    %263 = vdwg.mxu0
    %v264 = vsel %vm176, %v112, 0.0
    %265 = vadd.xlane.f32.xlu0 %v264
    %v266 = vpop.xlane.xlu0 %265
    %v267 = vsel %vm176, %v113, 0.0
    %268 = vadd.xlane.f32.xlu0 %v267
    %v269 = vpop.xlane.xlu0 %268
    %v270 = vsel %vm176, %v114, 0.0
    %271 = vadd.xlane.f32.xlu0 %v270
    %v272 = vpop.xlane.xlu0 %271
    %v273 = vsel %vm176, %v115, 0.0
    %274 = vadd.xlane.f32.xlu0 %v273
    %v275 = vpop.xlane.xlu0 %274
    %v276 = vmul.f32 %v266, %v180
    %v277 = vmul.f32 %v269, %v180
    %v278 = vmul.f32 %v272, %v180
    %v279 = vmul.f32 %v275, %v180
    %v280 = vsub.f32 %v112, %v276
    %v281 = vsub.f32 %v113, %v277
    %v282 = vsub.f32 %v114, %v278
    %v283 = vsub.f32 %v115, %v279
    %v284 = vmul.f32 %v280, %v280
    %v285 = vmul.f32 %v281, %v281
    %v286 = vmul.f32 %v282, %v282
    %v287 = vmul.f32 %v283, %v283
    %v288 = vsel %vm176, %v284, 0.0
    %289 = vadd.xlane.f32.xlu0 %v288
    %v290 = vpop.xlane.xlu0 %289
    %v291 = vsel %vm176, %v285, 0.0
    %292 = vadd.xlane.f32.xlu0 %v291
    %v293 = vpop.xlane.xlu0 %292
    %v294 = vsel %vm176, %v286, 0.0
    %295 = vadd.xlane.f32.xlu0 %v294
    %v296 = vpop.xlane.xlu0 %295
    %v297 = vsel %vm176, %v287, 0.0
    %298 = vadd.xlane.f32.xlu0 %v297
    %v299 = vpop.xlane.xlu0 %298
    %v300 = vmul.f32 %v290, %v180
    %v301 = vmul.f32 %v293, %v180
    %v302 = vmul.f32 %v296, %v180
    %v303 = vmul.f32 %v299, %v180
    %v304 = vadd.f32 %v300, 1e-05
    %v305 = vadd.f32 %v301, 1e-05
    %v306 = vadd.f32 %v302, 1e-05
    %v307 = vadd.f32 %v303, 1e-05
    %v308 = vrsqrt.pop %v304
    %v309 = vrsqrt.pop %v305
    %v310 = vrsqrt.pop %v306
    %v311 = vrsqrt.pop %v307
    %v312 = vmul.f32 %v280, %v308
    %v313 = vmul.f32 %v281, %v309
    %v314 = vmul.f32 %v282, %v310
    %v315 = vmul.f32 %v283, %v311
    %v316 = vmul.f32 %v312, %v195
    %v317 = vmul.f32 %v313, %v195
    %v318 = vmul.f32 %v314, %v195
    %v319 = vmul.f32 %v315, %v195
    %v320 = vadd.f32 %v316, %v202
    %v321 = vadd.f32 %v317, %v202
    %v322 = vadd.f32 %v318, %v202
    %v323 = vadd.f32 %v319, %v202
    %v324 = vpack.c.bf16 %v321, %v320
    %v325 = vpack.c.bf16 %v323, %v322
    %v327 = vsel %vm176, %v324, 0
    %v330 = vsel %vm176, %v325, 0
    %332 = vmatprep.subr.bf16.mxu0 0
    %333 = vmatpush1.bf16.msra.mxu0 %v210
    %334 = vmatprep.subr.bf16.mxu0 0
    %335 = vmatpush1.bf16.msra.mxu0 0
    %336 = vmatprep.subr.bf16.mxu0 0
    %337 = vmatpush1.bf16.msra.mxu0 0
    %338 = vmatprep.subr.bf16.mxu0 0
    %339 = vmatpush1.bf16.msra.mxu0 0
    %340 = vmatprep.subr.bf16.mxu0 0
    %341 = vmatpush1.bf16.msra.mxu0 0
    %342 = vmatprep.subr.bf16.mxu0 0
    %343 = vmatpush1.bf16.msra.mxu0 0
    %344 = vmatprep.subr.bf16.mxu0 0
    %345 = vmatpush1.bf16.msra.mxu0 0
    %346 = vmatprep.subr.bf16.mxu0 0
    %347 = vmatpush1.bf16.msra.mxu0 0
    %348 = vmatprep.subr.bf16.mxu0 0
    %349 = vmatpush1.bf16.msra.mxu0 0
    %350 = vmatprep.subr.bf16.mxu0 0
    %351 = vmatpush1.bf16.msra.mxu0 0
    %352 = vmatprep.subr.bf16.mxu0 0
    %353 = vmatpush1.bf16.msra.mxu0 0
    %354 = vmatprep.subr.bf16.mxu0 0
    %355 = vmatpush1.bf16.msra.mxu0 0
    %356 = vmatprep.subr.bf16.mxu0 0
    %357 = vmatpush1.bf16.msra.mxu0 0
    %358 = vmatprep.subr.bf16.mxu0 0
    %359 = vmatpush1.bf16.msra.mxu0 0
    %360 = vmatprep.subr.bf16.mxu0 0
    %361 = vmatpush1.bf16.msra.mxu0 0
    %362 = vmatprep.subr.bf16.mxu0 0
    %363 = vmatpush1.bf16.msra.mxu0 0
    %364 = vmatprep.mubr.bf16.mxu0 0
    %365 = vmatmul.mubr.bf16.gmra.mrb[0].mxu0 %v327
    %v366 = vpop.f32.mrb[0].mxu0
    %v367 = vadd.f32 0.0, %v366
    %v368 = vpop.f32.mrb[0].mxu0
    %v369 = vpop.f32.mrb[0].mxu0
    %v370 = vadd.f32 0.0, %v369
    %v371 = vpop.f32.mrb[0].mxu0
    %372 = vmatprep.mubr.bf16.mxu0 0
    %373 = vmatmul.mubr.bf16.gmra.mrb[0].mxu0 %v330
    %v374 = vpop.f32.mrb[0].mxu0
    %v375 = vadd.f32 0.0, %v374
    %v376 = vpop.f32.mrb[0].mxu0
    %v377 = vpop.f32.mrb[0].mxu0
    %v378 = vadd.f32 0.0, %v377
    %v379 = vpop.f32.mrb[0].mxu0
    %380 = vdwg.mxu0
    %v381 = vsel %vm176, %v127, 0.0
    %382 = vadd.xlane.f32.xlu0 %v381
    %v383 = vpop.xlane.xlu0 %382
    %v384 = vsel %vm176, %v128, 0.0
    %385 = vadd.xlane.f32.xlu0 %v384
    %v386 = vpop.xlane.xlu0 %385
    %v387 = vsel %vm176, %v129, 0.0
    %388 = vadd.xlane.f32.xlu0 %v387
    %v389 = vpop.xlane.xlu0 %388
    %v390 = vsel %vm176, %v130, 0.0
    %391 = vadd.xlane.f32.xlu0 %v390
    %v392 = vpop.xlane.xlu0 %391
    %v393 = vmul.f32 %v383, %v180
    %v394 = vmul.f32 %v386, %v180
    %v395 = vmul.f32 %v389, %v180
    %v396 = vmul.f32 %v392, %v180
    %v397 = vsub.f32 %v127, %v393
    %v398 = vsub.f32 %v128, %v394
    %v399 = vsub.f32 %v129, %v395
    %v400 = vsub.f32 %v130, %v396
    %v401 = vmul.f32 %v397, %v397
    %v402 = vmul.f32 %v398, %v398
    %v403 = vmul.f32 %v399, %v399
    %v404 = vmul.f32 %v400, %v400
    %v405 = vsel %vm176, %v401, 0.0
    %406 = vadd.xlane.f32.xlu0 %v405
    %v407 = vpop.xlane.xlu0 %406
    %v408 = vsel %vm176, %v402, 0.0
    %409 = vadd.xlane.f32.xlu0 %v408
    %v410 = vpop.xlane.xlu0 %409
    %v411 = vsel %vm176, %v403, 0.0
    %412 = vadd.xlane.f32.xlu0 %v411
    %v413 = vpop.xlane.xlu0 %412
    %v414 = vsel %vm176, %v404, 0.0
    %415 = vadd.xlane.f32.xlu0 %v414
    %v416 = vpop.xlane.xlu0 %415
    %v417 = vmul.f32 %v407, %v180
    %v418 = vmul.f32 %v410, %v180
    %v419 = vmul.f32 %v413, %v180
    %v420 = vmul.f32 %v416, %v180
    %v421 = vadd.f32 %v417, 1e-05
    %v422 = vadd.f32 %v418, 1e-05
    %v423 = vadd.f32 %v419, 1e-05
    %v424 = vadd.f32 %v420, 1e-05
    %v425 = vrsqrt.pop %v421
    %v426 = vrsqrt.pop %v422
    %v427 = vrsqrt.pop %v423
    %v428 = vrsqrt.pop %v424
    %v429 = vmul.f32 %v397, %v425
    %v430 = vmul.f32 %v398, %v426
    %v431 = vmul.f32 %v399, %v427
    %v432 = vmul.f32 %v400, %v428
    %v433 = vmul.f32 %v429, %v195
    %v434 = vmul.f32 %v430, %v195
    %v435 = vmul.f32 %v431, %v195
    %v436 = vmul.f32 %v432, %v195
    %v437 = vadd.f32 %v433, %v202
    %v438 = vadd.f32 %v434, %v202
    %v439 = vadd.f32 %v435, %v202
    %v440 = vadd.f32 %v436, %v202
    %v441 = vpack.c.bf16 %v438, %v437
    %v442 = vpack.c.bf16 %v440, %v439
    %v444 = vsel %vm176, %v441, 0
    %v447 = vsel %vm176, %v442, 0
    %449 = vmatprep.subr.bf16.mxu0 0
    %450 = vmatpush1.bf16.msra.mxu0 %v210
    %451 = vmatprep.subr.bf16.mxu0 0
    %452 = vmatpush1.bf16.msra.mxu0 0
    %453 = vmatprep.subr.bf16.mxu0 0
    %454 = vmatpush1.bf16.msra.mxu0 0
    %455 = vmatprep.subr.bf16.mxu0 0
    %456 = vmatpush1.bf16.msra.mxu0 0
    %457 = vmatprep.subr.bf16.mxu0 0
    %458 = vmatpush1.bf16.msra.mxu0 0
    %459 = vmatprep.subr.bf16.mxu0 0
    %460 = vmatpush1.bf16.msra.mxu0 0
    %461 = vmatprep.subr.bf16.mxu0 0
    %462 = vmatpush1.bf16.msra.mxu0 0
    %463 = vmatprep.subr.bf16.mxu0 0
    %464 = vmatpush1.bf16.msra.mxu0 0
    %465 = vmatprep.subr.bf16.mxu0 0
    %466 = vmatpush1.bf16.msra.mxu0 0
    %467 = vmatprep.subr.bf16.mxu0 0
    %468 = vmatpush1.bf16.msra.mxu0 0
    %469 = vmatprep.subr.bf16.mxu0 0
    %470 = vmatpush1.bf16.msra.mxu0 0
    %471 = vmatprep.subr.bf16.mxu0 0
    %472 = vmatpush1.bf16.msra.mxu0 0
    %473 = vmatprep.subr.bf16.mxu0 0
    %474 = vmatpush1.bf16.msra.mxu0 0
    %475 = vmatprep.subr.bf16.mxu0 0
    %476 = vmatpush1.bf16.msra.mxu0 0
    %477 = vmatprep.subr.bf16.mxu0 0
    %478 = vmatpush1.bf16.msra.mxu0 0
    %479 = vmatprep.subr.bf16.mxu0 0
    %480 = vmatpush1.bf16.msra.mxu0 0
    %481 = vmatprep.mubr.bf16.mxu0 0
    %482 = vmatmul.mubr.bf16.gmra.mrb[0].mxu0 %v444
    %v483 = vpop.f32.mrb[0].mxu0
    %v484 = vadd.f32 0.0, %v483
    %v485 = vpop.f32.mrb[0].mxu0
    %v486 = vpop.f32.mrb[0].mxu0
    %v487 = vadd.f32 0.0, %v486
    %v488 = vpop.f32.mrb[0].mxu0
    %489 = vmatprep.mubr.bf16.mxu0 0
    %490 = vmatmul.mubr.bf16.gmra.mrb[0].mxu0 %v447
    %v491 = vpop.f32.mrb[0].mxu0
    %v492 = vadd.f32 0.0, %v491
    %v493 = vpop.f32.mrb[0].mxu0
    %v494 = vpop.f32.mrb[0].mxu0
    %v495 = vadd.f32 0.0, %v494
    %v496 = vpop.f32.mrb[0].mxu0
    %497 = vdwg.mxu0
    %v498 = vsel %vm176, %v142, 0.0
    %499 = vadd.xlane.f32.xlu0 %v498
    %v500 = vpop.xlane.xlu0 %499
    %v501 = vsel %vm176, %v143, 0.0
    %502 = vadd.xlane.f32.xlu0 %v501
    %v503 = vpop.xlane.xlu0 %502
    %v504 = vsel %vm176, %v144, 0.0
    %505 = vadd.xlane.f32.xlu0 %v504
    %v506 = vpop.xlane.xlu0 %505
    %v507 = vsel %vm176, %v145, 0.0
    %508 = vadd.xlane.f32.xlu0 %v507
    %v509 = vpop.xlane.xlu0 %508
    %v510 = vmul.f32 %v500, %v180
    %v511 = vmul.f32 %v503, %v180
    %v512 = vmul.f32 %v506, %v180
    %v513 = vmul.f32 %v509, %v180
    %v514 = vsub.f32 %v142, %v510
    %v515 = vsub.f32 %v143, %v511
    %v516 = vsub.f32 %v144, %v512
    %v517 = vsub.f32 %v145, %v513
    %v518 = vmul.f32 %v514, %v514
    %v519 = vmul.f32 %v515, %v515
    %v520 = vmul.f32 %v516, %v516
    %v521 = vmul.f32 %v517, %v517
    %v522 = vsel %vm176, %v518, 0.0
    %523 = vadd.xlane.f32.xlu0 %v522
    %v524 = vpop.xlane.xlu0 %523
    %v525 = vsel %vm176, %v519, 0.0
    %526 = vadd.xlane.f32.xlu0 %v525
    %v527 = vpop.xlane.xlu0 %526
    %v528 = vsel %vm176, %v520, 0.0
    %529 = vadd.xlane.f32.xlu0 %v528
    %v530 = vpop.xlane.xlu0 %529
    %v531 = vsel %vm176, %v521, 0.0
    %532 = vadd.xlane.f32.xlu0 %v531
    %v533 = vpop.xlane.xlu0 %532
    %v534 = vmul.f32 %v524, %v180
    %v535 = vmul.f32 %v527, %v180
    %v536 = vmul.f32 %v530, %v180
    %v537 = vmul.f32 %v533, %v180
    %v538 = vadd.f32 %v534, 1e-05
    %v539 = vadd.f32 %v535, 1e-05
    %v540 = vadd.f32 %v536, 1e-05
    %v541 = vadd.f32 %v537, 1e-05
    %v542 = vrsqrt.pop %v538
    %v543 = vrsqrt.pop %v539
    %v544 = vrsqrt.pop %v540
    %v545 = vrsqrt.pop %v541
    %v546 = vmul.f32 %v514, %v542
    %v547 = vmul.f32 %v515, %v543
    %v548 = vmul.f32 %v516, %v544
    %v549 = vmul.f32 %v517, %v545
    %v550 = vmul.f32 %v546, %v195
    %v551 = vmul.f32 %v547, %v195
    %v552 = vmul.f32 %v548, %v195
    %v553 = vmul.f32 %v549, %v195
    %v554 = vadd.f32 %v550, %v202
    %v555 = vadd.f32 %v551, %v202
    %v556 = vadd.f32 %v552, %v202
    %v557 = vadd.f32 %v553, %v202
    %v558 = vpack.c.bf16 %v555, %v554
    %v559 = vpack.c.bf16 %v557, %v556
    %v561 = vsel %vm176, %v558, 0
    %v564 = vsel %vm176, %v559, 0
    %566 = vmatprep.subr.bf16.mxu0 0
    %567 = vmatpush1.bf16.msra.mxu0 %v210
    %568 = vmatprep.subr.bf16.mxu0 0
    %569 = vmatpush1.bf16.msra.mxu0 0
    %570 = vmatprep.subr.bf16.mxu0 0
    %571 = vmatpush1.bf16.msra.mxu0 0
    %572 = vmatprep.subr.bf16.mxu0 0
    %573 = vmatpush1.bf16.msra.mxu0 0
    %574 = vmatprep.subr.bf16.mxu0 0
    %575 = vmatpush1.bf16.msra.mxu0 0
    %576 = vmatprep.subr.bf16.mxu0 0
    %577 = vmatpush1.bf16.msra.mxu0 0
    %578 = vmatprep.subr.bf16.mxu0 0
    %579 = vmatpush1.bf16.msra.mxu0 0
    %580 = vmatprep.subr.bf16.mxu0 0
    %581 = vmatpush1.bf16.msra.mxu0 0
    %582 = vmatprep.subr.bf16.mxu0 0
    %583 = vmatpush1.bf16.msra.mxu0 0
    %584 = vmatprep.subr.bf16.mxu0 0
    %585 = vmatpush1.bf16.msra.mxu0 0
    %586 = vmatprep.subr.bf16.mxu0 0
    %587 = vmatpush1.bf16.msra.mxu0 0
    %588 = vmatprep.subr.bf16.mxu0 0
    %589 = vmatpush1.bf16.msra.mxu0 0
    %590 = vmatprep.subr.bf16.mxu0 0
    %591 = vmatpush1.bf16.msra.mxu0 0
    %592 = vmatprep.subr.bf16.mxu0 0
    %593 = vmatpush1.bf16.msra.mxu0 0
    %594 = vmatprep.subr.bf16.mxu0 0
    %595 = vmatpush1.bf16.msra.mxu0 0
    %596 = vmatprep.subr.bf16.mxu0 0
    %597 = vmatpush1.bf16.msra.mxu0 0
    %598 = vmatprep.mubr.bf16.mxu0 0
    %599 = vmatmul.mubr.bf16.gmra.mrb[0].mxu0 %v561
    %v600 = vpop.f32.mrb[0].mxu0
    %v601 = vadd.f32 0.0, %v600
    %v602 = vpop.f32.mrb[0].mxu0
    %v603 = vpop.f32.mrb[0].mxu0
    %v604 = vadd.f32 0.0, %v603
    %v605 = vpop.f32.mrb[0].mxu0
    %606 = vmatprep.mubr.bf16.mxu0 0
    %607 = vmatmul.mubr.bf16.gmra.mrb[0].mxu0 %v564
    %v608 = vpop.f32.mrb[0].mxu0
    %v609 = vadd.f32 0.0, %v608
    %v610 = vpop.f32.mrb[0].mxu0
    %v611 = vpop.f32.mrb[0].mxu0
    %v612 = vadd.f32 0.0, %v611
    %v613 = vpop.f32.mrb[0].mxu0
    %614 = vdwg.mxu0
    %v615 = vsel %vm176, %v157, 0.0
    %616 = vadd.xlane.f32.xlu0 %v615
    %v617 = vpop.xlane.xlu0 %616
    %v618 = vsel %vm176, %v158, 0.0
    %619 = vadd.xlane.f32.xlu0 %v618
    %v620 = vpop.xlane.xlu0 %619
    %v621 = vsel %vm176, %v159, 0.0
    %622 = vadd.xlane.f32.xlu0 %v621
    %v623 = vpop.xlane.xlu0 %622
    %v624 = vsel %vm176, %v160, 0.0
    %625 = vadd.xlane.f32.xlu0 %v624
    %v626 = vpop.xlane.xlu0 %625
    %v627 = vmul.f32 %v617, %v180
    %v628 = vmul.f32 %v620, %v180
    %v629 = vmul.f32 %v623, %v180
    %v630 = vmul.f32 %v626, %v180
    %v631 = vsub.f32 %v157, %v627
    %v632 = vsub.f32 %v158, %v628
    %v633 = vsub.f32 %v159, %v629
    %v634 = vsub.f32 %v160, %v630
    %v635 = vmul.f32 %v631, %v631
    %v636 = vmul.f32 %v632, %v632
    %v637 = vmul.f32 %v633, %v633
    %v638 = vmul.f32 %v634, %v634
    %v639 = vsel %vm176, %v635, 0.0
    %640 = vadd.xlane.f32.xlu0 %v639
    %v641 = vpop.xlane.xlu0 %640
    %v642 = vsel %vm176, %v636, 0.0
    %643 = vadd.xlane.f32.xlu0 %v642
    %v644 = vpop.xlane.xlu0 %643
    %v645 = vsel %vm176, %v637, 0.0
    %646 = vadd.xlane.f32.xlu0 %v645
    %v647 = vpop.xlane.xlu0 %646
    %v648 = vsel %vm176, %v638, 0.0
    %649 = vadd.xlane.f32.xlu0 %v648
    %v650 = vpop.xlane.xlu0 %649
    %v651 = vmul.f32 %v641, %v180
    %v652 = vmul.f32 %v644, %v180
    %v653 = vmul.f32 %v647, %v180
    %v654 = vmul.f32 %v650, %v180
    %v655 = vadd.f32 %v651, 1e-05
    %v656 = vadd.f32 %v652, 1e-05
    %v657 = vadd.f32 %v653, 1e-05
    %v658 = vadd.f32 %v654, 1e-05
    %v659 = vrsqrt.pop %v655
    %v660 = vrsqrt.pop %v656
    %v661 = vrsqrt.pop %v657
    %v662 = vrsqrt.pop %v658
    %v663 = vmul.f32 %v631, %v659
    %v664 = vmul.f32 %v632, %v660
    %v665 = vmul.f32 %v633, %v661
    %v666 = vmul.f32 %v634, %v662
    %v667 = vmul.f32 %v663, %v195
    %v668 = vmul.f32 %v664, %v195
    %v669 = vmul.f32 %v665, %v195
    %v670 = vmul.f32 %v666, %v195
    %v671 = vadd.f32 %v667, %v202
    %v672 = vadd.f32 %v668, %v202
    %v673 = vadd.f32 %v669, %v202
    %v674 = vadd.f32 %v670, %v202
    %v675 = vpack.c.bf16 %v672, %v671
    %v676 = vpack.c.bf16 %v674, %v673
    %v678 = vsel %vm176, %v675, 0
    %v681 = vsel %vm176, %v676, 0
    %683 = vmatprep.subr.bf16.mxu0 0
    %684 = vmatpush1.bf16.msra.mxu0 %v210
    %685 = vmatprep.subr.bf16.mxu0 0
    %686 = vmatpush1.bf16.msra.mxu0 0
    %687 = vmatprep.subr.bf16.mxu0 0
    %688 = vmatpush1.bf16.msra.mxu0 0
    %689 = vmatprep.subr.bf16.mxu0 0
    %690 = vmatpush1.bf16.msra.mxu0 0
    %691 = vmatprep.subr.bf16.mxu0 0
    %692 = vmatpush1.bf16.msra.mxu0 0
    %693 = vmatprep.subr.bf16.mxu0 0
    %694 = vmatpush1.bf16.msra.mxu0 0
    %695 = vmatprep.subr.bf16.mxu0 0
    %696 = vmatpush1.bf16.msra.mxu0 0
    %697 = vmatprep.subr.bf16.mxu0 0
    %698 = vmatpush1.bf16.msra.mxu0 0
    %699 = vmatprep.subr.bf16.mxu0 0
    %700 = vmatpush1.bf16.msra.mxu0 0
    %701 = vmatprep.subr.bf16.mxu0 0
    %702 = vmatpush1.bf16.msra.mxu0 0
    %703 = vmatprep.subr.bf16.mxu0 0
    %704 = vmatpush1.bf16.msra.mxu0 0
    %705 = vmatprep.subr.bf16.mxu0 0
    %706 = vmatpush1.bf16.msra.mxu0 0
    %707 = vmatprep.subr.bf16.mxu0 0
    %708 = vmatpush1.bf16.msra.mxu0 0
    %709 = vmatprep.subr.bf16.mxu0 0
    %710 = vmatpush1.bf16.msra.mxu0 0
    %711 = vmatprep.subr.bf16.mxu0 0
    %712 = vmatpush1.bf16.msra.mxu0 0
    %713 = vmatprep.subr.bf16.mxu0 0
    %714 = vmatpush1.bf16.msra.mxu0 0
    %715 = vmatprep.mubr.bf16.mxu0 0
    %716 = vmatmul.mubr.bf16.gmra.mrb[0].mxu0 %v678
    %v717 = vpop.f32.mrb[0].mxu0
    %v718 = vadd.f32 0.0, %v717
    %v719 = vpop.f32.mrb[0].mxu0
    %v720 = vpop.f32.mrb[0].mxu0
    %v721 = vadd.f32 0.0, %v720
    %v722 = vpop.f32.mrb[0].mxu0
    %723 = vmatprep.mubr.bf16.mxu0 0
    %724 = vmatmul.mubr.bf16.gmra.mrb[0].mxu0 %v681
    %v725 = vpop.f32.mrb[0].mxu0
    %v726 = vadd.f32 0.0, %v725
    %v727 = vpop.f32.mrb[0].mxu0
    %v728 = vpop.f32.mrb[0].mxu0
    %v729 = vadd.f32 0.0, %v728
    %v730 = vpop.f32.mrb[0].mxu0
    %731 = vdwg.mxu0
    %v732 = vmax.f32 %v250, %v367
    %v733 = vmax.f32 %v253, %v370
    %v734 = vmax.f32 %v258, %v375
    %v735 = vmax.f32 %v261, %v378
    %v736 = vmax.f32 %v732, %v484
    %v737 = vmax.f32 %v733, %v487
    %v738 = vmax.f32 %v734, %v492
    %v739 = vmax.f32 %v735, %v495
    %v740 = vmax.f32 %v736, %v601
    %v741 = vmax.f32 %v737, %v604
    %v742 = vmax.f32 %v738, %v609
    %v743 = vmax.f32 %v739, %v612
    %v744 = vmax.f32 %v740, %v718
    %v745 = vmax.f32 %v741, %v721
    %v746 = vmax.f32 %v742, %v726
    %v747 = vmax.f32 %v743, %v729
    %v748 = vsub.f32 %v250, %v744
    %v749 = vsub.f32 %v253, %v745
    %v750 = vsub.f32 %v258, %v746
    %v751 = vsub.f32 %v261, %v747
    %v752 = vmul.f32 %v748, 1.442695
    %v753 = vpow.pop %v752
    %v754 = vmul.f32 %v749, 1.442695
    %v755 = vpow.pop %v754
    %v756 = vmul.f32 %v750, 1.442695
    %v757 = vpow.pop %v756
    %v758 = vmul.f32 %v751, 1.442695
    %v759 = vpow.pop %v758
    %v760 = vsub.f32 %v367, %v744
    %v761 = vsub.f32 %v370, %v745
    %v762 = vsub.f32 %v375, %v746
    %v763 = vsub.f32 %v378, %v747
    %v764 = vmul.f32 %v760, 1.442695
    %v765 = vpow.pop %v764
    %v766 = vmul.f32 %v761, 1.442695
    %v767 = vpow.pop %v766
    %v768 = vmul.f32 %v762, 1.442695
    %v769 = vpow.pop %v768
    %v770 = vmul.f32 %v763, 1.442695
    %v771 = vpow.pop %v770
    %v772 = vsub.f32 %v484, %v744
    %v773 = vsub.f32 %v487, %v745
    %v774 = vsub.f32 %v492, %v746
    %v775 = vsub.f32 %v495, %v747
    %v776 = vmul.f32 %v772, 1.442695
    %v777 = vpow.pop %v776
    %v778 = vmul.f32 %v773, 1.442695
    %v779 = vpow.pop %v778
    %v780 = vmul.f32 %v774, 1.442695
    %v781 = vpow.pop %v780
    %v782 = vmul.f32 %v775, 1.442695
    %v783 = vpow.pop %v782
    %v784 = vsub.f32 %v601, %v744
    %v785 = vsub.f32 %v604, %v745
    %v786 = vsub.f32 %v609, %v746
    %v787 = vsub.f32 %v612, %v747
    %v788 = vmul.f32 %v784, 1.442695
    %v789 = vpow.pop %v788
    %v790 = vmul.f32 %v785, 1.442695
    %v791 = vpow.pop %v790
    %v792 = vmul.f32 %v786, 1.442695
    %v793 = vpow.pop %v792
    %v794 = vmul.f32 %v787, 1.442695
    %v795 = vpow.pop %v794
    %v796 = vsub.f32 %v718, %v744
    %v797 = vsub.f32 %v721, %v745
    %v798 = vsub.f32 %v726, %v746
    %v799 = vsub.f32 %v729, %v747
    %v800 = vmul.f32 %v796, 1.442695
    %v801 = vpow.pop %v800
    %v802 = vmul.f32 %v797, 1.442695
    %v803 = vpow.pop %v802
    %v804 = vmul.f32 %v798, 1.442695
    %v805 = vpow.pop %v804
    %v806 = vmul.f32 %v799, 1.442695
    %v807 = vpow.pop %v806
    %v808 = vadd.f32 %v753, %v765
    %v809 = vadd.f32 %v755, %v767
    %v810 = vadd.f32 %v757, %v769
    %v811 = vadd.f32 %v759, %v771
    %v812 = vadd.f32 %v808, %v777
    %v813 = vadd.f32 %v809, %v779
    %v814 = vadd.f32 %v810, %v781
    %v815 = vadd.f32 %v811, %v783
    %v816 = vadd.f32 %v812, %v789
    %v817 = vadd.f32 %v813, %v791
    %v818 = vadd.f32 %v814, %v793
    %v819 = vadd.f32 %v815, %v795
    %v820 = vadd.f32 %v816, %v801
    %v821 = vadd.f32 %v817, %v803
    %v822 = vadd.f32 %v818, %v805
    %v823 = vadd.f32 %v819, %v807
    %v824 = vrcp.pop %v820
    %v825 = vrcp.pop %v821
    %v826 = vrcp.pop %v822
    %v827 = vrcp.pop %v823
    %v828 = vmul.f32 %v753, %v824
    %v829 = vmul.f32 %v755, %v825
    %v830 = vmul.f32 %v757, %v826
    %v831 = vmul.f32 %v759, %v827
    %vm832 = vcmask 64512
    %v833 = vsel %vm832, %v828, 0.0
    %834 = vadd.xlane.f32.xlu0 %v833
    %v835 = vpop.xlane.xlu0 %834
    %v836 = vsel %vm832, %v829, 0.0
    %837 = vadd.xlane.f32.xlu0 %v836
    %v838 = vpop.xlane.xlu0 %837
    %v839 = vsel %vm832, %v830, 0.0
    %840 = vadd.xlane.f32.xlu0 %v839
    %v841 = vpop.xlane.xlu0 %840
    %v842 = vsel %vm832, %v831, 0.0
    %843 = vadd.xlane.f32.xlu0 %v842
    %v844 = vpop.xlane.xlu0 %843
    %v845 = vrcp.pop %v835
    %v846 = vrcp.pop %v838
    %v847 = vrcp.pop %v841
    %v848 = vrcp.pop %v844
    %v849 = vmul.f32 %v828, %v845
    %v850 = vmul.f32 %v829, %v846
    %v851 = vmul.f32 %v830, %v847
    %v852 = vmul.f32 %v831, %v848
    %v853 = vpack.c.bf16 %v850, %v849
    %v854 = vpack.c.bf16 %v852, %v851
    %v856 = vsel %vm832, %v853, 0
    %v859 = vsel %vm832, %v854, 0
    %vm861 = vcmask 1043456
    %v863 = vsel %vm861, %v165, 0
    %865 = vmatprep.subr.bf16.mxu0 0
    %866 = vmatpush1.bf16.msra.mxu0 %v863
    %867 = vmatprep.subr.bf16.mxu0 0
    %868 = vmatpush1.bf16.msra.mxu0 0
    %869 = vmatprep.subr.bf16.mxu0 0
    %870 = vmatpush1.bf16.msra.mxu0 0
    %871 = vmatprep.subr.bf16.mxu0 0
    %872 = vmatpush1.bf16.msra.mxu0 0
    %873 = vmatprep.subr.bf16.mxu0 0
    %874 = vmatpush1.bf16.msra.mxu0 0
    %875 = vmatprep.subr.bf16.mxu0 0
    %876 = vmatpush1.bf16.msra.mxu0 0
    %877 = vmatprep.subr.bf16.mxu0 0
    %878 = vmatpush1.bf16.msra.mxu0 0
    %879 = vmatprep.subr.bf16.mxu0 0
    %880 = vmatpush1.bf16.msra.mxu0 0
    %881 = vmatprep.subr.bf16.mxu0 0
    %882 = vmatpush1.bf16.msra.mxu0 0
    %883 = vmatprep.subr.bf16.mxu0 0
    %884 = vmatpush1.bf16.msra.mxu0 0
    %885 = vmatprep.subr.bf16.mxu0 0
    %886 = vmatpush1.bf16.msra.mxu0 0
    %887 = vmatprep.subr.bf16.mxu0 0
    %888 = vmatpush1.bf16.msra.mxu0 0
    %889 = vmatprep.subr.bf16.mxu0 0
    %890 = vmatpush1.bf16.msra.mxu0 0
    %891 = vmatprep.subr.bf16.mxu0 0
    %892 = vmatpush1.bf16.msra.mxu0 0
    %893 = vmatprep.subr.bf16.mxu0 0
    %894 = vmatpush1.bf16.msra.mxu0 0
    %895 = vmatprep.subr.bf16.mxu0 0
    %896 = vmatpush1.bf16.msra.mxu0 0
    %897 = vmatprep.mubr.bf16.mxu0 0
    %898 = vmatmul.mubr.bf16.gmra.mrb[0].mxu0 %v856
    %v899 = vpop.f32.mrb[0].mxu0
    %v900 = vadd.f32 0.0, %v899
    %v901 = vpop.f32.mrb[0].mxu0
    %v902 = vpop.f32.mrb[0].mxu0
    %v903 = vadd.f32 0.0, %v902
    %v904 = vpop.f32.mrb[0].mxu0
    %905 = vmatprep.mubr.bf16.mxu0 0
    %906 = vmatmul.mubr.bf16.gmra.mrb[0].mxu0 %v859
    %v907 = vpop.f32.mrb[0].mxu0
    %v908 = vadd.f32 0.0, %v907
    %v909 = vpop.f32.mrb[0].mxu0
    %v910 = vpop.f32.mrb[0].mxu0
    %v911 = vadd.f32 0.0, %v910
    %v912 = vpop.f32.mrb[0].mxu0
    %913 = vdwg.mxu0
    %v914 = vadd.f32 %v100, %v900
    %v915 = vadd.f32 %v100, %v903
    %v916 = vadd.f32 %v100, %v908
    %v917 = vadd.f32 %v100, %v911
    %v918 = vsel %vm176, %v914, 0.0
    %919 = vadd.xlane.f32.xlu0 %v918
    %v920 = vpop.xlane.xlu0 %919
    %v921 = vsel %vm176, %v915, 0.0
    %922 = vadd.xlane.f32.xlu0 %v921
    %v923 = vpop.xlane.xlu0 %922
    %v924 = vsel %vm176, %v916, 0.0
    %925 = vadd.xlane.f32.xlu0 %v924
    %v926 = vpop.xlane.xlu0 %925
    %v927 = vsel %vm176, %v917, 0.0
    %928 = vadd.xlane.f32.xlu0 %v927
    %v929 = vpop.xlane.xlu0 %928
    %v930 = vmul.f32 %v920, %v180
    %v931 = vmul.f32 %v923, %v180
    %v932 = vmul.f32 %v926, %v180
    %v933 = vmul.f32 %v929, %v180
    %v934 = vsub.f32 %v914, %v930
    %v935 = vsub.f32 %v915, %v931
    %v936 = vsub.f32 %v916, %v932
    %v937 = vsub.f32 %v917, %v933
    %v938 = vmul.f32 %v934, %v934
    %v939 = vmul.f32 %v935, %v935
    %v940 = vmul.f32 %v936, %v936
    %v941 = vmul.f32 %v937, %v937
    %v942 = vsel %vm176, %v938, 0.0
    %943 = vadd.xlane.f32.xlu0 %v942
    %v944 = vpop.xlane.xlu0 %943
    %v945 = vsel %vm176, %v939, 0.0
    %946 = vadd.xlane.f32.xlu0 %v945
    %v947 = vpop.xlane.xlu0 %946
    %v948 = vsel %vm176, %v940, 0.0
    %949 = vadd.xlane.f32.xlu0 %v948
    %v950 = vpop.xlane.xlu0 %949
    %v951 = vsel %vm176, %v941, 0.0
    %952 = vadd.xlane.f32.xlu0 %v951
    %v953 = vpop.xlane.xlu0 %952
    %v954 = vmul.f32 %v944, %v180
    %v955 = vmul.f32 %v947, %v180
    %v956 = vmul.f32 %v950, %v180
    %v957 = vmul.f32 %v953, %v180
    %v958 = vadd.f32 %v954, 1e-05
    %v959 = vadd.f32 %v955, 1e-05
    %v960 = vadd.f32 %v956, 1e-05
    %v961 = vadd.f32 %v957, 1e-05
    %v962 = vrsqrt.pop %v958
    %v963 = vrsqrt.pop %v959
    %v964 = vrsqrt.pop %v960
    %v965 = vrsqrt.pop %v961
    %v966 = vmul.f32 %v934, %v962
    %v967 = vmul.f32 %v935, %v963
    %v968 = vmul.f32 %v936, %v964
    %v969 = vmul.f32 %v937, %v965
    %v971 = vlaneseq
    %v972 = vshrl.u32 %v971, 7
    %v973 = vsub.s32 0, %v972
    %v974 = vrot.slane %v166, %v973
    %v976 = vmul.f32 %v966, %v974
    %v977 = vmul.f32 %v967, %v974
    %v978 = vmul.f32 %v968, %v974
    %v979 = vmul.f32 %v969, %v974
    %v981 = vlaneseq
    %v982 = vshrl.u32 %v981, 7
    %v983 = vsub.s32 0, %v982
    %v984 = vrot.slane %v167, %v983
    %v986 = vadd.f32 %v976, %v984
    %v987 = vadd.f32 %v977, %v984
    %v988 = vadd.f32 %v978, %v984
    %v989 = vadd.f32 %v979, %v984
    %v990 = vpack.c.bf16 %v987, %v986
    %v991 = vpack.c.bf16 %v989, %v988
    %v993 = vlaneseq
    %v994 = vshrl.u32 %v993, 7
    %v995 = vsub.s32 0, %v994
    %v996 = vrot.slane %v170, %v995
    %v1000 = vunpack.c.l.b16 %v168
    %v1001 = vunpack.c.l.b16 %v169
    %v1002 = vpack.c.b16 %v1001, %v1000
    %v1005 = vsel %vm176, %v990, 0
    %v1008 = vsel %vm176, %v991, 0
    %1010 = vmatprep.subr.bf16.mxu0 0
    %1011 = vmatpush1.bf16.msra.mxu0 %v1002
    %1012 = vmatprep.subr.bf16.mxu0 0
    %1013 = vmatpush1.bf16.msra.mxu0 0
    %1014 = vmatprep.subr.bf16.mxu0 0
    %1015 = vmatpush1.bf16.msra.mxu0 0
    %1016 = vmatprep.subr.bf16.mxu0 0
    %1017 = vmatpush1.bf16.msra.mxu0 0
    %1018 = vmatprep.subr.bf16.mxu0 0
    %1019 = vmatpush1.bf16.msra.mxu0 0
    %1020 = vmatprep.subr.bf16.mxu0 0
    %1021 = vmatpush1.bf16.msra.mxu0 0
    %1022 = vmatprep.subr.bf16.mxu0 0
    %1023 = vmatpush1.bf16.msra.mxu0 0
    %1024 = vmatprep.subr.bf16.mxu0 0
    %1025 = vmatpush1.bf16.msra.mxu0 0
    %1026 = vmatprep.subr.bf16.mxu0 0
    %1027 = vmatpush1.bf16.msra.mxu0 0
    %1028 = vmatprep.subr.bf16.mxu0 0
    %1029 = vmatpush1.bf16.msra.mxu0 0
    %1030 = vmatprep.subr.bf16.mxu0 0
    %1031 = vmatpush1.bf16.msra.mxu0 0
    %1032 = vmatprep.subr.bf16.mxu0 0
    %1033 = vmatpush1.bf16.msra.mxu0 0
    %1034 = vmatprep.subr.bf16.mxu0 0
    %1035 = vmatpush1.bf16.msra.mxu0 0
    %1036 = vmatprep.subr.bf16.mxu0 0
    %1037 = vmatpush1.bf16.msra.mxu0 0
    %1038 = vmatprep.subr.bf16.mxu0 0
    %1039 = vmatpush1.bf16.msra.mxu0 0
    %1040 = vmatprep.subr.bf16.mxu0 0
    %1041 = vmatpush1.bf16.msra.mxu0 0
    %1042 = vmatprep.mubr.bf16.mxu0 0
    %1043 = vmatmul.mubr.bf16.gmra.mrb[0].mxu0 %v1005
    %v1044 = vpop.f32.mrb[0].mxu0
    %v1045 = vadd.f32 %v996, %v1044
    %v1046 = vpop.f32.mrb[0].mxu0
    %v1047 = vpop.f32.mrb[0].mxu0
    %v1048 = vadd.f32 %v996, %v1047
    %v1049 = vpop.f32.mrb[0].mxu0
    %1050 = vmatprep.mubr.bf16.mxu0 0
    %1051 = vmatmul.mubr.bf16.gmra.mrb[0].mxu0 %v1008
    %v1052 = vpop.f32.mrb[0].mxu0
    %v1053 = vadd.f32 %v996, %v1052
    %v1054 = vpop.f32.mrb[0].mxu0
    %v1055 = vpop.f32.mrb[0].mxu0
    %v1056 = vadd.f32 %v996, %v1055
    %v1057 = vpop.f32.mrb[0].mxu0
    %1058 = vdwg.mxu0
    %v1059 = vmul.f32 %v1045, 0.5
    %v1060 = vmul.f32 %v1048, 0.5
    %v1061 = vmul.f32 %v1053, 0.5
    %v1062 = vmul.f32 %v1056, 0.5
    %v1063 = vmul.f32 %v1045, 0.70710677
    %v1064 = vmul.f32 %v1048, 0.70710677
    %v1065 = vmul.f32 %v1053, 0.70710677
    %v1066 = vmul.f32 %v1056, 0.70710677
    %v1067 = verf.f32.pop %v1063
    %v1068 = verf.f32.pop %v1064
    %v1069 = verf.f32.pop %v1065
    %v1070 = verf.f32.pop %v1066
    %v1071 = vadd.f32 %v1067, 1.0
    %v1072 = vadd.f32 %v1068, 1.0
    %v1073 = vadd.f32 %v1069, 1.0
    %v1074 = vadd.f32 %v1070, 1.0
    %v1075 = vmul.f32 %v1059, %v1071
    %v1076 = vmul.f32 %v1060, %v1072
    %v1077 = vmul.f32 %v1061, %v1073
    %v1078 = vmul.f32 %v1062, %v1074
    %v1079 = vpack.c.bf16 %v1076, %v1075
    %v1080 = vpack.c.bf16 %v1078, %v1077
    %v1085 = vunpack.c.l.b16 %v171
    %v1086 = vunpack.c.l.b16 %v172
    %v1087 = vunpack.c.l.b16 %v173
    %v1088 = vunpack.c.l.b16 %v174
    %v1089 = vpack.c.b16 %v1086, %v1085
    %v1090 = vpack.c.b16 %v1088, %v1087
    %vm1093 = vcmask 261120
    %v1095 = vsel %vm1093, %v1079, 0
    %v1098 = vsel %vm1093, %v1080, 0
    %1100 = vmatprep.subr.bf16.mxu0 0
    %1101 = vmatpush1.bf16.msra.mxu0 %v1089
    %1102 = vmatprep.subr.bf16.mxu0 0
    %1103 = vmatpush1.bf16.msra.mxu0 %v1090
    %1104 = vmatprep.subr.bf16.mxu0 0
    %1105 = vmatpush1.bf16.msra.mxu0 0
    %1106 = vmatprep.subr.bf16.mxu0 0
    %1107 = vmatpush1.bf16.msra.mxu0 0
    %1108 = vmatprep.subr.bf16.mxu0 0
    %1109 = vmatpush1.bf16.msra.mxu0 0
    %1110 = vmatprep.subr.bf16.mxu0 0
    %1111 = vmatpush1.bf16.msra.mxu0 0
    %1112 = vmatprep.subr.bf16.mxu0 0
    %1113 = vmatpush1.bf16.msra.mxu0 0
    %1114 = vmatprep.subr.bf16.mxu0 0
    %1115 = vmatpush1.bf16.msra.mxu0 0
    %1116 = vmatprep.subr.bf16.mxu0 0
    %1117 = vmatpush1.bf16.msra.mxu0 0
    %1118 = vmatprep.subr.bf16.mxu0 0
    %1119 = vmatpush1.bf16.msra.mxu0 0
    %1120 = vmatprep.subr.bf16.mxu0 0
    %1121 = vmatpush1.bf16.msra.mxu0 0
    %1122 = vmatprep.subr.bf16.mxu0 0
    %1123 = vmatpush1.bf16.msra.mxu0 0
    %1124 = vmatprep.subr.bf16.mxu0 0
    %1125 = vmatpush1.bf16.msra.mxu0 0
    %1126 = vmatprep.subr.bf16.mxu0 0
    %1127 = vmatpush1.bf16.msra.mxu0 0
    %1128 = vmatprep.subr.bf16.mxu0 0
    %1129 = vmatpush1.bf16.msra.mxu0 0
    %1130 = vmatprep.subr.bf16.mxu0 0
    %1131 = vmatpush1.bf16.msra.mxu0 0
    %1132 = vmatprep.mubr.bf16.mxu0 0
    %1133 = vmatmul.mubr.bf16.gmra.mrb[0].mxu0 %v1095
    %v1134 = vpop.f32.mrb[0].mxu0
    %v1135 = vadd.f32 0.0, %v1134
    %v1136 = vpop.f32.mrb[0].mxu0
    %v1137 = vpop.f32.mrb[0].mxu0
    %v1138 = vadd.f32 0.0, %v1137
    %v1139 = vpop.f32.mrb[0].mxu0
    %1140 = vmatprep.mubr.bf16.mxu0 0
    %1141 = vmatmul.mubr.bf16.gmra.mrb[0].mxu0 %v1098
    %v1142 = vpop.f32.mrb[0].mxu0
    %v1143 = vadd.f32 0.0, %v1142
    %v1144 = vpop.f32.mrb[0].mxu0
    %v1145 = vpop.f32.mrb[0].mxu0
    %v1146 = vadd.f32 0.0, %v1145
    %v1147 = vpop.f32.mrb[0].mxu0
    %1148 = vdwg.mxu0
    %v1149 = vadd.f32 %v914, %v1135
    %v1150 = vadd.f32 %v915, %v1138
    %v1151 = vadd.f32 %v916, %v1143
    %v1152 = vadd.f32 %v917, %v1146
    %v1154 = vlaneseq
    %v1155 = vshrl.u32 %v1154, 7
    %v1156 = vsub.s32 0, %v1155
    %v1157 = vrot.slane %v175, %v1156
    %v1159 = vadd.f32 %v1149, %v1157
    %v1160 = vadd.f32 %v1150, %v1157
    %v1161 = vadd.f32 %v1151, %v1157
    %v1162 = vadd.f32 %v1152, %v1157
    %1163 = vst.msk [vmem:[#allocation2] sm:$0xff] %vm176, %v1159
    %1164 = vst.msk [vmem:[#allocation2 + $0x8] sm:$0xff] %vm176, %v1160
    %1165 = vst.msk [vmem:[#allocation2 + $0x10] sm:$0xff] %vm176, %v1161
    %1166 = vst.msk [vmem:[#allocation2 + $0x18] sm:$0xff] %vm176, %v1162
    %v1167 = vld [vmem:[%s13] sm:$0x1]
    %v1169 = vlaneseq
    %v1170 = vshrl.u32 %v1169, 7
    %v1171 = vsub.s32 0, %v1170
    %v1172 = vrot.slane %v1167, %v1171
    %v1174 = vld [vmem:[%s0] sm:$0xff]
    %v1175 = vld [vmem:[%s0 + $0x8] sm:$0xff]
    %v1176 = vld [vmem:[%s0 + $0x10] sm:$0xff]
    %v1177 = vld [vmem:[%s0 + $0x18] sm:$0xff]
    %v1178 = vadd.f32 %v1174, %v110
    %v1179 = vadd.f32 %v1175, %v110
    %v1180 = vadd.f32 %v1176, %v110
    %v1181 = vadd.f32 %v1177, %v110
    %v1182 = vld [vmem:[%s116] sm:$0xff]
    %v1183 = vld [vmem:[%s116 + $0x8] sm:$0xff]
    %v1184 = vld [vmem:[%s116 + $0x10] sm:$0xff]
    %v1185 = vld [vmem:[%s116 + $0x18] sm:$0xff]
    %v1186 = vadd.f32 %v1182, %v125
    %v1187 = vadd.f32 %v1183, %v125
    %v1188 = vadd.f32 %v1184, %v125
    %v1189 = vadd.f32 %v1185, %v125
    %v1190 = vld [vmem:[%s131] sm:$0xff]
    %v1191 = vld [vmem:[%s131 + $0x8] sm:$0xff]
    %v1192 = vld [vmem:[%s131 + $0x10] sm:$0xff]
    %v1193 = vld [vmem:[%s131 + $0x18] sm:$0xff]
    %v1194 = vadd.f32 %v1190, %v140
    %v1195 = vadd.f32 %v1191, %v140
    %v1196 = vadd.f32 %v1192, %v140
    %v1197 = vadd.f32 %v1193, %v140
    %v1198 = vld [vmem:[%s146] sm:$0xff]
    %v1199 = vld [vmem:[%s146 + $0x8] sm:$0xff]
    %v1200 = vld [vmem:[%s146 + $0x10] sm:$0xff]
    %v1201 = vld [vmem:[%s146 + $0x18] sm:$0xff]
    %v1202 = vadd.f32 %v1198, %v155
    %v1203 = vadd.f32 %v1199, %v155
    %v1204 = vadd.f32 %v1200, %v155
    %v1205 = vadd.f32 %v1201, %v155
    %v1206 = vld [vmem:[%s14] sm:$0x1]
    %v1207 = vld [vmem:[%s15] sm:$0x1]
    %v1208 = vld [vmem:[%s16] sm:$0xf]
    %v1209 = vld [vmem:[%s16 + $0x4] sm:$0xf]
    %v1210 = vld [vmem:[%s17] sm:$0xf]
    %v1211 = vld [vmem:[%s17 + $0x4] sm:$0xf]
    %v1212 = vld [vmem:[%s18] sm:$0x1]
    %v1213 = vld [vmem:[%s19] sm:$0x1]
    %v1214 = vld [vmem:[%s20] sm:$0xf]
    %v1215 = vld [vmem:[%s20 + $0x4] sm:$0xf]
    %v1216 = vld [vmem:[%s21] sm:$0x1]
    %v1217 = vld [vmem:[%s22] sm:$0xf]
    %v1218 = vld [vmem:[%s22 + $0x4] sm:$0xf]
    %v1219 = vld [vmem:[%s22 + $0x8] sm:$0xf]
    %v1220 = vld [vmem:[%s22 + $0xc] sm:$0xf]
    %v1221 = vld [vmem:[%s23] sm:$0x1]
    %v1222 = vsel %vm176, %v1172, 0.0
    %1223 = vadd.xlane.f32.xlu0 %v1222
    %v1224 = vpop.xlane.xlu0 %1223
    %v1225 = vmul.f32 %v1224, %v180
    %v1226 = vsub.f32 %v1172, %v1225
    %v1227 = vmul.f32 %v1226, %v1226
    %v1228 = vsel %vm176, %v1227, 0.0
    %1229 = vadd.xlane.f32.xlu0 %v1228
    %v1230 = vpop.xlane.xlu0 %1229
    %v1231 = vmul.f32 %v1230, %v180
    %v1232 = vadd.f32 %v1231, 1e-05
    %v1233 = vrsqrt.pop %v1232
    %v1234 = vmul.f32 %v1226, %v1233
    %v1236 = vlaneseq
    %v1237 = vshrl.u32 %v1236, 7
    %v1238 = vsub.s32 0, %v1237
    %v1239 = vrot.slane %v1206, %v1238
    %v1241 = vmul.f32 %v1234, %v1239
    %v1243 = vlaneseq
    %v1244 = vshrl.u32 %v1243, 7
    %v1245 = vsub.s32 0, %v1244
    %v1246 = vrot.slane %v1207, %v1245
    %v1248 = vadd.f32 %v1241, %v1246
    %v1249 = vpack.c.bf16 %v1248, %v1248
    %v1252 = vunpack.c.l.b16 %v1208
    %v1253 = vunpack.c.l.b16 %v1209
    %v1254 = vpack.c.b16 %v1253, %v1252
    %v1257 = vsel %vm176, %v1249, 0
    %1259 = vmatprep.subr.bf16.mxu0 0
    %1260 = vmatpush1.bf16.msra.mxu0 %v1254
    %1261 = vmatprep.subr.bf16.mxu0 0
    %1262 = vmatpush1.bf16.msra.mxu0 0
    %1263 = vmatprep.subr.bf16.mxu0 0
    %1264 = vmatpush1.bf16.msra.mxu0 0
    %1265 = vmatprep.subr.bf16.mxu0 0
    %1266 = vmatpush1.bf16.msra.mxu0 0
    %1267 = vmatprep.subr.bf16.mxu0 0
    %1268 = vmatpush1.bf16.msra.mxu0 0
    %1269 = vmatprep.subr.bf16.mxu0 0
    %1270 = vmatpush1.bf16.msra.mxu0 0
    %1271 = vmatprep.subr.bf16.mxu0 0
    %1272 = vmatpush1.bf16.msra.mxu0 0
    %1273 = vmatprep.subr.bf16.mxu0 0
    %1274 = vmatpush1.bf16.msra.mxu0 0
    %1275 = vmatprep.subr.bf16.mxu0 0
    %1276 = vmatpush1.bf16.msra.mxu0 0
    %1277 = vmatprep.subr.bf16.mxu0 0
    %1278 = vmatpush1.bf16.msra.mxu0 0
    %1279 = vmatprep.subr.bf16.mxu0 0
    %1280 = vmatpush1.bf16.msra.mxu0 0
    %1281 = vmatprep.subr.bf16.mxu0 0
    %1282 = vmatpush1.bf16.msra.mxu0 0
    %1283 = vmatprep.subr.bf16.mxu0 0
    %1284 = vmatpush1.bf16.msra.mxu0 0
    %1285 = vmatprep.subr.bf16.mxu0 0
    %1286 = vmatpush1.bf16.msra.mxu0 0
    %1287 = vmatprep.subr.bf16.mxu0 0
    %1288 = vmatpush1.bf16.msra.mxu0 0
    %1289 = vmatprep.subr.bf16.mxu0 0
    %1290 = vmatpush1.bf16.msra.mxu0 0
    %1291 = vmatprep.mubr.bf16.mxu0 0
    %1292 = vmatmul.mubr.bf16.gmra.mrb[0].mxu0 %v1257
    %v1293 = vpop.f32.mrb[0].mxu0
    %v1294 = vadd.f32 0.0, %v1293
    %v1295 = vpop.f32.mrb[0].mxu0
    %v1296 = vpop.f32.mrb[0].mxu0
    %v1297 = vadd.f32 0.0, %v1296
    %v1298 = vpop.f32.mrb[0].mxu0
    %1299 = vmatprep.mubr.bf16.mxu0 0
    %1300 = vmatmul.mubr.bf16.gmra.mrb[0].mxu0 %v1257
    %v1301 = vpop.f32.mrb[0].mxu0
    %v1302 = vadd.f32 0.0, %v1301
    %v1303 = vpop.f32.mrb[0].mxu0
    %v1304 = vpop.f32.mrb[0].mxu0
    %v1305 = vadd.f32 0.0, %v1304
    %v1306 = vpop.f32.mrb[0].mxu0
    %1307 = vdwg.mxu0
    %v1308 = vsel %vm176, %v1178, 0.0
    %1309 = vadd.xlane.f32.xlu0 %v1308
    %v1310 = vpop.xlane.xlu0 %1309
    %v1311 = vsel %vm176, %v1179, 0.0
    %1312 = vadd.xlane.f32.xlu0 %v1311
    %v1313 = vpop.xlane.xlu0 %1312
    %v1314 = vsel %vm176, %v1180, 0.0
    %1315 = vadd.xlane.f32.xlu0 %v1314
    %v1316 = vpop.xlane.xlu0 %1315
    %v1317 = vsel %vm176, %v1181, 0.0
    %1318 = vadd.xlane.f32.xlu0 %v1317
    %v1319 = vpop.xlane.xlu0 %1318
    %v1320 = vmul.f32 %v1310, %v180
    %v1321 = vmul.f32 %v1313, %v180
    %v1322 = vmul.f32 %v1316, %v180
    %v1323 = vmul.f32 %v1319, %v180
    %v1324 = vsub.f32 %v1178, %v1320
    %v1325 = vsub.f32 %v1179, %v1321
    %v1326 = vsub.f32 %v1180, %v1322
    %v1327 = vsub.f32 %v1181, %v1323
    %v1328 = vmul.f32 %v1324, %v1324
    %v1329 = vmul.f32 %v1325, %v1325
    %v1330 = vmul.f32 %v1326, %v1326
    %v1331 = vmul.f32 %v1327, %v1327
    %v1332 = vsel %vm176, %v1328, 0.0
    %1333 = vadd.xlane.f32.xlu0 %v1332
    %v1334 = vpop.xlane.xlu0 %1333
    %v1335 = vsel %vm176, %v1329, 0.0
    %1336 = vadd.xlane.f32.xlu0 %v1335
    %v1337 = vpop.xlane.xlu0 %1336
    %v1338 = vsel %vm176, %v1330, 0.0
    %1339 = vadd.xlane.f32.xlu0 %v1338
    %v1340 = vpop.xlane.xlu0 %1339
    %v1341 = vsel %vm176, %v1331, 0.0
    %1342 = vadd.xlane.f32.xlu0 %v1341
    %v1343 = vpop.xlane.xlu0 %1342
    %v1344 = vmul.f32 %v1334, %v180
    %v1345 = vmul.f32 %v1337, %v180
    %v1346 = vmul.f32 %v1340, %v180
    %v1347 = vmul.f32 %v1343, %v180
    %v1348 = vadd.f32 %v1344, 1e-05
    %v1349 = vadd.f32 %v1345, 1e-05
    %v1350 = vadd.f32 %v1346, 1e-05
    %v1351 = vadd.f32 %v1347, 1e-05
    %v1352 = vrsqrt.pop %v1348
    %v1353 = vrsqrt.pop %v1349
    %v1354 = vrsqrt.pop %v1350
    %v1355 = vrsqrt.pop %v1351
    %v1356 = vmul.f32 %v1324, %v1352
    %v1357 = vmul.f32 %v1325, %v1353
    %v1358 = vmul.f32 %v1326, %v1354
    %v1359 = vmul.f32 %v1327, %v1355
    %v1360 = vmul.f32 %v1356, %v1239
    %v1361 = vmul.f32 %v1357, %v1239
    %v1362 = vmul.f32 %v1358, %v1239
    %v1363 = vmul.f32 %v1359, %v1239
    %v1364 = vadd.f32 %v1360, %v1246
    %v1365 = vadd.f32 %v1361, %v1246
    %v1366 = vadd.f32 %v1362, %v1246
    %v1367 = vadd.f32 %v1363, %v1246
    %v1368 = vpack.c.bf16 %v1365, %v1364
    %v1369 = vpack.c.bf16 %v1367, %v1366
    %v1371 = vsel %vm176, %v1368, 0
    %v1374 = vsel %vm176, %v1369, 0
    %1376 = vmatprep.subr.bf16.mxu0 0
    %1377 = vmatpush1.bf16.msra.mxu0 %v1254
    %1378 = vmatprep.subr.bf16.mxu0 0
    %1379 = vmatpush1.bf16.msra.mxu0 0
    %1380 = vmatprep.subr.bf16.mxu0 0
    %1381 = vmatpush1.bf16.msra.mxu0 0
    %1382 = vmatprep.subr.bf16.mxu0 0
    %1383 = vmatpush1.bf16.msra.mxu0 0
    %1384 = vmatprep.subr.bf16.mxu0 0
    %1385 = vmatpush1.bf16.msra.mxu0 0
    %1386 = vmatprep.subr.bf16.mxu0 0
    %1387 = vmatpush1.bf16.msra.mxu0 0
    %1388 = vmatprep.subr.bf16.mxu0 0
    %1389 = vmatpush1.bf16.msra.mxu0 0
    %1390 = vmatprep.subr.bf16.mxu0 0
    %1391 = vmatpush1.bf16.msra.mxu0 0
    %1392 = vmatprep.subr.bf16.mxu0 0
    %1393 = vmatpush1.bf16.msra.mxu0 0
    %1394 = vmatprep.subr.bf16.mxu0 0
    %1395 = vmatpush1.bf16.msra.mxu0 0
    %1396 = vmatprep.subr.bf16.mxu0 0
    %1397 = vmatpush1.bf16.msra.mxu0 0
    %1398 = vmatprep.subr.bf16.mxu0 0
    %1399 = vmatpush1.bf16.msra.mxu0 0
    %1400 = vmatprep.subr.bf16.mxu0 0
    %1401 = vmatpush1.bf16.msra.mxu0 0
    %1402 = vmatprep.subr.bf16.mxu0 0
    %1403 = vmatpush1.bf16.msra.mxu0 0
    %1404 = vmatprep.subr.bf16.mxu0 0
    %1405 = vmatpush1.bf16.msra.mxu0 0
    %1406 = vmatprep.subr.bf16.mxu0 0
    %1407 = vmatpush1.bf16.msra.mxu0 0
    %1408 = vmatprep.mubr.bf16.mxu0 0
    %1409 = vmatmul.mubr.bf16.gmra.mrb[0].mxu0 %v1371
    %v1410 = vpop.f32.mrb[0].mxu0
    %v1411 = vadd.f32 0.0, %v1410
    %v1412 = vpop.f32.mrb[0].mxu0
    %v1413 = vpop.f32.mrb[0].mxu0
    %v1414 = vadd.f32 0.0, %v1413
    %v1415 = vpop.f32.mrb[0].mxu0
    %1416 = vmatprep.mubr.bf16.mxu0 0
    %1417 = vmatmul.mubr.bf16.gmra.mrb[0].mxu0 %v1374
    %v1418 = vpop.f32.mrb[0].mxu0
    %v1419 = vadd.f32 0.0, %v1418
    %v1420 = vpop.f32.mrb[0].mxu0
    %v1421 = vpop.f32.mrb[0].mxu0
    %v1422 = vadd.f32 0.0, %v1421
    %v1423 = vpop.f32.mrb[0].mxu0
    %1424 = vdwg.mxu0
    %v1425 = vsel %vm176, %v1186, 0.0
    %1426 = vadd.xlane.f32.xlu0 %v1425
    %v1427 = vpop.xlane.xlu0 %1426
    %v1428 = vsel %vm176, %v1187, 0.0
    %1429 = vadd.xlane.f32.xlu0 %v1428
    %v1430 = vpop.xlane.xlu0 %1429
    %v1431 = vsel %vm176, %v1188, 0.0
    %1432 = vadd.xlane.f32.xlu0 %v1431
    %v1433 = vpop.xlane.xlu0 %1432
    %v1434 = vsel %vm176, %v1189, 0.0
    %1435 = vadd.xlane.f32.xlu0 %v1434
    %v1436 = vpop.xlane.xlu0 %1435
    %v1437 = vmul.f32 %v1427, %v180
    %v1438 = vmul.f32 %v1430, %v180
    %v1439 = vmul.f32 %v1433, %v180
    %v1440 = vmul.f32 %v1436, %v180
    %v1441 = vsub.f32 %v1186, %v1437
    %v1442 = vsub.f32 %v1187, %v1438
    %v1443 = vsub.f32 %v1188, %v1439
    %v1444 = vsub.f32 %v1189, %v1440
    %v1445 = vmul.f32 %v1441, %v1441
    %v1446 = vmul.f32 %v1442, %v1442
    %v1447 = vmul.f32 %v1443, %v1443
    %v1448 = vmul.f32 %v1444, %v1444
    %v1449 = vsel %vm176, %v1445, 0.0
    %1450 = vadd.xlane.f32.xlu0 %v1449
    %v1451 = vpop.xlane.xlu0 %1450
    %v1452 = vsel %vm176, %v1446, 0.0
    %1453 = vadd.xlane.f32.xlu0 %v1452
    %v1454 = vpop.xlane.xlu0 %1453
    %v1455 = vsel %vm176, %v1447, 0.0
    %1456 = vadd.xlane.f32.xlu0 %v1455
    %v1457 = vpop.xlane.xlu0 %1456
    %v1458 = vsel %vm176, %v1448, 0.0
    %1459 = vadd.xlane.f32.xlu0 %v1458
    %v1460 = vpop.xlane.xlu0 %1459
    %v1461 = vmul.f32 %v1451, %v180
    %v1462 = vmul.f32 %v1454, %v180
    %v1463 = vmul.f32 %v1457, %v180
    %v1464 = vmul.f32 %v1460, %v180
    %v1465 = vadd.f32 %v1461, 1e-05
    %v1466 = vadd.f32 %v1462, 1e-05
    %v1467 = vadd.f32 %v1463, 1e-05
    %v1468 = vadd.f32 %v1464, 1e-05
    %v1469 = vrsqrt.pop %v1465
    %v1470 = vrsqrt.pop %v1466
    %v1471 = vrsqrt.pop %v1467
    %v1472 = vrsqrt.pop %v1468
    %v1473 = vmul.f32 %v1441, %v1469
    %v1474 = vmul.f32 %v1442, %v1470
    %v1475 = vmul.f32 %v1443, %v1471
    %v1476 = vmul.f32 %v1444, %v1472
    %v1477 = vmul.f32 %v1473, %v1239
    %v1478 = vmul.f32 %v1474, %v1239
    %v1479 = vmul.f32 %v1475, %v1239
    %v1480 = vmul.f32 %v1476, %v1239
    %v1481 = vadd.f32 %v1477, %v1246
    %v1482 = vadd.f32 %v1478, %v1246
    %v1483 = vadd.f32 %v1479, %v1246
    %v1484 = vadd.f32 %v1480, %v1246
    %v1485 = vpack.c.bf16 %v1482, %v1481
    %v1486 = vpack.c.bf16 %v1484, %v1483
    %v1488 = vsel %vm176, %v1485, 0
    %v1491 = vsel %vm176, %v1486, 0
    %1493 = vmatprep.subr.bf16.mxu0 0
    %1494 = vmatpush1.bf16.msra.mxu0 %v1254
    %1495 = vmatprep.subr.bf16.mxu0 0
    %1496 = vmatpush1.bf16.msra.mxu0 0
    %1497 = vmatprep.subr.bf16.mxu0 0
    %1498 = vmatpush1.bf16.msra.mxu0 0
    %1499 = vmatprep.subr.bf16.mxu0 0
    %1500 = vmatpush1.bf16.msra.mxu0 0
    %1501 = vmatprep.subr.bf16.mxu0 0
    %1502 = vmatpush1.bf16.msra.mxu0 0
    %1503 = vmatprep.subr.bf16.mxu0 0
    %1504 = vmatpush1.bf16.msra.mxu0 0
    %1505 = vmatprep.subr.bf16.mxu0 0
    %1506 = vmatpush1.bf16.msra.mxu0 0
    %1507 = vmatprep.subr.bf16.mxu0 0
    %1508 = vmatpush1.bf16.msra.mxu0 0
    %1509 = vmatprep.subr.bf16.mxu0 0
    %1510 = vmatpush1.bf16.msra.mxu0 0
    %1511 = vmatprep.subr.bf16.mxu0 0
    %1512 = vmatpush1.bf16.msra.mxu0 0
    %1513 = vmatprep.subr.bf16.mxu0 0
    %1514 = vmatpush1.bf16.msra.mxu0 0
    %1515 = vmatprep.subr.bf16.mxu0 0
    %1516 = vmatpush1.bf16.msra.mxu0 0
    %1517 = vmatprep.subr.bf16.mxu0 0
    %1518 = vmatpush1.bf16.msra.mxu0 0
    %1519 = vmatprep.subr.bf16.mxu0 0
    %1520 = vmatpush1.bf16.msra.mxu0 0
    %1521 = vmatprep.subr.bf16.mxu0 0
    %1522 = vmatpush1.bf16.msra.mxu0 0
    %1523 = vmatprep.subr.bf16.mxu0 0
    %1524 = vmatpush1.bf16.msra.mxu0 0
    %1525 = vmatprep.mubr.bf16.mxu0 0
    %1526 = vmatmul.mubr.bf16.gmra.mrb[0].mxu0 %v1488
    %v1527 = vpop.f32.mrb[0].mxu0
    %v1528 = vadd.f32 0.0, %v1527
    %v1529 = vpop.f32.mrb[0].mxu0
    %v1530 = vpop.f32.mrb[0].mxu0
    %v1531 = vadd.f32 0.0, %v1530
    %v1532 = vpop.f32.mrb[0].mxu0
    %1533 = vmatprep.mubr.bf16.mxu0 0
    %1534 = vmatmul.mubr.bf16.gmra.mrb[0].mxu0 %v1491
    %v1535 = vpop.f32.mrb[0].mxu0
    %v1536 = vadd.f32 0.0, %v1535
    %v1537 = vpop.f32.mrb[0].mxu0
    %v1538 = vpop.f32.mrb[0].mxu0
    %v1539 = vadd.f32 0.0, %v1538
    %v1540 = vpop.f32.mrb[0].mxu0
    %1541 = vdwg.mxu0
    %v1542 = vsel %vm176, %v1194, 0.0
    %1543 = vadd.xlane.f32.xlu0 %v1542
    %v1544 = vpop.xlane.xlu0 %1543
    %v1545 = vsel %vm176, %v1195, 0.0
    %1546 = vadd.xlane.f32.xlu0 %v1545
    %v1547 = vpop.xlane.xlu0 %1546
    %v1548 = vsel %vm176, %v1196, 0.0
    %1549 = vadd.xlane.f32.xlu0 %v1548
    %v1550 = vpop.xlane.xlu0 %1549
    %v1551 = vsel %vm176, %v1197, 0.0
    %1552 = vadd.xlane.f32.xlu0 %v1551
    %v1553 = vpop.xlane.xlu0 %1552
    %v1554 = vmul.f32 %v1544, %v180
    %v1555 = vmul.f32 %v1547, %v180
    %v1556 = vmul.f32 %v1550, %v180
    %v1557 = vmul.f32 %v1553, %v180
    %v1558 = vsub.f32 %v1194, %v1554
    %v1559 = vsub.f32 %v1195, %v1555
    %v1560 = vsub.f32 %v1196, %v1556
    %v1561 = vsub.f32 %v1197, %v1557
    %v1562 = vmul.f32 %v1558, %v1558
    %v1563 = vmul.f32 %v1559, %v1559
    %v1564 = vmul.f32 %v1560, %v1560
    %v1565 = vmul.f32 %v1561, %v1561
    %v1566 = vsel %vm176, %v1562, 0.0
    %1567 = vadd.xlane.f32.xlu0 %v1566
    %v1568 = vpop.xlane.xlu0 %1567
    %v1569 = vsel %vm176, %v1563, 0.0
    %1570 = vadd.xlane.f32.xlu0 %v1569
    %v1571 = vpop.xlane.xlu0 %1570
    %v1572 = vsel %vm176, %v1564, 0.0
    %1573 = vadd.xlane.f32.xlu0 %v1572
    %v1574 = vpop.xlane.xlu0 %1573
    %v1575 = vsel %vm176, %v1565, 0.0
    %1576 = vadd.xlane.f32.xlu0 %v1575
    %v1577 = vpop.xlane.xlu0 %1576
    %v1578 = vmul.f32 %v1568, %v180
    %v1579 = vmul.f32 %v1571, %v180
    %v1580 = vmul.f32 %v1574, %v180
    %v1581 = vmul.f32 %v1577, %v180
    %v1582 = vadd.f32 %v1578, 1e-05
    %v1583 = vadd.f32 %v1579, 1e-05
    %v1584 = vadd.f32 %v1580, 1e-05
    %v1585 = vadd.f32 %v1581, 1e-05
    %v1586 = vrsqrt.pop %v1582
    %v1587 = vrsqrt.pop %v1583
    %v1588 = vrsqrt.pop %v1584
    %v1589 = vrsqrt.pop %v1585
    %v1590 = vmul.f32 %v1558, %v1586
    %v1591 = vmul.f32 %v1559, %v1587
    %v1592 = vmul.f32 %v1560, %v1588
    %v1593 = vmul.f32 %v1561, %v1589
    %v1594 = vmul.f32 %v1590, %v1239
    %v1595 = vmul.f32 %v1591, %v1239
    %v1596 = vmul.f32 %v1592, %v1239
    %v1597 = vmul.f32 %v1593, %v1239
    %v1598 = vadd.f32 %v1594, %v1246
    %v1599 = vadd.f32 %v1595, %v1246
    %v1600 = vadd.f32 %v1596, %v1246
    %v1601 = vadd.f32 %v1597, %v1246
    %v1602 = vpack.c.bf16 %v1599, %v1598
    %v1603 = vpack.c.bf16 %v1601, %v1600
    %v1605 = vsel %vm176, %v1602, 0
    %v1608 = vsel %vm176, %v1603, 0
    %1610 = vmatprep.subr.bf16.mxu0 0
    %1611 = vmatpush1.bf16.msra.mxu0 %v1254
    %1612 = vmatprep.subr.bf16.mxu0 0
    %1613 = vmatpush1.bf16.msra.mxu0 0
    %1614 = vmatprep.subr.bf16.mxu0 0
    %1615 = vmatpush1.bf16.msra.mxu0 0
    %1616 = vmatprep.subr.bf16.mxu0 0
    %1617 = vmatpush1.bf16.msra.mxu0 0
    %1618 = vmatprep.subr.bf16.mxu0 0
    %1619 = vmatpush1.bf16.msra.mxu0 0
    %1620 = vmatprep.subr.bf16.mxu0 0
    %1621 = vmatpush1.bf16.msra.mxu0 0
    %1622 = vmatprep.subr.bf16.mxu0 0
    %1623 = vmatpush1.bf16.msra.mxu0 0
    %1624 = vmatprep.subr.bf16.mxu0 0
    %1625 = vmatpush1.bf16.msra.mxu0 0
    %1626 = vmatprep.subr.bf16.mxu0 0
    %1627 = vmatpush1.bf16.msra.mxu0 0
    %1628 = vmatprep.subr.bf16.mxu0 0
    %1629 = vmatpush1.bf16.msra.mxu0 0
    %1630 = vmatprep.subr.bf16.mxu0 0
    %1631 = vmatpush1.bf16.msra.mxu0 0
    %1632 = vmatprep.subr.bf16.mxu0 0
    %1633 = vmatpush1.bf16.msra.mxu0 0
    %1634 = vmatprep.subr.bf16.mxu0 0
    %1635 = vmatpush1.bf16.msra.mxu0 0
    %1636 = vmatprep.subr.bf16.mxu0 0
    %1637 = vmatpush1.bf16.msra.mxu0 0
    %1638 = vmatprep.subr.bf16.mxu0 0
    %1639 = vmatpush1.bf16.msra.mxu0 0
    %1640 = vmatprep.subr.bf16.mxu0 0
    %1641 = vmatpush1.bf16.msra.mxu0 0
    %1642 = vmatprep.mubr.bf16.mxu0 0
    %1643 = vmatmul.mubr.bf16.gmra.mrb[0].mxu0 %v1605
    %v1644 = vpop.f32.mrb[0].mxu0
    %v1645 = vadd.f32 0.0, %v1644
    %v1646 = vpop.f32.mrb[0].mxu0
    %v1647 = vpop.f32.mrb[0].mxu0
    %v1648 = vadd.f32 0.0, %v1647
    %v1649 = vpop.f32.mrb[0].mxu0
    %1650 = vmatprep.mubr.bf16.mxu0 0
    %1651 = vmatmul.mubr.bf16.gmra.mrb[0].mxu0 %v1608
    %v1652 = vpop.f32.mrb[0].mxu0
    %v1653 = vadd.f32 0.0, %v1652
    %v1654 = vpop.f32.mrb[0].mxu0
    %v1655 = vpop.f32.mrb[0].mxu0
    %v1656 = vadd.f32 0.0, %v1655
    %v1657 = vpop.f32.mrb[0].mxu0
    %1658 = vdwg.mxu0
    %v1659 = vsel %vm176, %v1202, 0.0
    %1660 = vadd.xlane.f32.xlu0 %v1659
    %v1661 = vpop.xlane.xlu0 %1660
    %v1662 = vsel %vm176, %v1203, 0.0
    %1663 = vadd.xlane.f32.xlu0 %v1662
    %v1664 = vpop.xlane.xlu0 %1663
    %v1665 = vsel %vm176, %v1204, 0.0
    %1666 = vadd.xlane.f32.xlu0 %v1665
    %v1667 = vpop.xlane.xlu0 %1666
    %v1668 = vsel %vm176, %v1205, 0.0
    %1669 = vadd.xlane.f32.xlu0 %v1668
    %v1670 = vpop.xlane.xlu0 %1669
    %v1671 = vmul.f32 %v1661, %v180
    %v1672 = vmul.f32 %v1664, %v180
    %v1673 = vmul.f32 %v1667, %v180
    %v1674 = vmul.f32 %v1670, %v180
    %v1675 = vsub.f32 %v1202, %v1671
    %v1676 = vsub.f32 %v1203, %v1672
    %v1677 = vsub.f32 %v1204, %v1673
    %v1678 = vsub.f32 %v1205, %v1674
    %v1679 = vmul.f32 %v1675, %v1675
    %v1680 = vmul.f32 %v1676, %v1676
    %v1681 = vmul.f32 %v1677, %v1677
    %v1682 = vmul.f32 %v1678, %v1678
    %v1683 = vsel %vm176, %v1679, 0.0
    %1684 = vadd.xlane.f32.xlu0 %v1683
    %v1685 = vpop.xlane.xlu0 %1684
    %v1686 = vsel %vm176, %v1680, 0.0
    %1687 = vadd.xlane.f32.xlu0 %v1686
    %v1688 = vpop.xlane.xlu0 %1687
    %v1689 = vsel %vm176, %v1681, 0.0
    %1690 = vadd.xlane.f32.xlu0 %v1689
    %v1691 = vpop.xlane.xlu0 %1690
    %v1692 = vsel %vm176, %v1682, 0.0
    %1693 = vadd.xlane.f32.xlu0 %v1692
    %v1694 = vpop.xlane.xlu0 %1693
    %v1695 = vmul.f32 %v1685, %v180
    %v1696 = vmul.f32 %v1688, %v180
    %v1697 = vmul.f32 %v1691, %v180
    %v1698 = vmul.f32 %v1694, %v180
    %v1699 = vadd.f32 %v1695, 1e-05
    %v1700 = vadd.f32 %v1696, 1e-05
    %v1701 = vadd.f32 %v1697, 1e-05
    %v1702 = vadd.f32 %v1698, 1e-05
    %v1703 = vrsqrt.pop %v1699
    %v1704 = vrsqrt.pop %v1700
    %v1705 = vrsqrt.pop %v1701
    %v1706 = vrsqrt.pop %v1702
    %v1707 = vmul.f32 %v1675, %v1703
    %v1708 = vmul.f32 %v1676, %v1704
    %v1709 = vmul.f32 %v1677, %v1705
    %v1710 = vmul.f32 %v1678, %v1706
    %v1711 = vmul.f32 %v1707, %v1239
    %v1712 = vmul.f32 %v1708, %v1239
    %v1713 = vmul.f32 %v1709, %v1239
    %v1714 = vmul.f32 %v1710, %v1239
    %v1715 = vadd.f32 %v1711, %v1246
    %v1716 = vadd.f32 %v1712, %v1246
    %v1717 = vadd.f32 %v1713, %v1246
    %v1718 = vadd.f32 %v1714, %v1246
    %v1719 = vpack.c.bf16 %v1716, %v1715
    %v1720 = vpack.c.bf16 %v1718, %v1717
    %v1722 = vsel %vm176, %v1719, 0
    %v1725 = vsel %vm176, %v1720, 0
    %1727 = vmatprep.subr.bf16.mxu0 0
    %1728 = vmatpush1.bf16.msra.mxu0 %v1254
    %1729 = vmatprep.subr.bf16.mxu0 0
    %1730 = vmatpush1.bf16.msra.mxu0 0
    %1731 = vmatprep.subr.bf16.mxu0 0
    %1732 = vmatpush1.bf16.msra.mxu0 0
    %1733 = vmatprep.subr.bf16.mxu0 0
    %1734 = vmatpush1.bf16.msra.mxu0 0
    %1735 = vmatprep.subr.bf16.mxu0 0
    %1736 = vmatpush1.bf16.msra.mxu0 0
    %1737 = vmatprep.subr.bf16.mxu0 0
    %1738 = vmatpush1.bf16.msra.mxu0 0
    %1739 = vmatprep.subr.bf16.mxu0 0
    %1740 = vmatpush1.bf16.msra.mxu0 0
    %1741 = vmatprep.subr.bf16.mxu0 0
    %1742 = vmatpush1.bf16.msra.mxu0 0
    %1743 = vmatprep.subr.bf16.mxu0 0
    %1744 = vmatpush1.bf16.msra.mxu0 0
    %1745 = vmatprep.subr.bf16.mxu0 0
    %1746 = vmatpush1.bf16.msra.mxu0 0
    %1747 = vmatprep.subr.bf16.mxu0 0
    %1748 = vmatpush1.bf16.msra.mxu0 0
    %1749 = vmatprep.subr.bf16.mxu0 0
    %1750 = vmatpush1.bf16.msra.mxu0 0
    %1751 = vmatprep.subr.bf16.mxu0 0
    %1752 = vmatpush1.bf16.msra.mxu0 0
    %1753 = vmatprep.subr.bf16.mxu0 0
    %1754 = vmatpush1.bf16.msra.mxu0 0
    %1755 = vmatprep.subr.bf16.mxu0 0
    %1756 = vmatpush1.bf16.msra.mxu0 0
    %1757 = vmatprep.subr.bf16.mxu0 0
    %1758 = vmatpush1.bf16.msra.mxu0 0
    %1759 = vmatprep.mubr.bf16.mxu0 0
    %1760 = vmatmul.mubr.bf16.gmra.mrb[0].mxu0 %v1722
    %v1761 = vpop.f32.mrb[0].mxu0
    %v1762 = vadd.f32 0.0, %v1761
    %v1763 = vpop.f32.mrb[0].mxu0
    %v1764 = vpop.f32.mrb[0].mxu0
    %v1765 = vadd.f32 0.0, %v1764
    %v1766 = vpop.f32.mrb[0].mxu0
    %1767 = vmatprep.mubr.bf16.mxu0 0
    %1768 = vmatmul.mubr.bf16.gmra.mrb[0].mxu0 %v1725
    %v1769 = vpop.f32.mrb[0].mxu0
    %v1770 = vadd.f32 0.0, %v1769
    %v1771 = vpop.f32.mrb[0].mxu0
    %v1772 = vpop.f32.mrb[0].mxu0
    %v1773 = vadd.f32 0.0, %v1772
    %v1774 = vpop.f32.mrb[0].mxu0
    %1775 = vdwg.mxu0
    %v1776 = vmax.f32 %v1294, %v1411
    %v1777 = vmax.f32 %v1297, %v1414
    %v1778 = vmax.f32 %v1302, %v1419
    %v1779 = vmax.f32 %v1305, %v1422
    %v1780 = vmax.f32 %v1776, %v1528
    %v1781 = vmax.f32 %v1777, %v1531
    %v1782 = vmax.f32 %v1778, %v1536
    %v1783 = vmax.f32 %v1779, %v1539
    %v1784 = vmax.f32 %v1780, %v1645
    %v1785 = vmax.f32 %v1781, %v1648
    %v1786 = vmax.f32 %v1782, %v1653
    %v1787 = vmax.f32 %v1783, %v1656
    %v1788 = vmax.f32 %v1784, %v1762
    %v1789 = vmax.f32 %v1785, %v1765
    %v1790 = vmax.f32 %v1786, %v1770
    %v1791 = vmax.f32 %v1787, %v1773
    %v1792 = vsub.f32 %v1294, %v1788
    %v1793 = vsub.f32 %v1297, %v1789
    %v1794 = vsub.f32 %v1302, %v1790
    %v1795 = vsub.f32 %v1305, %v1791
    %v1796 = vmul.f32 %v1792, 1.442695
    %v1797 = vpow.pop %v1796
    %v1798 = vmul.f32 %v1793, 1.442695
    %v1799 = vpow.pop %v1798
    %v1800 = vmul.f32 %v1794, 1.442695
    %v1801 = vpow.pop %v1800
    %v1802 = vmul.f32 %v1795, 1.442695
    %v1803 = vpow.pop %v1802
    %v1804 = vsub.f32 %v1411, %v1788
    %v1805 = vsub.f32 %v1414, %v1789
    %v1806 = vsub.f32 %v1419, %v1790
    %v1807 = vsub.f32 %v1422, %v1791
    %v1808 = vmul.f32 %v1804, 1.442695
    %v1809 = vpow.pop %v1808
    %v1810 = vmul.f32 %v1805, 1.442695
    %v1811 = vpow.pop %v1810
    %v1812 = vmul.f32 %v1806, 1.442695
    %v1813 = vpow.pop %v1812
    %v1814 = vmul.f32 %v1807, 1.442695
    %v1815 = vpow.pop %v1814
    %v1816 = vsub.f32 %v1528, %v1788
    %v1817 = vsub.f32 %v1531, %v1789
    %v1818 = vsub.f32 %v1536, %v1790
    %v1819 = vsub.f32 %v1539, %v1791
    %v1820 = vmul.f32 %v1816, 1.442695
    %v1821 = vpow.pop %v1820
    %v1822 = vmul.f32 %v1817, 1.442695
    %v1823 = vpow.pop %v1822
    %v1824 = vmul.f32 %v1818, 1.442695
    %v1825 = vpow.pop %v1824
    %v1826 = vmul.f32 %v1819, 1.442695
    %v1827 = vpow.pop %v1826
    %v1828 = vsub.f32 %v1645, %v1788
    %v1829 = vsub.f32 %v1648, %v1789
    %v1830 = vsub.f32 %v1653, %v1790
    %v1831 = vsub.f32 %v1656, %v1791
    %v1832 = vmul.f32 %v1828, 1.442695
    %v1833 = vpow.pop %v1832
    %v1834 = vmul.f32 %v1829, 1.442695
    %v1835 = vpow.pop %v1834
    %v1836 = vmul.f32 %v1830, 1.442695
    %v1837 = vpow.pop %v1836
    %v1838 = vmul.f32 %v1831, 1.442695
    %v1839 = vpow.pop %v1838
    %v1840 = vsub.f32 %v1762, %v1788
    %v1841 = vsub.f32 %v1765, %v1789
    %v1842 = vsub.f32 %v1770, %v1790
    %v1843 = vsub.f32 %v1773, %v1791
    %v1844 = vmul.f32 %v1840, 1.442695
    %v1845 = vpow.pop %v1844
    %v1846 = vmul.f32 %v1841, 1.442695
    %v1847 = vpow.pop %v1846
    %v1848 = vmul.f32 %v1842, 1.442695
    %v1849 = vpow.pop %v1848
    %v1850 = vmul.f32 %v1843, 1.442695
    %v1851 = vpow.pop %v1850
    %v1852 = vadd.f32 %v1797, %v1809
    %v1853 = vadd.f32 %v1799, %v1811
    %v1854 = vadd.f32 %v1801, %v1813
    %v1855 = vadd.f32 %v1803, %v1815
    %v1856 = vadd.f32 %v1852, %v1821
    %v1857 = vadd.f32 %v1853, %v1823
    %v1858 = vadd.f32 %v1854, %v1825
    %v1859 = vadd.f32 %v1855, %v1827
    %v1860 = vadd.f32 %v1856, %v1833
    %v1861 = vadd.f32 %v1857, %v1835
    %v1862 = vadd.f32 %v1858, %v1837
    %v1863 = vadd.f32 %v1859, %v1839
    %v1864 = vadd.f32 %v1860, %v1845
    %v1865 = vadd.f32 %v1861, %v1847
    %v1866 = vadd.f32 %v1862, %v1849
    %v1867 = vadd.f32 %v1863, %v1851
    %v1868 = vrcp.pop %v1864
    %v1869 = vrcp.pop %v1865
    %v1870 = vrcp.pop %v1866
    %v1871 = vrcp.pop %v1867
    %v1872 = vmul.f32 %v1797, %v1868
    %v1873 = vmul.f32 %v1799, %v1869
    %v1874 = vmul.f32 %v1801, %v1870
    %v1875 = vmul.f32 %v1803, %v1871
    %v1876 = vsel %vm176, %v1872, 0.0
    %1877 = vadd.xlane.f32.xlu0 %v1876
    %v1878 = vpop.xlane.xlu0 %1877
    %v1879 = vsel %vm176, %v1873, 0.0
    %1880 = vadd.xlane.f32.xlu0 %v1879
    %v1881 = vpop.xlane.xlu0 %1880
    %v1882 = vsel %vm176, %v1874, 0.0
    %1883 = vadd.xlane.f32.xlu0 %v1882
    %v1884 = vpop.xlane.xlu0 %1883
    %v1885 = vsel %vm176, %v1875, 0.0
    %1886 = vadd.xlane.f32.xlu0 %v1885
    %v1887 = vpop.xlane.xlu0 %1886
    %v1888 = vrcp.pop %v1878
    %v1889 = vrcp.pop %v1881
    %v1890 = vrcp.pop %v1884
    %v1891 = vrcp.pop %v1887
    %v1892 = vmul.f32 %v1872, %v1888
    %v1893 = vmul.f32 %v1873, %v1889
    %v1894 = vmul.f32 %v1874, %v1890
    %v1895 = vmul.f32 %v1875, %v1891
    %v1896 = vpack.c.bf16 %v1893, %v1892
    %v1897 = vpack.c.bf16 %v1895, %v1894
    %v1900 = vunpack.c.l.b16 %v1210
    %v1901 = vunpack.c.l.b16 %v1211
    %v1902 = vpack.c.b16 %v1901, %v1900
    %v1905 = vsel %vm176, %v1896, 0
    %v1908 = vsel %vm176, %v1897, 0
    %1910 = vmatprep.subr.bf16.mxu0 0
    %1911 = vmatpush1.bf16.msra.mxu0 %v1902
    %1912 = vmatprep.subr.bf16.mxu0 0
    %1913 = vmatpush1.bf16.msra.mxu0 0
    %1914 = vmatprep.subr.bf16.mxu0 0
    %1915 = vmatpush1.bf16.msra.mxu0 0
    %1916 = vmatprep.subr.bf16.mxu0 0
    %1917 = vmatpush1.bf16.msra.mxu0 0
    %1918 = vmatprep.subr.bf16.mxu0 0
    %1919 = vmatpush1.bf16.msra.mxu0 0
    %1920 = vmatprep.subr.bf16.mxu0 0
    %1921 = vmatpush1.bf16.msra.mxu0 0
    %1922 = vmatprep.subr.bf16.mxu0 0
    %1923 = vmatpush1.bf16.msra.mxu0 0
    %1924 = vmatprep.subr.bf16.mxu0 0
    %1925 = vmatpush1.bf16.msra.mxu0 0
    %1926 = vmatprep.subr.bf16.mxu0 0
    %1927 = vmatpush1.bf16.msra.mxu0 0
    %1928 = vmatprep.subr.bf16.mxu0 0
    %1929 = vmatpush1.bf16.msra.mxu0 0
    %1930 = vmatprep.subr.bf16.mxu0 0
    %1931 = vmatpush1.bf16.msra.mxu0 0
    %1932 = vmatprep.subr.bf16.mxu0 0
    %1933 = vmatpush1.bf16.msra.mxu0 0
    %1934 = vmatprep.subr.bf16.mxu0 0
    %1935 = vmatpush1.bf16.msra.mxu0 0
    %1936 = vmatprep.subr.bf16.mxu0 0
    %1937 = vmatpush1.bf16.msra.mxu0 0
    %1938 = vmatprep.subr.bf16.mxu0 0
    %1939 = vmatpush1.bf16.msra.mxu0 0
    %1940 = vmatprep.subr.bf16.mxu0 0
    %1941 = vmatpush1.bf16.msra.mxu0 0
    %1942 = vmatprep.mubr.bf16.mxu0 0
    %1943 = vmatmul.mubr.bf16.gmra.mrb[0].mxu0 %v1905
    %v1944 = vpop.f32.mrb[0].mxu0
    %v1945 = vadd.f32 0.0, %v1944
    %v1946 = vpop.f32.mrb[0].mxu0
    %v1947 = vpop.f32.mrb[0].mxu0
    %v1948 = vadd.f32 0.0, %v1947
    %v1949 = vpop.f32.mrb[0].mxu0
    %1950 = vmatprep.mubr.bf16.mxu0 0
    %1951 = vmatmul.mubr.bf16.gmra.mrb[0].mxu0 %v1908
    %v1952 = vpop.f32.mrb[0].mxu0
    %v1953 = vadd.f32 0.0, %v1952
    %v1954 = vpop.f32.mrb[0].mxu0
    %v1955 = vpop.f32.mrb[0].mxu0
    %v1956 = vadd.f32 0.0, %v1955
    %v1957 = vpop.f32.mrb[0].mxu0
    %1958 = vdwg.mxu0
    %v1959 = vadd.f32 %v1172, %v1945
    %v1960 = vadd.f32 %v1172, %v1948
    %v1961 = vadd.f32 %v1172, %v1953
    %v1962 = vadd.f32 %v1172, %v1956
    %v1963 = vmul.f32 %v1809, %v1868
    %v1964 = vmul.f32 %v1811, %v1869
    %v1965 = vmul.f32 %v1813, %v1870
    %v1966 = vmul.f32 %v1815, %v1871
    %v1967 = vsel %vm176, %v1963, 0.0
    %1968 = vadd.xlane.f32.xlu0 %v1967
    %v1969 = vpop.xlane.xlu0 %1968
    %v1970 = vsel %vm176, %v1964, 0.0
    %1971 = vadd.xlane.f32.xlu0 %v1970
    %v1972 = vpop.xlane.xlu0 %1971
    %v1973 = vsel %vm176, %v1965, 0.0
    %1974 = vadd.xlane.f32.xlu0 %v1973
    %v1975 = vpop.xlane.xlu0 %1974
    %v1976 = vsel %vm176, %v1966, 0.0
    %1977 = vadd.xlane.f32.xlu0 %v1976
    %v1978 = vpop.xlane.xlu0 %1977
    %v1979 = vrcp.pop %v1969
    %v1980 = vrcp.pop %v1972
    %v1981 = vrcp.pop %v1975
    %v1982 = vrcp.pop %v1978
    %v1983 = vmul.f32 %v1963, %v1979
    %v1984 = vmul.f32 %v1964, %v1980
    %v1985 = vmul.f32 %v1965, %v1981
    %v1986 = vmul.f32 %v1966, %v1982
    %v1987 = vpack.c.bf16 %v1984, %v1983
    %v1988 = vpack.c.bf16 %v1986, %v1985
    %v1990 = vsel %vm176, %v1987, 0
    %v1993 = vsel %vm176, %v1988, 0
    %1995 = vmatprep.subr.bf16.mxu0 0
    %1996 = vmatpush1.bf16.msra.mxu0 %v1902
    %1997 = vmatprep.subr.bf16.mxu0 0
    %1998 = vmatpush1.bf16.msra.mxu0 0
    %1999 = vmatprep.subr.bf16.mxu0 0
    %2000 = vmatpush1.bf16.msra.mxu0 0
    %2001 = vmatprep.subr.bf16.mxu0 0
    %2002 = vmatpush1.bf16.msra.mxu0 0
    %2003 = vmatprep.subr.bf16.mxu0 0
    %2004 = vmatpush1.bf16.msra.mxu0 0
    %2005 = vmatprep.subr.bf16.mxu0 0
    %2006 = vmatpush1.bf16.msra.mxu0 0
    %2007 = vmatprep.subr.bf16.mxu0 0
    %2008 = vmatpush1.bf16.msra.mxu0 0
    %2009 = vmatprep.subr.bf16.mxu0 0
    %2010 = vmatpush1.bf16.msra.mxu0 0
    %2011 = vmatprep.subr.bf16.mxu0 0
    %2012 = vmatpush1.bf16.msra.mxu0 0
    %2013 = vmatprep.subr.bf16.mxu0 0
    %2014 = vmatpush1.bf16.msra.mxu0 0
    %2015 = vmatprep.subr.bf16.mxu0 0
    %2016 = vmatpush1.bf16.msra.mxu0 0
    %2017 = vmatprep.subr.bf16.mxu0 0
    %2018 = vmatpush1.bf16.msra.mxu0 0
    %2019 = vmatprep.subr.bf16.mxu0 0
    %2020 = vmatpush1.bf16.msra.mxu0 0
    %2021 = vmatprep.subr.bf16.mxu0 0
    %2022 = vmatpush1.bf16.msra.mxu0 0
    %2023 = vmatprep.subr.bf16.mxu0 0
    %2024 = vmatpush1.bf16.msra.mxu0 0
    %2025 = vmatprep.subr.bf16.mxu0 0
    %2026 = vmatpush1.bf16.msra.mxu0 0
    %2027 = vmatprep.mubr.bf16.mxu0 0
    %2028 = vmatmul.mubr.bf16.gmra.mrb[0].mxu0 %v1990
    %v2029 = vpop.f32.mrb[0].mxu0
    %v2030 = vadd.f32 0.0, %v2029
    %v2031 = vpop.f32.mrb[0].mxu0
    %v2032 = vpop.f32.mrb[0].mxu0
    %v2033 = vadd.f32 0.0, %v2032
    %v2034 = vpop.f32.mrb[0].mxu0
    %2035 = vmatprep.mubr.bf16.mxu0 0
    %2036 = vmatmul.mubr.bf16.gmra.mrb[0].mxu0 %v1993
    %v2037 = vpop.f32.mrb[0].mxu0
    %v2038 = vadd.f32 0.0, %v2037
    %v2039 = vpop.f32.mrb[0].mxu0
    %v2040 = vpop.f32.mrb[0].mxu0
    %v2041 = vadd.f32 0.0, %v2040
    %v2042 = vpop.f32.mrb[0].mxu0
    %2043 = vdwg.mxu0
    %v2044 = vadd.f32 %v1178, %v2030
    %v2045 = vadd.f32 %v1179, %v2033
    %v2046 = vadd.f32 %v1180, %v2038
    %v2047 = vadd.f32 %v1181, %v2041
    %v2048 = vmul.f32 %v1821, %v1868
    %v2049 = vmul.f32 %v1823, %v1869
    %v2050 = vmul.f32 %v1825, %v1870
    %v2051 = vmul.f32 %v1827, %v1871
    %v2052 = vsel %vm176, %v2048, 0.0
    %2053 = vadd.xlane.f32.xlu0 %v2052
    %v2054 = vpop.xlane.xlu0 %2053
    %v2055 = vsel %vm176, %v2049, 0.0
    %2056 = vadd.xlane.f32.xlu0 %v2055
    %v2057 = vpop.xlane.xlu0 %2056
    %v2058 = vsel %vm176, %v2050, 0.0
    %2059 = vadd.xlane.f32.xlu0 %v2058
    %v2060 = vpop.xlane.xlu0 %2059
    %v2061 = vsel %vm176, %v2051, 0.0
    %2062 = vadd.xlane.f32.xlu0 %v2061
    %v2063 = vpop.xlane.xlu0 %2062
    %v2064 = vrcp.pop %v2054
    %v2065 = vrcp.pop %v2057
    %v2066 = vrcp.pop %v2060
    %v2067 = vrcp.pop %v2063
    %v2068 = vmul.f32 %v2048, %v2064
    %v2069 = vmul.f32 %v2049, %v2065
    %v2070 = vmul.f32 %v2050, %v2066
    %v2071 = vmul.f32 %v2051, %v2067
    %v2072 = vpack.c.bf16 %v2069, %v2068
    %v2073 = vpack.c.bf16 %v2071, %v2070
    %v2075 = vsel %vm176, %v2072, 0
    %v2078 = vsel %vm176, %v2073, 0
    %2080 = vmatprep.subr.bf16.mxu0 0
    %2081 = vmatpush1.bf16.msra.mxu0 %v1902
    %2082 = vmatprep.subr.bf16.mxu0 0
    %2083 = vmatpush1.bf16.msra.mxu0 0
    %2084 = vmatprep.subr.bf16.mxu0 0
    %2085 = vmatpush1.bf16.msra.mxu0 0
    %2086 = vmatprep.subr.bf16.mxu0 0
    %2087 = vmatpush1.bf16.msra.mxu0 0
    %2088 = vmatprep.subr.bf16.mxu0 0
    %2089 = vmatpush1.bf16.msra.mxu0 0
    %2090 = vmatprep.subr.bf16.mxu0 0
    %2091 = vmatpush1.bf16.msra.mxu0 0
    %2092 = vmatprep.subr.bf16.mxu0 0
    %2093 = vmatpush1.bf16.msra.mxu0 0
    %2094 = vmatprep.subr.bf16.mxu0 0
    %2095 = vmatpush1.bf16.msra.mxu0 0
    %2096 = vmatprep.subr.bf16.mxu0 0
    %2097 = vmatpush1.bf16.msra.mxu0 0
    %2098 = vmatprep.subr.bf16.mxu0 0
    %2099 = vmatpush1.bf16.msra.mxu0 0
    %2100 = vmatprep.subr.bf16.mxu0 0
    %2101 = vmatpush1.bf16.msra.mxu0 0
    %2102 = vmatprep.subr.bf16.mxu0 0
    %2103 = vmatpush1.bf16.msra.mxu0 0
    %2104 = vmatprep.subr.bf16.mxu0 0
    %2105 = vmatpush1.bf16.msra.mxu0 0
    %2106 = vmatprep.subr.bf16.mxu0 0
    %2107 = vmatpush1.bf16.msra.mxu0 0
    %2108 = vmatprep.subr.bf16.mxu0 0
    %2109 = vmatpush1.bf16.msra.mxu0 0
    %2110 = vmatprep.subr.bf16.mxu0 0
    %2111 = vmatpush1.bf16.msra.mxu0 0
    %2112 = vmatprep.mubr.bf16.mxu0 0
    %2113 = vmatmul.mubr.bf16.gmra.mrb[0].mxu0 %v2075
    %v2114 = vpop.f32.mrb[0].mxu0
    %v2115 = vadd.f32 0.0, %v2114
    %v2116 = vpop.f32.mrb[0].mxu0
    %v2117 = vpop.f32.mrb[0].mxu0
    %v2118 = vadd.f32 0.0, %v2117
    %v2119 = vpop.f32.mrb[0].mxu0
    %2120 = vmatprep.mubr.bf16.mxu0 0
    %2121 = vmatmul.mubr.bf16.gmra.mrb[0].mxu0 %v2078
    %v2122 = vpop.f32.mrb[0].mxu0
    %v2123 = vadd.f32 0.0, %v2122
    %v2124 = vpop.f32.mrb[0].mxu0
    %v2125 = vpop.f32.mrb[0].mxu0
    %v2126 = vadd.f32 0.0, %v2125
    %v2127 = vpop.f32.mrb[0].mxu0
    %2128 = vdwg.mxu0
    %v2129 = vadd.f32 %v1186, %v2115
    %v2130 = vadd.f32 %v1187, %v2118
    %v2131 = vadd.f32 %v1188, %v2123
    %v2132 = vadd.f32 %v1189, %v2126
    %v2133 = vmul.f32 %v1833, %v1868
    %v2134 = vmul.f32 %v1835, %v1869
    %v2135 = vmul.f32 %v1837, %v1870
    %v2136 = vmul.f32 %v1839, %v1871
    %v2137 = vsel %vm176, %v2133, 0.0
    %2138 = vadd.xlane.f32.xlu0 %v2137
    %v2139 = vpop.xlane.xlu0 %2138
    %v2140 = vsel %vm176, %v2134, 0.0
    %2141 = vadd.xlane.f32.xlu0 %v2140
    %v2142 = vpop.xlane.xlu0 %2141
    %v2143 = vsel %vm176, %v2135, 0.0
    %2144 = vadd.xlane.f32.xlu0 %v2143
    %v2145 = vpop.xlane.xlu0 %2144
    %v2146 = vsel %vm176, %v2136, 0.0
    %2147 = vadd.xlane.f32.xlu0 %v2146
    %v2148 = vpop.xlane.xlu0 %2147
    %v2149 = vrcp.pop %v2139
    %v2150 = vrcp.pop %v2142
    %v2151 = vrcp.pop %v2145
    %v2152 = vrcp.pop %v2148
    %v2153 = vmul.f32 %v2133, %v2149
    %v2154 = vmul.f32 %v2134, %v2150
    %v2155 = vmul.f32 %v2135, %v2151
    %v2156 = vmul.f32 %v2136, %v2152
    %v2157 = vpack.c.bf16 %v2154, %v2153
    %v2158 = vpack.c.bf16 %v2156, %v2155
    %v2160 = vsel %vm176, %v2157, 0
    %v2163 = vsel %vm176, %v2158, 0
    %2165 = vmatprep.subr.bf16.mxu0 0
    %2166 = vmatpush1.bf16.msra.mxu0 %v1902
    %2167 = vmatprep.subr.bf16.mxu0 0
    %2168 = vmatpush1.bf16.msra.mxu0 0
    %2169 = vmatprep.subr.bf16.mxu0 0
    %2170 = vmatpush1.bf16.msra.mxu0 0
    %2171 = vmatprep.subr.bf16.mxu0 0
    %2172 = vmatpush1.bf16.msra.mxu0 0
    %2173 = vmatprep.subr.bf16.mxu0 0
    %2174 = vmatpush1.bf16.msra.mxu0 0
    %2175 = vmatprep.subr.bf16.mxu0 0
    %2176 = vmatpush1.bf16.msra.mxu0 0
    %2177 = vmatprep.subr.bf16.mxu0 0
    %2178 = vmatpush1.bf16.msra.mxu0 0
    %2179 = vmatprep.subr.bf16.mxu0 0
    %2180 = vmatpush1.bf16.msra.mxu0 0
    %2181 = vmatprep.subr.bf16.mxu0 0
    %2182 = vmatpush1.bf16.msra.mxu0 0
    %2183 = vmatprep.subr.bf16.mxu0 0
    %2184 = vmatpush1.bf16.msra.mxu0 0
    %2185 = vmatprep.subr.bf16.mxu0 0
    %2186 = vmatpush1.bf16.msra.mxu0 0
    %2187 = vmatprep.subr.bf16.mxu0 0
    %2188 = vmatpush1.bf16.msra.mxu0 0
    %2189 = vmatprep.subr.bf16.mxu0 0
    %2190 = vmatpush1.bf16.msra.mxu0 0
    %2191 = vmatprep.subr.bf16.mxu0 0
    %2192 = vmatpush1.bf16.msra.mxu0 0
    %2193 = vmatprep.subr.bf16.mxu0 0
    %2194 = vmatpush1.bf16.msra.mxu0 0
    %2195 = vmatprep.subr.bf16.mxu0 0
    %2196 = vmatpush1.bf16.msra.mxu0 0
    %2197 = vmatprep.mubr.bf16.mxu0 0
    %2198 = vmatmul.mubr.bf16.gmra.mrb[0].mxu0 %v2160
    %v2199 = vpop.f32.mrb[0].mxu0
    %v2200 = vadd.f32 0.0, %v2199
    %v2201 = vpop.f32.mrb[0].mxu0
    %v2202 = vpop.f32.mrb[0].mxu0
    %v2203 = vadd.f32 0.0, %v2202
    %v2204 = vpop.f32.mrb[0].mxu0
    %2205 = vmatprep.mubr.bf16.mxu0 0
    %2206 = vmatmul.mubr.bf16.gmra.mrb[0].mxu0 %v2163
    %v2207 = vpop.f32.mrb[0].mxu0
    %v2208 = vadd.f32 0.0, %v2207
    %v2209 = vpop.f32.mrb[0].mxu0
    %v2210 = vpop.f32.mrb[0].mxu0
    %v2211 = vadd.f32 0.0, %v2210
    %v2212 = vpop.f32.mrb[0].mxu0
    %2213 = vdwg.mxu0
    %v2214 = vadd.f32 %v1194, %v2200
    %v2215 = vadd.f32 %v1195, %v2203
    %v2216 = vadd.f32 %v1196, %v2208
    %v2217 = vadd.f32 %v1197, %v2211
    %v2218 = vmul.f32 %v1845, %v1868
    %v2219 = vmul.f32 %v1847, %v1869
    %v2220 = vmul.f32 %v1849, %v1870
    %v2221 = vmul.f32 %v1851, %v1871
    %v2222 = vsel %vm176, %v2218, 0.0
    %2223 = vadd.xlane.f32.xlu0 %v2222
    %v2224 = vpop.xlane.xlu0 %2223
    %v2225 = vsel %vm176, %v2219, 0.0
    %2226 = vadd.xlane.f32.xlu0 %v2225
    %v2227 = vpop.xlane.xlu0 %2226
    %v2228 = vsel %vm176, %v2220, 0.0
    %2229 = vadd.xlane.f32.xlu0 %v2228
    %v2230 = vpop.xlane.xlu0 %2229
    %v2231 = vsel %vm176, %v2221, 0.0
    %2232 = vadd.xlane.f32.xlu0 %v2231
    %v2233 = vpop.xlane.xlu0 %2232
    %v2234 = vrcp.pop %v2224
    %v2235 = vrcp.pop %v2227
    %v2236 = vrcp.pop %v2230
    %v2237 = vrcp.pop %v2233
    %v2238 = vmul.f32 %v2218, %v2234
    %v2239 = vmul.f32 %v2219, %v2235
    %v2240 = vmul.f32 %v2220, %v2236
    %v2241 = vmul.f32 %v2221, %v2237
    %v2242 = vpack.c.bf16 %v2239, %v2238
    %v2243 = vpack.c.bf16 %v2241, %v2240
    %v2245 = vsel %vm176, %v2242, 0
    %v2248 = vsel %vm176, %v2243, 0
    %2250 = vmatprep.subr.bf16.mxu0 0
    %2251 = vmatpush1.bf16.msra.mxu0 %v1902
    %2252 = vmatprep.subr.bf16.mxu0 0
    %2253 = vmatpush1.bf16.msra.mxu0 0
    %2254 = vmatprep.subr.bf16.mxu0 0
    %2255 = vmatpush1.bf16.msra.mxu0 0
    %2256 = vmatprep.subr.bf16.mxu0 0
    %2257 = vmatpush1.bf16.msra.mxu0 0
    %2258 = vmatprep.subr.bf16.mxu0 0
    %2259 = vmatpush1.bf16.msra.mxu0 0
    %2260 = vmatprep.subr.bf16.mxu0 0
    %2261 = vmatpush1.bf16.msra.mxu0 0
    %2262 = vmatprep.subr.bf16.mxu0 0
    %2263 = vmatpush1.bf16.msra.mxu0 0
    %2264 = vmatprep.subr.bf16.mxu0 0
    %2265 = vmatpush1.bf16.msra.mxu0 0
    %2266 = vmatprep.subr.bf16.mxu0 0
    %2267 = vmatpush1.bf16.msra.mxu0 0
    %2268 = vmatprep.subr.bf16.mxu0 0
    %2269 = vmatpush1.bf16.msra.mxu0 0
    %2270 = vmatprep.subr.bf16.mxu0 0
    %2271 = vmatpush1.bf16.msra.mxu0 0
    %2272 = vmatprep.subr.bf16.mxu0 0
    %2273 = vmatpush1.bf16.msra.mxu0 0
    %2274 = vmatprep.subr.bf16.mxu0 0
    %2275 = vmatpush1.bf16.msra.mxu0 0
    %2276 = vmatprep.subr.bf16.mxu0 0
    %2277 = vmatpush1.bf16.msra.mxu0 0
    %2278 = vmatprep.subr.bf16.mxu0 0
    %2279 = vmatpush1.bf16.msra.mxu0 0
    %2280 = vmatprep.subr.bf16.mxu0 0
    %2281 = vmatpush1.bf16.msra.mxu0 0
    %2282 = vmatprep.mubr.bf16.mxu0 0
    %2283 = vmatmul.mubr.bf16.gmra.mrb[0].mxu0 %v2245
    %v2284 = vpop.f32.mrb[0].mxu0
    %v2285 = vadd.f32 0.0, %v2284
    %v2286 = vpop.f32.mrb[0].mxu0
    %v2287 = vpop.f32.mrb[0].mxu0
    %v2288 = vadd.f32 0.0, %v2287
    %v2289 = vpop.f32.mrb[0].mxu0
    %2290 = vmatprep.mubr.bf16.mxu0 0
    %2291 = vmatmul.mubr.bf16.gmra.mrb[0].mxu0 %v2248
    %v2292 = vpop.f32.mrb[0].mxu0
    %v2293 = vadd.f32 0.0, %v2292
    %v2294 = vpop.f32.mrb[0].mxu0
    %v2295 = vpop.f32.mrb[0].mxu0
    %v2296 = vadd.f32 0.0, %v2295
    %v2297 = vpop.f32.mrb[0].mxu0
    %2298 = vdwg.mxu0
    %v2299 = vadd.f32 %v1202, %v2285
    %v2300 = vadd.f32 %v1203, %v2288
    %v2301 = vadd.f32 %v1204, %v2293
    %v2302 = vadd.f32 %v1205, %v2296
    %v2303 = vsel %vm176, %v1959, 0.0
    %2304 = vadd.xlane.f32.xlu0 %v2303
    %v2305 = vpop.xlane.xlu0 %2304
    %v2306 = vsel %vm176, %v1960, 0.0
    %2307 = vadd.xlane.f32.xlu0 %v2306
    %v2308 = vpop.xlane.xlu0 %2307
    %v2309 = vsel %vm176, %v1961, 0.0
    %2310 = vadd.xlane.f32.xlu0 %v2309
    %v2311 = vpop.xlane.xlu0 %2310
    %v2312 = vsel %vm176, %v1962, 0.0
    %2313 = vadd.xlane.f32.xlu0 %v2312
    %v2314 = vpop.xlane.xlu0 %2313
    %v2315 = vmul.f32 %v2305, %v180
    %v2316 = vmul.f32 %v2308, %v180
    %v2317 = vmul.f32 %v2311, %v180
    %v2318 = vmul.f32 %v2314, %v180
    %v2319 = vsub.f32 %v1959, %v2315
    %v2320 = vsub.f32 %v1960, %v2316
    %v2321 = vsub.f32 %v1961, %v2317
    %v2322 = vsub.f32 %v1962, %v2318
    %v2323 = vmul.f32 %v2319, %v2319
    %v2324 = vmul.f32 %v2320, %v2320
    %v2325 = vmul.f32 %v2321, %v2321
    %v2326 = vmul.f32 %v2322, %v2322
    %v2327 = vsel %vm176, %v2323, 0.0
    %2328 = vadd.xlane.f32.xlu0 %v2327
    %v2329 = vpop.xlane.xlu0 %2328
    %v2330 = vsel %vm176, %v2324, 0.0
    %2331 = vadd.xlane.f32.xlu0 %v2330
    %v2332 = vpop.xlane.xlu0 %2331
    %v2333 = vsel %vm176, %v2325, 0.0
    %2334 = vadd.xlane.f32.xlu0 %v2333
    %v2335 = vpop.xlane.xlu0 %2334
    %v2336 = vsel %vm176, %v2326, 0.0
    %2337 = vadd.xlane.f32.xlu0 %v2336
    %v2338 = vpop.xlane.xlu0 %2337
    %v2339 = vmul.f32 %v2329, %v180
    %v2340 = vmul.f32 %v2332, %v180
    %v2341 = vmul.f32 %v2335, %v180
    %v2342 = vmul.f32 %v2338, %v180
    %v2343 = vadd.f32 %v2339, 1e-05
    %v2344 = vadd.f32 %v2340, 1e-05
    %v2345 = vadd.f32 %v2341, 1e-05
    %v2346 = vadd.f32 %v2342, 1e-05
    %v2347 = vrsqrt.pop %v2343
    %v2348 = vrsqrt.pop %v2344
    %v2349 = vrsqrt.pop %v2345
    %v2350 = vrsqrt.pop %v2346
    %v2351 = vmul.f32 %v2319, %v2347
    %v2352 = vmul.f32 %v2320, %v2348
    %v2353 = vmul.f32 %v2321, %v2349
    %v2354 = vmul.f32 %v2322, %v2350
    %v2356 = vlaneseq
    %v2357 = vshrl.u32 %v2356, 7
    %v2358 = vsub.s32 0, %v2357
    %v2359 = vrot.slane %v1212, %v2358
    %v2361 = vmul.f32 %v2351, %v2359
    %v2362 = vmul.f32 %v2352, %v2359
    %v2363 = vmul.f32 %v2353, %v2359
    %v2364 = vmul.f32 %v2354, %v2359
    %v2366 = vlaneseq
    %v2367 = vshrl.u32 %v2366, 7
    %v2368 = vsub.s32 0, %v2367
    %v2369 = vrot.slane %v1213, %v2368
    %v2371 = vadd.f32 %v2361, %v2369
    %v2372 = vadd.f32 %v2362, %v2369
    %v2373 = vadd.f32 %v2363, %v2369
    %v2374 = vadd.f32 %v2364, %v2369
    %v2375 = vpack.c.bf16 %v2372, %v2371
    %v2376 = vpack.c.bf16 %v2374, %v2373
    %v2378 = vlaneseq
    %v2379 = vshrl.u32 %v2378, 7
    %v2380 = vsub.s32 0, %v2379
    %v2381 = vrot.slane %v1216, %v2380
    %v2385 = vunpack.c.l.b16 %v1214
    %v2386 = vunpack.c.l.b16 %v1215
    %v2387 = vpack.c.b16 %v2386, %v2385
    %v2390 = vsel %vm176, %v2375, 0
    %v2393 = vsel %vm176, %v2376, 0
    %2395 = vmatprep.subr.bf16.mxu0 0
    %2396 = vmatpush1.bf16.msra.mxu0 %v2387
    %2397 = vmatprep.subr.bf16.mxu0 0
    %2398 = vmatpush1.bf16.msra.mxu0 0
    %2399 = vmatprep.subr.bf16.mxu0 0
    %2400 = vmatpush1.bf16.msra.mxu0 0
    %2401 = vmatprep.subr.bf16.mxu0 0
    %2402 = vmatpush1.bf16.msra.mxu0 0
    %2403 = vmatprep.subr.bf16.mxu0 0
    %2404 = vmatpush1.bf16.msra.mxu0 0
    %2405 = vmatprep.subr.bf16.mxu0 0
    %2406 = vmatpush1.bf16.msra.mxu0 0
    %2407 = vmatprep.subr.bf16.mxu0 0
    %2408 = vmatpush1.bf16.msra.mxu0 0
    %2409 = vmatprep.subr.bf16.mxu0 0
    %2410 = vmatpush1.bf16.msra.mxu0 0
    %2411 = vmatprep.subr.bf16.mxu0 0
    %2412 = vmatpush1.bf16.msra.mxu0 0
    %2413 = vmatprep.subr.bf16.mxu0 0
    %2414 = vmatpush1.bf16.msra.mxu0 0
    %2415 = vmatprep.subr.bf16.mxu0 0
    %2416 = vmatpush1.bf16.msra.mxu0 0
    %2417 = vmatprep.subr.bf16.mxu0 0
    %2418 = vmatpush1.bf16.msra.mxu0 0
    %2419 = vmatprep.subr.bf16.mxu0 0
    %2420 = vmatpush1.bf16.msra.mxu0 0
    %2421 = vmatprep.subr.bf16.mxu0 0
    %2422 = vmatpush1.bf16.msra.mxu0 0
    %2423 = vmatprep.subr.bf16.mxu0 0
    %2424 = vmatpush1.bf16.msra.mxu0 0
    %2425 = vmatprep.subr.bf16.mxu0 0
    %2426 = vmatpush1.bf16.msra.mxu0 0
    %2427 = vmatprep.mubr.bf16.mxu0 0
    %2428 = vmatmul.mubr.bf16.gmra.mrb[0].mxu0 %v2390
    %v2429 = vpop.f32.mrb[0].mxu0
    %v2430 = vadd.f32 %v2381, %v2429
    %v2431 = vpop.f32.mrb[0].mxu0
    %v2432 = vpop.f32.mrb[0].mxu0
    %v2433 = vadd.f32 %v2381, %v2432
    %v2434 = vpop.f32.mrb[0].mxu0
    %2435 = vmatprep.mubr.bf16.mxu0 0
    %2436 = vmatmul.mubr.bf16.gmra.mrb[0].mxu0 %v2393
    %v2437 = vpop.f32.mrb[0].mxu0
    %v2438 = vadd.f32 %v2381, %v2437
    %v2439 = vpop.f32.mrb[0].mxu0
    %v2440 = vpop.f32.mrb[0].mxu0
    %v2441 = vadd.f32 %v2381, %v2440
    %v2442 = vpop.f32.mrb[0].mxu0
    %2443 = vdwg.mxu0
    %v2444 = vmul.f32 %v2430, 0.5
    %v2445 = vmul.f32 %v2433, 0.5
    %v2446 = vmul.f32 %v2438, 0.5
    %v2447 = vmul.f32 %v2441, 0.5
    %v2448 = vmul.f32 %v2430, 0.70710677
    %v2449 = vmul.f32 %v2433, 0.70710677
    %v2450 = vmul.f32 %v2438, 0.70710677
    %v2451 = vmul.f32 %v2441, 0.70710677
    %v2452 = verf.f32.pop %v2448
    %v2453 = verf.f32.pop %v2449
    %v2454 = verf.f32.pop %v2450
    %v2455 = verf.f32.pop %v2451
    %v2456 = vadd.f32 %v2452, 1.0
    %v2457 = vadd.f32 %v2453, 1.0
    %v2458 = vadd.f32 %v2454, 1.0
    %v2459 = vadd.f32 %v2455, 1.0
    %v2460 = vmul.f32 %v2444, %v2456
    %v2461 = vmul.f32 %v2445, %v2457
    %v2462 = vmul.f32 %v2446, %v2458
    %v2463 = vmul.f32 %v2447, %v2459
    %v2464 = vpack.c.bf16 %v2461, %v2460
    %v2465 = vpack.c.bf16 %v2463, %v2462
    %v2470 = vunpack.c.l.b16 %v1217
    %v2471 = vunpack.c.l.b16 %v1218
    %v2472 = vunpack.c.l.b16 %v1219
    %v2473 = vunpack.c.l.b16 %v1220
    %v2474 = vpack.c.b16 %v2471, %v2470
    %v2475 = vpack.c.b16 %v2473, %v2472
    %v2479 = vsel %vm1093, %v2464, 0
    %v2482 = vsel %vm1093, %v2465, 0
    %2484 = vmatprep.subr.bf16.mxu0 0
    %2485 = vmatpush1.bf16.msra.mxu0 %v2474
    %2486 = vmatprep.subr.bf16.mxu0 0
    %2487 = vmatpush1.bf16.msra.mxu0 %v2475
    %2488 = vmatprep.subr.bf16.mxu0 0
    %2489 = vmatpush1.bf16.msra.mxu0 0
    %2490 = vmatprep.subr.bf16.mxu0 0
    %2491 = vmatpush1.bf16.msra.mxu0 0
    %2492 = vmatprep.subr.bf16.mxu0 0
    %2493 = vmatpush1.bf16.msra.mxu0 0
    %2494 = vmatprep.subr.bf16.mxu0 0
    %2495 = vmatpush1.bf16.msra.mxu0 0
    %2496 = vmatprep.subr.bf16.mxu0 0
    %2497 = vmatpush1.bf16.msra.mxu0 0
    %2498 = vmatprep.subr.bf16.mxu0 0
    %2499 = vmatpush1.bf16.msra.mxu0 0
    %2500 = vmatprep.subr.bf16.mxu0 0
    %2501 = vmatpush1.bf16.msra.mxu0 0
    %2502 = vmatprep.subr.bf16.mxu0 0
    %2503 = vmatpush1.bf16.msra.mxu0 0
    %2504 = vmatprep.subr.bf16.mxu0 0
    %2505 = vmatpush1.bf16.msra.mxu0 0
    %2506 = vmatprep.subr.bf16.mxu0 0
    %2507 = vmatpush1.bf16.msra.mxu0 0
    %2508 = vmatprep.subr.bf16.mxu0 0
    %2509 = vmatpush1.bf16.msra.mxu0 0
    %2510 = vmatprep.subr.bf16.mxu0 0
    %2511 = vmatpush1.bf16.msra.mxu0 0
    %2512 = vmatprep.subr.bf16.mxu0 0
    %2513 = vmatpush1.bf16.msra.mxu0 0
    %2514 = vmatprep.subr.bf16.mxu0 0
    %2515 = vmatpush1.bf16.msra.mxu0 0
    %2516 = vmatprep.mubr.bf16.mxu0 0
    %2517 = vmatmul.mubr.bf16.gmra.mrb[0].mxu0 %v2479
    %v2518 = vpop.f32.mrb[0].mxu0
    %v2519 = vadd.f32 0.0, %v2518
    %v2520 = vpop.f32.mrb[0].mxu0
    %v2521 = vpop.f32.mrb[0].mxu0
    %v2522 = vadd.f32 0.0, %v2521
    %v2523 = vpop.f32.mrb[0].mxu0
    %2524 = vmatprep.mubr.bf16.mxu0 0
    %2525 = vmatmul.mubr.bf16.gmra.mrb[0].mxu0 %v2482
    %v2526 = vpop.f32.mrb[0].mxu0
    %v2527 = vadd.f32 0.0, %v2526
    %v2528 = vpop.f32.mrb[0].mxu0
    %v2529 = vpop.f32.mrb[0].mxu0
    %v2530 = vadd.f32 0.0, %v2529
    %v2531 = vpop.f32.mrb[0].mxu0
    %2532 = vdwg.mxu0
    %v2533 = vadd.f32 %v1959, %v2519
    %v2534 = vadd.f32 %v1960, %v2522
    %v2535 = vadd.f32 %v1961, %v2527
    %v2536 = vadd.f32 %v1962, %v2530
    %v2538 = vlaneseq
    %v2539 = vshrl.u32 %v2538, 7
    %v2540 = vsub.s32 0, %v2539
    %v2541 = vrot.slane %v1221, %v2540
    %v2543 = vadd.f32 %v2533, %v2541
    %v2544 = vadd.f32 %v2534, %v2541
    %v2545 = vadd.f32 %v2535, %v2541
    %v2546 = vadd.f32 %v2536, %v2541
    %v2547 = vsel %vm176, %v2044, 0.0
    %2548 = vadd.xlane.f32.xlu0 %v2547
    %v2549 = vpop.xlane.xlu0 %2548
    %v2550 = vsel %vm176, %v2045, 0.0
    %2551 = vadd.xlane.f32.xlu0 %v2550
    %v2552 = vpop.xlane.xlu0 %2551
    %v2553 = vsel %vm176, %v2046, 0.0
    %2554 = vadd.xlane.f32.xlu0 %v2553
    %v2555 = vpop.xlane.xlu0 %2554
    %v2556 = vsel %vm176, %v2047, 0.0
    %2557 = vadd.xlane.f32.xlu0 %v2556
    %v2558 = vpop.xlane.xlu0 %2557
    %v2559 = vmul.f32 %v2549, %v180
    %v2560 = vmul.f32 %v2552, %v180
    %v2561 = vmul.f32 %v2555, %v180
    %v2562 = vmul.f32 %v2558, %v180
    %v2563 = vsub.f32 %v2044, %v2559
    %v2564 = vsub.f32 %v2045, %v2560
    %v2565 = vsub.f32 %v2046, %v2561
    %v2566 = vsub.f32 %v2047, %v2562
    %v2567 = vmul.f32 %v2563, %v2563
    %v2568 = vmul.f32 %v2564, %v2564
    %v2569 = vmul.f32 %v2565, %v2565
    %v2570 = vmul.f32 %v2566, %v2566
    %v2571 = vsel %vm176, %v2567, 0.0
    %2572 = vadd.xlane.f32.xlu0 %v2571
    %v2573 = vpop.xlane.xlu0 %2572
    %v2574 = vsel %vm176, %v2568, 0.0
    %2575 = vadd.xlane.f32.xlu0 %v2574
    %v2576 = vpop.xlane.xlu0 %2575
    %v2577 = vsel %vm176, %v2569, 0.0
    %2578 = vadd.xlane.f32.xlu0 %v2577
    %v2579 = vpop.xlane.xlu0 %2578
    %v2580 = vsel %vm176, %v2570, 0.0
    %2581 = vadd.xlane.f32.xlu0 %v2580
    %v2582 = vpop.xlane.xlu0 %2581
    %v2583 = vmul.f32 %v2573, %v180
    %v2584 = vmul.f32 %v2576, %v180
    %v2585 = vmul.f32 %v2579, %v180
    %v2586 = vmul.f32 %v2582, %v180
    %v2587 = vadd.f32 %v2583, 1e-05
    %v2588 = vadd.f32 %v2584, 1e-05
    %v2589 = vadd.f32 %v2585, 1e-05
    %v2590 = vadd.f32 %v2586, 1e-05
    %v2591 = vrsqrt.pop %v2587
    %v2592 = vrsqrt.pop %v2588
    %v2593 = vrsqrt.pop %v2589
    %v2594 = vrsqrt.pop %v2590
    %v2595 = vmul.f32 %v2563, %v2591
    %v2596 = vmul.f32 %v2564, %v2592
    %v2597 = vmul.f32 %v2565, %v2593
    %v2598 = vmul.f32 %v2566, %v2594
    %v2599 = vmul.f32 %v2595, %v2359
    %v2600 = vmul.f32 %v2596, %v2359
    %v2601 = vmul.f32 %v2597, %v2359
    %v2602 = vmul.f32 %v2598, %v2359
    %v2603 = vadd.f32 %v2599, %v2369
    %v2604 = vadd.f32 %v2600, %v2369
    %v2605 = vadd.f32 %v2601, %v2369
    %v2606 = vadd.f32 %v2602, %v2369
    %v2607 = vpack.c.bf16 %v2604, %v2603
    %v2608 = vpack.c.bf16 %v2606, %v2605
    %v2610 = vsel %vm176, %v2607, 0
    %v2613 = vsel %vm176, %v2608, 0
    %2615 = vmatprep.subr.bf16.mxu0 0
    %2616 = vmatpush1.bf16.msra.mxu0 %v2387
    %2617 = vmatprep.subr.bf16.mxu0 0
    %2618 = vmatpush1.bf16.msra.mxu0 0
    %2619 = vmatprep.subr.bf16.mxu0 0
    %2620 = vmatpush1.bf16.msra.mxu0 0
    %2621 = vmatprep.subr.bf16.mxu0 0
    %2622 = vmatpush1.bf16.msra.mxu0 0
    %2623 = vmatprep.subr.bf16.mxu0 0
    %2624 = vmatpush1.bf16.msra.mxu0 0
    %2625 = vmatprep.subr.bf16.mxu0 0
    %2626 = vmatpush1.bf16.msra.mxu0 0
    %2627 = vmatprep.subr.bf16.mxu0 0
    %2628 = vmatpush1.bf16.msra.mxu0 0
    %2629 = vmatprep.subr.bf16.mxu0 0
    %2630 = vmatpush1.bf16.msra.mxu0 0
    %2631 = vmatprep.subr.bf16.mxu0 0
    %2632 = vmatpush1.bf16.msra.mxu0 0
    %2633 = vmatprep.subr.bf16.mxu0 0
    %2634 = vmatpush1.bf16.msra.mxu0 0
    %2635 = vmatprep.subr.bf16.mxu0 0
    %2636 = vmatpush1.bf16.msra.mxu0 0
    %2637 = vmatprep.subr.bf16.mxu0 0
    %2638 = vmatpush1.bf16.msra.mxu0 0
    %2639 = vmatprep.subr.bf16.mxu0 0
    %2640 = vmatpush1.bf16.msra.mxu0 0
    %2641 = vmatprep.subr.bf16.mxu0 0
    %2642 = vmatpush1.bf16.msra.mxu0 0
    %2643 = vmatprep.subr.bf16.mxu0 0
    %2644 = vmatpush1.bf16.msra.mxu0 0
    %2645 = vmatprep.subr.bf16.mxu0 0
    %2646 = vmatpush1.bf16.msra.mxu0 0
    %2647 = vmatprep.mubr.bf16.mxu0 0
    %2648 = vmatmul.mubr.bf16.gmra.mrb[0].mxu0 %v2610
    %v2649 = vpop.f32.mrb[0].mxu0
    %v2650 = vadd.f32 %v2381, %v2649
    %v2651 = vpop.f32.mrb[0].mxu0
    %v2652 = vpop.f32.mrb[0].mxu0
    %v2653 = vadd.f32 %v2381, %v2652
    %v2654 = vpop.f32.mrb[0].mxu0
    %2655 = vmatprep.mubr.bf16.mxu0 0
    %2656 = vmatmul.mubr.bf16.gmra.mrb[0].mxu0 %v2613
    %v2657 = vpop.f32.mrb[0].mxu0
    %v2658 = vadd.f32 %v2381, %v2657
    %v2659 = vpop.f32.mrb[0].mxu0
    %v2660 = vpop.f32.mrb[0].mxu0
    %v2661 = vadd.f32 %v2381, %v2660
    %v2662 = vpop.f32.mrb[0].mxu0
    %2663 = vdwg.mxu0
    %v2664 = vmul.f32 %v2650, 0.5
    %v2665 = vmul.f32 %v2653, 0.5
    %v2666 = vmul.f32 %v2658, 0.5
    %v2667 = vmul.f32 %v2661, 0.5
    %v2668 = vmul.f32 %v2650, 0.70710677
    %v2669 = vmul.f32 %v2653, 0.70710677
    %v2670 = vmul.f32 %v2658, 0.70710677
    %v2671 = vmul.f32 %v2661, 0.70710677
    %v2672 = verf.f32.pop %v2668
    %v2673 = verf.f32.pop %v2669
    %v2674 = verf.f32.pop %v2670
    %v2675 = verf.f32.pop %v2671
    %v2676 = vadd.f32 %v2672, 1.0
    %v2677 = vadd.f32 %v2673, 1.0
    %v2678 = vadd.f32 %v2674, 1.0
    %v2679 = vadd.f32 %v2675, 1.0
    %v2680 = vmul.f32 %v2664, %v2676
    %v2681 = vmul.f32 %v2665, %v2677
    %v2682 = vmul.f32 %v2666, %v2678
    %v2683 = vmul.f32 %v2667, %v2679
    %v2684 = vpack.c.bf16 %v2681, %v2680
    %v2685 = vpack.c.bf16 %v2683, %v2682
    %v2687 = vsel %vm1093, %v2684, 0
    %v2690 = vsel %vm1093, %v2685, 0
    %2692 = vmatprep.subr.bf16.mxu0 0
    %2693 = vmatpush1.bf16.msra.mxu0 %v2474
    %2694 = vmatprep.subr.bf16.mxu0 0
    %2695 = vmatpush1.bf16.msra.mxu0 %v2475
    %2696 = vmatprep.subr.bf16.mxu0 0
    %2697 = vmatpush1.bf16.msra.mxu0 0
    %2698 = vmatprep.subr.bf16.mxu0 0
    %2699 = vmatpush1.bf16.msra.mxu0 0
    %2700 = vmatprep.subr.bf16.mxu0 0
    %2701 = vmatpush1.bf16.msra.mxu0 0
    %2702 = vmatprep.subr.bf16.mxu0 0
    %2703 = vmatpush1.bf16.msra.mxu0 0
    %2704 = vmatprep.subr.bf16.mxu0 0
    %2705 = vmatpush1.bf16.msra.mxu0 0
    %2706 = vmatprep.subr.bf16.mxu0 0
    %2707 = vmatpush1.bf16.msra.mxu0 0
    %2708 = vmatprep.subr.bf16.mxu0 0
    %2709 = vmatpush1.bf16.msra.mxu0 0
    %2710 = vmatprep.subr.bf16.mxu0 0
    %2711 = vmatpush1.bf16.msra.mxu0 0
    %2712 = vmatprep.subr.bf16.mxu0 0
    %2713 = vmatpush1.bf16.msra.mxu0 0
    %2714 = vmatprep.subr.bf16.mxu0 0
    %2715 = vmatpush1.bf16.msra.mxu0 0
    %2716 = vmatprep.subr.bf16.mxu0 0
    %2717 = vmatpush1.bf16.msra.mxu0 0
    %2718 = vmatprep.subr.bf16.mxu0 0
    %2719 = vmatpush1.bf16.msra.mxu0 0
    %2720 = vmatprep.subr.bf16.mxu0 0
    %2721 = vmatpush1.bf16.msra.mxu0 0
    %2722 = vmatprep.subr.bf16.mxu0 0
    %2723 = vmatpush1.bf16.msra.mxu0 0
    %2724 = vmatprep.mubr.bf16.mxu0 0
    %2725 = vmatmul.mubr.bf16.gmra.mrb[0].mxu0 %v2687
    %v2726 = vpop.f32.mrb[0].mxu0
    %v2727 = vadd.f32 0.0, %v2726
    %v2728 = vpop.f32.mrb[0].mxu0
    %v2729 = vpop.f32.mrb[0].mxu0
    %v2730 = vadd.f32 0.0, %v2729
    %v2731 = vpop.f32.mrb[0].mxu0
    %2732 = vmatprep.mubr.bf16.mxu0 0
    %2733 = vmatmul.mubr.bf16.gmra.mrb[0].mxu0 %v2690
    %v2734 = vpop.f32.mrb[0].mxu0
    %v2735 = vadd.f32 0.0, %v2734
    %v2736 = vpop.f32.mrb[0].mxu0
    %v2737 = vpop.f32.mrb[0].mxu0
    %v2738 = vadd.f32 0.0, %v2737
    %v2739 = vpop.f32.mrb[0].mxu0
    %2740 = vdwg.mxu0
    %v2741 = vadd.f32 %v2044, %v2727
    %v2742 = vadd.f32 %v2045, %v2730
    %v2743 = vadd.f32 %v2046, %v2735
    %v2744 = vadd.f32 %v2047, %v2738
    %v2745 = vadd.f32 %v2741, %v2541
    %v2746 = vadd.f32 %v2742, %v2541
    %v2747 = vadd.f32 %v2743, %v2541
    %v2748 = vadd.f32 %v2744, %v2541
    %v2749 = vsel %vm176, %v2129, 0.0
    %2750 = vadd.xlane.f32.xlu0 %v2749
    %v2751 = vpop.xlane.xlu0 %2750
    %v2752 = vsel %vm176, %v2130, 0.0
    %2753 = vadd.xlane.f32.xlu0 %v2752
    %v2754 = vpop.xlane.xlu0 %2753
    %v2755 = vsel %vm176, %v2131, 0.0
    %2756 = vadd.xlane.f32.xlu0 %v2755
    %v2757 = vpop.xlane.xlu0 %2756
    %v2758 = vsel %vm176, %v2132, 0.0
    %2759 = vadd.xlane.f32.xlu0 %v2758
    %v2760 = vpop.xlane.xlu0 %2759
    %v2761 = vmul.f32 %v2751, %v180
    %v2762 = vmul.f32 %v2754, %v180
    %v2763 = vmul.f32 %v2757, %v180
    %v2764 = vmul.f32 %v2760, %v180
    %v2765 = vsub.f32 %v2129, %v2761
    %v2766 = vsub.f32 %v2130, %v2762
    %v2767 = vsub.f32 %v2131, %v2763
    %v2768 = vsub.f32 %v2132, %v2764
    %v2769 = vmul.f32 %v2765, %v2765
    %v2770 = vmul.f32 %v2766, %v2766
    %v2771 = vmul.f32 %v2767, %v2767
    %v2772 = vmul.f32 %v2768, %v2768
    %v2773 = vsel %vm176, %v2769, 0.0
    %2774 = vadd.xlane.f32.xlu0 %v2773
    %v2775 = vpop.xlane.xlu0 %2774
    %v2776 = vsel %vm176, %v2770, 0.0
    %2777 = vadd.xlane.f32.xlu0 %v2776
    %v2778 = vpop.xlane.xlu0 %2777
    %v2779 = vsel %vm176, %v2771, 0.0
    %2780 = vadd.xlane.f32.xlu0 %v2779
    %v2781 = vpop.xlane.xlu0 %2780
    %v2782 = vsel %vm176, %v2772, 0.0
    %2783 = vadd.xlane.f32.xlu0 %v2782
    %v2784 = vpop.xlane.xlu0 %2783
    %v2785 = vmul.f32 %v2775, %v180
    %v2786 = vmul.f32 %v2778, %v180
    %v2787 = vmul.f32 %v2781, %v180
    %v2788 = vmul.f32 %v2784, %v180
    %v2789 = vadd.f32 %v2785, 1e-05
    %v2790 = vadd.f32 %v2786, 1e-05
    %v2791 = vadd.f32 %v2787, 1e-05
    %v2792 = vadd.f32 %v2788, 1e-05
    %v2793 = vrsqrt.pop %v2789
    %v2794 = vrsqrt.pop %v2790
    %v2795 = vrsqrt.pop %v2791
    %v2796 = vrsqrt.pop %v2792
    %v2797 = vmul.f32 %v2765, %v2793
    %v2798 = vmul.f32 %v2766, %v2794
    %v2799 = vmul.f32 %v2767, %v2795
    %v2800 = vmul.f32 %v2768, %v2796
    %v2801 = vmul.f32 %v2797, %v2359
    %v2802 = vmul.f32 %v2798, %v2359
    %v2803 = vmul.f32 %v2799, %v2359
    %v2804 = vmul.f32 %v2800, %v2359
    %v2805 = vadd.f32 %v2801, %v2369
    %v2806 = vadd.f32 %v2802, %v2369
    %v2807 = vadd.f32 %v2803, %v2369
    %v2808 = vadd.f32 %v2804, %v2369
    %v2809 = vpack.c.bf16 %v2806, %v2805
    %v2810 = vpack.c.bf16 %v2808, %v2807
    %v2812 = vsel %vm176, %v2809, 0
    %v2815 = vsel %vm176, %v2810, 0
    %2817 = vmatprep.subr.bf16.mxu0 0
    %2818 = vmatpush1.bf16.msra.mxu0 %v2387
    %2819 = vmatprep.subr.bf16.mxu0 0
    %2820 = vmatpush1.bf16.msra.mxu0 0
    %2821 = vmatprep.subr.bf16.mxu0 0
    %2822 = vmatpush1.bf16.msra.mxu0 0
    %2823 = vmatprep.subr.bf16.mxu0 0
    %2824 = vmatpush1.bf16.msra.mxu0 0
    %2825 = vmatprep.subr.bf16.mxu0 0
    %2826 = vmatpush1.bf16.msra.mxu0 0
    %2827 = vmatprep.subr.bf16.mxu0 0
    %2828 = vmatpush1.bf16.msra.mxu0 0
    %2829 = vmatprep.subr.bf16.mxu0 0
    %2830 = vmatpush1.bf16.msra.mxu0 0
    %2831 = vmatprep.subr.bf16.mxu0 0
    %2832 = vmatpush1.bf16.msra.mxu0 0
    %2833 = vmatprep.subr.bf16.mxu0 0
    %2834 = vmatpush1.bf16.msra.mxu0 0
    %2835 = vmatprep.subr.bf16.mxu0 0
    %2836 = vmatpush1.bf16.msra.mxu0 0
    %2837 = vmatprep.subr.bf16.mxu0 0
    %2838 = vmatpush1.bf16.msra.mxu0 0
    %2839 = vmatprep.subr.bf16.mxu0 0
    %2840 = vmatpush1.bf16.msra.mxu0 0
    %2841 = vmatprep.subr.bf16.mxu0 0
    %2842 = vmatpush1.bf16.msra.mxu0 0
    %2843 = vmatprep.subr.bf16.mxu0 0
    %2844 = vmatpush1.bf16.msra.mxu0 0
    %2845 = vmatprep.subr.bf16.mxu0 0
    %2846 = vmatpush1.bf16.msra.mxu0 0
    %2847 = vmatprep.subr.bf16.mxu0 0
    %2848 = vmatpush1.bf16.msra.mxu0 0
    %2849 = vmatprep.mubr.bf16.mxu0 0
    %2850 = vmatmul.mubr.bf16.gmra.mrb[0].mxu0 %v2812
    %v2851 = vpop.f32.mrb[0].mxu0
    %v2852 = vadd.f32 %v2381, %v2851
    %v2853 = vpop.f32.mrb[0].mxu0
    %v2854 = vpop.f32.mrb[0].mxu0
    %v2855 = vadd.f32 %v2381, %v2854
    %v2856 = vpop.f32.mrb[0].mxu0
    %2857 = vmatprep.mubr.bf16.mxu0 0
    %2858 = vmatmul.mubr.bf16.gmra.mrb[0].mxu0 %v2815
    %v2859 = vpop.f32.mrb[0].mxu0
    %v2860 = vadd.f32 %v2381, %v2859
    %v2861 = vpop.f32.mrb[0].mxu0
    %v2862 = vpop.f32.mrb[0].mxu0
    %v2863 = vadd.f32 %v2381, %v2862
    %v2864 = vpop.f32.mrb[0].mxu0
    %2865 = vdwg.mxu0
    %v2866 = vmul.f32 %v2852, 0.5
    %v2867 = vmul.f32 %v2855, 0.5
    %v2868 = vmul.f32 %v2860, 0.5
    %v2869 = vmul.f32 %v2863, 0.5
    %v2870 = vmul.f32 %v2852, 0.70710677
    %v2871 = vmul.f32 %v2855, 0.70710677
    %v2872 = vmul.f32 %v2860, 0.70710677
    %v2873 = vmul.f32 %v2863, 0.70710677
    %v2874 = verf.f32.pop %v2870
    %v2875 = verf.f32.pop %v2871
    %v2876 = verf.f32.pop %v2872
    %v2877 = verf.f32.pop %v2873
    %v2878 = vadd.f32 %v2874, 1.0
    %v2879 = vadd.f32 %v2875, 1.0
    %v2880 = vadd.f32 %v2876, 1.0
    %v2881 = vadd.f32 %v2877, 1.0
    %v2882 = vmul.f32 %v2866, %v2878
    %v2883 = vmul.f32 %v2867, %v2879
    %v2884 = vmul.f32 %v2868, %v2880
    %v2885 = vmul.f32 %v2869, %v2881
    %v2886 = vpack.c.bf16 %v2883, %v2882
    %v2887 = vpack.c.bf16 %v2885, %v2884
    %v2889 = vsel %vm1093, %v2886, 0
    %v2892 = vsel %vm1093, %v2887, 0
    %2894 = vmatprep.subr.bf16.mxu0 0
    %2895 = vmatpush1.bf16.msra.mxu0 %v2474
    %2896 = vmatprep.subr.bf16.mxu0 0
    %2897 = vmatpush1.bf16.msra.mxu0 %v2475
    %2898 = vmatprep.subr.bf16.mxu0 0
    %2899 = vmatpush1.bf16.msra.mxu0 0
    %2900 = vmatprep.subr.bf16.mxu0 0
    %2901 = vmatpush1.bf16.msra.mxu0 0
    %2902 = vmatprep.subr.bf16.mxu0 0
    %2903 = vmatpush1.bf16.msra.mxu0 0
    %2904 = vmatprep.subr.bf16.mxu0 0
    %2905 = vmatpush1.bf16.msra.mxu0 0
    %2906 = vmatprep.subr.bf16.mxu0 0
    %2907 = vmatpush1.bf16.msra.mxu0 0
    %2908 = vmatprep.subr.bf16.mxu0 0
    %2909 = vmatpush1.bf16.msra.mxu0 0
    %2910 = vmatprep.subr.bf16.mxu0 0
    %2911 = vmatpush1.bf16.msra.mxu0 0
    %2912 = vmatprep.subr.bf16.mxu0 0
    %2913 = vmatpush1.bf16.msra.mxu0 0
    %2914 = vmatprep.subr.bf16.mxu0 0
    %2915 = vmatpush1.bf16.msra.mxu0 0
    %2916 = vmatprep.subr.bf16.mxu0 0
    %2917 = vmatpush1.bf16.msra.mxu0 0
    %2918 = vmatprep.subr.bf16.mxu0 0
    %2919 = vmatpush1.bf16.msra.mxu0 0
    %2920 = vmatprep.subr.bf16.mxu0 0
    %2921 = vmatpush1.bf16.msra.mxu0 0
    %2922 = vmatprep.subr.bf16.mxu0 0
    %2923 = vmatpush1.bf16.msra.mxu0 0
    %2924 = vmatprep.subr.bf16.mxu0 0
    %2925 = vmatpush1.bf16.msra.mxu0 0
    %2926 = vmatprep.mubr.bf16.mxu0 0
    %2927 = vmatmul.mubr.bf16.gmra.mrb[0].mxu0 %v2889
    %v2928 = vpop.f32.mrb[0].mxu0
    %v2929 = vadd.f32 0.0, %v2928
    %v2930 = vpop.f32.mrb[0].mxu0
    %v2931 = vpop.f32.mrb[0].mxu0
    %v2932 = vadd.f32 0.0, %v2931
    %v2933 = vpop.f32.mrb[0].mxu0
    %2934 = vmatprep.mubr.bf16.mxu0 0
    %2935 = vmatmul.mubr.bf16.gmra.mrb[0].mxu0 %v2892
    %v2936 = vpop.f32.mrb[0].mxu0
    %v2937 = vadd.f32 0.0, %v2936
    %v2938 = vpop.f32.mrb[0].mxu0
    %v2939 = vpop.f32.mrb[0].mxu0
    %v2940 = vadd.f32 0.0, %v2939
    %v2941 = vpop.f32.mrb[0].mxu0
    %2942 = vdwg.mxu0
    %v2943 = vadd.f32 %v2129, %v2929
    %v2944 = vadd.f32 %v2130, %v2932
    %v2945 = vadd.f32 %v2131, %v2937
    %v2946 = vadd.f32 %v2132, %v2940
    %v2947 = vadd.f32 %v2943, %v2541
    %v2948 = vadd.f32 %v2944, %v2541
    %v2949 = vadd.f32 %v2945, %v2541
    %v2950 = vadd.f32 %v2946, %v2541
    %v2951 = vsel %vm176, %v2214, 0.0
    %2952 = vadd.xlane.f32.xlu0 %v2951
    %v2953 = vpop.xlane.xlu0 %2952
    %v2954 = vsel %vm176, %v2215, 0.0
    %2955 = vadd.xlane.f32.xlu0 %v2954
    %v2956 = vpop.xlane.xlu0 %2955
    %v2957 = vsel %vm176, %v2216, 0.0
    %2958 = vadd.xlane.f32.xlu0 %v2957
    %v2959 = vpop.xlane.xlu0 %2958
    %v2960 = vsel %vm176, %v2217, 0.0
    %2961 = vadd.xlane.f32.xlu0 %v2960
    %v2962 = vpop.xlane.xlu0 %2961
    %v2963 = vmul.f32 %v2953, %v180
    %v2964 = vmul.f32 %v2956, %v180
    %v2965 = vmul.f32 %v2959, %v180
    %v2966 = vmul.f32 %v2962, %v180
    %v2967 = vsub.f32 %v2214, %v2963
    %v2968 = vsub.f32 %v2215, %v2964
    %v2969 = vsub.f32 %v2216, %v2965
    %v2970 = vsub.f32 %v2217, %v2966
    %v2971 = vmul.f32 %v2967, %v2967
    %v2972 = vmul.f32 %v2968, %v2968
    %v2973 = vmul.f32 %v2969, %v2969
    %v2974 = vmul.f32 %v2970, %v2970
    %v2975 = vsel %vm176, %v2971, 0.0
    %2976 = vadd.xlane.f32.xlu0 %v2975
    %v2977 = vpop.xlane.xlu0 %2976
    %v2978 = vsel %vm176, %v2972, 0.0
    %2979 = vadd.xlane.f32.xlu0 %v2978
    %v2980 = vpop.xlane.xlu0 %2979
    %v2981 = vsel %vm176, %v2973, 0.0
    %2982 = vadd.xlane.f32.xlu0 %v2981
    %v2983 = vpop.xlane.xlu0 %2982
    %v2984 = vsel %vm176, %v2974, 0.0
    %2985 = vadd.xlane.f32.xlu0 %v2984
    %v2986 = vpop.xlane.xlu0 %2985
    %v2987 = vmul.f32 %v2977, %v180
    %v2988 = vmul.f32 %v2980, %v180
    %v2989 = vmul.f32 %v2983, %v180
    %v2990 = vmul.f32 %v2986, %v180
    %v2991 = vadd.f32 %v2987, 1e-05
    %v2992 = vadd.f32 %v2988, 1e-05
    %v2993 = vadd.f32 %v2989, 1e-05
    %v2994 = vadd.f32 %v2990, 1e-05
    %v2995 = vrsqrt.pop %v2991
    %v2996 = vrsqrt.pop %v2992
    %v2997 = vrsqrt.pop %v2993
    %v2998 = vrsqrt.pop %v2994
    %v2999 = vmul.f32 %v2967, %v2995
    %v3000 = vmul.f32 %v2968, %v2996
    %v3001 = vmul.f32 %v2969, %v2997
    %v3002 = vmul.f32 %v2970, %v2998
    %v3003 = vmul.f32 %v2999, %v2359
    %v3004 = vmul.f32 %v3000, %v2359
    %v3005 = vmul.f32 %v3001, %v2359
    %v3006 = vmul.f32 %v3002, %v2359
    %v3007 = vadd.f32 %v3003, %v2369
    %v3008 = vadd.f32 %v3004, %v2369
    %v3009 = vadd.f32 %v3005, %v2369
    %v3010 = vadd.f32 %v3006, %v2369
    %v3011 = vpack.c.bf16 %v3008, %v3007
    %v3012 = vpack.c.bf16 %v3010, %v3009
    %v3014 = vsel %vm176, %v3011, 0
    %v3017 = vsel %vm176, %v3012, 0
    %3019 = vmatprep.subr.bf16.mxu0 0
    %3020 = vmatpush1.bf16.msra.mxu0 %v2387
    %3021 = vmatprep.subr.bf16.mxu0 0
    %3022 = vmatpush1.bf16.msra.mxu0 0
    %3023 = vmatprep.subr.bf16.mxu0 0
    %3024 = vmatpush1.bf16.msra.mxu0 0
    %3025 = vmatprep.subr.bf16.mxu0 0
    %3026 = vmatpush1.bf16.msra.mxu0 0
    %3027 = vmatprep.subr.bf16.mxu0 0
    %3028 = vmatpush1.bf16.msra.mxu0 0
    %3029 = vmatprep.subr.bf16.mxu0 0
    %3030 = vmatpush1.bf16.msra.mxu0 0
    %3031 = vmatprep.subr.bf16.mxu0 0
    %3032 = vmatpush1.bf16.msra.mxu0 0
    %3033 = vmatprep.subr.bf16.mxu0 0
    %3034 = vmatpush1.bf16.msra.mxu0 0
    %3035 = vmatprep.subr.bf16.mxu0 0
    %3036 = vmatpush1.bf16.msra.mxu0 0
    %3037 = vmatprep.subr.bf16.mxu0 0
    %3038 = vmatpush1.bf16.msra.mxu0 0
    %3039 = vmatprep.subr.bf16.mxu0 0
    %3040 = vmatpush1.bf16.msra.mxu0 0
    %3041 = vmatprep.subr.bf16.mxu0 0
    %3042 = vmatpush1.bf16.msra.mxu0 0
    %3043 = vmatprep.subr.bf16.mxu0 0
    %3044 = vmatpush1.bf16.msra.mxu0 0
    %3045 = vmatprep.subr.bf16.mxu0 0
    %3046 = vmatpush1.bf16.msra.mxu0 0
    %3047 = vmatprep.subr.bf16.mxu0 0
    %3048 = vmatpush1.bf16.msra.mxu0 0
    %3049 = vmatprep.subr.bf16.mxu0 0
    %3050 = vmatpush1.bf16.msra.mxu0 0
    %3051 = vmatprep.mubr.bf16.mxu0 0
    %3052 = vmatmul.mubr.bf16.gmra.mrb[0].mxu0 %v3014
    %v3053 = vpop.f32.mrb[0].mxu0
    %v3054 = vadd.f32 %v2381, %v3053
    %v3055 = vpop.f32.mrb[0].mxu0
    %v3056 = vpop.f32.mrb[0].mxu0
    %v3057 = vadd.f32 %v2381, %v3056
    %v3058 = vpop.f32.mrb[0].mxu0
    %3059 = vmatprep.mubr.bf16.mxu0 0
    %3060 = vmatmul.mubr.bf16.gmra.mrb[0].mxu0 %v3017
    %v3061 = vpop.f32.mrb[0].mxu0
    %v3062 = vadd.f32 %v2381, %v3061
    %v3063 = vpop.f32.mrb[0].mxu0
    %v3064 = vpop.f32.mrb[0].mxu0
    %v3065 = vadd.f32 %v2381, %v3064
    %v3066 = vpop.f32.mrb[0].mxu0
    %3067 = vdwg.mxu0
    %v3068 = vmul.f32 %v3054, 0.5
    %v3069 = vmul.f32 %v3057, 0.5
    %v3070 = vmul.f32 %v3062, 0.5
    %v3071 = vmul.f32 %v3065, 0.5
    %v3072 = vmul.f32 %v3054, 0.70710677
    %v3073 = vmul.f32 %v3057, 0.70710677
    %v3074 = vmul.f32 %v3062, 0.70710677
    %v3075 = vmul.f32 %v3065, 0.70710677
    %v3076 = verf.f32.pop %v3072
    %v3077 = verf.f32.pop %v3073
    %v3078 = verf.f32.pop %v3074
    %v3079 = verf.f32.pop %v3075
    %v3080 = vadd.f32 %v3076, 1.0
    %v3081 = vadd.f32 %v3077, 1.0
    %v3082 = vadd.f32 %v3078, 1.0
    %v3083 = vadd.f32 %v3079, 1.0
    %v3084 = vmul.f32 %v3068, %v3080
    %v3085 = vmul.f32 %v3069, %v3081
    %v3086 = vmul.f32 %v3070, %v3082
    %v3087 = vmul.f32 %v3071, %v3083
    %v3088 = vpack.c.bf16 %v3085, %v3084
    %v3089 = vpack.c.bf16 %v3087, %v3086
    %v3091 = vsel %vm1093, %v3088, 0
    %v3094 = vsel %vm1093, %v3089, 0
    %3096 = vmatprep.subr.bf16.mxu0 0
    %3097 = vmatpush1.bf16.msra.mxu0 %v2474
    %3098 = vmatprep.subr.bf16.mxu0 0
    %3099 = vmatpush1.bf16.msra.mxu0 %v2475
    %3100 = vmatprep.subr.bf16.mxu0 0
    %3101 = vmatpush1.bf16.msra.mxu0 0
    %3102 = vmatprep.subr.bf16.mxu0 0
    %3103 = vmatpush1.bf16.msra.mxu0 0
    %3104 = vmatprep.subr.bf16.mxu0 0
    %3105 = vmatpush1.bf16.msra.mxu0 0
    %3106 = vmatprep.subr.bf16.mxu0 0
    %3107 = vmatpush1.bf16.msra.mxu0 0
    %3108 = vmatprep.subr.bf16.mxu0 0
    %3109 = vmatpush1.bf16.msra.mxu0 0
    %3110 = vmatprep.subr.bf16.mxu0 0
    %3111 = vmatpush1.bf16.msra.mxu0 0
    %3112 = vmatprep.subr.bf16.mxu0 0
    %3113 = vmatpush1.bf16.msra.mxu0 0
    %3114 = vmatprep.subr.bf16.mxu0 0
    %3115 = vmatpush1.bf16.msra.mxu0 0
    %3116 = vmatprep.subr.bf16.mxu0 0
    %3117 = vmatpush1.bf16.msra.mxu0 0
    %3118 = vmatprep.subr.bf16.mxu0 0
    %3119 = vmatpush1.bf16.msra.mxu0 0
    %3120 = vmatprep.subr.bf16.mxu0 0
    %3121 = vmatpush1.bf16.msra.mxu0 0
    %3122 = vmatprep.subr.bf16.mxu0 0
    %3123 = vmatpush1.bf16.msra.mxu0 0
    %3124 = vmatprep.subr.bf16.mxu0 0
    %3125 = vmatpush1.bf16.msra.mxu0 0
    %3126 = vmatprep.subr.bf16.mxu0 0
    %3127 = vmatpush1.bf16.msra.mxu0 0
    %3128 = vmatprep.mubr.bf16.mxu0 0
    %3129 = vmatmul.mubr.bf16.gmra.mrb[0].mxu0 %v3091
    %v3130 = vpop.f32.mrb[0].mxu0
    %v3131 = vadd.f32 0.0, %v3130
    %v3132 = vpop.f32.mrb[0].mxu0
    %v3133 = vpop.f32.mrb[0].mxu0
    %v3134 = vadd.f32 0.0, %v3133
    %v3135 = vpop.f32.mrb[0].mxu0
    %3136 = vmatprep.mubr.bf16.mxu0 0
    %3137 = vmatmul.mubr.bf16.gmra.mrb[0].mxu0 %v3094
    %v3138 = vpop.f32.mrb[0].mxu0
    %v3139 = vadd.f32 0.0, %v3138
    %v3140 = vpop.f32.mrb[0].mxu0
    %v3141 = vpop.f32.mrb[0].mxu0
    %v3142 = vadd.f32 0.0, %v3141
    %v3143 = vpop.f32.mrb[0].mxu0
    %3144 = vdwg.mxu0
    %v3145 = vadd.f32 %v2214, %v3131
    %v3146 = vadd.f32 %v2215, %v3134
    %v3147 = vadd.f32 %v2216, %v3139
    %v3148 = vadd.f32 %v2217, %v3142
    %v3149 = vadd.f32 %v3145, %v2541
    %v3150 = vadd.f32 %v3146, %v2541
    %v3151 = vadd.f32 %v3147, %v2541
    %v3152 = vadd.f32 %v3148, %v2541
    %v3153 = vsel %vm176, %v2299, 0.0
    %3154 = vadd.xlane.f32.xlu0 %v3153
    %v3155 = vpop.xlane.xlu0 %3154
    %v3156 = vsel %vm176, %v2300, 0.0
    %3157 = vadd.xlane.f32.xlu0 %v3156
    %v3158 = vpop.xlane.xlu0 %3157
    %v3159 = vsel %vm176, %v2301, 0.0
    %3160 = vadd.xlane.f32.xlu0 %v3159
    %v3161 = vpop.xlane.xlu0 %3160
    %v3162 = vsel %vm176, %v2302, 0.0
    %3163 = vadd.xlane.f32.xlu0 %v3162
    %v3164 = vpop.xlane.xlu0 %3163
    %v3165 = vmul.f32 %v3155, %v180
    %v3166 = vmul.f32 %v3158, %v180
    %v3167 = vmul.f32 %v3161, %v180
    %v3168 = vmul.f32 %v3164, %v180
    %v3169 = vsub.f32 %v2299, %v3165
    %v3170 = vsub.f32 %v2300, %v3166
    %v3171 = vsub.f32 %v2301, %v3167
    %v3172 = vsub.f32 %v2302, %v3168
    %v3173 = vmul.f32 %v3169, %v3169
    %v3174 = vmul.f32 %v3170, %v3170
    %v3175 = vmul.f32 %v3171, %v3171
    %v3176 = vmul.f32 %v3172, %v3172
    %v3177 = vsel %vm176, %v3173, 0.0
    %3178 = vadd.xlane.f32.xlu0 %v3177
    %v3179 = vpop.xlane.xlu0 %3178
    %v3180 = vsel %vm176, %v3174, 0.0
    %3181 = vadd.xlane.f32.xlu0 %v3180
    %v3182 = vpop.xlane.xlu0 %3181
    %v3183 = vsel %vm176, %v3175, 0.0
    %3184 = vadd.xlane.f32.xlu0 %v3183
    %v3185 = vpop.xlane.xlu0 %3184
    %v3186 = vsel %vm176, %v3176, 0.0
    %3187 = vadd.xlane.f32.xlu0 %v3186
    %v3188 = vpop.xlane.xlu0 %3187
    %v3189 = vmul.f32 %v3179, %v180
    %v3190 = vmul.f32 %v3182, %v180
    %v3191 = vmul.f32 %v3185, %v180
    %v3192 = vmul.f32 %v3188, %v180
    %v3193 = vadd.f32 %v3189, 1e-05
    %v3194 = vadd.f32 %v3190, 1e-05
    %v3195 = vadd.f32 %v3191, 1e-05
    %v3196 = vadd.f32 %v3192, 1e-05
    %v3197 = vrsqrt.pop %v3193
    %v3198 = vrsqrt.pop %v3194
    %v3199 = vrsqrt.pop %v3195
    %v3200 = vrsqrt.pop %v3196
    %v3201 = vmul.f32 %v3169, %v3197
    %v3202 = vmul.f32 %v3170, %v3198
    %v3203 = vmul.f32 %v3171, %v3199
    %v3204 = vmul.f32 %v3172, %v3200
    %v3205 = vmul.f32 %v3201, %v2359
    %v3206 = vmul.f32 %v3202, %v2359
    %v3207 = vmul.f32 %v3203, %v2359
    %v3208 = vmul.f32 %v3204, %v2359
    %v3209 = vadd.f32 %v3205, %v2369
    %v3210 = vadd.f32 %v3206, %v2369
    %v3211 = vadd.f32 %v3207, %v2369
    %v3212 = vadd.f32 %v3208, %v2369
    %v3213 = vpack.c.bf16 %v3210, %v3209
    %v3214 = vpack.c.bf16 %v3212, %v3211
    %v3216 = vsel %vm176, %v3213, 0
    %v3219 = vsel %vm176, %v3214, 0
    %3221 = vmatprep.subr.bf16.mxu0 0
    %3222 = vmatpush1.bf16.msra.mxu0 %v2387
    %3223 = vmatprep.subr.bf16.mxu0 0
    %3224 = vmatpush1.bf16.msra.mxu0 0
    %3225 = vmatprep.subr.bf16.mxu0 0
    %3226 = vmatpush1.bf16.msra.mxu0 0
    %3227 = vmatprep.subr.bf16.mxu0 0
    %3228 = vmatpush1.bf16.msra.mxu0 0
    %3229 = vmatprep.subr.bf16.mxu0 0
    %3230 = vmatpush1.bf16.msra.mxu0 0
    %3231 = vmatprep.subr.bf16.mxu0 0
    %3232 = vmatpush1.bf16.msra.mxu0 0
    %3233 = vmatprep.subr.bf16.mxu0 0
    %3234 = vmatpush1.bf16.msra.mxu0 0
    %3235 = vmatprep.subr.bf16.mxu0 0
    %3236 = vmatpush1.bf16.msra.mxu0 0
    %3237 = vmatprep.subr.bf16.mxu0 0
    %3238 = vmatpush1.bf16.msra.mxu0 0
    %3239 = vmatprep.subr.bf16.mxu0 0
    %3240 = vmatpush1.bf16.msra.mxu0 0
    %3241 = vmatprep.subr.bf16.mxu0 0
    %3242 = vmatpush1.bf16.msra.mxu0 0
    %3243 = vmatprep.subr.bf16.mxu0 0
    %3244 = vmatpush1.bf16.msra.mxu0 0
    %3245 = vmatprep.subr.bf16.mxu0 0
    %3246 = vmatpush1.bf16.msra.mxu0 0
    %3247 = vmatprep.subr.bf16.mxu0 0
    %3248 = vmatpush1.bf16.msra.mxu0 0
    %3249 = vmatprep.subr.bf16.mxu0 0
    %3250 = vmatpush1.bf16.msra.mxu0 0
    %3251 = vmatprep.subr.bf16.mxu0 0
    %3252 = vmatpush1.bf16.msra.mxu0 0
    %3253 = vmatprep.mubr.bf16.mxu0 0
    %3254 = vmatmul.mubr.bf16.gmra.mrb[0].mxu0 %v3216
    %v3255 = vpop.f32.mrb[0].mxu0
    %v3256 = vadd.f32 %v2381, %v3255
    %v3257 = vpop.f32.mrb[0].mxu0
    %v3258 = vpop.f32.mrb[0].mxu0
    %v3259 = vadd.f32 %v2381, %v3258
    %v3260 = vpop.f32.mrb[0].mxu0
    %3261 = vmatprep.mubr.bf16.mxu0 0
    %3262 = vmatmul.mubr.bf16.gmra.mrb[0].mxu0 %v3219
    %v3263 = vpop.f32.mrb[0].mxu0
    %v3264 = vadd.f32 %v2381, %v3263
    %v3265 = vpop.f32.mrb[0].mxu0
    %v3266 = vpop.f32.mrb[0].mxu0
    %v3267 = vadd.f32 %v2381, %v3266
    %v3268 = vpop.f32.mrb[0].mxu0
    %3269 = vdwg.mxu0
    %v3270 = vmul.f32 %v3256, 0.5
    %v3271 = vmul.f32 %v3259, 0.5
    %v3272 = vmul.f32 %v3264, 0.5
    %v3273 = vmul.f32 %v3267, 0.5
    %v3274 = vmul.f32 %v3256, 0.70710677
    %v3275 = vmul.f32 %v3259, 0.70710677
    %v3276 = vmul.f32 %v3264, 0.70710677
    %v3277 = vmul.f32 %v3267, 0.70710677
    %v3278 = verf.f32.pop %v3274
    %v3279 = verf.f32.pop %v3275
    %v3280 = verf.f32.pop %v3276
    %v3281 = verf.f32.pop %v3277
    %v3282 = vadd.f32 %v3278, 1.0
    %v3283 = vadd.f32 %v3279, 1.0
    %v3284 = vadd.f32 %v3280, 1.0
    %v3285 = vadd.f32 %v3281, 1.0
    %v3286 = vmul.f32 %v3270, %v3282
    %v3287 = vmul.f32 %v3271, %v3283
    %v3288 = vmul.f32 %v3272, %v3284
    %v3289 = vmul.f32 %v3273, %v3285
    %v3290 = vpack.c.bf16 %v3287, %v3286
    %v3291 = vpack.c.bf16 %v3289, %v3288
    %v3293 = vsel %vm1093, %v3290, 0
    %v3296 = vsel %vm1093, %v3291, 0
    %3298 = vmatprep.subr.bf16.mxu0 0
    %3299 = vmatpush1.bf16.msra.mxu0 %v2474
    %3300 = vmatprep.subr.bf16.mxu0 0
    %3301 = vmatpush1.bf16.msra.mxu0 %v2475
    %3302 = vmatprep.subr.bf16.mxu0 0
    %3303 = vmatpush1.bf16.msra.mxu0 0
    %3304 = vmatprep.subr.bf16.mxu0 0
    %3305 = vmatpush1.bf16.msra.mxu0 0
    %3306 = vmatprep.subr.bf16.mxu0 0
    %3307 = vmatpush1.bf16.msra.mxu0 0
    %3308 = vmatprep.subr.bf16.mxu0 0
    %3309 = vmatpush1.bf16.msra.mxu0 0
    %3310 = vmatprep.subr.bf16.mxu0 0
    %3311 = vmatpush1.bf16.msra.mxu0 0
    %3312 = vmatprep.subr.bf16.mxu0 0
    %3313 = vmatpush1.bf16.msra.mxu0 0
    %3314 = vmatprep.subr.bf16.mxu0 0
    %3315 = vmatpush1.bf16.msra.mxu0 0
    %3316 = vmatprep.subr.bf16.mxu0 0
    %3317 = vmatpush1.bf16.msra.mxu0 0
    %3318 = vmatprep.subr.bf16.mxu0 0
    %3319 = vmatpush1.bf16.msra.mxu0 0
    %3320 = vmatprep.subr.bf16.mxu0 0
    %3321 = vmatpush1.bf16.msra.mxu0 0
    %3322 = vmatprep.subr.bf16.mxu0 0
    %3323 = vmatpush1.bf16.msra.mxu0 0
    %3324 = vmatprep.subr.bf16.mxu0 0
    %3325 = vmatpush1.bf16.msra.mxu0 0
    %3326 = vmatprep.subr.bf16.mxu0 0
    %3327 = vmatpush1.bf16.msra.mxu0 0
    %3328 = vmatprep.subr.bf16.mxu0 0
    %3329 = vmatpush1.bf16.msra.mxu0 0
    %3330 = vmatprep.mubr.bf16.mxu0 0
    %3331 = vmatmul.mubr.bf16.gmra.mrb[0].mxu0 %v3293
    %v3332 = vpop.f32.mrb[0].mxu0
    %v3333 = vadd.f32 0.0, %v3332
    %v3334 = vpop.f32.mrb[0].mxu0
    %v3335 = vpop.f32.mrb[0].mxu0
    %v3336 = vadd.f32 0.0, %v3335
    %v3337 = vpop.f32.mrb[0].mxu0
    %3338 = vmatprep.mubr.bf16.mxu0 0
    %3339 = vmatmul.mubr.bf16.gmra.mrb[0].mxu0 %v3296
    %v3340 = vpop.f32.mrb[0].mxu0
    %v3341 = vadd.f32 0.0, %v3340
    %v3342 = vpop.f32.mrb[0].mxu0
    %v3343 = vpop.f32.mrb[0].mxu0
    %v3344 = vadd.f32 0.0, %v3343
    %v3345 = vpop.f32.mrb[0].mxu0
    %3346 = vdwg.mxu0
    %v3347 = vadd.f32 %v2299, %v3333
    %v3348 = vadd.f32 %v2300, %v3336
    %v3349 = vadd.f32 %v2301, %v3341
    %v3350 = vadd.f32 %v2302, %v3344
    %v3351 = vadd.f32 %v3347, %v2541
    %v3352 = vadd.f32 %v3348, %v2541
    %v3353 = vadd.f32 %v3349, %v2541
    %v3354 = vadd.f32 %v3350, %v2541
    %s3355 = scalar_lea.vmem %s14, 1
    %v3356 = vld [vmem:[%s3355] sm:$0x1]
    %s3357 = scalar_lea.vmem %s15, 1
    %v3358 = vld [vmem:[%s3357] sm:$0x1]
    %s3359 = scalar_lea.vmem %s16, 8
    %v3360 = vld [vmem:[%s3359] sm:$0xf]
    %v3361 = vld [vmem:[%s3359 + $0x4] sm:$0xf]
    %s3362 = scalar_lea.vmem %s17, 8
    %v3363 = vld [vmem:[%s3362] sm:$0xf]
    %v3364 = vld [vmem:[%s3362 + $0x4] sm:$0xf]
    %s3365 = scalar_lea.vmem %s18, 1
    %v3366 = vld [vmem:[%s3365] sm:$0x1]
    %s3367 = scalar_lea.vmem %s19, 1
    %v3368 = vld [vmem:[%s3367] sm:$0x1]
    %s3369 = scalar_lea.vmem %s20, 8
    %v3370 = vld [vmem:[%s3369] sm:$0xf]
    %v3371 = vld [vmem:[%s3369 + $0x4] sm:$0xf]
    %s3372 = scalar_lea.vmem %s21, 1
    %v3373 = vld [vmem:[%s3372] sm:$0x1]
    %s3374 = scalar_lea.vmem %s22, 16
    %v3375 = vld [vmem:[%s3374] sm:$0xf]
    %v3376 = vld [vmem:[%s3374 + $0x4] sm:$0xf]
    %v3377 = vld [vmem:[%s3374 + $0x8] sm:$0xf]
    %v3378 = vld [vmem:[%s3374 + $0xc] sm:$0xf]
    %s3379 = scalar_lea.vmem %s23, 1
    %v3380 = vld [vmem:[%s3379] sm:$0x1]
    %v3381 = vsel %vm176, %v2543, 0.0
    %3382 = vadd.xlane.f32.xlu0 %v3381
    %v3383 = vpop.xlane.xlu0 %3382
    %v3384 = vsel %vm176, %v2544, 0.0
    %3385 = vadd.xlane.f32.xlu0 %v3384
    %v3386 = vpop.xlane.xlu0 %3385
    %v3387 = vsel %vm176, %v2545, 0.0
    %3388 = vadd.xlane.f32.xlu0 %v3387
    %v3389 = vpop.xlane.xlu0 %3388
    %v3390 = vsel %vm176, %v2546, 0.0
    %3391 = vadd.xlane.f32.xlu0 %v3390
    %v3392 = vpop.xlane.xlu0 %3391
    %v3393 = vmul.f32 %v3383, %v180
    %v3394 = vmul.f32 %v3386, %v180
    %v3395 = vmul.f32 %v3389, %v180
    %v3396 = vmul.f32 %v3392, %v180
    %v3397 = vsub.f32 %v2543, %v3393
    %v3398 = vsub.f32 %v2544, %v3394
    %v3399 = vsub.f32 %v2545, %v3395
    %v3400 = vsub.f32 %v2546, %v3396
    %v3401 = vmul.f32 %v3397, %v3397
    %v3402 = vmul.f32 %v3398, %v3398
    %v3403 = vmul.f32 %v3399, %v3399
    %v3404 = vmul.f32 %v3400, %v3400
    %v3405 = vsel %vm176, %v3401, 0.0
    %3406 = vadd.xlane.f32.xlu0 %v3405
    %v3407 = vpop.xlane.xlu0 %3406
    %v3408 = vsel %vm176, %v3402, 0.0
    %3409 = vadd.xlane.f32.xlu0 %v3408
    %v3410 = vpop.xlane.xlu0 %3409
    %v3411 = vsel %vm176, %v3403, 0.0
    %3412 = vadd.xlane.f32.xlu0 %v3411
    %v3413 = vpop.xlane.xlu0 %3412
    %v3414 = vsel %vm176, %v3404, 0.0
    %3415 = vadd.xlane.f32.xlu0 %v3414
    %v3416 = vpop.xlane.xlu0 %3415
    %v3417 = vmul.f32 %v3407, %v180
    %v3418 = vmul.f32 %v3410, %v180
    %v3419 = vmul.f32 %v3413, %v180
    %v3420 = vmul.f32 %v3416, %v180
    %v3421 = vadd.f32 %v3417, 1e-05
    %v3422 = vadd.f32 %v3418, 1e-05
    %v3423 = vadd.f32 %v3419, 1e-05
    %v3424 = vadd.f32 %v3420, 1e-05
    %v3425 = vrsqrt.pop %v3421
    %v3426 = vrsqrt.pop %v3422
    %v3427 = vrsqrt.pop %v3423
    %v3428 = vrsqrt.pop %v3424
    %v3429 = vmul.f32 %v3397, %v3425
    %v3430 = vmul.f32 %v3398, %v3426
    %v3431 = vmul.f32 %v3399, %v3427
    %v3432 = vmul.f32 %v3400, %v3428
    %v3434 = vlaneseq
    %v3435 = vshrl.u32 %v3434, 7
    %v3436 = vsub.s32 0, %v3435
    %v3437 = vrot.slane %v3356, %v3436
    %v3439 = vmul.f32 %v3429, %v3437
    %v3440 = vmul.f32 %v3430, %v3437
    %v3441 = vmul.f32 %v3431, %v3437
    %v3442 = vmul.f32 %v3432, %v3437
    %v3444 = vlaneseq
    %v3445 = vshrl.u32 %v3444, 7
    %v3446 = vsub.s32 0, %v3445
    %v3447 = vrot.slane %v3358, %v3446
    %v3449 = vadd.f32 %v3439, %v3447
    %v3450 = vadd.f32 %v3440, %v3447
    %v3451 = vadd.f32 %v3441, %v3447
    %v3452 = vadd.f32 %v3442, %v3447
    %v3453 = vpack.c.bf16 %v3450, %v3449
    %v3454 = vpack.c.bf16 %v3452, %v3451
    %v3457 = vunpack.c.l.b16 %v3360
    %v3458 = vunpack.c.l.b16 %v3361
    %v3459 = vpack.c.b16 %v3458, %v3457
    %v3462 = vsel %vm176, %v3453, 0
    %v3465 = vsel %vm176, %v3454, 0
    %3467 = vmatprep.subr.bf16.mxu0 0
    %3468 = vmatpush1.bf16.msra.mxu0 %v3459
    %3469 = vmatprep.subr.bf16.mxu0 0
    %3470 = vmatpush1.bf16.msra.mxu0 0
    %3471 = vmatprep.subr.bf16.mxu0 0
    %3472 = vmatpush1.bf16.msra.mxu0 0
    %3473 = vmatprep.subr.bf16.mxu0 0
    %3474 = vmatpush1.bf16.msra.mxu0 0
    %3475 = vmatprep.subr.bf16.mxu0 0
    %3476 = vmatpush1.bf16.msra.mxu0 0
    %3477 = vmatprep.subr.bf16.mxu0 0
    %3478 = vmatpush1.bf16.msra.mxu0 0
    %3479 = vmatprep.subr.bf16.mxu0 0
    %3480 = vmatpush1.bf16.msra.mxu0 0
    %3481 = vmatprep.subr.bf16.mxu0 0
    %3482 = vmatpush1.bf16.msra.mxu0 0
    %3483 = vmatprep.subr.bf16.mxu0 0
    %3484 = vmatpush1.bf16.msra.mxu0 0
    %3485 = vmatprep.subr.bf16.mxu0 0
    %3486 = vmatpush1.bf16.msra.mxu0 0
    %3487 = vmatprep.subr.bf16.mxu0 0
    %3488 = vmatpush1.bf16.msra.mxu0 0
    %3489 = vmatprep.subr.bf16.mxu0 0
    %3490 = vmatpush1.bf16.msra.mxu0 0
    %3491 = vmatprep.subr.bf16.mxu0 0
    %3492 = vmatpush1.bf16.msra.mxu0 0
    %3493 = vmatprep.subr.bf16.mxu0 0
    %3494 = vmatpush1.bf16.msra.mxu0 0
    %3495 = vmatprep.subr.bf16.mxu0 0
    %3496 = vmatpush1.bf16.msra.mxu0 0
    %3497 = vmatprep.subr.bf16.mxu0 0
    %3498 = vmatpush1.bf16.msra.mxu0 0
    %3499 = vmatprep.mubr.bf16.mxu0 0
    %3500 = vmatmul.mubr.bf16.gmra.mrb[0].mxu0 %v3462
    %v3501 = vpop.f32.mrb[0].mxu0
    %v3502 = vadd.f32 0.0, %v3501
    %v3503 = vpop.f32.mrb[0].mxu0
    %v3504 = vpop.f32.mrb[0].mxu0
    %v3505 = vadd.f32 0.0, %v3504
    %v3506 = vpop.f32.mrb[0].mxu0
    %3507 = vmatprep.mubr.bf16.mxu0 0
    %3508 = vmatmul.mubr.bf16.gmra.mrb[0].mxu0 %v3465
    %v3509 = vpop.f32.mrb[0].mxu0
    %v3510 = vadd.f32 0.0, %v3509
    %v3511 = vpop.f32.mrb[0].mxu0
    %v3512 = vpop.f32.mrb[0].mxu0
    %v3513 = vadd.f32 0.0, %v3512
    %v3514 = vpop.f32.mrb[0].mxu0
    %3515 = vdwg.mxu0
    %v3516 = vsel %vm176, %v2745, 0.0
    %3517 = vadd.xlane.f32.xlu0 %v3516
    %v3518 = vpop.xlane.xlu0 %3517
    %v3519 = vsel %vm176, %v2746, 0.0
    %3520 = vadd.xlane.f32.xlu0 %v3519
    %v3521 = vpop.xlane.xlu0 %3520
    %v3522 = vsel %vm176, %v2747, 0.0
    %3523 = vadd.xlane.f32.xlu0 %v3522
    %v3524 = vpop.xlane.xlu0 %3523
    %v3525 = vsel %vm176, %v2748, 0.0
    %3526 = vadd.xlane.f32.xlu0 %v3525
    %v3527 = vpop.xlane.xlu0 %3526
    %v3528 = vmul.f32 %v3518, %v180
    %v3529 = vmul.f32 %v3521, %v180
    %v3530 = vmul.f32 %v3524, %v180
    %v3531 = vmul.f32 %v3527, %v180
    %v3532 = vsub.f32 %v2745, %v3528
    %v3533 = vsub.f32 %v2746, %v3529
    %v3534 = vsub.f32 %v2747, %v3530
    %v3535 = vsub.f32 %v2748, %v3531
    %v3536 = vmul.f32 %v3532, %v3532
    %v3537 = vmul.f32 %v3533, %v3533
    %v3538 = vmul.f32 %v3534, %v3534
    %v3539 = vmul.f32 %v3535, %v3535
    %v3540 = vsel %vm176, %v3536, 0.0
    %3541 = vadd.xlane.f32.xlu0 %v3540
    %v3542 = vpop.xlane.xlu0 %3541
    %v3543 = vsel %vm176, %v3537, 0.0
    %3544 = vadd.xlane.f32.xlu0 %v3543
    %v3545 = vpop.xlane.xlu0 %3544
    %v3546 = vsel %vm176, %v3538, 0.0
    %3547 = vadd.xlane.f32.xlu0 %v3546
    %v3548 = vpop.xlane.xlu0 %3547
    %v3549 = vsel %vm176, %v3539, 0.0
    %3550 = vadd.xlane.f32.xlu0 %v3549
    %v3551 = vpop.xlane.xlu0 %3550
    %v3552 = vmul.f32 %v3542, %v180
    %v3553 = vmul.f32 %v3545, %v180
    %v3554 = vmul.f32 %v3548, %v180
    %v3555 = vmul.f32 %v3551, %v180
    %v3556 = vadd.f32 %v3552, 1e-05
    %v3557 = vadd.f32 %v3553, 1e-05
    %v3558 = vadd.f32 %v3554, 1e-05
    %v3559 = vadd.f32 %v3555, 1e-05
    %v3560 = vrsqrt.pop %v3556
    %v3561 = vrsqrt.pop %v3557
    %v3562 = vrsqrt.pop %v3558
    %v3563 = vrsqrt.pop %v3559
    %v3564 = vmul.f32 %v3532, %v3560
    %v3565 = vmul.f32 %v3533, %v3561
    %v3566 = vmul.f32 %v3534, %v3562
    %v3567 = vmul.f32 %v3535, %v3563
    %v3568 = vmul.f32 %v3564, %v3437
    %v3569 = vmul.f32 %v3565, %v3437
    %v3570 = vmul.f32 %v3566, %v3437
    %v3571 = vmul.f32 %v3567, %v3437
    %v3572 = vadd.f32 %v3568, %v3447
    %v3573 = vadd.f32 %v3569, %v3447
    %v3574 = vadd.f32 %v3570, %v3447
    %v3575 = vadd.f32 %v3571, %v3447
    %v3576 = vpack.c.bf16 %v3573, %v3572
    %v3577 = vpack.c.bf16 %v3575, %v3574
    %v3579 = vsel %vm176, %v3576, 0
    %v3582 = vsel %vm176, %v3577, 0
    %3584 = vmatprep.subr.bf16.mxu0 0
    %3585 = vmatpush1.bf16.msra.mxu0 %v3459
    %3586 = vmatprep.subr.bf16.mxu0 0
    %3587 = vmatpush1.bf16.msra.mxu0 0
    %3588 = vmatprep.subr.bf16.mxu0 0
    %3589 = vmatpush1.bf16.msra.mxu0 0
    %3590 = vmatprep.subr.bf16.mxu0 0
    %3591 = vmatpush1.bf16.msra.mxu0 0
    %3592 = vmatprep.subr.bf16.mxu0 0
    %3593 = vmatpush1.bf16.msra.mxu0 0
    %3594 = vmatprep.subr.bf16.mxu0 0
    %3595 = vmatpush1.bf16.msra.mxu0 0
    %3596 = vmatprep.subr.bf16.mxu0 0
    %3597 = vmatpush1.bf16.msra.mxu0 0
    %3598 = vmatprep.subr.bf16.mxu0 0
    %3599 = vmatpush1.bf16.msra.mxu0 0
    %3600 = vmatprep.subr.bf16.mxu0 0
    %3601 = vmatpush1.bf16.msra.mxu0 0
    %3602 = vmatprep.subr.bf16.mxu0 0
    %3603 = vmatpush1.bf16.msra.mxu0 0
    %3604 = vmatprep.subr.bf16.mxu0 0
    %3605 = vmatpush1.bf16.msra.mxu0 0
    %3606 = vmatprep.subr.bf16.mxu0 0
    %3607 = vmatpush1.bf16.msra.mxu0 0
    %3608 = vmatprep.subr.bf16.mxu0 0
    %3609 = vmatpush1.bf16.msra.mxu0 0
    %3610 = vmatprep.subr.bf16.mxu0 0
    %3611 = vmatpush1.bf16.msra.mxu0 0
    %3612 = vmatprep.subr.bf16.mxu0 0
    %3613 = vmatpush1.bf16.msra.mxu0 0
    %3614 = vmatprep.subr.bf16.mxu0 0
    %3615 = vmatpush1.bf16.msra.mxu0 0
    %3616 = vmatprep.mubr.bf16.mxu0 0
    %3617 = vmatmul.mubr.bf16.gmra.mrb[0].mxu0 %v3579
    %v3618 = vpop.f32.mrb[0].mxu0
    %v3619 = vadd.f32 0.0, %v3618
    %v3620 = vpop.f32.mrb[0].mxu0
    %v3621 = vpop.f32.mrb[0].mxu0
    %v3622 = vadd.f32 0.0, %v3621
    %v3623 = vpop.f32.mrb[0].mxu0
    %3624 = vmatprep.mubr.bf16.mxu0 0
    %3625 = vmatmul.mubr.bf16.gmra.mrb[0].mxu0 %v3582
    %v3626 = vpop.f32.mrb[0].mxu0
    %v3627 = vadd.f32 0.0, %v3626
    %v3628 = vpop.f32.mrb[0].mxu0
    %v3629 = vpop.f32.mrb[0].mxu0
    %v3630 = vadd.f32 0.0, %v3629
    %v3631 = vpop.f32.mrb[0].mxu0
    %3632 = vdwg.mxu0
    %v3633 = vsel %vm176, %v2947, 0.0
    %3634 = vadd.xlane.f32.xlu0 %v3633
    %v3635 = vpop.xlane.xlu0 %3634
    %v3636 = vsel %vm176, %v2948, 0.0
    %3637 = vadd.xlane.f32.xlu0 %v3636
    %v3638 = vpop.xlane.xlu0 %3637
    %v3639 = vsel %vm176, %v2949, 0.0
    %3640 = vadd.xlane.f32.xlu0 %v3639
    %v3641 = vpop.xlane.xlu0 %3640
    %v3642 = vsel %vm176, %v2950, 0.0
    %3643 = vadd.xlane.f32.xlu0 %v3642
    %v3644 = vpop.xlane.xlu0 %3643
    %v3645 = vmul.f32 %v3635, %v180
    %v3646 = vmul.f32 %v3638, %v180
    %v3647 = vmul.f32 %v3641, %v180
    %v3648 = vmul.f32 %v3644, %v180
    %v3649 = vsub.f32 %v2947, %v3645
    %v3650 = vsub.f32 %v2948, %v3646
    %v3651 = vsub.f32 %v2949, %v3647
    %v3652 = vsub.f32 %v2950, %v3648
    %v3653 = vmul.f32 %v3649, %v3649
    %v3654 = vmul.f32 %v3650, %v3650
    %v3655 = vmul.f32 %v3651, %v3651
    %v3656 = vmul.f32 %v3652, %v3652
    %v3657 = vsel %vm176, %v3653, 0.0
    %3658 = vadd.xlane.f32.xlu0 %v3657
    %v3659 = vpop.xlane.xlu0 %3658
    %v3660 = vsel %vm176, %v3654, 0.0
    %3661 = vadd.xlane.f32.xlu0 %v3660
    %v3662 = vpop.xlane.xlu0 %3661
    %v3663 = vsel %vm176, %v3655, 0.0
    %3664 = vadd.xlane.f32.xlu0 %v3663
    %v3665 = vpop.xlane.xlu0 %3664
    %v3666 = vsel %vm176, %v3656, 0.0
    %3667 = vadd.xlane.f32.xlu0 %v3666
    %v3668 = vpop.xlane.xlu0 %3667
    %v3669 = vmul.f32 %v3659, %v180
    %v3670 = vmul.f32 %v3662, %v180
    %v3671 = vmul.f32 %v3665, %v180
    %v3672 = vmul.f32 %v3668, %v180
    %v3673 = vadd.f32 %v3669, 1e-05
    %v3674 = vadd.f32 %v3670, 1e-05
    %v3675 = vadd.f32 %v3671, 1e-05
    %v3676 = vadd.f32 %v3672, 1e-05
    %v3677 = vrsqrt.pop %v3673
    %v3678 = vrsqrt.pop %v3674
    %v3679 = vrsqrt.pop %v3675
    %v3680 = vrsqrt.pop %v3676
    %v3681 = vmul.f32 %v3649, %v3677
    %v3682 = vmul.f32 %v3650, %v3678
    %v3683 = vmul.f32 %v3651, %v3679
    %v3684 = vmul.f32 %v3652, %v3680
    %v3685 = vmul.f32 %v3681, %v3437
    %v3686 = vmul.f32 %v3682, %v3437
    %v3687 = vmul.f32 %v3683, %v3437
    %v3688 = vmul.f32 %v3684, %v3437
    %v3689 = vadd.f32 %v3685, %v3447
    %v3690 = vadd.f32 %v3686, %v3447
    %v3691 = vadd.f32 %v3687, %v3447
    %v3692 = vadd.f32 %v3688, %v3447
    %v3693 = vpack.c.bf16 %v3690, %v3689
    %v3694 = vpack.c.bf16 %v3692, %v3691
    %v3696 = vsel %vm176, %v3693, 0
    %v3699 = vsel %vm176, %v3694, 0
    %3701 = vmatprep.subr.bf16.mxu0 0
    %3702 = vmatpush1.bf16.msra.mxu0 %v3459
    %3703 = vmatprep.subr.bf16.mxu0 0
    %3704 = vmatpush1.bf16.msra.mxu0 0
    %3705 = vmatprep.subr.bf16.mxu0 0
    %3706 = vmatpush1.bf16.msra.mxu0 0
    %3707 = vmatprep.subr.bf16.mxu0 0
    %3708 = vmatpush1.bf16.msra.mxu0 0
    %3709 = vmatprep.subr.bf16.mxu0 0
    %3710 = vmatpush1.bf16.msra.mxu0 0
    %3711 = vmatprep.subr.bf16.mxu0 0
    %3712 = vmatpush1.bf16.msra.mxu0 0
    %3713 = vmatprep.subr.bf16.mxu0 0
    %3714 = vmatpush1.bf16.msra.mxu0 0
    %3715 = vmatprep.subr.bf16.mxu0 0
    %3716 = vmatpush1.bf16.msra.mxu0 0
    %3717 = vmatprep.subr.bf16.mxu0 0
    %3718 = vmatpush1.bf16.msra.mxu0 0
    %3719 = vmatprep.subr.bf16.mxu0 0
    %3720 = vmatpush1.bf16.msra.mxu0 0
    %3721 = vmatprep.subr.bf16.mxu0 0
    %3722 = vmatpush1.bf16.msra.mxu0 0
    %3723 = vmatprep.subr.bf16.mxu0 0
    %3724 = vmatpush1.bf16.msra.mxu0 0
    %3725 = vmatprep.subr.bf16.mxu0 0
    %3726 = vmatpush1.bf16.msra.mxu0 0
    %3727 = vmatprep.subr.bf16.mxu0 0
    %3728 = vmatpush1.bf16.msra.mxu0 0
    %3729 = vmatprep.subr.bf16.mxu0 0
    %3730 = vmatpush1.bf16.msra.mxu0 0
    %3731 = vmatprep.subr.bf16.mxu0 0
    %3732 = vmatpush1.bf16.msra.mxu0 0
    %3733 = vmatprep.mubr.bf16.mxu0 0
    %3734 = vmatmul.mubr.bf16.gmra.mrb[0].mxu0 %v3696
    %v3735 = vpop.f32.mrb[0].mxu0
    %v3736 = vadd.f32 0.0, %v3735
    %v3737 = vpop.f32.mrb[0].mxu0
    %v3738 = vpop.f32.mrb[0].mxu0
    %v3739 = vadd.f32 0.0, %v3738
    %v3740 = vpop.f32.mrb[0].mxu0
    %3741 = vmatprep.mubr.bf16.mxu0 0
    %3742 = vmatmul.mubr.bf16.gmra.mrb[0].mxu0 %v3699
    %v3743 = vpop.f32.mrb[0].mxu0
    %v3744 = vadd.f32 0.0, %v3743
    %v3745 = vpop.f32.mrb[0].mxu0
    %v3746 = vpop.f32.mrb[0].mxu0
    %v3747 = vadd.f32 0.0, %v3746
    %v3748 = vpop.f32.mrb[0].mxu0
    %3749 = vdwg.mxu0
    %v3750 = vsel %vm176, %v3149, 0.0
    %3751 = vadd.xlane.f32.xlu0 %v3750
    %v3752 = vpop.xlane.xlu0 %3751
    %v3753 = vsel %vm176, %v3150, 0.0
    %3754 = vadd.xlane.f32.xlu0 %v3753
    %v3755 = vpop.xlane.xlu0 %3754
    %v3756 = vsel %vm176, %v3151, 0.0
    %3757 = vadd.xlane.f32.xlu0 %v3756
    %v3758 = vpop.xlane.xlu0 %3757
    %v3759 = vsel %vm176, %v3152, 0.0
    %3760 = vadd.xlane.f32.xlu0 %v3759
    %v3761 = vpop.xlane.xlu0 %3760
    %v3762 = vmul.f32 %v3752, %v180
    %v3763 = vmul.f32 %v3755, %v180
    %v3764 = vmul.f32 %v3758, %v180
    %v3765 = vmul.f32 %v3761, %v180
    %v3766 = vsub.f32 %v3149, %v3762
    %v3767 = vsub.f32 %v3150, %v3763
    %v3768 = vsub.f32 %v3151, %v3764
    %v3769 = vsub.f32 %v3152, %v3765
    %v3770 = vmul.f32 %v3766, %v3766
    %v3771 = vmul.f32 %v3767, %v3767
    %v3772 = vmul.f32 %v3768, %v3768
    %v3773 = vmul.f32 %v3769, %v3769
    %v3774 = vsel %vm176, %v3770, 0.0
    %3775 = vadd.xlane.f32.xlu0 %v3774
    %v3776 = vpop.xlane.xlu0 %3775
    %v3777 = vsel %vm176, %v3771, 0.0
    %3778 = vadd.xlane.f32.xlu0 %v3777
    %v3779 = vpop.xlane.xlu0 %3778
    %v3780 = vsel %vm176, %v3772, 0.0
    %3781 = vadd.xlane.f32.xlu0 %v3780
    %v3782 = vpop.xlane.xlu0 %3781
    %v3783 = vsel %vm176, %v3773, 0.0
    %3784 = vadd.xlane.f32.xlu0 %v3783
    %v3785 = vpop.xlane.xlu0 %3784
    %v3786 = vmul.f32 %v3776, %v180
    %v3787 = vmul.f32 %v3779, %v180
    %v3788 = vmul.f32 %v3782, %v180
    %v3789 = vmul.f32 %v3785, %v180
    %v3790 = vadd.f32 %v3786, 1e-05
    %v3791 = vadd.f32 %v3787, 1e-05
    %v3792 = vadd.f32 %v3788, 1e-05
    %v3793 = vadd.f32 %v3789, 1e-05
    %v3794 = vrsqrt.pop %v3790
    %v3795 = vrsqrt.pop %v3791
    %v3796 = vrsqrt.pop %v3792
    %v3797 = vrsqrt.pop %v3793
    %v3798 = vmul.f32 %v3766, %v3794
    %v3799 = vmul.f32 %v3767, %v3795
    %v3800 = vmul.f32 %v3768, %v3796
    %v3801 = vmul.f32 %v3769, %v3797
    %v3802 = vmul.f32 %v3798, %v3437
    %v3803 = vmul.f32 %v3799, %v3437
    %v3804 = vmul.f32 %v3800, %v3437
    %v3805 = vmul.f32 %v3801, %v3437
    %v3806 = vadd.f32 %v3802, %v3447
    %v3807 = vadd.f32 %v3803, %v3447
    %v3808 = vadd.f32 %v3804, %v3447
    %v3809 = vadd.f32 %v3805, %v3447
    %v3810 = vpack.c.bf16 %v3807, %v3806
    %v3811 = vpack.c.bf16 %v3809, %v3808
    %v3813 = vsel %vm176, %v3810, 0
    %v3816 = vsel %vm176, %v3811, 0
    %3818 = vmatprep.subr.bf16.mxu0 0
    %3819 = vmatpush1.bf16.msra.mxu0 %v3459
    %3820 = vmatprep.subr.bf16.mxu0 0
    %3821 = vmatpush1.bf16.msra.mxu0 0
    %3822 = vmatprep.subr.bf16.mxu0 0
    %3823 = vmatpush1.bf16.msra.mxu0 0
    %3824 = vmatprep.subr.bf16.mxu0 0
    %3825 = vmatpush1.bf16.msra.mxu0 0
    %3826 = vmatprep.subr.bf16.mxu0 0
    %3827 = vmatpush1.bf16.msra.mxu0 0
    %3828 = vmatprep.subr.bf16.mxu0 0
    %3829 = vmatpush1.bf16.msra.mxu0 0
    %3830 = vmatprep.subr.bf16.mxu0 0
    %3831 = vmatpush1.bf16.msra.mxu0 0
    %3832 = vmatprep.subr.bf16.mxu0 0
    %3833 = vmatpush1.bf16.msra.mxu0 0
    %3834 = vmatprep.subr.bf16.mxu0 0
    %3835 = vmatpush1.bf16.msra.mxu0 0
    %3836 = vmatprep.subr.bf16.mxu0 0
    %3837 = vmatpush1.bf16.msra.mxu0 0
    %3838 = vmatprep.subr.bf16.mxu0 0
    %3839 = vmatpush1.bf16.msra.mxu0 0
    %3840 = vmatprep.subr.bf16.mxu0 0
    %3841 = vmatpush1.bf16.msra.mxu0 0
    %3842 = vmatprep.subr.bf16.mxu0 0
    %3843 = vmatpush1.bf16.msra.mxu0 0
    %3844 = vmatprep.subr.bf16.mxu0 0
    %3845 = vmatpush1.bf16.msra.mxu0 0
    %3846 = vmatprep.subr.bf16.mxu0 0
    %3847 = vmatpush1.bf16.msra.mxu0 0
    %3848 = vmatprep.subr.bf16.mxu0 0
    %3849 = vmatpush1.bf16.msra.mxu0 0
    %3850 = vmatprep.mubr.bf16.mxu0 0
    %3851 = vmatmul.mubr.bf16.gmra.mrb[0].mxu0 %v3813
    %v3852 = vpop.f32.mrb[0].mxu0
    %v3853 = vadd.f32 0.0, %v3852
    %v3854 = vpop.f32.mrb[0].mxu0
    %v3855 = vpop.f32.mrb[0].mxu0
    %v3856 = vadd.f32 0.0, %v3855
    %v3857 = vpop.f32.mrb[0].mxu0
    %3858 = vmatprep.mubr.bf16.mxu0 0
    %3859 = vmatmul.mubr.bf16.gmra.mrb[0].mxu0 %v3816
    %v3860 = vpop.f32.mrb[0].mxu0
    %v3861 = vadd.f32 0.0, %v3860
    %v3862 = vpop.f32.mrb[0].mxu0
    %v3863 = vpop.f32.mrb[0].mxu0
    %v3864 = vadd.f32 0.0, %v3863
    %v3865 = vpop.f32.mrb[0].mxu0
    %3866 = vdwg.mxu0
    %v3867 = vsel %vm176, %v3351, 0.0
    %3868 = vadd.xlane.f32.xlu0 %v3867
    %v3869 = vpop.xlane.xlu0 %3868
    %v3870 = vsel %vm176, %v3352, 0.0
    %3871 = vadd.xlane.f32.xlu0 %v3870
    %v3872 = vpop.xlane.xlu0 %3871
    %v3873 = vsel %vm176, %v3353, 0.0
    %3874 = vadd.xlane.f32.xlu0 %v3873
    %v3875 = vpop.xlane.xlu0 %3874
    %v3876 = vsel %vm176, %v3354, 0.0
    %3877 = vadd.xlane.f32.xlu0 %v3876
    %v3878 = vpop.xlane.xlu0 %3877
    %v3879 = vmul.f32 %v3869, %v180
    %v3880 = vmul.f32 %v3872, %v180
    %v3881 = vmul.f32 %v3875, %v180
    %v3882 = vmul.f32 %v3878, %v180
    %v3883 = vsub.f32 %v3351, %v3879
    %v3884 = vsub.f32 %v3352, %v3880
    %v3885 = vsub.f32 %v3353, %v3881
    %v3886 = vsub.f32 %v3354, %v3882
    %v3887 = vmul.f32 %v3883, %v3883
    %v3888 = vmul.f32 %v3884, %v3884
    %v3889 = vmul.f32 %v3885, %v3885
    %v3890 = vmul.f32 %v3886, %v3886
    %v3891 = vsel %vm176, %v3887, 0.0
    %3892 = vadd.xlane.f32.xlu0 %v3891
    %v3893 = vpop.xlane.xlu0 %3892
    %v3894 = vsel %vm176, %v3888, 0.0
    %3895 = vadd.xlane.f32.xlu0 %v3894
    %v3896 = vpop.xlane.xlu0 %3895
    %v3897 = vsel %vm176, %v3889, 0.0
    %3898 = vadd.xlane.f32.xlu0 %v3897
    %v3899 = vpop.xlane.xlu0 %3898
    %v3900 = vsel %vm176, %v3890, 0.0
    %3901 = vadd.xlane.f32.xlu0 %v3900
    %v3902 = vpop.xlane.xlu0 %3901
    %v3903 = vmul.f32 %v3893, %v180
    %v3904 = vmul.f32 %v3896, %v180
    %v3905 = vmul.f32 %v3899, %v180
    %v3906 = vmul.f32 %v3902, %v180
    %v3907 = vadd.f32 %v3903, 1e-05
    %v3908 = vadd.f32 %v3904, 1e-05
    %v3909 = vadd.f32 %v3905, 1e-05
    %v3910 = vadd.f32 %v3906, 1e-05
    %v3911 = vrsqrt.pop %v3907
    %v3912 = vrsqrt.pop %v3908
    %v3913 = vrsqrt.pop %v3909
    %v3914 = vrsqrt.pop %v3910
    %v3915 = vmul.f32 %v3883, %v3911
    %v3916 = vmul.f32 %v3884, %v3912
    %v3917 = vmul.f32 %v3885, %v3913
    %v3918 = vmul.f32 %v3886, %v3914
    %v3919 = vmul.f32 %v3915, %v3437
    %v3920 = vmul.f32 %v3916, %v3437
    %v3921 = vmul.f32 %v3917, %v3437
    %v3922 = vmul.f32 %v3918, %v3437
    %v3923 = vadd.f32 %v3919, %v3447
    %v3924 = vadd.f32 %v3920, %v3447
    %v3925 = vadd.f32 %v3921, %v3447
    %v3926 = vadd.f32 %v3922, %v3447
    %v3927 = vpack.c.bf16 %v3924, %v3923
    %v3928 = vpack.c.bf16 %v3926, %v3925
    %v3930 = vsel %vm176, %v3927, 0
    %v3933 = vsel %vm176, %v3928, 0
    %3935 = vmatprep.subr.bf16.mxu0 0
    %3936 = vmatpush1.bf16.msra.mxu0 %v3459
    %3937 = vmatprep.subr.bf16.mxu0 0
    %3938 = vmatpush1.bf16.msra.mxu0 0
    %3939 = vmatprep.subr.bf16.mxu0 0
    %3940 = vmatpush1.bf16.msra.mxu0 0
    %3941 = vmatprep.subr.bf16.mxu0 0
    %3942 = vmatpush1.bf16.msra.mxu0 0
    %3943 = vmatprep.subr.bf16.mxu0 0
    %3944 = vmatpush1.bf16.msra.mxu0 0
    %3945 = vmatprep.subr.bf16.mxu0 0
    %3946 = vmatpush1.bf16.msra.mxu0 0
    %3947 = vmatprep.subr.bf16.mxu0 0
    %3948 = vmatpush1.bf16.msra.mxu0 0
    %3949 = vmatprep.subr.bf16.mxu0 0
    %3950 = vmatpush1.bf16.msra.mxu0 0
    %3951 = vmatprep.subr.bf16.mxu0 0
    %3952 = vmatpush1.bf16.msra.mxu0 0
    %3953 = vmatprep.subr.bf16.mxu0 0
    %3954 = vmatpush1.bf16.msra.mxu0 0
    %3955 = vmatprep.subr.bf16.mxu0 0
    %3956 = vmatpush1.bf16.msra.mxu0 0
    %3957 = vmatprep.subr.bf16.mxu0 0
    %3958 = vmatpush1.bf16.msra.mxu0 0
    %3959 = vmatprep.subr.bf16.mxu0 0
    %3960 = vmatpush1.bf16.msra.mxu0 0
    %3961 = vmatprep.subr.bf16.mxu0 0
    %3962 = vmatpush1.bf16.msra.mxu0 0
    %3963 = vmatprep.subr.bf16.mxu0 0
    %3964 = vmatpush1.bf16.msra.mxu0 0
    %3965 = vmatprep.subr.bf16.mxu0 0
    %3966 = vmatpush1.bf16.msra.mxu0 0
    %3967 = vmatprep.mubr.bf16.mxu0 0
    %3968 = vmatmul.mubr.bf16.gmra.mrb[0].mxu0 %v3930
    %v3969 = vpop.f32.mrb[0].mxu0
    %v3970 = vadd.f32 0.0, %v3969
    %v3971 = vpop.f32.mrb[0].mxu0
    %v3972 = vpop.f32.mrb[0].mxu0
    %v3973 = vadd.f32 0.0, %v3972
    %v3974 = vpop.f32.mrb[0].mxu0
    %3975 = vmatprep.mubr.bf16.mxu0 0
    %3976 = vmatmul.mubr.bf16.gmra.mrb[0].mxu0 %v3933
    %v3977 = vpop.f32.mrb[0].mxu0
    %v3978 = vadd.f32 0.0, %v3977
    %v3979 = vpop.f32.mrb[0].mxu0
    %v3980 = vpop.f32.mrb[0].mxu0
    %v3981 = vadd.f32 0.0, %v3980
    %v3982 = vpop.f32.mrb[0].mxu0
    %3983 = vdwg.mxu0
    %v3984 = vmax.f32 %v3502, %v3619
    %v3985 = vmax.f32 %v3505, %v3622
    %v3986 = vmax.f32 %v3510, %v3627
    %v3987 = vmax.f32 %v3513, %v3630
    %v3988 = vmax.f32 %v3984, %v3736
    %v3989 = vmax.f32 %v3985, %v3739
    %v3990 = vmax.f32 %v3986, %v3744
    %v3991 = vmax.f32 %v3987, %v3747
    %v3992 = vmax.f32 %v3988, %v3853
    %v3993 = vmax.f32 %v3989, %v3856
    %v3994 = vmax.f32 %v3990, %v3861
    %v3995 = vmax.f32 %v3991, %v3864
    %v3996 = vmax.f32 %v3992, %v3970
    %v3997 = vmax.f32 %v3993, %v3973
    %v3998 = vmax.f32 %v3994, %v3978
    %v3999 = vmax.f32 %v3995, %v3981
    %v4000 = vsub.f32 %v3502, %v3996
    %v4001 = vsub.f32 %v3505, %v3997
    %v4002 = vsub.f32 %v3510, %v3998
    %v4003 = vsub.f32 %v3513, %v3999
    %v4004 = vmul.f32 %v4000, 1.442695
    %v4005 = vpow.pop %v4004
    %v4006 = vmul.f32 %v4001, 1.442695
    %v4007 = vpow.pop %v4006
    %v4008 = vmul.f32 %v4002, 1.442695
    %v4009 = vpow.pop %v4008
    %v4010 = vmul.f32 %v4003, 1.442695
    %v4011 = vpow.pop %v4010
    %v4012 = vsub.f32 %v3619, %v3996
    %v4013 = vsub.f32 %v3622, %v3997
    %v4014 = vsub.f32 %v3627, %v3998
    %v4015 = vsub.f32 %v3630, %v3999
    %v4016 = vmul.f32 %v4012, 1.442695
    %v4017 = vpow.pop %v4016
    %v4018 = vmul.f32 %v4013, 1.442695
    %v4019 = vpow.pop %v4018
    %v4020 = vmul.f32 %v4014, 1.442695
    %v4021 = vpow.pop %v4020
    %v4022 = vmul.f32 %v4015, 1.442695
    %v4023 = vpow.pop %v4022
    %v4024 = vsub.f32 %v3736, %v3996
    %v4025 = vsub.f32 %v3739, %v3997
    %v4026 = vsub.f32 %v3744, %v3998
    %v4027 = vsub.f32 %v3747, %v3999
    %v4028 = vmul.f32 %v4024, 1.442695
    %v4029 = vpow.pop %v4028
    %v4030 = vmul.f32 %v4025, 1.442695
    %v4031 = vpow.pop %v4030
    %v4032 = vmul.f32 %v4026, 1.442695
    %v4033 = vpow.pop %v4032
    %v4034 = vmul.f32 %v4027, 1.442695
    %v4035 = vpow.pop %v4034
    %v4036 = vsub.f32 %v3853, %v3996
    %v4037 = vsub.f32 %v3856, %v3997
    %v4038 = vsub.f32 %v3861, %v3998
    %v4039 = vsub.f32 %v3864, %v3999
    %v4040 = vmul.f32 %v4036, 1.442695
    %v4041 = vpow.pop %v4040
    %v4042 = vmul.f32 %v4037, 1.442695
    %v4043 = vpow.pop %v4042
    %v4044 = vmul.f32 %v4038, 1.442695
    %v4045 = vpow.pop %v4044
    %v4046 = vmul.f32 %v4039, 1.442695
    %v4047 = vpow.pop %v4046
    %v4048 = vsub.f32 %v3970, %v3996
    %v4049 = vsub.f32 %v3973, %v3997
    %v4050 = vsub.f32 %v3978, %v3998
    %v4051 = vsub.f32 %v3981, %v3999
    %v4052 = vmul.f32 %v4048, 1.442695
    %v4053 = vpow.pop %v4052
    %v4054 = vmul.f32 %v4049, 1.442695
    %v4055 = vpow.pop %v4054
    %v4056 = vmul.f32 %v4050, 1.442695
    %v4057 = vpow.pop %v4056
    %v4058 = vmul.f32 %v4051, 1.442695
    %v4059 = vpow.pop %v4058
    %v4060 = vadd.f32 %v4005, %v4017
    %v4061 = vadd.f32 %v4007, %v4019
    %v4062 = vadd.f32 %v4009, %v4021
    %v4063 = vadd.f32 %v4011, %v4023
    %v4064 = vadd.f32 %v4060, %v4029
    %v4065 = vadd.f32 %v4061, %v4031
    %v4066 = vadd.f32 %v4062, %v4033
    %v4067 = vadd.f32 %v4063, %v4035
    %v4068 = vadd.f32 %v4064, %v4041
    %v4069 = vadd.f32 %v4065, %v4043
    %v4070 = vadd.f32 %v4066, %v4045
    %v4071 = vadd.f32 %v4067, %v4047
    %v4072 = vadd.f32 %v4068, %v4053
    %v4073 = vadd.f32 %v4069, %v4055
    %v4074 = vadd.f32 %v4070, %v4057
    %v4075 = vadd.f32 %v4071, %v4059
    %v4076 = vrcp.pop %v4072
    %v4077 = vrcp.pop %v4073
    %v4078 = vrcp.pop %v4074
    %v4079 = vrcp.pop %v4075
    %v4080 = vmul.f32 %v4005, %v4076
    %v4081 = vmul.f32 %v4007, %v4077
    %v4082 = vmul.f32 %v4009, %v4078
    %v4083 = vmul.f32 %v4011, %v4079
    %v4084 = vsel %vm176, %v4080, 0.0
    %4085 = vadd.xlane.f32.xlu0 %v4084
    %v4086 = vpop.xlane.xlu0 %4085
    %v4087 = vsel %vm176, %v4081, 0.0
    %4088 = vadd.xlane.f32.xlu0 %v4087
    %v4089 = vpop.xlane.xlu0 %4088
    %v4090 = vsel %vm176, %v4082, 0.0
    %4091 = vadd.xlane.f32.xlu0 %v4090
    %v4092 = vpop.xlane.xlu0 %4091
    %v4093 = vsel %vm176, %v4083, 0.0
    %4094 = vadd.xlane.f32.xlu0 %v4093
    %v4095 = vpop.xlane.xlu0 %4094
    %v4096 = vrcp.pop %v4086
    %v4097 = vrcp.pop %v4089
    %v4098 = vrcp.pop %v4092
    %v4099 = vrcp.pop %v4095
    %v4100 = vmul.f32 %v4080, %v4096
    %v4101 = vmul.f32 %v4081, %v4097
    %v4102 = vmul.f32 %v4082, %v4098
    %v4103 = vmul.f32 %v4083, %v4099
    %v4104 = vpack.c.bf16 %v4101, %v4100
    %v4105 = vpack.c.bf16 %v4103, %v4102
    %v4108 = vunpack.c.l.b16 %v3363
    %v4109 = vunpack.c.l.b16 %v3364
    %v4110 = vpack.c.b16 %v4109, %v4108
    %v4113 = vsel %vm176, %v4104, 0
    %v4116 = vsel %vm176, %v4105, 0
    %4118 = vmatprep.subr.bf16.mxu0 0
    %4119 = vmatpush1.bf16.msra.mxu0 %v4110
    %4120 = vmatprep.subr.bf16.mxu0 0
    %4121 = vmatpush1.bf16.msra.mxu0 0
    %4122 = vmatprep.subr.bf16.mxu0 0
    %4123 = vmatpush1.bf16.msra.mxu0 0
    %4124 = vmatprep.subr.bf16.mxu0 0
    %4125 = vmatpush1.bf16.msra.mxu0 0
    %4126 = vmatprep.subr.bf16.mxu0 0
    %4127 = vmatpush1.bf16.msra.mxu0 0
    %4128 = vmatprep.subr.bf16.mxu0 0
    %4129 = vmatpush1.bf16.msra.mxu0 0
    %4130 = vmatprep.subr.bf16.mxu0 0
    %4131 = vmatpush1.bf16.msra.mxu0 0
    %4132 = vmatprep.subr.bf16.mxu0 0
    %4133 = vmatpush1.bf16.msra.mxu0 0
    %4134 = vmatprep.subr.bf16.mxu0 0
    %4135 = vmatpush1.bf16.msra.mxu0 0
    %4136 = vmatprep.subr.bf16.mxu0 0
    %4137 = vmatpush1.bf16.msra.mxu0 0
    %4138 = vmatprep.subr.bf16.mxu0 0
    %4139 = vmatpush1.bf16.msra.mxu0 0
    %4140 = vmatprep.subr.bf16.mxu0 0
    %4141 = vmatpush1.bf16.msra.mxu0 0
    %4142 = vmatprep.subr.bf16.mxu0 0
    %4143 = vmatpush1.bf16.msra.mxu0 0
    %4144 = vmatprep.subr.bf16.mxu0 0
    %4145 = vmatpush1.bf16.msra.mxu0 0
    %4146 = vmatprep.subr.bf16.mxu0 0
    %4147 = vmatpush1.bf16.msra.mxu0 0
    %4148 = vmatprep.subr.bf16.mxu0 0
    %4149 = vmatpush1.bf16.msra.mxu0 0
    %4150 = vmatprep.mubr.bf16.mxu0 0
    %4151 = vmatmul.mubr.bf16.gmra.mrb[0].mxu0 %v4113
    %v4152 = vpop.f32.mrb[0].mxu0
    %v4153 = vadd.f32 0.0, %v4152
    %v4154 = vpop.f32.mrb[0].mxu0
    %v4155 = vpop.f32.mrb[0].mxu0
    %v4156 = vadd.f32 0.0, %v4155
    %v4157 = vpop.f32.mrb[0].mxu0
    %4158 = vmatprep.mubr.bf16.mxu0 0
    %4159 = vmatmul.mubr.bf16.gmra.mrb[0].mxu0 %v4116
    %v4160 = vpop.f32.mrb[0].mxu0
    %v4161 = vadd.f32 0.0, %v4160
    %v4162 = vpop.f32.mrb[0].mxu0
    %v4163 = vpop.f32.mrb[0].mxu0
    %v4164 = vadd.f32 0.0, %v4163
    %v4165 = vpop.f32.mrb[0].mxu0
    %4166 = vdwg.mxu0
    %v4167 = vadd.f32 %v2543, %v4153
    %v4168 = vadd.f32 %v2544, %v4156
    %v4169 = vadd.f32 %v2545, %v4161
    %v4170 = vadd.f32 %v2546, %v4164
    %v4171 = vmul.f32 %v4017, %v4076
    %v4172 = vmul.f32 %v4019, %v4077
    %v4173 = vmul.f32 %v4021, %v4078
    %v4174 = vmul.f32 %v4023, %v4079
    %v4175 = vsel %vm176, %v4171, 0.0
    %4176 = vadd.xlane.f32.xlu0 %v4175
    %v4177 = vpop.xlane.xlu0 %4176
    %v4178 = vsel %vm176, %v4172, 0.0
    %4179 = vadd.xlane.f32.xlu0 %v4178
    %v4180 = vpop.xlane.xlu0 %4179
    %v4181 = vsel %vm176, %v4173, 0.0
    %4182 = vadd.xlane.f32.xlu0 %v4181
    %v4183 = vpop.xlane.xlu0 %4182
    %v4184 = vsel %vm176, %v4174, 0.0
    %4185 = vadd.xlane.f32.xlu0 %v4184
    %v4186 = vpop.xlane.xlu0 %4185
    %v4187 = vrcp.pop %v4177
    %v4188 = vrcp.pop %v4180
    %v4189 = vrcp.pop %v4183
    %v4190 = vrcp.pop %v4186
    %v4191 = vmul.f32 %v4171, %v4187
    %v4192 = vmul.f32 %v4172, %v4188
    %v4193 = vmul.f32 %v4173, %v4189
    %v4194 = vmul.f32 %v4174, %v4190
    %v4195 = vpack.c.bf16 %v4192, %v4191
    %v4196 = vpack.c.bf16 %v4194, %v4193
    %v4198 = vsel %vm176, %v4195, 0
    %v4201 = vsel %vm176, %v4196, 0
    %4203 = vmatprep.subr.bf16.mxu0 0
    %4204 = vmatpush1.bf16.msra.mxu0 %v4110
    %4205 = vmatprep.subr.bf16.mxu0 0
    %4206 = vmatpush1.bf16.msra.mxu0 0
    %4207 = vmatprep.subr.bf16.mxu0 0
    %4208 = vmatpush1.bf16.msra.mxu0 0
    %4209 = vmatprep.subr.bf16.mxu0 0
    %4210 = vmatpush1.bf16.msra.mxu0 0
    %4211 = vmatprep.subr.bf16.mxu0 0
    %4212 = vmatpush1.bf16.msra.mxu0 0
    %4213 = vmatprep.subr.bf16.mxu0 0
    %4214 = vmatpush1.bf16.msra.mxu0 0
    %4215 = vmatprep.subr.bf16.mxu0 0
    %4216 = vmatpush1.bf16.msra.mxu0 0
    %4217 = vmatprep.subr.bf16.mxu0 0
    %4218 = vmatpush1.bf16.msra.mxu0 0
    %4219 = vmatprep.subr.bf16.mxu0 0
    %4220 = vmatpush1.bf16.msra.mxu0 0
    %4221 = vmatprep.subr.bf16.mxu0 0
    %4222 = vmatpush1.bf16.msra.mxu0 0
    %4223 = vmatprep.subr.bf16.mxu0 0
    %4224 = vmatpush1.bf16.msra.mxu0 0
    %4225 = vmatprep.subr.bf16.mxu0 0
    %4226 = vmatpush1.bf16.msra.mxu0 0
    %4227 = vmatprep.subr.bf16.mxu0 0
    %4228 = vmatpush1.bf16.msra.mxu0 0
    %4229 = vmatprep.subr.bf16.mxu0 0
    %4230 = vmatpush1.bf16.msra.mxu0 0
    %4231 = vmatprep.subr.bf16.mxu0 0
    %4232 = vmatpush1.bf16.msra.mxu0 0
    %4233 = vmatprep.subr.bf16.mxu0 0
    %4234 = vmatpush1.bf16.msra.mxu0 0
    %4235 = vmatprep.mubr.bf16.mxu0 0
    %4236 = vmatmul.mubr.bf16.gmra.mrb[0].mxu0 %v4198
    %v4237 = vpop.f32.mrb[0].mxu0
    %v4238 = vadd.f32 0.0, %v4237
    %v4239 = vpop.f32.mrb[0].mxu0
    %v4240 = vpop.f32.mrb[0].mxu0
    %v4241 = vadd.f32 0.0, %v4240
    %v4242 = vpop.f32.mrb[0].mxu0
    %4243 = vmatprep.mubr.bf16.mxu0 0
    %4244 = vmatmul.mubr.bf16.gmra.mrb[0].mxu0 %v4201
    %v4245 = vpop.f32.mrb[0].mxu0
    %v4246 = vadd.f32 0.0, %v4245
    %v4247 = vpop.f32.mrb[0].mxu0
    %v4248 = vpop.f32.mrb[0].mxu0
    %v4249 = vadd.f32 0.0, %v4248
    %v4250 = vpop.f32.mrb[0].mxu0
    %4251 = vdwg.mxu0
    %v4252 = vadd.f32 %v2745, %v4238
    %v4253 = vadd.f32 %v2746, %v4241
    %v4254 = vadd.f32 %v2747, %v4246
    %v4255 = vadd.f32 %v2748, %v4249
    %v4256 = vmul.f32 %v4029, %v4076
    %v4257 = vmul.f32 %v4031, %v4077
    %v4258 = vmul.f32 %v4033, %v4078
    %v4259 = vmul.f32 %v4035, %v4079
    %v4260 = vsel %vm176, %v4256, 0.0
    %4261 = vadd.xlane.f32.xlu0 %v4260
    %v4262 = vpop.xlane.xlu0 %4261
    %v4263 = vsel %vm176, %v4257, 0.0
    %4264 = vadd.xlane.f32.xlu0 %v4263
    %v4265 = vpop.xlane.xlu0 %4264
    %v4266 = vsel %vm176, %v4258, 0.0
    %4267 = vadd.xlane.f32.xlu0 %v4266
    %v4268 = vpop.xlane.xlu0 %4267
    %v4269 = vsel %vm176, %v4259, 0.0
    %4270 = vadd.xlane.f32.xlu0 %v4269
    %v4271 = vpop.xlane.xlu0 %4270
    %v4272 = vrcp.pop %v4262
    %v4273 = vrcp.pop %v4265
    %v4274 = vrcp.pop %v4268
    %v4275 = vrcp.pop %v4271
    %v4276 = vmul.f32 %v4256, %v4272
    %v4277 = vmul.f32 %v4257, %v4273
    %v4278 = vmul.f32 %v4258, %v4274
    %v4279 = vmul.f32 %v4259, %v4275
    %v4280 = vpack.c.bf16 %v4277, %v4276
    %v4281 = vpack.c.bf16 %v4279, %v4278
    %v4283 = vsel %vm176, %v4280, 0
    %v4286 = vsel %vm176, %v4281, 0
    %4288 = vmatprep.subr.bf16.mxu0 0
    %4289 = vmatpush1.bf16.msra.mxu0 %v4110
    %4290 = vmatprep.subr.bf16.mxu0 0
    %4291 = vmatpush1.bf16.msra.mxu0 0
    %4292 = vmatprep.subr.bf16.mxu0 0
    %4293 = vmatpush1.bf16.msra.mxu0 0
    %4294 = vmatprep.subr.bf16.mxu0 0
    %4295 = vmatpush1.bf16.msra.mxu0 0
    %4296 = vmatprep.subr.bf16.mxu0 0
    %4297 = vmatpush1.bf16.msra.mxu0 0
    %4298 = vmatprep.subr.bf16.mxu0 0
    %4299 = vmatpush1.bf16.msra.mxu0 0
    %4300 = vmatprep.subr.bf16.mxu0 0
    %4301 = vmatpush1.bf16.msra.mxu0 0
    %4302 = vmatprep.subr.bf16.mxu0 0
    %4303 = vmatpush1.bf16.msra.mxu0 0
    %4304 = vmatprep.subr.bf16.mxu0 0
    %4305 = vmatpush1.bf16.msra.mxu0 0
    %4306 = vmatprep.subr.bf16.mxu0 0
    %4307 = vmatpush1.bf16.msra.mxu0 0
    %4308 = vmatprep.subr.bf16.mxu0 0
    %4309 = vmatpush1.bf16.msra.mxu0 0
    %4310 = vmatprep.subr.bf16.mxu0 0
    %4311 = vmatpush1.bf16.msra.mxu0 0
    %4312 = vmatprep.subr.bf16.mxu0 0
    %4313 = vmatpush1.bf16.msra.mxu0 0
    %4314 = vmatprep.subr.bf16.mxu0 0
    %4315 = vmatpush1.bf16.msra.mxu0 0
    %4316 = vmatprep.subr.bf16.mxu0 0
    %4317 = vmatpush1.bf16.msra.mxu0 0
    %4318 = vmatprep.subr.bf16.mxu0 0
    %4319 = vmatpush1.bf16.msra.mxu0 0
    %4320 = vmatprep.mubr.bf16.mxu0 0
    %4321 = vmatmul.mubr.bf16.gmra.mrb[0].mxu0 %v4283
    %v4322 = vpop.f32.mrb[0].mxu0
    %v4323 = vadd.f32 0.0, %v4322
    %v4324 = vpop.f32.mrb[0].mxu0
    %v4325 = vpop.f32.mrb[0].mxu0
    %v4326 = vadd.f32 0.0, %v4325
    %v4327 = vpop.f32.mrb[0].mxu0
    %4328 = vmatprep.mubr.bf16.mxu0 0
    %4329 = vmatmul.mubr.bf16.gmra.mrb[0].mxu0 %v4286
    %v4330 = vpop.f32.mrb[0].mxu0
    %v4331 = vadd.f32 0.0, %v4330
    %v4332 = vpop.f32.mrb[0].mxu0
    %v4333 = vpop.f32.mrb[0].mxu0
    %v4334 = vadd.f32 0.0, %v4333
    %v4335 = vpop.f32.mrb[0].mxu0
    %4336 = vdwg.mxu0
    %v4337 = vadd.f32 %v2947, %v4323
    %v4338 = vadd.f32 %v2948, %v4326
    %v4339 = vadd.f32 %v2949, %v4331
    %v4340 = vadd.f32 %v2950, %v4334
    %v4341 = vmul.f32 %v4041, %v4076
    %v4342 = vmul.f32 %v4043, %v4077
    %v4343 = vmul.f32 %v4045, %v4078
    %v4344 = vmul.f32 %v4047, %v4079
    %v4345 = vsel %vm176, %v4341, 0.0
    %4346 = vadd.xlane.f32.xlu0 %v4345
    %v4347 = vpop.xlane.xlu0 %4346
    %v4348 = vsel %vm176, %v4342, 0.0
    %4349 = vadd.xlane.f32.xlu0 %v4348
    %v4350 = vpop.xlane.xlu0 %4349
    %v4351 = vsel %vm176, %v4343, 0.0
    %4352 = vadd.xlane.f32.xlu0 %v4351
    %v4353 = vpop.xlane.xlu0 %4352
    %v4354 = vsel %vm176, %v4344, 0.0
    %4355 = vadd.xlane.f32.xlu0 %v4354
    %v4356 = vpop.xlane.xlu0 %4355
    %v4357 = vrcp.pop %v4347
    %v4358 = vrcp.pop %v4350
    %v4359 = vrcp.pop %v4353
    %v4360 = vrcp.pop %v4356
    %v4361 = vmul.f32 %v4341, %v4357
    %v4362 = vmul.f32 %v4342, %v4358
    %v4363 = vmul.f32 %v4343, %v4359
    %v4364 = vmul.f32 %v4344, %v4360
    %v4365 = vpack.c.bf16 %v4362, %v4361
    %v4366 = vpack.c.bf16 %v4364, %v4363
    %v4368 = vsel %vm176, %v4365, 0
    %v4371 = vsel %vm176, %v4366, 0
    %4373 = vmatprep.subr.bf16.mxu0 0
    %4374 = vmatpush1.bf16.msra.mxu0 %v4110
    %4375 = vmatprep.subr.bf16.mxu0 0
    %4376 = vmatpush1.bf16.msra.mxu0 0
    %4377 = vmatprep.subr.bf16.mxu0 0
    %4378 = vmatpush1.bf16.msra.mxu0 0
    %4379 = vmatprep.subr.bf16.mxu0 0
    %4380 = vmatpush1.bf16.msra.mxu0 0
    %4381 = vmatprep.subr.bf16.mxu0 0
    %4382 = vmatpush1.bf16.msra.mxu0 0
    %4383 = vmatprep.subr.bf16.mxu0 0
    %4384 = vmatpush1.bf16.msra.mxu0 0
    %4385 = vmatprep.subr.bf16.mxu0 0
    %4386 = vmatpush1.bf16.msra.mxu0 0
    %4387 = vmatprep.subr.bf16.mxu0 0
    %4388 = vmatpush1.bf16.msra.mxu0 0
    %4389 = vmatprep.subr.bf16.mxu0 0
    %4390 = vmatpush1.bf16.msra.mxu0 0
    %4391 = vmatprep.subr.bf16.mxu0 0
    %4392 = vmatpush1.bf16.msra.mxu0 0
    %4393 = vmatprep.subr.bf16.mxu0 0
    %4394 = vmatpush1.bf16.msra.mxu0 0
    %4395 = vmatprep.subr.bf16.mxu0 0
    %4396 = vmatpush1.bf16.msra.mxu0 0
    %4397 = vmatprep.subr.bf16.mxu0 0
    %4398 = vmatpush1.bf16.msra.mxu0 0
    %4399 = vmatprep.subr.bf16.mxu0 0
    %4400 = vmatpush1.bf16.msra.mxu0 0
    %4401 = vmatprep.subr.bf16.mxu0 0
    %4402 = vmatpush1.bf16.msra.mxu0 0
    %4403 = vmatprep.subr.bf16.mxu0 0
    %4404 = vmatpush1.bf16.msra.mxu0 0
    %4405 = vmatprep.mubr.bf16.mxu0 0
    %4406 = vmatmul.mubr.bf16.gmra.mrb[0].mxu0 %v4368
    %v4407 = vpop.f32.mrb[0].mxu0
    %v4408 = vadd.f32 0.0, %v4407
    %v4409 = vpop.f32.mrb[0].mxu0
    %v4410 = vpop.f32.mrb[0].mxu0
    %v4411 = vadd.f32 0.0, %v4410
    %v4412 = vpop.f32.mrb[0].mxu0
    %4413 = vmatprep.mubr.bf16.mxu0 0
    %4414 = vmatmul.mubr.bf16.gmra.mrb[0].mxu0 %v4371
    %v4415 = vpop.f32.mrb[0].mxu0
    %v4416 = vadd.f32 0.0, %v4415
    %v4417 = vpop.f32.mrb[0].mxu0
    %v4418 = vpop.f32.mrb[0].mxu0
    %v4419 = vadd.f32 0.0, %v4418
    %v4420 = vpop.f32.mrb[0].mxu0
    %4421 = vdwg.mxu0
    %v4422 = vadd.f32 %v3149, %v4408
    %v4423 = vadd.f32 %v3150, %v4411
    %v4424 = vadd.f32 %v3151, %v4416
    %v4425 = vadd.f32 %v3152, %v4419
    %v4426 = vmul.f32 %v4053, %v4076
    %v4427 = vmul.f32 %v4055, %v4077
    %v4428 = vmul.f32 %v4057, %v4078
    %v4429 = vmul.f32 %v4059, %v4079
    %v4430 = vsel %vm176, %v4426, 0.0
    %4431 = vadd.xlane.f32.xlu0 %v4430
    %v4432 = vpop.xlane.xlu0 %4431
    %v4433 = vsel %vm176, %v4427, 0.0
    %4434 = vadd.xlane.f32.xlu0 %v4433
    %v4435 = vpop.xlane.xlu0 %4434
    %v4436 = vsel %vm176, %v4428, 0.0
    %4437 = vadd.xlane.f32.xlu0 %v4436
    %v4438 = vpop.xlane.xlu0 %4437
    %v4439 = vsel %vm176, %v4429, 0.0
    %4440 = vadd.xlane.f32.xlu0 %v4439
    %v4441 = vpop.xlane.xlu0 %4440
    %v4442 = vrcp.pop %v4432
    %v4443 = vrcp.pop %v4435
    %v4444 = vrcp.pop %v4438
    %v4445 = vrcp.pop %v4441
    %v4446 = vmul.f32 %v4426, %v4442
    %v4447 = vmul.f32 %v4427, %v4443
    %v4448 = vmul.f32 %v4428, %v4444
    %v4449 = vmul.f32 %v4429, %v4445
    %v4450 = vpack.c.bf16 %v4447, %v4446
    %v4451 = vpack.c.bf16 %v4449, %v4448
    %v4453 = vsel %vm176, %v4450, 0
    %v4456 = vsel %vm176, %v4451, 0
    %4458 = vmatprep.subr.bf16.mxu0 0
    %4459 = vmatpush1.bf16.msra.mxu0 %v4110
    %4460 = vmatprep.subr.bf16.mxu0 0
    %4461 = vmatpush1.bf16.msra.mxu0 0
    %4462 = vmatprep.subr.bf16.mxu0 0
    %4463 = vmatpush1.bf16.msra.mxu0 0
    %4464 = vmatprep.subr.bf16.mxu0 0
    %4465 = vmatpush1.bf16.msra.mxu0 0
    %4466 = vmatprep.subr.bf16.mxu0 0
    %4467 = vmatpush1.bf16.msra.mxu0 0
    %4468 = vmatprep.subr.bf16.mxu0 0
    %4469 = vmatpush1.bf16.msra.mxu0 0
    %4470 = vmatprep.subr.bf16.mxu0 0
    %4471 = vmatpush1.bf16.msra.mxu0 0
    %4472 = vmatprep.subr.bf16.mxu0 0
    %4473 = vmatpush1.bf16.msra.mxu0 0
    %4474 = vmatprep.subr.bf16.mxu0 0
    %4475 = vmatpush1.bf16.msra.mxu0 0
    %4476 = vmatprep.subr.bf16.mxu0 0
    %4477 = vmatpush1.bf16.msra.mxu0 0
    %4478 = vmatprep.subr.bf16.mxu0 0
    %4479 = vmatpush1.bf16.msra.mxu0 0
    %4480 = vmatprep.subr.bf16.mxu0 0
    %4481 = vmatpush1.bf16.msra.mxu0 0
    %4482 = vmatprep.subr.bf16.mxu0 0
    %4483 = vmatpush1.bf16.msra.mxu0 0
    %4484 = vmatprep.subr.bf16.mxu0 0
    %4485 = vmatpush1.bf16.msra.mxu0 0
    %4486 = vmatprep.subr.bf16.mxu0 0
    %4487 = vmatpush1.bf16.msra.mxu0 0
    %4488 = vmatprep.subr.bf16.mxu0 0
    %4489 = vmatpush1.bf16.msra.mxu0 0
    %4490 = vmatprep.mubr.bf16.mxu0 0
    %4491 = vmatmul.mubr.bf16.gmra.mrb[0].mxu0 %v4453
    %v4492 = vpop.f32.mrb[0].mxu0
    %v4493 = vadd.f32 0.0, %v4492
    %v4494 = vpop.f32.mrb[0].mxu0
    %v4495 = vpop.f32.mrb[0].mxu0
    %v4496 = vadd.f32 0.0, %v4495
    %v4497 = vpop.f32.mrb[0].mxu0
    %4498 = vmatprep.mubr.bf16.mxu0 0
    %4499 = vmatmul.mubr.bf16.gmra.mrb[0].mxu0 %v4456
    %v4500 = vpop.f32.mrb[0].mxu0
    %v4501 = vadd.f32 0.0, %v4500
    %v4502 = vpop.f32.mrb[0].mxu0
    %v4503 = vpop.f32.mrb[0].mxu0
    %v4504 = vadd.f32 0.0, %v4503
    %v4505 = vpop.f32.mrb[0].mxu0
    %4506 = vdwg.mxu0
    %v4507 = vadd.f32 %v3351, %v4493
    %v4508 = vadd.f32 %v3352, %v4496
    %v4509 = vadd.f32 %v3353, %v4501
    %v4510 = vadd.f32 %v3354, %v4504
    %v4511 = vsel %vm176, %v4167, 0.0
    %4512 = vadd.xlane.f32.xlu0 %v4511
    %v4513 = vpop.xlane.xlu0 %4512
    %v4514 = vsel %vm176, %v4168, 0.0
    %4515 = vadd.xlane.f32.xlu0 %v4514
    %v4516 = vpop.xlane.xlu0 %4515
    %v4517 = vsel %vm176, %v4169, 0.0
    %4518 = vadd.xlane.f32.xlu0 %v4517
    %v4519 = vpop.xlane.xlu0 %4518
    %v4520 = vsel %vm176, %v4170, 0.0
    %4521 = vadd.xlane.f32.xlu0 %v4520
    %v4522 = vpop.xlane.xlu0 %4521
    %v4523 = vmul.f32 %v4513, %v180
    %v4524 = vmul.f32 %v4516, %v180
    %v4525 = vmul.f32 %v4519, %v180
    %v4526 = vmul.f32 %v4522, %v180
    %v4527 = vsub.f32 %v4167, %v4523
    %v4528 = vsub.f32 %v4168, %v4524
    %v4529 = vsub.f32 %v4169, %v4525
    %v4530 = vsub.f32 %v4170, %v4526
    %v4531 = vmul.f32 %v4527, %v4527
    %v4532 = vmul.f32 %v4528, %v4528
    %v4533 = vmul.f32 %v4529, %v4529
    %v4534 = vmul.f32 %v4530, %v4530
    %v4535 = vsel %vm176, %v4531, 0.0
    %4536 = vadd.xlane.f32.xlu0 %v4535
    %v4537 = vpop.xlane.xlu0 %4536
    %v4538 = vsel %vm176, %v4532, 0.0
    %4539 = vadd.xlane.f32.xlu0 %v4538
    %v4540 = vpop.xlane.xlu0 %4539
    %v4541 = vsel %vm176, %v4533, 0.0
    %4542 = vadd.xlane.f32.xlu0 %v4541
    %v4543 = vpop.xlane.xlu0 %4542
    %v4544 = vsel %vm176, %v4534, 0.0
    %4545 = vadd.xlane.f32.xlu0 %v4544
    %v4546 = vpop.xlane.xlu0 %4545
    %v4547 = vmul.f32 %v4537, %v180
    %v4548 = vmul.f32 %v4540, %v180
    %v4549 = vmul.f32 %v4543, %v180
    %v4550 = vmul.f32 %v4546, %v180
    %v4551 = vadd.f32 %v4547, 1e-05
    %v4552 = vadd.f32 %v4548, 1e-05
    %v4553 = vadd.f32 %v4549, 1e-05
    %v4554 = vadd.f32 %v4550, 1e-05
    %v4555 = vrsqrt.pop %v4551
    %v4556 = vrsqrt.pop %v4552
    %v4557 = vrsqrt.pop %v4553
    %v4558 = vrsqrt.pop %v4554
    %v4559 = vmul.f32 %v4527, %v4555
    %v4560 = vmul.f32 %v4528, %v4556
    %v4561 = vmul.f32 %v4529, %v4557
    %v4562 = vmul.f32 %v4530, %v4558
    %v4564 = vlaneseq
    %v4565 = vshrl.u32 %v4564, 7
    %v4566 = vsub.s32 0, %v4565
    %v4567 = vrot.slane %v3366, %v4566
    %v4569 = vmul.f32 %v4559, %v4567
    %v4570 = vmul.f32 %v4560, %v4567
    %v4571 = vmul.f32 %v4561, %v4567
    %v4572 = vmul.f32 %v4562, %v4567
    %v4574 = vlaneseq
    %v4575 = vshrl.u32 %v4574, 7
    %v4576 = vsub.s32 0, %v4575
    %v4577 = vrot.slane %v3368, %v4576
    %v4579 = vadd.f32 %v4569, %v4577
    %v4580 = vadd.f32 %v4570, %v4577
    %v4581 = vadd.f32 %v4571, %v4577
    %v4582 = vadd.f32 %v4572, %v4577
    %v4583 = vpack.c.bf16 %v4580, %v4579
    %v4584 = vpack.c.bf16 %v4582, %v4581
    %v4586 = vlaneseq
    %v4587 = vshrl.u32 %v4586, 7
    %v4588 = vsub.s32 0, %v4587
    %v4589 = vrot.slane %v3373, %v4588
    %v4593 = vunpack.c.l.b16 %v3370
    %v4594 = vunpack.c.l.b16 %v3371
    %v4595 = vpack.c.b16 %v4594, %v4593
    %v4598 = vsel %vm176, %v4583, 0
    %v4601 = vsel %vm176, %v4584, 0
    %4603 = vmatprep.subr.bf16.mxu0 0
    %4604 = vmatpush1.bf16.msra.mxu0 %v4595
    %4605 = vmatprep.subr.bf16.mxu0 0
    %4606 = vmatpush1.bf16.msra.mxu0 0
    %4607 = vmatprep.subr.bf16.mxu0 0
    %4608 = vmatpush1.bf16.msra.mxu0 0
    %4609 = vmatprep.subr.bf16.mxu0 0
    %4610 = vmatpush1.bf16.msra.mxu0 0
    %4611 = vmatprep.subr.bf16.mxu0 0
    %4612 = vmatpush1.bf16.msra.mxu0 0
    %4613 = vmatprep.subr.bf16.mxu0 0
    %4614 = vmatpush1.bf16.msra.mxu0 0
    %4615 = vmatprep.subr.bf16.mxu0 0
    %4616 = vmatpush1.bf16.msra.mxu0 0
    %4617 = vmatprep.subr.bf16.mxu0 0
    %4618 = vmatpush1.bf16.msra.mxu0 0
    %4619 = vmatprep.subr.bf16.mxu0 0
    %4620 = vmatpush1.bf16.msra.mxu0 0
    %4621 = vmatprep.subr.bf16.mxu0 0
    %4622 = vmatpush1.bf16.msra.mxu0 0
    %4623 = vmatprep.subr.bf16.mxu0 0
    %4624 = vmatpush1.bf16.msra.mxu0 0
    %4625 = vmatprep.subr.bf16.mxu0 0
    %4626 = vmatpush1.bf16.msra.mxu0 0
    %4627 = vmatprep.subr.bf16.mxu0 0
    %4628 = vmatpush1.bf16.msra.mxu0 0
    %4629 = vmatprep.subr.bf16.mxu0 0
    %4630 = vmatpush1.bf16.msra.mxu0 0
    %4631 = vmatprep.subr.bf16.mxu0 0
    %4632 = vmatpush1.bf16.msra.mxu0 0
    %4633 = vmatprep.subr.bf16.mxu0 0
    %4634 = vmatpush1.bf16.msra.mxu0 0
    %4635 = vmatprep.mubr.bf16.mxu0 0
    %4636 = vmatmul.mubr.bf16.gmra.mrb[0].mxu0 %v4598
    %v4637 = vpop.f32.mrb[0].mxu0
    %v4638 = vadd.f32 %v4589, %v4637
    %v4639 = vpop.f32.mrb[0].mxu0
    %v4640 = vpop.f32.mrb[0].mxu0
    %v4641 = vadd.f32 %v4589, %v4640
    %v4642 = vpop.f32.mrb[0].mxu0
    %4643 = vmatprep.mubr.bf16.mxu0 0
    %4644 = vmatmul.mubr.bf16.gmra.mrb[0].mxu0 %v4601
    %v4645 = vpop.f32.mrb[0].mxu0
    %v4646 = vadd.f32 %v4589, %v4645
    %v4647 = vpop.f32.mrb[0].mxu0
    %v4648 = vpop.f32.mrb[0].mxu0
    %v4649 = vadd.f32 %v4589, %v4648
    %v4650 = vpop.f32.mrb[0].mxu0
    %4651 = vdwg.mxu0
    %v4652 = vmul.f32 %v4638, 0.5
    %v4653 = vmul.f32 %v4641, 0.5
    %v4654 = vmul.f32 %v4646, 0.5
    %v4655 = vmul.f32 %v4649, 0.5
    %v4656 = vmul.f32 %v4638, 0.70710677
    %v4657 = vmul.f32 %v4641, 0.70710677
    %v4658 = vmul.f32 %v4646, 0.70710677
    %v4659 = vmul.f32 %v4649, 0.70710677
    %v4660 = verf.f32.pop %v4656
    %v4661 = verf.f32.pop %v4657
    %v4662 = verf.f32.pop %v4658
    %v4663 = verf.f32.pop %v4659
    %v4664 = vadd.f32 %v4660, 1.0
    %v4665 = vadd.f32 %v4661, 1.0
    %v4666 = vadd.f32 %v4662, 1.0
    %v4667 = vadd.f32 %v4663, 1.0
    %v4668 = vmul.f32 %v4652, %v4664
    %v4669 = vmul.f32 %v4653, %v4665
    %v4670 = vmul.f32 %v4654, %v4666
    %v4671 = vmul.f32 %v4655, %v4667
    %v4672 = vpack.c.bf16 %v4669, %v4668
    %v4673 = vpack.c.bf16 %v4671, %v4670
    %v4678 = vunpack.c.l.b16 %v3375
    %v4679 = vunpack.c.l.b16 %v3376
    %v4680 = vunpack.c.l.b16 %v3377
    %v4681 = vunpack.c.l.b16 %v3378
    %v4682 = vpack.c.b16 %v4679, %v4678
    %v4683 = vpack.c.b16 %v4681, %v4680
    %v4687 = vsel %vm1093, %v4672, 0
    %v4690 = vsel %vm1093, %v4673, 0
    %4692 = vmatprep.subr.bf16.mxu0 0
    %4693 = vmatpush1.bf16.msra.mxu0 %v4682
    %4694 = vmatprep.subr.bf16.mxu0 0
    %4695 = vmatpush1.bf16.msra.mxu0 %v4683
    %4696 = vmatprep.subr.bf16.mxu0 0
    %4697 = vmatpush1.bf16.msra.mxu0 0
    %4698 = vmatprep.subr.bf16.mxu0 0
    %4699 = vmatpush1.bf16.msra.mxu0 0
    %4700 = vmatprep.subr.bf16.mxu0 0
    %4701 = vmatpush1.bf16.msra.mxu0 0
    %4702 = vmatprep.subr.bf16.mxu0 0
    %4703 = vmatpush1.bf16.msra.mxu0 0
    %4704 = vmatprep.subr.bf16.mxu0 0
    %4705 = vmatpush1.bf16.msra.mxu0 0
    %4706 = vmatprep.subr.bf16.mxu0 0
    %4707 = vmatpush1.bf16.msra.mxu0 0
    %4708 = vmatprep.subr.bf16.mxu0 0
    %4709 = vmatpush1.bf16.msra.mxu0 0
    %4710 = vmatprep.subr.bf16.mxu0 0
    %4711 = vmatpush1.bf16.msra.mxu0 0
    %4712 = vmatprep.subr.bf16.mxu0 0
    %4713 = vmatpush1.bf16.msra.mxu0 0
    %4714 = vmatprep.subr.bf16.mxu0 0
    %4715 = vmatpush1.bf16.msra.mxu0 0
    %4716 = vmatprep.subr.bf16.mxu0 0
    %4717 = vmatpush1.bf16.msra.mxu0 0
    %4718 = vmatprep.subr.bf16.mxu0 0
    %4719 = vmatpush1.bf16.msra.mxu0 0
    %4720 = vmatprep.subr.bf16.mxu0 0
    %4721 = vmatpush1.bf16.msra.mxu0 0
    %4722 = vmatprep.subr.bf16.mxu0 0
    %4723 = vmatpush1.bf16.msra.mxu0 0
    %4724 = vmatprep.mubr.bf16.mxu0 0
    %4725 = vmatmul.mubr.bf16.gmra.mrb[0].mxu0 %v4687
    %v4726 = vpop.f32.mrb[0].mxu0
    %v4727 = vadd.f32 0.0, %v4726
    %v4728 = vpop.f32.mrb[0].mxu0
    %v4729 = vpop.f32.mrb[0].mxu0
    %v4730 = vadd.f32 0.0, %v4729
    %v4731 = vpop.f32.mrb[0].mxu0
    %4732 = vmatprep.mubr.bf16.mxu0 0
    %4733 = vmatmul.mubr.bf16.gmra.mrb[0].mxu0 %v4690
    %v4734 = vpop.f32.mrb[0].mxu0
    %v4735 = vadd.f32 0.0, %v4734
    %v4736 = vpop.f32.mrb[0].mxu0
    %v4737 = vpop.f32.mrb[0].mxu0
    %v4738 = vadd.f32 0.0, %v4737
    %v4739 = vpop.f32.mrb[0].mxu0
    %4740 = vdwg.mxu0
    %v4741 = vadd.f32 %v4167, %v4727
    %v4742 = vadd.f32 %v4168, %v4730
    %v4743 = vadd.f32 %v4169, %v4735
    %v4744 = vadd.f32 %v4170, %v4738
    %v4746 = vlaneseq
    %v4747 = vshrl.u32 %v4746, 7
    %v4748 = vsub.s32 0, %v4747
    %v4749 = vrot.slane %v3380, %v4748
    %v4751 = vadd.f32 %v4741, %v4749
    %v4752 = vadd.f32 %v4742, %v4749
    %v4753 = vadd.f32 %v4743, %v4749
    %v4754 = vadd.f32 %v4744, %v4749
    %v4755 = vsel %vm176, %v4252, 0.0
    %4756 = vadd.xlane.f32.xlu0 %v4755
    %v4757 = vpop.xlane.xlu0 %4756
    %v4758 = vsel %vm176, %v4253, 0.0
    %4759 = vadd.xlane.f32.xlu0 %v4758
    %v4760 = vpop.xlane.xlu0 %4759
    %v4761 = vsel %vm176, %v4254, 0.0
    %4762 = vadd.xlane.f32.xlu0 %v4761
    %v4763 = vpop.xlane.xlu0 %4762
    %v4764 = vsel %vm176, %v4255, 0.0
    %4765 = vadd.xlane.f32.xlu0 %v4764
    %v4766 = vpop.xlane.xlu0 %4765
    %v4767 = vmul.f32 %v4757, %v180
    %v4768 = vmul.f32 %v4760, %v180
    %v4769 = vmul.f32 %v4763, %v180
    %v4770 = vmul.f32 %v4766, %v180
    %v4771 = vsub.f32 %v4252, %v4767
    %v4772 = vsub.f32 %v4253, %v4768
    %v4773 = vsub.f32 %v4254, %v4769
    %v4774 = vsub.f32 %v4255, %v4770
    %v4775 = vmul.f32 %v4771, %v4771
    %v4776 = vmul.f32 %v4772, %v4772
    %v4777 = vmul.f32 %v4773, %v4773
    %v4778 = vmul.f32 %v4774, %v4774
    %v4779 = vsel %vm176, %v4775, 0.0
    %4780 = vadd.xlane.f32.xlu0 %v4779
    %v4781 = vpop.xlane.xlu0 %4780
    %v4782 = vsel %vm176, %v4776, 0.0
    %4783 = vadd.xlane.f32.xlu0 %v4782
    %v4784 = vpop.xlane.xlu0 %4783
    %v4785 = vsel %vm176, %v4777, 0.0
    %4786 = vadd.xlane.f32.xlu0 %v4785
    %v4787 = vpop.xlane.xlu0 %4786
    %v4788 = vsel %vm176, %v4778, 0.0
    %4789 = vadd.xlane.f32.xlu0 %v4788
    %v4790 = vpop.xlane.xlu0 %4789
    %v4791 = vmul.f32 %v4781, %v180
    %v4792 = vmul.f32 %v4784, %v180
    %v4793 = vmul.f32 %v4787, %v180
    %v4794 = vmul.f32 %v4790, %v180
    %v4795 = vadd.f32 %v4791, 1e-05
    %v4796 = vadd.f32 %v4792, 1e-05
    %v4797 = vadd.f32 %v4793, 1e-05
    %v4798 = vadd.f32 %v4794, 1e-05
    %v4799 = vrsqrt.pop %v4795
    %v4800 = vrsqrt.pop %v4796
    %v4801 = vrsqrt.pop %v4797
    %v4802 = vrsqrt.pop %v4798
    %v4803 = vmul.f32 %v4771, %v4799
    %v4804 = vmul.f32 %v4772, %v4800
    %v4805 = vmul.f32 %v4773, %v4801
    %v4806 = vmul.f32 %v4774, %v4802
    %v4807 = vmul.f32 %v4803, %v4567
    %v4808 = vmul.f32 %v4804, %v4567
    %v4809 = vmul.f32 %v4805, %v4567
    %v4810 = vmul.f32 %v4806, %v4567
    %v4811 = vadd.f32 %v4807, %v4577
    %v4812 = vadd.f32 %v4808, %v4577
    %v4813 = vadd.f32 %v4809, %v4577
    %v4814 = vadd.f32 %v4810, %v4577
    %v4815 = vpack.c.bf16 %v4812, %v4811
    %v4816 = vpack.c.bf16 %v4814, %v4813
    %v4818 = vsel %vm176, %v4815, 0
    %v4821 = vsel %vm176, %v4816, 0
    %4823 = vmatprep.subr.bf16.mxu0 0
    %4824 = vmatpush1.bf16.msra.mxu0 %v4595
    %4825 = vmatprep.subr.bf16.mxu0 0
    %4826 = vmatpush1.bf16.msra.mxu0 0
    %4827 = vmatprep.subr.bf16.mxu0 0
    %4828 = vmatpush1.bf16.msra.mxu0 0
    %4829 = vmatprep.subr.bf16.mxu0 0
    %4830 = vmatpush1.bf16.msra.mxu0 0
    %4831 = vmatprep.subr.bf16.mxu0 0
    %4832 = vmatpush1.bf16.msra.mxu0 0
    %4833 = vmatprep.subr.bf16.mxu0 0
    %4834 = vmatpush1.bf16.msra.mxu0 0
    %4835 = vmatprep.subr.bf16.mxu0 0
    %4836 = vmatpush1.bf16.msra.mxu0 0
    %4837 = vmatprep.subr.bf16.mxu0 0
    %4838 = vmatpush1.bf16.msra.mxu0 0
    %4839 = vmatprep.subr.bf16.mxu0 0
    %4840 = vmatpush1.bf16.msra.mxu0 0
    %4841 = vmatprep.subr.bf16.mxu0 0
    %4842 = vmatpush1.bf16.msra.mxu0 0
    %4843 = vmatprep.subr.bf16.mxu0 0
    %4844 = vmatpush1.bf16.msra.mxu0 0
    %4845 = vmatprep.subr.bf16.mxu0 0
    %4846 = vmatpush1.bf16.msra.mxu0 0
    %4847 = vmatprep.subr.bf16.mxu0 0
    %4848 = vmatpush1.bf16.msra.mxu0 0
    %4849 = vmatprep.subr.bf16.mxu0 0
    %4850 = vmatpush1.bf16.msra.mxu0 0
    %4851 = vmatprep.subr.bf16.mxu0 0
    %4852 = vmatpush1.bf16.msra.mxu0 0
    %4853 = vmatprep.subr.bf16.mxu0 0
    %4854 = vmatpush1.bf16.msra.mxu0 0
    %4855 = vmatprep.mubr.bf16.mxu0 0
    %4856 = vmatmul.mubr.bf16.gmra.mrb[0].mxu0 %v4818
    %v4857 = vpop.f32.mrb[0].mxu0
    %v4858 = vadd.f32 %v4589, %v4857
    %v4859 = vpop.f32.mrb[0].mxu0
    %v4860 = vpop.f32.mrb[0].mxu0
    %v4861 = vadd.f32 %v4589, %v4860
    %v4862 = vpop.f32.mrb[0].mxu0
    %4863 = vmatprep.mubr.bf16.mxu0 0
    %4864 = vmatmul.mubr.bf16.gmra.mrb[0].mxu0 %v4821
    %v4865 = vpop.f32.mrb[0].mxu0
    %v4866 = vadd.f32 %v4589, %v4865
    %v4867 = vpop.f32.mrb[0].mxu0
    %v4868 = vpop.f32.mrb[0].mxu0
    %v4869 = vadd.f32 %v4589, %v4868
    %v4870 = vpop.f32.mrb[0].mxu0
    %4871 = vdwg.mxu0
    %v4872 = vmul.f32 %v4858, 0.5
    %v4873 = vmul.f32 %v4861, 0.5
    %v4874 = vmul.f32 %v4866, 0.5
    %v4875 = vmul.f32 %v4869, 0.5
    %v4876 = vmul.f32 %v4858, 0.70710677
    %v4877 = vmul.f32 %v4861, 0.70710677
    %v4878 = vmul.f32 %v4866, 0.70710677
    %v4879 = vmul.f32 %v4869, 0.70710677
    %v4880 = verf.f32.pop %v4876
    %v4881 = verf.f32.pop %v4877
    %v4882 = verf.f32.pop %v4878
    %v4883 = verf.f32.pop %v4879
    %v4884 = vadd.f32 %v4880, 1.0
    %v4885 = vadd.f32 %v4881, 1.0
    %v4886 = vadd.f32 %v4882, 1.0
    %v4887 = vadd.f32 %v4883, 1.0
    %v4888 = vmul.f32 %v4872, %v4884
    %v4889 = vmul.f32 %v4873, %v4885
    %v4890 = vmul.f32 %v4874, %v4886
    %v4891 = vmul.f32 %v4875, %v4887
    %v4892 = vpack.c.bf16 %v4889, %v4888
    %v4893 = vpack.c.bf16 %v4891, %v4890
    %v4895 = vsel %vm1093, %v4892, 0
    %v4898 = vsel %vm1093, %v4893, 0
    %4900 = vmatprep.subr.bf16.mxu0 0
    %4901 = vmatpush1.bf16.msra.mxu0 %v4682
    %4902 = vmatprep.subr.bf16.mxu0 0
    %4903 = vmatpush1.bf16.msra.mxu0 %v4683
    %4904 = vmatprep.subr.bf16.mxu0 0
    %4905 = vmatpush1.bf16.msra.mxu0 0
    %4906 = vmatprep.subr.bf16.mxu0 0
    %4907 = vmatpush1.bf16.msra.mxu0 0
    %4908 = vmatprep.subr.bf16.mxu0 0
    %4909 = vmatpush1.bf16.msra.mxu0 0
    %4910 = vmatprep.subr.bf16.mxu0 0
    %4911 = vmatpush1.bf16.msra.mxu0 0
    %4912 = vmatprep.subr.bf16.mxu0 0
    %4913 = vmatpush1.bf16.msra.mxu0 0
    %4914 = vmatprep.subr.bf16.mxu0 0
    %4915 = vmatpush1.bf16.msra.mxu0 0
    %4916 = vmatprep.subr.bf16.mxu0 0
    %4917 = vmatpush1.bf16.msra.mxu0 0
    %4918 = vmatprep.subr.bf16.mxu0 0
    %4919 = vmatpush1.bf16.msra.mxu0 0
    %4920 = vmatprep.subr.bf16.mxu0 0
    %4921 = vmatpush1.bf16.msra.mxu0 0
    %4922 = vmatprep.subr.bf16.mxu0 0
    %4923 = vmatpush1.bf16.msra.mxu0 0
    %4924 = vmatprep.subr.bf16.mxu0 0
    %4925 = vmatpush1.bf16.msra.mxu0 0
    %4926 = vmatprep.subr.bf16.mxu0 0
    %4927 = vmatpush1.bf16.msra.mxu0 0
    %4928 = vmatprep.subr.bf16.mxu0 0
    %4929 = vmatpush1.bf16.msra.mxu0 0
    %4930 = vmatprep.subr.bf16.mxu0 0
    %4931 = vmatpush1.bf16.msra.mxu0 0
    %4932 = vmatprep.mubr.bf16.mxu0 0
    %4933 = vmatmul.mubr.bf16.gmra.mrb[0].mxu0 %v4895
    %v4934 = vpop.f32.mrb[0].mxu0
    %v4935 = vadd.f32 0.0, %v4934
    %v4936 = vpop.f32.mrb[0].mxu0
    %v4937 = vpop.f32.mrb[0].mxu0
    %v4938 = vadd.f32 0.0, %v4937
    %v4939 = vpop.f32.mrb[0].mxu0
    %4940 = vmatprep.mubr.bf16.mxu0 0
    %4941 = vmatmul.mubr.bf16.gmra.mrb[0].mxu0 %v4898
    %v4942 = vpop.f32.mrb[0].mxu0
    %v4943 = vadd.f32 0.0, %v4942
    %v4944 = vpop.f32.mrb[0].mxu0
    %v4945 = vpop.f32.mrb[0].mxu0
    %v4946 = vadd.f32 0.0, %v4945
    %v4947 = vpop.f32.mrb[0].mxu0
    %4948 = vdwg.mxu0
    %v4949 = vadd.f32 %v4252, %v4935
    %v4950 = vadd.f32 %v4253, %v4938
    %v4951 = vadd.f32 %v4254, %v4943
    %v4952 = vadd.f32 %v4255, %v4946
    %v4953 = vadd.f32 %v4949, %v4749
    %v4954 = vadd.f32 %v4950, %v4749
    %v4955 = vadd.f32 %v4951, %v4749
    %v4956 = vadd.f32 %v4952, %v4749
    %v4957 = vsel %vm176, %v4337, 0.0
    %4958 = vadd.xlane.f32.xlu0 %v4957
    %v4959 = vpop.xlane.xlu0 %4958
    %v4960 = vsel %vm176, %v4338, 0.0
    %4961 = vadd.xlane.f32.xlu0 %v4960
    %v4962 = vpop.xlane.xlu0 %4961
    %v4963 = vsel %vm176, %v4339, 0.0
    %4964 = vadd.xlane.f32.xlu0 %v4963
    %v4965 = vpop.xlane.xlu0 %4964
    %v4966 = vsel %vm176, %v4340, 0.0
    %4967 = vadd.xlane.f32.xlu0 %v4966
    %v4968 = vpop.xlane.xlu0 %4967
    %v4969 = vmul.f32 %v4959, %v180
    %v4970 = vmul.f32 %v4962, %v180
    %v4971 = vmul.f32 %v4965, %v180
    %v4972 = vmul.f32 %v4968, %v180
    %v4973 = vsub.f32 %v4337, %v4969
    %v4974 = vsub.f32 %v4338, %v4970
    %v4975 = vsub.f32 %v4339, %v4971
    %v4976 = vsub.f32 %v4340, %v4972
    %v4977 = vmul.f32 %v4973, %v4973
    %v4978 = vmul.f32 %v4974, %v4974
    %v4979 = vmul.f32 %v4975, %v4975
    %v4980 = vmul.f32 %v4976, %v4976
    %v4981 = vsel %vm176, %v4977, 0.0
    %4982 = vadd.xlane.f32.xlu0 %v4981
    %v4983 = vpop.xlane.xlu0 %4982
    %v4984 = vsel %vm176, %v4978, 0.0
    %4985 = vadd.xlane.f32.xlu0 %v4984
    %v4986 = vpop.xlane.xlu0 %4985
    %v4987 = vsel %vm176, %v4979, 0.0
    %4988 = vadd.xlane.f32.xlu0 %v4987
    %v4989 = vpop.xlane.xlu0 %4988
    %v4990 = vsel %vm176, %v4980, 0.0
    %4991 = vadd.xlane.f32.xlu0 %v4990
    %v4992 = vpop.xlane.xlu0 %4991
    %v4993 = vmul.f32 %v4983, %v180
    %v4994 = vmul.f32 %v4986, %v180
    %v4995 = vmul.f32 %v4989, %v180
    %v4996 = vmul.f32 %v4992, %v180
    %v4997 = vadd.f32 %v4993, 1e-05
    %v4998 = vadd.f32 %v4994, 1e-05
    %v4999 = vadd.f32 %v4995, 1e-05
    %v5000 = vadd.f32 %v4996, 1e-05
    %v5001 = vrsqrt.pop %v4997
    %v5002 = vrsqrt.pop %v4998
    %v5003 = vrsqrt.pop %v4999
    %v5004 = vrsqrt.pop %v5000
    %v5005 = vmul.f32 %v4973, %v5001
    %v5006 = vmul.f32 %v4974, %v5002
    %v5007 = vmul.f32 %v4975, %v5003
    %v5008 = vmul.f32 %v4976, %v5004
    %v5009 = vmul.f32 %v5005, %v4567
    %v5010 = vmul.f32 %v5006, %v4567
    %v5011 = vmul.f32 %v5007, %v4567
    %v5012 = vmul.f32 %v5008, %v4567
    %v5013 = vadd.f32 %v5009, %v4577
    %v5014 = vadd.f32 %v5010, %v4577
    %v5015 = vadd.f32 %v5011, %v4577
    %v5016 = vadd.f32 %v5012, %v4577
    %v5017 = vpack.c.bf16 %v5014, %v5013
    %v5018 = vpack.c.bf16 %v5016, %v5015
    %v5020 = vsel %vm176, %v5017, 0
    %v5023 = vsel %vm176, %v5018, 0
    %5025 = vmatprep.subr.bf16.mxu0 0
    %5026 = vmatpush1.bf16.msra.mxu0 %v4595
    %5027 = vmatprep.subr.bf16.mxu0 0
    %5028 = vmatpush1.bf16.msra.mxu0 0
    %5029 = vmatprep.subr.bf16.mxu0 0
    %5030 = vmatpush1.bf16.msra.mxu0 0
    %5031 = vmatprep.subr.bf16.mxu0 0
    %5032 = vmatpush1.bf16.msra.mxu0 0
    %5033 = vmatprep.subr.bf16.mxu0 0
    %5034 = vmatpush1.bf16.msra.mxu0 0
    %5035 = vmatprep.subr.bf16.mxu0 0
    %5036 = vmatpush1.bf16.msra.mxu0 0
    %5037 = vmatprep.subr.bf16.mxu0 0
    %5038 = vmatpush1.bf16.msra.mxu0 0
    %5039 = vmatprep.subr.bf16.mxu0 0
    %5040 = vmatpush1.bf16.msra.mxu0 0
    %5041 = vmatprep.subr.bf16.mxu0 0
    %5042 = vmatpush1.bf16.msra.mxu0 0
    %5043 = vmatprep.subr.bf16.mxu0 0
    %5044 = vmatpush1.bf16.msra.mxu0 0
    %5045 = vmatprep.subr.bf16.mxu0 0
    %5046 = vmatpush1.bf16.msra.mxu0 0
    %5047 = vmatprep.subr.bf16.mxu0 0
    %5048 = vmatpush1.bf16.msra.mxu0 0
    %5049 = vmatprep.subr.bf16.mxu0 0
    %5050 = vmatpush1.bf16.msra.mxu0 0
    %5051 = vmatprep.subr.bf16.mxu0 0
    %5052 = vmatpush1.bf16.msra.mxu0 0
    %5053 = vmatprep.subr.bf16.mxu0 0
    %5054 = vmatpush1.bf16.msra.mxu0 0
    %5055 = vmatprep.subr.bf16.mxu0 0
    %5056 = vmatpush1.bf16.msra.mxu0 0
    %5057 = vmatprep.mubr.bf16.mxu0 0
    %5058 = vmatmul.mubr.bf16.gmra.mrb[0].mxu0 %v5020
    %v5059 = vpop.f32.mrb[0].mxu0
    %v5060 = vadd.f32 %v4589, %v5059
    %v5061 = vpop.f32.mrb[0].mxu0
    %v5062 = vpop.f32.mrb[0].mxu0
    %v5063 = vadd.f32 %v4589, %v5062
    %v5064 = vpop.f32.mrb[0].mxu0
    %5065 = vmatprep.mubr.bf16.mxu0 0
    %5066 = vmatmul.mubr.bf16.gmra.mrb[0].mxu0 %v5023
    %v5067 = vpop.f32.mrb[0].mxu0
    %v5068 = vadd.f32 %v4589, %v5067
    %v5069 = vpop.f32.mrb[0].mxu0
    %v5070 = vpop.f32.mrb[0].mxu0
    %v5071 = vadd.f32 %v4589, %v5070
    %v5072 = vpop.f32.mrb[0].mxu0
    %5073 = vdwg.mxu0
    %v5074 = vmul.f32 %v5060, 0.5
    %v5075 = vmul.f32 %v5063, 0.5
    %v5076 = vmul.f32 %v5068, 0.5
    %v5077 = vmul.f32 %v5071, 0.5
    %v5078 = vmul.f32 %v5060, 0.70710677
    %v5079 = vmul.f32 %v5063, 0.70710677
    %v5080 = vmul.f32 %v5068, 0.70710677
    %v5081 = vmul.f32 %v5071, 0.70710677
    %v5082 = verf.f32.pop %v5078
    %v5083 = verf.f32.pop %v5079
    %v5084 = verf.f32.pop %v5080
    %v5085 = verf.f32.pop %v5081
    %v5086 = vadd.f32 %v5082, 1.0
    %v5087 = vadd.f32 %v5083, 1.0
    %v5088 = vadd.f32 %v5084, 1.0
    %v5089 = vadd.f32 %v5085, 1.0
    %v5090 = vmul.f32 %v5074, %v5086
    %v5091 = vmul.f32 %v5075, %v5087
    %v5092 = vmul.f32 %v5076, %v5088
    %v5093 = vmul.f32 %v5077, %v5089
    %v5094 = vpack.c.bf16 %v5091, %v5090
    %v5095 = vpack.c.bf16 %v5093, %v5092
    %v5097 = vsel %vm1093, %v5094, 0
    %v5100 = vsel %vm1093, %v5095, 0
    %5102 = vmatprep.subr.bf16.mxu0 0
    %5103 = vmatpush1.bf16.msra.mxu0 %v4682
    %5104 = vmatprep.subr.bf16.mxu0 0
    %5105 = vmatpush1.bf16.msra.mxu0 %v4683
    %5106 = vmatprep.subr.bf16.mxu0 0
    %5107 = vmatpush1.bf16.msra.mxu0 0
    %5108 = vmatprep.subr.bf16.mxu0 0
    %5109 = vmatpush1.bf16.msra.mxu0 0
    %5110 = vmatprep.subr.bf16.mxu0 0
    %5111 = vmatpush1.bf16.msra.mxu0 0
    %5112 = vmatprep.subr.bf16.mxu0 0
    %5113 = vmatpush1.bf16.msra.mxu0 0
    %5114 = vmatprep.subr.bf16.mxu0 0
    %5115 = vmatpush1.bf16.msra.mxu0 0
    %5116 = vmatprep.subr.bf16.mxu0 0
    %5117 = vmatpush1.bf16.msra.mxu0 0
    %5118 = vmatprep.subr.bf16.mxu0 0
    %5119 = vmatpush1.bf16.msra.mxu0 0
    %5120 = vmatprep.subr.bf16.mxu0 0
    %5121 = vmatpush1.bf16.msra.mxu0 0
    %5122 = vmatprep.subr.bf16.mxu0 0
    %5123 = vmatpush1.bf16.msra.mxu0 0
    %5124 = vmatprep.subr.bf16.mxu0 0
    %5125 = vmatpush1.bf16.msra.mxu0 0
    %5126 = vmatprep.subr.bf16.mxu0 0
    %5127 = vmatpush1.bf16.msra.mxu0 0
    %5128 = vmatprep.subr.bf16.mxu0 0
    %5129 = vmatpush1.bf16.msra.mxu0 0
    %5130 = vmatprep.subr.bf16.mxu0 0
    %5131 = vmatpush1.bf16.msra.mxu0 0
    %5132 = vmatprep.subr.bf16.mxu0 0
    %5133 = vmatpush1.bf16.msra.mxu0 0
    %5134 = vmatprep.mubr.bf16.mxu0 0
    %5135 = vmatmul.mubr.bf16.gmra.mrb[0].mxu0 %v5097
    %v5136 = vpop.f32.mrb[0].mxu0
    %v5137 = vadd.f32 0.0, %v5136
    %v5138 = vpop.f32.mrb[0].mxu0
    %v5139 = vpop.f32.mrb[0].mxu0
    %v5140 = vadd.f32 0.0, %v5139
    %v5141 = vpop.f32.mrb[0].mxu0
    %5142 = vmatprep.mubr.bf16.mxu0 0
    %5143 = vmatmul.mubr.bf16.gmra.mrb[0].mxu0 %v5100
    %v5144 = vpop.f32.mrb[0].mxu0
    %v5145 = vadd.f32 0.0, %v5144
    %v5146 = vpop.f32.mrb[0].mxu0
    %v5147 = vpop.f32.mrb[0].mxu0
    %v5148 = vadd.f32 0.0, %v5147
    %v5149 = vpop.f32.mrb[0].mxu0
    %5150 = vdwg.mxu0
    %v5151 = vadd.f32 %v4337, %v5137
    %v5152 = vadd.f32 %v4338, %v5140
    %v5153 = vadd.f32 %v4339, %v5145
    %v5154 = vadd.f32 %v4340, %v5148
    %v5155 = vadd.f32 %v5151, %v4749
    %v5156 = vadd.f32 %v5152, %v4749
    %v5157 = vadd.f32 %v5153, %v4749
    %v5158 = vadd.f32 %v5154, %v4749
    %v5159 = vsel %vm176, %v4422, 0.0
    %5160 = vadd.xlane.f32.xlu0 %v5159
    %v5161 = vpop.xlane.xlu0 %5160
    %v5162 = vsel %vm176, %v4423, 0.0
    %5163 = vadd.xlane.f32.xlu0 %v5162
    %v5164 = vpop.xlane.xlu0 %5163
    %v5165 = vsel %vm176, %v4424, 0.0
    %5166 = vadd.xlane.f32.xlu0 %v5165
    %v5167 = vpop.xlane.xlu0 %5166
    %v5168 = vsel %vm176, %v4425, 0.0
    %5169 = vadd.xlane.f32.xlu0 %v5168
    %v5170 = vpop.xlane.xlu0 %5169
    %v5171 = vmul.f32 %v5161, %v180
    %v5172 = vmul.f32 %v5164, %v180
    %v5173 = vmul.f32 %v5167, %v180
    %v5174 = vmul.f32 %v5170, %v180
    %v5175 = vsub.f32 %v4422, %v5171
    %v5176 = vsub.f32 %v4423, %v5172
    %v5177 = vsub.f32 %v4424, %v5173
    %v5178 = vsub.f32 %v4425, %v5174
    %v5179 = vmul.f32 %v5175, %v5175
    %v5180 = vmul.f32 %v5176, %v5176
    %v5181 = vmul.f32 %v5177, %v5177
    %v5182 = vmul.f32 %v5178, %v5178
    %v5183 = vsel %vm176, %v5179, 0.0
    %5184 = vadd.xlane.f32.xlu0 %v5183
    %v5185 = vpop.xlane.xlu0 %5184
    %v5186 = vsel %vm176, %v5180, 0.0
    %5187 = vadd.xlane.f32.xlu0 %v5186
    %v5188 = vpop.xlane.xlu0 %5187
    %v5189 = vsel %vm176, %v5181, 0.0
    %5190 = vadd.xlane.f32.xlu0 %v5189
    %v5191 = vpop.xlane.xlu0 %5190
    %v5192 = vsel %vm176, %v5182, 0.0
    %5193 = vadd.xlane.f32.xlu0 %v5192
    %v5194 = vpop.xlane.xlu0 %5193
    %v5195 = vmul.f32 %v5185, %v180
    %v5196 = vmul.f32 %v5188, %v180
    %v5197 = vmul.f32 %v5191, %v180
    %v5198 = vmul.f32 %v5194, %v180
    %v5199 = vadd.f32 %v5195, 1e-05
    %v5200 = vadd.f32 %v5196, 1e-05
    %v5201 = vadd.f32 %v5197, 1e-05
    %v5202 = vadd.f32 %v5198, 1e-05
    %v5203 = vrsqrt.pop %v5199
    %v5204 = vrsqrt.pop %v5200
    %v5205 = vrsqrt.pop %v5201
    %v5206 = vrsqrt.pop %v5202
    %v5207 = vmul.f32 %v5175, %v5203
    %v5208 = vmul.f32 %v5176, %v5204
    %v5209 = vmul.f32 %v5177, %v5205
    %v5210 = vmul.f32 %v5178, %v5206
    %v5211 = vmul.f32 %v5207, %v4567
    %v5212 = vmul.f32 %v5208, %v4567
    %v5213 = vmul.f32 %v5209, %v4567
    %v5214 = vmul.f32 %v5210, %v4567
    %v5215 = vadd.f32 %v5211, %v4577
    %v5216 = vadd.f32 %v5212, %v4577
    %v5217 = vadd.f32 %v5213, %v4577
    %v5218 = vadd.f32 %v5214, %v4577
    %v5219 = vpack.c.bf16 %v5216, %v5215
    %v5220 = vpack.c.bf16 %v5218, %v5217
    %v5222 = vsel %vm176, %v5219, 0
    %v5225 = vsel %vm176, %v5220, 0
    %5227 = vmatprep.subr.bf16.mxu0 0
    %5228 = vmatpush1.bf16.msra.mxu0 %v4595
    %5229 = vmatprep.subr.bf16.mxu0 0
    %5230 = vmatpush1.bf16.msra.mxu0 0
    %5231 = vmatprep.subr.bf16.mxu0 0
    %5232 = vmatpush1.bf16.msra.mxu0 0
    %5233 = vmatprep.subr.bf16.mxu0 0
    %5234 = vmatpush1.bf16.msra.mxu0 0
    %5235 = vmatprep.subr.bf16.mxu0 0
    %5236 = vmatpush1.bf16.msra.mxu0 0
    %5237 = vmatprep.subr.bf16.mxu0 0
    %5238 = vmatpush1.bf16.msra.mxu0 0
    %5239 = vmatprep.subr.bf16.mxu0 0
    %5240 = vmatpush1.bf16.msra.mxu0 0
    %5241 = vmatprep.subr.bf16.mxu0 0
    %5242 = vmatpush1.bf16.msra.mxu0 0
    %5243 = vmatprep.subr.bf16.mxu0 0
    %5244 = vmatpush1.bf16.msra.mxu0 0
    %5245 = vmatprep.subr.bf16.mxu0 0
    %5246 = vmatpush1.bf16.msra.mxu0 0
    %5247 = vmatprep.subr.bf16.mxu0 0
    %5248 = vmatpush1.bf16.msra.mxu0 0
    %5249 = vmatprep.subr.bf16.mxu0 0
    %5250 = vmatpush1.bf16.msra.mxu0 0
    %5251 = vmatprep.subr.bf16.mxu0 0
    %5252 = vmatpush1.bf16.msra.mxu0 0
    %5253 = vmatprep.subr.bf16.mxu0 0
    %5254 = vmatpush1.bf16.msra.mxu0 0
    %5255 = vmatprep.subr.bf16.mxu0 0
    %5256 = vmatpush1.bf16.msra.mxu0 0
    %5257 = vmatprep.subr.bf16.mxu0 0
    %5258 = vmatpush1.bf16.msra.mxu0 0
    %5259 = vmatprep.mubr.bf16.mxu0 0
    %5260 = vmatmul.mubr.bf16.gmra.mrb[0].mxu0 %v5222
    %v5261 = vpop.f32.mrb[0].mxu0
    %v5262 = vadd.f32 %v4589, %v5261
    %v5263 = vpop.f32.mrb[0].mxu0
    %v5264 = vpop.f32.mrb[0].mxu0
    %v5265 = vadd.f32 %v4589, %v5264
    %v5266 = vpop.f32.mrb[0].mxu0
    %5267 = vmatprep.mubr.bf16.mxu0 0
    %5268 = vmatmul.mubr.bf16.gmra.mrb[0].mxu0 %v5225
    %v5269 = vpop.f32.mrb[0].mxu0
    %v5270 = vadd.f32 %v4589, %v5269
    %v5271 = vpop.f32.mrb[0].mxu0
    %v5272 = vpop.f32.mrb[0].mxu0
    %v5273 = vadd.f32 %v4589, %v5272
    %v5274 = vpop.f32.mrb[0].mxu0
    %5275 = vdwg.mxu0
    %v5276 = vmul.f32 %v5262, 0.5
    %v5277 = vmul.f32 %v5265, 0.5
    %v5278 = vmul.f32 %v5270, 0.5
    %v5279 = vmul.f32 %v5273, 0.5
    %v5280 = vmul.f32 %v5262, 0.70710677
    %v5281 = vmul.f32 %v5265, 0.70710677
    %v5282 = vmul.f32 %v5270, 0.70710677
    %v5283 = vmul.f32 %v5273, 0.70710677
    %v5284 = verf.f32.pop %v5280
    %v5285 = verf.f32.pop %v5281
    %v5286 = verf.f32.pop %v5282
    %v5287 = verf.f32.pop %v5283
    %v5288 = vadd.f32 %v5284, 1.0
    %v5289 = vadd.f32 %v5285, 1.0
    %v5290 = vadd.f32 %v5286, 1.0
    %v5291 = vadd.f32 %v5287, 1.0
    %v5292 = vmul.f32 %v5276, %v5288
    %v5293 = vmul.f32 %v5277, %v5289
    %v5294 = vmul.f32 %v5278, %v5290
    %v5295 = vmul.f32 %v5279, %v5291
    %v5296 = vpack.c.bf16 %v5293, %v5292
    %v5297 = vpack.c.bf16 %v5295, %v5294
    %v5299 = vsel %vm1093, %v5296, 0
    %v5302 = vsel %vm1093, %v5297, 0
    %5304 = vmatprep.subr.bf16.mxu0 0
    %5305 = vmatpush1.bf16.msra.mxu0 %v4682
    %5306 = vmatprep.subr.bf16.mxu0 0
    %5307 = vmatpush1.bf16.msra.mxu0 %v4683
    %5308 = vmatprep.subr.bf16.mxu0 0
    %5309 = vmatpush1.bf16.msra.mxu0 0
    %5310 = vmatprep.subr.bf16.mxu0 0
    %5311 = vmatpush1.bf16.msra.mxu0 0
    %5312 = vmatprep.subr.bf16.mxu0 0
    %5313 = vmatpush1.bf16.msra.mxu0 0
    %5314 = vmatprep.subr.bf16.mxu0 0
    %5315 = vmatpush1.bf16.msra.mxu0 0
    %5316 = vmatprep.subr.bf16.mxu0 0
    %5317 = vmatpush1.bf16.msra.mxu0 0
    %5318 = vmatprep.subr.bf16.mxu0 0
    %5319 = vmatpush1.bf16.msra.mxu0 0
    %5320 = vmatprep.subr.bf16.mxu0 0
    %5321 = vmatpush1.bf16.msra.mxu0 0
    %5322 = vmatprep.subr.bf16.mxu0 0
    %5323 = vmatpush1.bf16.msra.mxu0 0
    %5324 = vmatprep.subr.bf16.mxu0 0
    %5325 = vmatpush1.bf16.msra.mxu0 0
    %5326 = vmatprep.subr.bf16.mxu0 0
    %5327 = vmatpush1.bf16.msra.mxu0 0
    %5328 = vmatprep.subr.bf16.mxu0 0
    %5329 = vmatpush1.bf16.msra.mxu0 0
    %5330 = vmatprep.subr.bf16.mxu0 0
    %5331 = vmatpush1.bf16.msra.mxu0 0
    %5332 = vmatprep.subr.bf16.mxu0 0
    %5333 = vmatpush1.bf16.msra.mxu0 0
    %5334 = vmatprep.subr.bf16.mxu0 0
    %5335 = vmatpush1.bf16.msra.mxu0 0
    %5336 = vmatprep.mubr.bf16.mxu0 0
    %5337 = vmatmul.mubr.bf16.gmra.mrb[0].mxu0 %v5299
    %v5338 = vpop.f32.mrb[0].mxu0
    %v5339 = vadd.f32 0.0, %v5338
    %v5340 = vpop.f32.mrb[0].mxu0
    %v5341 = vpop.f32.mrb[0].mxu0
    %v5342 = vadd.f32 0.0, %v5341
    %v5343 = vpop.f32.mrb[0].mxu0
    %5344 = vmatprep.mubr.bf16.mxu0 0
    %5345 = vmatmul.mubr.bf16.gmra.mrb[0].mxu0 %v5302
    %v5346 = vpop.f32.mrb[0].mxu0
    %v5347 = vadd.f32 0.0, %v5346
    %v5348 = vpop.f32.mrb[0].mxu0
    %v5349 = vpop.f32.mrb[0].mxu0
    %v5350 = vadd.f32 0.0, %v5349
    %v5351 = vpop.f32.mrb[0].mxu0
    %5352 = vdwg.mxu0
    %v5353 = vadd.f32 %v4422, %v5339
    %v5354 = vadd.f32 %v4423, %v5342
    %v5355 = vadd.f32 %v4424, %v5347
    %v5356 = vadd.f32 %v4425, %v5350
    %v5357 = vadd.f32 %v5353, %v4749
    %v5358 = vadd.f32 %v5354, %v4749
    %v5359 = vadd.f32 %v5355, %v4749
    %v5360 = vadd.f32 %v5356, %v4749
    %v5361 = vsel %vm176, %v4507, 0.0
    %5362 = vadd.xlane.f32.xlu0 %v5361
    %v5363 = vpop.xlane.xlu0 %5362
    %v5364 = vsel %vm176, %v4508, 0.0
    %5365 = vadd.xlane.f32.xlu0 %v5364
    %v5366 = vpop.xlane.xlu0 %5365
    %v5367 = vsel %vm176, %v4509, 0.0
    %5368 = vadd.xlane.f32.xlu0 %v5367
    %v5369 = vpop.xlane.xlu0 %5368
    %v5370 = vsel %vm176, %v4510, 0.0
    %5371 = vadd.xlane.f32.xlu0 %v5370
    %v5372 = vpop.xlane.xlu0 %5371
    %v5373 = vmul.f32 %v5363, %v180
    %v5374 = vmul.f32 %v5366, %v180
    %v5375 = vmul.f32 %v5369, %v180
    %v5376 = vmul.f32 %v5372, %v180
    %v5377 = vsub.f32 %v4507, %v5373
    %v5378 = vsub.f32 %v4508, %v5374
    %v5379 = vsub.f32 %v4509, %v5375
    %v5380 = vsub.f32 %v4510, %v5376
    %v5381 = vmul.f32 %v5377, %v5377
    %v5382 = vmul.f32 %v5378, %v5378
    %v5383 = vmul.f32 %v5379, %v5379
    %v5384 = vmul.f32 %v5380, %v5380
    %v5385 = vsel %vm176, %v5381, 0.0
    %5386 = vadd.xlane.f32.xlu0 %v5385
    %v5387 = vpop.xlane.xlu0 %5386
    %v5388 = vsel %vm176, %v5382, 0.0
    %5389 = vadd.xlane.f32.xlu0 %v5388
    %v5390 = vpop.xlane.xlu0 %5389
    %v5391 = vsel %vm176, %v5383, 0.0
    %5392 = vadd.xlane.f32.xlu0 %v5391
    %v5393 = vpop.xlane.xlu0 %5392
    %v5394 = vsel %vm176, %v5384, 0.0
    %5395 = vadd.xlane.f32.xlu0 %v5394
    %v5396 = vpop.xlane.xlu0 %5395
    %v5397 = vmul.f32 %v5387, %v180
    %v5398 = vmul.f32 %v5390, %v180
    %v5399 = vmul.f32 %v5393, %v180
    %v5400 = vmul.f32 %v5396, %v180
    %v5401 = vadd.f32 %v5397, 1e-05
    %v5402 = vadd.f32 %v5398, 1e-05
    %v5403 = vadd.f32 %v5399, 1e-05
    %v5404 = vadd.f32 %v5400, 1e-05
    %v5405 = vrsqrt.pop %v5401
    %v5406 = vrsqrt.pop %v5402
    %v5407 = vrsqrt.pop %v5403
    %v5408 = vrsqrt.pop %v5404
    %v5409 = vmul.f32 %v5377, %v5405
    %v5410 = vmul.f32 %v5378, %v5406
    %v5411 = vmul.f32 %v5379, %v5407
    %v5412 = vmul.f32 %v5380, %v5408
    %v5413 = vmul.f32 %v5409, %v4567
    %v5414 = vmul.f32 %v5410, %v4567
    %v5415 = vmul.f32 %v5411, %v4567
    %v5416 = vmul.f32 %v5412, %v4567
    %v5417 = vadd.f32 %v5413, %v4577
    %v5418 = vadd.f32 %v5414, %v4577
    %v5419 = vadd.f32 %v5415, %v4577
    %v5420 = vadd.f32 %v5416, %v4577
    %v5421 = vpack.c.bf16 %v5418, %v5417
    %v5422 = vpack.c.bf16 %v5420, %v5419
    %v5424 = vsel %vm176, %v5421, 0
    %v5427 = vsel %vm176, %v5422, 0
    %5429 = vmatprep.subr.bf16.mxu0 0
    %5430 = vmatpush1.bf16.msra.mxu0 %v4595
    %5431 = vmatprep.subr.bf16.mxu0 0
    %5432 = vmatpush1.bf16.msra.mxu0 0
    %5433 = vmatprep.subr.bf16.mxu0 0
    %5434 = vmatpush1.bf16.msra.mxu0 0
    %5435 = vmatprep.subr.bf16.mxu0 0
    %5436 = vmatpush1.bf16.msra.mxu0 0
    %5437 = vmatprep.subr.bf16.mxu0 0
    %5438 = vmatpush1.bf16.msra.mxu0 0
    %5439 = vmatprep.subr.bf16.mxu0 0
    %5440 = vmatpush1.bf16.msra.mxu0 0
    %5441 = vmatprep.subr.bf16.mxu0 0
    %5442 = vmatpush1.bf16.msra.mxu0 0
    %5443 = vmatprep.subr.bf16.mxu0 0
    %5444 = vmatpush1.bf16.msra.mxu0 0
    %5445 = vmatprep.subr.bf16.mxu0 0
    %5446 = vmatpush1.bf16.msra.mxu0 0
    %5447 = vmatprep.subr.bf16.mxu0 0
    %5448 = vmatpush1.bf16.msra.mxu0 0
    %5449 = vmatprep.subr.bf16.mxu0 0
    %5450 = vmatpush1.bf16.msra.mxu0 0
    %5451 = vmatprep.subr.bf16.mxu0 0
    %5452 = vmatpush1.bf16.msra.mxu0 0
    %5453 = vmatprep.subr.bf16.mxu0 0
    %5454 = vmatpush1.bf16.msra.mxu0 0
    %5455 = vmatprep.subr.bf16.mxu0 0
    %5456 = vmatpush1.bf16.msra.mxu0 0
    %5457 = vmatprep.subr.bf16.mxu0 0
    %5458 = vmatpush1.bf16.msra.mxu0 0
    %5459 = vmatprep.subr.bf16.mxu0 0
    %5460 = vmatpush1.bf16.msra.mxu0 0
    %5461 = vmatprep.mubr.bf16.mxu0 0
    %5462 = vmatmul.mubr.bf16.gmra.mrb[0].mxu0 %v5424
    %v5463 = vpop.f32.mrb[0].mxu0
    %v5464 = vadd.f32 %v4589, %v5463
    %v5465 = vpop.f32.mrb[0].mxu0
    %v5466 = vpop.f32.mrb[0].mxu0
    %v5467 = vadd.f32 %v4589, %v5466
    %v5468 = vpop.f32.mrb[0].mxu0
    %5469 = vmatprep.mubr.bf16.mxu0 0
    %5470 = vmatmul.mubr.bf16.gmra.mrb[0].mxu0 %v5427
    %v5471 = vpop.f32.mrb[0].mxu0
    %v5472 = vadd.f32 %v4589, %v5471
    %v5473 = vpop.f32.mrb[0].mxu0
    %v5474 = vpop.f32.mrb[0].mxu0
    %v5475 = vadd.f32 %v4589, %v5474
    %v5476 = vpop.f32.mrb[0].mxu0
    %5477 = vdwg.mxu0
    %v5478 = vmul.f32 %v5464, 0.5
    %v5479 = vmul.f32 %v5467, 0.5
    %v5480 = vmul.f32 %v5472, 0.5
    %v5481 = vmul.f32 %v5475, 0.5
    %v5482 = vmul.f32 %v5464, 0.70710677
    %v5483 = vmul.f32 %v5467, 0.70710677
    %v5484 = vmul.f32 %v5472, 0.70710677
    %v5485 = vmul.f32 %v5475, 0.70710677
    %v5486 = verf.f32.pop %v5482
    %v5487 = verf.f32.pop %v5483
    %v5488 = verf.f32.pop %v5484
    %v5489 = verf.f32.pop %v5485
    %v5490 = vadd.f32 %v5486, 1.0
    %v5491 = vadd.f32 %v5487, 1.0
    %v5492 = vadd.f32 %v5488, 1.0
    %v5493 = vadd.f32 %v5489, 1.0
    %v5494 = vmul.f32 %v5478, %v5490
    %v5495 = vmul.f32 %v5479, %v5491
    %v5496 = vmul.f32 %v5480, %v5492
    %v5497 = vmul.f32 %v5481, %v5493
    %v5498 = vpack.c.bf16 %v5495, %v5494
    %v5499 = vpack.c.bf16 %v5497, %v5496
    %v5501 = vsel %vm1093, %v5498, 0
    %v5504 = vsel %vm1093, %v5499, 0
    %5506 = vmatprep.subr.bf16.mxu0 0
    %5507 = vmatpush1.bf16.msra.mxu0 %v4682
    %5508 = vmatprep.subr.bf16.mxu0 0
    %5509 = vmatpush1.bf16.msra.mxu0 %v4683
    %5510 = vmatprep.subr.bf16.mxu0 0
    %5511 = vmatpush1.bf16.msra.mxu0 0
    %5512 = vmatprep.subr.bf16.mxu0 0
    %5513 = vmatpush1.bf16.msra.mxu0 0
    %5514 = vmatprep.subr.bf16.mxu0 0
    %5515 = vmatpush1.bf16.msra.mxu0 0
    %5516 = vmatprep.subr.bf16.mxu0 0
    %5517 = vmatpush1.bf16.msra.mxu0 0
    %5518 = vmatprep.subr.bf16.mxu0 0
    %5519 = vmatpush1.bf16.msra.mxu0 0
    %5520 = vmatprep.subr.bf16.mxu0 0
    %5521 = vmatpush1.bf16.msra.mxu0 0
    %5522 = vmatprep.subr.bf16.mxu0 0
    %5523 = vmatpush1.bf16.msra.mxu0 0
    %5524 = vmatprep.subr.bf16.mxu0 0
    %5525 = vmatpush1.bf16.msra.mxu0 0
    %5526 = vmatprep.subr.bf16.mxu0 0
    %5527 = vmatpush1.bf16.msra.mxu0 0
    %5528 = vmatprep.subr.bf16.mxu0 0
    %5529 = vmatpush1.bf16.msra.mxu0 0
    %5530 = vmatprep.subr.bf16.mxu0 0
    %5531 = vmatpush1.bf16.msra.mxu0 0
    %5532 = vmatprep.subr.bf16.mxu0 0
    %5533 = vmatpush1.bf16.msra.mxu0 0
    %5534 = vmatprep.subr.bf16.mxu0 0
    %5535 = vmatpush1.bf16.msra.mxu0 0
    %5536 = vmatprep.subr.bf16.mxu0 0
    %5537 = vmatpush1.bf16.msra.mxu0 0
    %5538 = vmatprep.mubr.bf16.mxu0 0
    %5539 = vmatmul.mubr.bf16.gmra.mrb[0].mxu0 %v5501
    %v5540 = vpop.f32.mrb[0].mxu0
    %v5541 = vadd.f32 0.0, %v5540
    %v5542 = vpop.f32.mrb[0].mxu0
    %v5543 = vpop.f32.mrb[0].mxu0
    %v5544 = vadd.f32 0.0, %v5543
    %v5545 = vpop.f32.mrb[0].mxu0
    %5546 = vmatprep.mubr.bf16.mxu0 0
    %5547 = vmatmul.mubr.bf16.gmra.mrb[0].mxu0 %v5504
    %v5548 = vpop.f32.mrb[0].mxu0
    %v5549 = vadd.f32 0.0, %v5548
    %v5550 = vpop.f32.mrb[0].mxu0
    %v5551 = vpop.f32.mrb[0].mxu0
    %v5552 = vadd.f32 0.0, %v5551
    %v5553 = vpop.f32.mrb[0].mxu0
    %5554 = vdwg.mxu0
    %v5555 = vadd.f32 %v4507, %v5541
    %v5556 = vadd.f32 %v4508, %v5544
    %v5557 = vadd.f32 %v4509, %v5549
    %v5558 = vadd.f32 %v4510, %v5552
    %v5559 = vadd.f32 %v5555, %v4749
    %v5560 = vadd.f32 %v5556, %v4749
    %v5561 = vadd.f32 %v5557, %v4749
    %v5562 = vadd.f32 %v5558, %v4749
    %v5563 = vld [vmem:[%s25] sm:$0x1]
    %v5565 = vlaneseq
    %v5566 = vshrl.u32 %v5565, 7
    %v5567 = vsub.s32 0, %v5566
    %v5568 = vrot.slane %v5563, %v5567
    %v5570 = vadd.f32 %v4751, %v5568
    %v5571 = vadd.f32 %v4752, %v5568
    %v5572 = vadd.f32 %v4753, %v5568
    %v5573 = vadd.f32 %v4754, %v5568
    %v5574 = vld [vmem:[%s24] sm:$0xf]
    %v5575 = vld [vmem:[%s24 + $0x4] sm:$0xf]
    %v5576 = vpack.c.bf16 %v4954, %v4953
    %v5577 = vpack.c.bf16 %v4956, %v4955
    %v5580 = vunpack.c.l.b16 %v5574
    %v5581 = vunpack.c.l.b16 %v5575
    %v5582 = vpack.c.b16 %v5581, %v5580
    %v5585 = vsel %vm176, %v5576, 0
    %v5588 = vsel %vm176, %v5577, 0
    %5590 = vmatprep.subr.bf16.mxu0 0
    %5591 = vmatpush1.bf16.msra.mxu0 %v5582
    %5592 = vmatprep.subr.bf16.mxu0 0
    %5593 = vmatpush1.bf16.msra.mxu0 0
    %5594 = vmatprep.subr.bf16.mxu0 0
    %5595 = vmatpush1.bf16.msra.mxu0 0
    %5596 = vmatprep.subr.bf16.mxu0 0
    %5597 = vmatpush1.bf16.msra.mxu0 0
    %5598 = vmatprep.subr.bf16.mxu0 0
    %5599 = vmatpush1.bf16.msra.mxu0 0
    %5600 = vmatprep.subr.bf16.mxu0 0
    %5601 = vmatpush1.bf16.msra.mxu0 0
    %5602 = vmatprep.subr.bf16.mxu0 0
    %5603 = vmatpush1.bf16.msra.mxu0 0
    %5604 = vmatprep.subr.bf16.mxu0 0
    %5605 = vmatpush1.bf16.msra.mxu0 0
    %5606 = vmatprep.subr.bf16.mxu0 0
    %5607 = vmatpush1.bf16.msra.mxu0 0
    %5608 = vmatprep.subr.bf16.mxu0 0
    %5609 = vmatpush1.bf16.msra.mxu0 0
    %5610 = vmatprep.subr.bf16.mxu0 0
    %5611 = vmatpush1.bf16.msra.mxu0 0
    %5612 = vmatprep.subr.bf16.mxu0 0
    %5613 = vmatpush1.bf16.msra.mxu0 0
    %5614 = vmatprep.subr.bf16.mxu0 0
    %5615 = vmatpush1.bf16.msra.mxu0 0
    %5616 = vmatprep.subr.bf16.mxu0 0
    %5617 = vmatpush1.bf16.msra.mxu0 0
    %5618 = vmatprep.subr.bf16.mxu0 0
    %5619 = vmatpush1.bf16.msra.mxu0 0
    %5620 = vmatprep.subr.bf16.mxu0 0
    %5621 = vmatpush1.bf16.msra.mxu0 0
    %5622 = vmatprep.mubr.bf16.mxu0 0
    %5623 = vmatmul.mubr.bf16.gmra.mrb[0].mxu0 %v5585
    %v5624 = vpop.f32.mrb[0].mxu0
    %v5625 = vadd.f32 0.0, %v5624
    %v5626 = vpop.f32.mrb[0].mxu0
    %v5627 = vpop.f32.mrb[0].mxu0
    %v5628 = vadd.f32 0.0, %v5627
    %v5629 = vpop.f32.mrb[0].mxu0
    %5630 = vmatprep.mubr.bf16.mxu0 0
    %5631 = vmatmul.mubr.bf16.gmra.mrb[0].mxu0 %v5588
    %v5632 = vpop.f32.mrb[0].mxu0
    %v5633 = vadd.f32 0.0, %v5632
    %v5634 = vpop.f32.mrb[0].mxu0
    %v5635 = vpop.f32.mrb[0].mxu0
    %v5636 = vadd.f32 0.0, %v5635
    %v5637 = vpop.f32.mrb[0].mxu0
    %5638 = vdwg.mxu0
    %v5639 = vadd.f32 %v5570, %v5625
    %v5640 = vadd.f32 %v5571, %v5628
    %v5641 = vadd.f32 %v5572, %v5633
    %v5642 = vadd.f32 %v5573, %v5636
    %s5643 = scalar_lea.vmem %s24, 8
    %v5644 = vld [vmem:[%s5643] sm:$0xf]
    %v5645 = vld [vmem:[%s5643 + $0x4] sm:$0xf]
    %v5646 = vpack.c.bf16 %v5156, %v5155
    %v5647 = vpack.c.bf16 %v5158, %v5157
    %v5650 = vunpack.c.l.b16 %v5644
    %v5651 = vunpack.c.l.b16 %v5645
    %v5652 = vpack.c.b16 %v5651, %v5650
    %v5655 = vsel %vm176, %v5646, 0
    %v5658 = vsel %vm176, %v5647, 0
    %5660 = vmatprep.subr.bf16.mxu0 0
    %5661 = vmatpush1.bf16.msra.mxu0 %v5652
    %5662 = vmatprep.subr.bf16.mxu0 0
    %5663 = vmatpush1.bf16.msra.mxu0 0
    %5664 = vmatprep.subr.bf16.mxu0 0
    %5665 = vmatpush1.bf16.msra.mxu0 0
    %5666 = vmatprep.subr.bf16.mxu0 0
    %5667 = vmatpush1.bf16.msra.mxu0 0
    %5668 = vmatprep.subr.bf16.mxu0 0
    %5669 = vmatpush1.bf16.msra.mxu0 0
    %5670 = vmatprep.subr.bf16.mxu0 0
    %5671 = vmatpush1.bf16.msra.mxu0 0
    %5672 = vmatprep.subr.bf16.mxu0 0
    %5673 = vmatpush1.bf16.msra.mxu0 0
    %5674 = vmatprep.subr.bf16.mxu0 0
    %5675 = vmatpush1.bf16.msra.mxu0 0
    %5676 = vmatprep.subr.bf16.mxu0 0
    %5677 = vmatpush1.bf16.msra.mxu0 0
    %5678 = vmatprep.subr.bf16.mxu0 0
    %5679 = vmatpush1.bf16.msra.mxu0 0
    %5680 = vmatprep.subr.bf16.mxu0 0
    %5681 = vmatpush1.bf16.msra.mxu0 0
    %5682 = vmatprep.subr.bf16.mxu0 0
    %5683 = vmatpush1.bf16.msra.mxu0 0
    %5684 = vmatprep.subr.bf16.mxu0 0
    %5685 = vmatpush1.bf16.msra.mxu0 0
    %5686 = vmatprep.subr.bf16.mxu0 0
    %5687 = vmatpush1.bf16.msra.mxu0 0
    %5688 = vmatprep.subr.bf16.mxu0 0
    %5689 = vmatpush1.bf16.msra.mxu0 0
    %5690 = vmatprep.subr.bf16.mxu0 0
    %5691 = vmatpush1.bf16.msra.mxu0 0
    %5692 = vmatprep.mubr.bf16.mxu0 0
    %5693 = vmatmul.mubr.bf16.gmra.mrb[0].mxu0 %v5655
    %v5694 = vpop.f32.mrb[0].mxu0
    %v5695 = vadd.f32 0.0, %v5694
    %v5696 = vpop.f32.mrb[0].mxu0
    %v5697 = vpop.f32.mrb[0].mxu0
    %v5698 = vadd.f32 0.0, %v5697
    %v5699 = vpop.f32.mrb[0].mxu0
    %5700 = vmatprep.mubr.bf16.mxu0 0
    %5701 = vmatmul.mubr.bf16.gmra.mrb[0].mxu0 %v5658
    %v5702 = vpop.f32.mrb[0].mxu0
    %v5703 = vadd.f32 0.0, %v5702
    %v5704 = vpop.f32.mrb[0].mxu0
    %v5705 = vpop.f32.mrb[0].mxu0
    %v5706 = vadd.f32 0.0, %v5705
    %v5707 = vpop.f32.mrb[0].mxu0
    %5708 = vdwg.mxu0
    %v5709 = vadd.f32 %v5639, %v5695
    %v5710 = vadd.f32 %v5640, %v5698
    %v5711 = vadd.f32 %v5641, %v5703
    %v5712 = vadd.f32 %v5642, %v5706
    %s5713 = scalar_lea.vmem %s24, 16
    %v5714 = vld [vmem:[%s5713] sm:$0xf]
    %v5715 = vld [vmem:[%s5713 + $0x4] sm:$0xf]
    %v5716 = vpack.c.bf16 %v5358, %v5357
    %v5717 = vpack.c.bf16 %v5360, %v5359
    %v5720 = vunpack.c.l.b16 %v5714
    %v5721 = vunpack.c.l.b16 %v5715
    %v5722 = vpack.c.b16 %v5721, %v5720
    %v5725 = vsel %vm176, %v5716, 0
    %v5728 = vsel %vm176, %v5717, 0
    %5730 = vmatprep.subr.bf16.mxu0 0
    %5731 = vmatpush1.bf16.msra.mxu0 %v5722
    %5732 = vmatprep.subr.bf16.mxu0 0
    %5733 = vmatpush1.bf16.msra.mxu0 0
    %5734 = vmatprep.subr.bf16.mxu0 0
    %5735 = vmatpush1.bf16.msra.mxu0 0
    %5736 = vmatprep.subr.bf16.mxu0 0
    %5737 = vmatpush1.bf16.msra.mxu0 0
    %5738 = vmatprep.subr.bf16.mxu0 0
    %5739 = vmatpush1.bf16.msra.mxu0 0
    %5740 = vmatprep.subr.bf16.mxu0 0
    %5741 = vmatpush1.bf16.msra.mxu0 0
    %5742 = vmatprep.subr.bf16.mxu0 0
    %5743 = vmatpush1.bf16.msra.mxu0 0
    %5744 = vmatprep.subr.bf16.mxu0 0
    %5745 = vmatpush1.bf16.msra.mxu0 0
    %5746 = vmatprep.subr.bf16.mxu0 0
    %5747 = vmatpush1.bf16.msra.mxu0 0
    %5748 = vmatprep.subr.bf16.mxu0 0
    %5749 = vmatpush1.bf16.msra.mxu0 0
    %5750 = vmatprep.subr.bf16.mxu0 0
    %5751 = vmatpush1.bf16.msra.mxu0 0
    %5752 = vmatprep.subr.bf16.mxu0 0
    %5753 = vmatpush1.bf16.msra.mxu0 0
    %5754 = vmatprep.subr.bf16.mxu0 0
    %5755 = vmatpush1.bf16.msra.mxu0 0
    %5756 = vmatprep.subr.bf16.mxu0 0
    %5757 = vmatpush1.bf16.msra.mxu0 0
    %5758 = vmatprep.subr.bf16.mxu0 0
    %5759 = vmatpush1.bf16.msra.mxu0 0
    %5760 = vmatprep.subr.bf16.mxu0 0
    %5761 = vmatpush1.bf16.msra.mxu0 0
    %5762 = vmatprep.mubr.bf16.mxu0 0
    %5763 = vmatmul.mubr.bf16.gmra.mrb[0].mxu0 %v5725
    %v5764 = vpop.f32.mrb[0].mxu0
    %v5765 = vadd.f32 0.0, %v5764
    %v5766 = vpop.f32.mrb[0].mxu0
    %v5767 = vpop.f32.mrb[0].mxu0
    %v5768 = vadd.f32 0.0, %v5767
    %v5769 = vpop.f32.mrb[0].mxu0
    %5770 = vmatprep.mubr.bf16.mxu0 0
    %5771 = vmatmul.mubr.bf16.gmra.mrb[0].mxu0 %v5728
    %v5772 = vpop.f32.mrb[0].mxu0
    %v5773 = vadd.f32 0.0, %v5772
    %v5774 = vpop.f32.mrb[0].mxu0
    %v5775 = vpop.f32.mrb[0].mxu0
    %v5776 = vadd.f32 0.0, %v5775
    %v5777 = vpop.f32.mrb[0].mxu0
    %5778 = vdwg.mxu0
    %v5779 = vadd.f32 %v5709, %v5765
    %v5780 = vadd.f32 %v5710, %v5768
    %v5781 = vadd.f32 %v5711, %v5773
    %v5782 = vadd.f32 %v5712, %v5776
    %s5783 = scalar_lea.vmem %s24, 24
    %v5784 = vld [vmem:[%s5783] sm:$0xf]
    %v5785 = vld [vmem:[%s5783 + $0x4] sm:$0xf]
    %v5786 = vpack.c.bf16 %v5560, %v5559
    %v5787 = vpack.c.bf16 %v5562, %v5561
    %v5790 = vunpack.c.l.b16 %v5784
    %v5791 = vunpack.c.l.b16 %v5785
    %v5792 = vpack.c.b16 %v5791, %v5790
    %v5795 = vsel %vm176, %v5786, 0
    %v5798 = vsel %vm176, %v5787, 0
    %5800 = vmatprep.subr.bf16.mxu0 0
    %5801 = vmatpush1.bf16.msra.mxu0 %v5792
    %5802 = vmatprep.subr.bf16.mxu0 0
    %5803 = vmatpush1.bf16.msra.mxu0 0
    %5804 = vmatprep.subr.bf16.mxu0 0
    %5805 = vmatpush1.bf16.msra.mxu0 0
    %5806 = vmatprep.subr.bf16.mxu0 0
    %5807 = vmatpush1.bf16.msra.mxu0 0
    %5808 = vmatprep.subr.bf16.mxu0 0
    %5809 = vmatpush1.bf16.msra.mxu0 0
    %5810 = vmatprep.subr.bf16.mxu0 0
    %5811 = vmatpush1.bf16.msra.mxu0 0
    %5812 = vmatprep.subr.bf16.mxu0 0
    %5813 = vmatpush1.bf16.msra.mxu0 0
    %5814 = vmatprep.subr.bf16.mxu0 0
    %5815 = vmatpush1.bf16.msra.mxu0 0
    %5816 = vmatprep.subr.bf16.mxu0 0
    %5817 = vmatpush1.bf16.msra.mxu0 0
    %5818 = vmatprep.subr.bf16.mxu0 0
    %5819 = vmatpush1.bf16.msra.mxu0 0
    %5820 = vmatprep.subr.bf16.mxu0 0
    %5821 = vmatpush1.bf16.msra.mxu0 0
    %5822 = vmatprep.subr.bf16.mxu0 0
    %5823 = vmatpush1.bf16.msra.mxu0 0
    %5824 = vmatprep.subr.bf16.mxu0 0
    %5825 = vmatpush1.bf16.msra.mxu0 0
    %5826 = vmatprep.subr.bf16.mxu0 0
    %5827 = vmatpush1.bf16.msra.mxu0 0
    %5828 = vmatprep.subr.bf16.mxu0 0
    %5829 = vmatpush1.bf16.msra.mxu0 0
    %5830 = vmatprep.subr.bf16.mxu0 0
    %5831 = vmatpush1.bf16.msra.mxu0 0
    %5832 = vmatprep.mubr.bf16.mxu0 0
    %5833 = vmatmul.mubr.bf16.gmra.mrb[0].mxu0 %v5795
    %v5834 = vpop.f32.mrb[0].mxu0
    %v5835 = vadd.f32 0.0, %v5834
    %v5836 = vpop.f32.mrb[0].mxu0
    %v5837 = vpop.f32.mrb[0].mxu0
    %v5838 = vadd.f32 0.0, %v5837
    %v5839 = vpop.f32.mrb[0].mxu0
    %5840 = vmatprep.mubr.bf16.mxu0 0
    %5841 = vmatmul.mubr.bf16.gmra.mrb[0].mxu0 %v5798
    %v5842 = vpop.f32.mrb[0].mxu0
    %v5843 = vadd.f32 0.0, %v5842
    %v5844 = vpop.f32.mrb[0].mxu0
    %v5845 = vpop.f32.mrb[0].mxu0
    %v5846 = vadd.f32 0.0, %v5845
    %v5847 = vpop.f32.mrb[0].mxu0
    %5848 = vdwg.mxu0
    %v5849 = vadd.f32 %v5779, %v5835
    %v5850 = vadd.f32 %v5780, %v5838
    %v5851 = vadd.f32 %v5781, %v5843
    %v5852 = vadd.f32 %v5782, %v5846
    %5853 = vst.msk [vmem:[#allocation4] sm:$0xff] %vm176, %v5849
    %5854 = vst.msk [vmem:[#allocation4 + $0x8] sm:$0xff] %vm176, %v5850
    %5855 = vst.msk [vmem:[#allocation4 + $0x10] sm:$0xff] %vm176, %v5851
    %5856 = vst.msk [vmem:[#allocation4 + $0x18] sm:$0xff] %vm176, %v5852
    // Predicated region
    $region106: #{msfa_forward.1} parent=1 // pred_check
      _
    $region107: #{msfa_forward.1} parent=1 // pred_check_branch
      %5858 = sbr.rel (0) target = $region109
    $region108: #{msfa_forward.1} parent=1 // pred_region
      %s5860 = ssub.s32 512, 512
      %5861 = vsyncadd [#allocation3], %s5860
      %s5862 = sshll.u32 [#allocation2], 4
      %s5863 = int_to_ptr.vmem [resolvable:$true] %s5862
      %5868 = dma.vmem_to_hbm [thread:$0]  %s5863, 512, %s26, [#allocation3], 128, 128, 8
    $region109: #{msfa_forward.1} parent=1 // pred_fallthru
      _
    // Predicated region
    $region110: #{msfa_forward.1} parent=1 // pred_check
      _
    $region111: #{msfa_forward.1} parent=1 // pred_check_branch
      %5870 = sbr.rel (0) target = $region113
    $region112: #{msfa_forward.1} parent=1 // pred_region
      %s5872 = ssub.s32 512, 512
      %5873 = vsyncadd [#allocation5], %s5872
      %s5874 = sshll.u32 [#allocation4], 4
      %s5875 = int_to_ptr.vmem [resolvable:$true] %s5874
      %5880 = dma.vmem_to_hbm [thread:$0]  %s5875, 512, %s27, [#allocation5], 128, 128, 8
    $region113: #{msfa_forward.1} parent=1 // pred_fallthru
      _
    // Predicated region
    $region114: #{msfa_forward.1} parent=1 // pred_check
      _
    $region115: #{msfa_forward.1} parent=1 // pred_check_branch
      %5882 = sbr.rel (0) target = $region117
    $region116: #{msfa_forward.1} parent=1 // pred_region
      %5883 = dma.done [#allocation3], 512
    $region117: #{msfa_forward.1} parent=1 // pred_fallthru
      _
    // Predicated region
    $region118: #{msfa_forward.1} parent=1 // pred_check
      _
    $region119: #{msfa_forward.1} parent=1 // pred_check_branch
      %5885 = sbr.rel (0) target = $region121
    $region120: #{msfa_forward.1} parent=1 // pred_region
      %5886 = dma.done [#allocation5], 512
    $region121: #{msfa_forward.1} parent=1 // pred_fallthru
      _
    %5887 = vsyncpa [#allocation3], 1
    %5888 = vsyncpa [#allocation5], 1

</llo_original>
